<compile_context>
chip_gen: v6e
topology: v6e:2x2x1
jax: 0.10.0
libtpu: 0.0.40
codegen_flags: <defaults>
</compile_context>

<pallas_src>
import jax
import jax.numpy as jnp
from jax.experimental import pallas as pl
from jax.experimental.pallas import tpu as pltpu


# ------------------------------ fused kernel ----------------------------------

def _deep_conv_lstm_kernel(
        x_ref,              # (T*N, 1)   time-major conv input, row = t*N + c*B + b
        w1_ref, b1_ref,     # (K, 1, CK), (1, CK)
        w2_ref, b2_ref,     # (K, CK, CK), (1, CK)
        w3_ref, b3_ref,     # (K, CK, CK), (1, CK)
        w4_ref, b4_ref,     # (K, CK, CK), (1, CK)
        wih0c_ref,          # (CK, C*4H)  block-rearranged W_ih^0
        whh0_ref,           # (H, 4H)
        b0_ref,             # (1, 4H)     (= bias_ih_l0 + bias_hh_l0)
        w1cat_ref,          # (2H, 4H)    [W_ih^1; W_hh^1]
        b1l_ref,            # (1, 4H)     (= bias_ih_l1 + bias_hh_l1)
        o_ref,              # (B, H)      last-step hidden state of LSTM layer 2
):
    B, H = o_ref.shape
    H4 = 4 * H
    K = w1_ref.shape[0]
    CK = w1_ref.shape[2]
    C = wih0c_ref.shape[1] // H4
    N = B * C
    T = x_ref.shape[0] // N

    # ---- conv1 + ReLU (IC == 1: broadcast multiply, avoids a degenerate K=1 matmul) ----
    x2 = x_ref[...]                                        # (T*N, 1)
    rows = (T - (K - 1)) * N
    acc = jnp.zeros((rows, CK), jnp.float32)
    for dk in range(K):
        acc = acc + x2[dk * N: dk * N + rows, :] * w1_ref[dk]      # (rows,1) * (1,CK)
    a = jnp.maximum(acc + b1_ref[...], 0.0)

    # ---- conv2..conv4 + ReLU: K static shifted row slices, VMEM-resident matmuls ----
    def conv_relu(a_in, w_ref, b_ref):
        kk, _, oc = w_ref.shape
        r_out = a_in.shape[0] - (kk - 1) * N
        acc_l = jnp.zeros((r_out, oc), jnp.float32)
        for d in range(kk):
            acc_l = acc_l + jnp.dot(a_in[d * N: d * N + r_out, :], w_ref[d],
                                    preferred_element_type=jnp.float32)
        return jnp.maximum(acc_l + b_ref[...], 0.0)

    a = conv_relu(a, w2_ref, b2_ref)
    a = conv_relu(a, w3_ref, b3_ref)
    a = conv_relu(a, w4_ref, b4_ref)                       # (T4*N, CK)
    T4 = a.shape[0] // N

    # ---- LSTM layer 0 input projection, hoisted off the recurrent critical path ----
    # proj[t*N + c*B + b, c*4H + j] is this row's contribution to gate j of step t.
    proj = jnp.dot(a, wih0c_ref[...], preferred_element_type=jnp.float32)  # (T4*N, C*4H)

    b0 = b0_ref[...]
    b1l = b1l_ref[...]
    whh0 = whh0_ref[...]
    w1cat = w1cat_ref[...]

    # Per-step gate inputs gathered BEFORE the serial recurrence (all slices aligned:
    # row offsets are multiples of B, column offsets multiples of 4H).
    gx_steps = []
    for t in range(T4):
        gx = b0
        for c in range(C):
            r0 = t * N + c * B
            gx = gx + proj[r0:r0 + B, c * H4:(c + 1) * H4]
        gx_steps.append(gx)                                # each (B, 4H)

    def gate_update(g, c_prev):
        # full 128-lane activation passes, then cheap static slices (PyTorch order i,f,g,o)
        s = jax.nn.sigmoid(g)
        th = jnp.tanh(g)
        i_g = s[:, 0 * H:1 * H]
        f_g = s[:, 1 * H:2 * H]
        g_g = th[:, 2 * H:3 * H]
        o_g = s[:, 3 * H:4 * H]
        c_new = f_g * c_prev + i_g * g_g
        h_new = o_g * jnp.tanh(c_new)
        return h_new, c_new

    h0 = jnp.zeros((B, H), jnp.float32)
    c0 = jnp.zeros((B, H), jnp.float32)
    h1 = jnp.zeros((B, H), jnp.float32)
    c1 = jnp.zeros((B, H), jnp.float32)

    # T4 is small and static at trace time -> fully unrolled serial recurrence;
    # only two small matmuls + activations per step remain on the critical path.
    for t in range(T4):
        g0 = gx_steps[t] + jnp.dot(h0, whh0, preferred_element_type=jnp.float32)
        h0, c0 = gate_update(g0, c0)
        g1 = jnp.dot(jnp.concatenate([h0, h1], axis=1), w1cat,
                     preferred_element_type=jnp.float32) + b1l
        h1, c1 = gate_update(g1, c1)

    o_ref[...] = h1


# ------------------------------ wrapper ----------------------------------------

def deep_conv_lstm_forward(x, params, kernel_size=5):
    """x: (B, T, C) float32 (torch input before unsqueeze(1)). Returns (None, feats)."""
    B, T, C = x.shape
    K = kernel_size
    CK = params["conv1_w"].shape[2]
    H = params["whh0"].shape[0]
    H4 = 4 * H
    N = B * C
    T4 = T - 4 * (K - 1)
    assert T4 >= 1, "sequence too short for four valid (K,1) convolutions"

    # time-major, channel-folded conv input: row t*N + c*B + b  <-  x[b, t, c]
    x2 = jnp.transpose(x, (1, 2, 0)).reshape(T * N, 1)

    # block-rearranged layer-0 input weights: wih0c[k, c*4H + j] = wih0[c*CK + k, j]
    wih0c = jnp.transpose(params["wih0"].reshape(C, CK, H4), (1, 0, 2)).reshape(CK, C * H4)
    # fused layer-1 weights: [h0_t, h1_{t-1}] @ [Wih1; Whh1]
    w1cat = jnp.concatenate([params["wih1"], params["whh1"]], axis=0)

    operands = (
        x2,
        params["conv1_w"], params["conv1_b"],
        params["conv2_w"], params["conv2_b"],
        params["conv3_w"], params["conv3_b"],
        params["conv4_w"], params["conv4_b"],
        wih0c, params["whh0"], params["b0"],
        w1cat, params["b1"],
    )

    # rough scheduling hint for XLA
    flops = 2 * (T - (K - 1)) * N * K * CK                      # conv1 (IC=1)
    rows = (T - (K - 1)) * N
    for _ in range(3):                                          # conv2..conv4
        rows -= (K - 1) * N
        flops += 2 * rows * K * CK * CK
    flops += 2 * (T4 * N) * CK * (C * H4)                       # hoisted input projection
    flops += T4 * (2 * B * H * H4 + 2 * B * (2 * H) * H4)       # recurrent matmuls
    transcendentals = T4 * 2 * (2 * B * H4 + B * H)
    bytes_accessed = 4 * (sum(int(op.size) for op in operands) + B * H)

    feats = pl.pallas_call(
        _deep_conv_lstm_kernel,
        out_shape=jax.ShapeDtypeStruct((B, H), jnp.float32),
        in_specs=[pl.BlockSpec(memory_space=pltpu.MemorySpace.VMEM)] * len(operands),
        out_specs=pl.BlockSpec(memory_space=pltpu.MemorySpace.VMEM),
        compiler_params=pltpu.CompilerParams(vmem_limit_bytes=32 * 1024 * 1024),
        cost_estimate=pl.CostEstimate(flops=int(flops),
                                      transcendentals=int(transcendentals),
                                      bytes_accessed=int(bytes_accessed)),
    )(*operands)

    # TODO(synk): nn.Dropout(0.5) is identity in eval mode and lstm.flatten_parameters()
    # is a no-op for the math; neither is lowered.
    # TODO(synk): classifier / regressor heads (backbone=False / regress=True) are not
    # implemented; this is the backbone=True branch returning (None, features).
    return None, feats


# ------------------------------ params + reference -----------------------------

def init_params(key, n_channels, conv_kernels, kernel_size, lstm_units):
    """Random parameters in the kernel's layout.

    Mapping from torch:  conv{i}_w[dk, ic, oc] = conv{i}.weight[oc, ic, dk, 0]
                         conv{i}_b[0, oc]      = conv{i}.bias[oc]
                         wih{l} = lstm.weight_ih_l{l}.T ; whh{l} = lstm.weight_hh_l{l}.T
                         b{l}   = (lstm.bias_ih_l{l} + lstm.bias_hh_l{l})[None, :]
    """
    CK, K, H = conv_kernels, kernel_size, lstm_units
    D = n_channels * CK
    keys = iter(jax.random.split(key, 16))

    def norm(shape, scale):
        return scale * jax.random.normal(next(keys), shape, jnp.float32)

    p = {}
    p["conv1_w"] = norm((K, 1, CK), K ** -0.5)
    p["conv1_b"] = norm((1, CK), 0.1)
    for i in (2, 3, 4):
        p[f"conv{i}_w"] = norm((K, CK, CK), (K * CK) ** -0.5)
        p[f"conv{i}_b"] = norm((1, CK), 0.1)
    p["wih0"] = norm((D, 4 * H), D ** -0.5)
    p["whh0"] = norm((H, 4 * H), H ** -0.5)
    p["b0"] = norm((1, 4 * H), 0.1)
    p["wih1"] = norm((H, 4 * H), H ** -0.5)
    p["whh1"] = norm((H, 4 * H), H ** -0.5)
    p["b1"] = norm((1, 4 * H), 0.1)
    return p


def reference_forward(x, params, kernel_size=5):
    """Pure-JAX (no Pallas) reference implementing the module math directly."""
    B, T, C = x.shape
    K = kernel_size
    a = jnp.transpose(x, (0, 2, 1)).reshape(B * C, T, 1)     # (N, T, 1), n = b*C + c

    def conv(a_in, w, b):
        kk = w.shape[0]
        t_out = a_in.shape[1] - kk + 1
        acc = jnp.zeros((a_in.shape[0], t_out, w.shape[2]), jnp.float32)
        for dk in range(kk):
            acc = acc + jnp.einsum("nti,io->nto", a_in[:, dk:dk + t_out, :], w[dk])
        return jnp.maximum(acc + b[0], 0.0)

    for i in (1, 2, 3, 4):
        a = conv(a, params[f"conv{i}_w"], params[f"conv{i}_b"])
    _, T4, CK = a.shape
    # torch: (B, CK, T4, C).permute(2, 0, 3, 1).reshape(T4, B, C*CK)
    seq = a.reshape(B, C, T4, CK).transpose(2, 0, 1, 3).reshape(T4, B, C * CK)

    H = params["whh0"].shape[0]

    def cell(xt, h, c, wih, whh, bias):
        g = xt @ wih + h @ whh + bias
        i_g = jax.nn.sigmoid(g[:, 0 * H:1 * H])
        f_g = jax.nn.sigmoid(g[:, 1 * H:2 * H])
        g_g = jnp.tanh(g[:, 2 * H:3 * H])
        o_g = jax.nn.sigmoid(g[:, 3 * H:4 * H])
        c_new = f_g * c + i_g * g_g
        return o_g * jnp.tanh(c_new), c_new

    h0 = c0 = h1 = c1 = jnp.zeros((B, H), jnp.float32)
    for t in range(T4):
        h0, c0 = cell(seq[t], h0, c0, params["wih0"], params["whh0"], params["b0"])
        h1, c1 = cell(h0, h1, c1, params["wih1"], params["whh1"], params["b1"])
    return h1


# ------------------------------ main --------------------------------------------

if __name__ == "__main__":
    # B chosen so that B and N = B*C are multiples of 8 -> every in-kernel row slice
    # (conv im2col shifts and per-step gate-input gathers) is sublane-aligned.
    B, T, C = 8, 24, 4          # batch, sequence length, sensor channels
    CK, K, H = 16, 5, 32        # conv_kernels, kernel_size, LSTM_units (small test sizes)

    key = jax.random.PRNGKey(0)
    kx, kp = jax.random.split(key)
    x = jax.random.normal(kx, (B, T, C), jnp.float32)
    params = init_params(kp, C, CK, K, H)

    fwd = jax.jit(lambda xx: deep_conv_lstm_forward(xx, params, kernel_size=K))
    none_out, feats = fwd(x)
    feats = jax.block_until_ready(feats)

    assert none_out is None
    assert feats.shape == (B, H), feats.shape

    ref = reference_forward(x, params, kernel_size=K)
    err = float(jnp.max(jnp.abs(feats - ref)))
    assert err < 1e-2, err

    print("KERNEL_OK")
</pallas_src>

<mosaic_0001>
module attributes {stable_mosaic.version = 11 : i64} {
  func.func @_deep_conv_lstm_kernel(%arg0: memref<768x1xf32, #tpu.memory_space<vmem>>, %arg1: memref<5x1x16xf32, #tpu.memory_space<vmem>>, %arg2: memref<1x16xf32, #tpu.memory_space<vmem>>, %arg3: memref<5x16x16xf32, #tpu.memory_space<vmem>>, %arg4: memref<1x16xf32, #tpu.memory_space<vmem>>, %arg5: memref<5x16x16xf32, #tpu.memory_space<vmem>>, %arg6: memref<1x16xf32, #tpu.memory_space<vmem>>, %arg7: memref<5x16x16xf32, #tpu.memory_space<vmem>>, %arg8: memref<1x16xf32, #tpu.memory_space<vmem>>, %arg9: memref<16x512xf32, #tpu.memory_space<vmem>>, %arg10: memref<32x128xf32, #tpu.memory_space<vmem>>, %arg11: memref<1x128xf32, #tpu.memory_space<vmem>>, %arg12: memref<64x128xf32, #tpu.memory_space<vmem>>, %arg13: memref<1x128xf32, #tpu.memory_space<vmem>>, %arg14: memref<8x32xf32, #tpu.memory_space<vmem>>) attributes {dimension_semantics = [], scalar_prefetch = 0 : i64, scratch_operands = 0 : i64, tpu.core_type = #tpu.core_type<tc>} {
    %c0 = arith.constant 0 : index
    %c0_0 = arith.constant 0 : index
    %0 = vector.load %arg0[%c0, %c0_0] : memref<768x1xf32, #tpu.memory_space<vmem>>, vector<768x1xf32>
    %cst = arith.constant 0.000000e+00 : f32
    %1 = vector.broadcast %cst : f32 to vector<640x16xf32>
    %2 = vector.extract_strided_slice %0 {offsets = [0, 0], sizes = [640, 1], strides = [1, 1]} : vector<768x1xf32> to vector<640x1xf32>
    %c0_1 = arith.constant 0 : index
    %c0_2 = arith.constant 0 : index
    %c0_3 = arith.constant 0 : index
    %3 = vector.load %arg1[%c0_1, %c0_2, %c0_3] : memref<5x1x16xf32, #tpu.memory_space<vmem>>, vector<1x1x16xf32>
    %4 = vector.shape_cast %3 : vector<1x1x16xf32> to vector<1x16xf32>
    %5 = vector.broadcast %2 : vector<640x1xf32> to vector<640x16xf32>
    %6 = vector.broadcast %4 : vector<1x16xf32> to vector<640x16xf32>
    %7 = arith.mulf %5, %6 : vector<640x16xf32>
    %8 = arith.addf %1, %7 : vector<640x16xf32>
    %9 = vector.extract_strided_slice %0 {offsets = [32, 0], sizes = [640, 1], strides = [1, 1]} : vector<768x1xf32> to vector<640x1xf32>
    %c1 = arith.constant 1 : index
    %c0_4 = arith.constant 0 : index
    %c0_5 = arith.constant 0 : index
    %10 = vector.load %arg1[%c1, %c0_4, %c0_5] : memref<5x1x16xf32, #tpu.memory_space<vmem>>, vector<1x1x16xf32>
    %11 = vector.shape_cast %10 : vector<1x1x16xf32> to vector<1x16xf32>
    %12 = vector.broadcast %9 : vector<640x1xf32> to vector<640x16xf32>
    %13 = vector.broadcast %11 : vector<1x16xf32> to vector<640x16xf32>
    %14 = arith.mulf %12, %13 : vector<640x16xf32>
    %15 = arith.addf %8, %14 : vector<640x16xf32>
    %16 = vector.extract_strided_slice %0 {offsets = [64, 0], sizes = [640, 1], strides = [1, 1]} : vector<768x1xf32> to vector<640x1xf32>
    %c2 = arith.constant 2 : index
    %c0_6 = arith.constant 0 : index
    %c0_7 = arith.constant 0 : index
    %17 = vector.load %arg1[%c2, %c0_6, %c0_7] : memref<5x1x16xf32, #tpu.memory_space<vmem>>, vector<1x1x16xf32>
    %18 = vector.shape_cast %17 : vector<1x1x16xf32> to vector<1x16xf32>
    %19 = vector.broadcast %16 : vector<640x1xf32> to vector<640x16xf32>
    %20 = vector.broadcast %18 : vector<1x16xf32> to vector<640x16xf32>
    %21 = arith.mulf %19, %20 : vector<640x16xf32>
    %22 = arith.addf %15, %21 : vector<640x16xf32>
    %23 = vector.extract_strided_slice %0 {offsets = [96, 0], sizes = [640, 1], strides = [1, 1]} : vector<768x1xf32> to vector<640x1xf32>
    %c3 = arith.constant 3 : index
    %c0_8 = arith.constant 0 : index
    %c0_9 = arith.constant 0 : index
    %24 = vector.load %arg1[%c3, %c0_8, %c0_9] : memref<5x1x16xf32, #tpu.memory_space<vmem>>, vector<1x1x16xf32>
    %25 = vector.shape_cast %24 : vector<1x1x16xf32> to vector<1x16xf32>
    %26 = vector.broadcast %23 : vector<640x1xf32> to vector<640x16xf32>
    %27 = vector.broadcast %25 : vector<1x16xf32> to vector<640x16xf32>
    %28 = arith.mulf %26, %27 : vector<640x16xf32>
    %29 = arith.addf %22, %28 : vector<640x16xf32>
    %30 = vector.extract_strided_slice %0 {offsets = [128, 0], sizes = [640, 1], strides = [1, 1]} : vector<768x1xf32> to vector<640x1xf32>
    %c4 = arith.constant 4 : index
    %c0_10 = arith.constant 0 : index
    %c0_11 = arith.constant 0 : index
    %31 = vector.load %arg1[%c4, %c0_10, %c0_11] : memref<5x1x16xf32, #tpu.memory_space<vmem>>, vector<1x1x16xf32>
    %32 = vector.shape_cast %31 : vector<1x1x16xf32> to vector<1x16xf32>
    %33 = vector.broadcast %30 : vector<640x1xf32> to vector<640x16xf32>
    %34 = vector.broadcast %32 : vector<1x16xf32> to vector<640x16xf32>
    %35 = arith.mulf %33, %34 : vector<640x16xf32>
    %36 = arith.addf %29, %35 : vector<640x16xf32>
    %c0_12 = arith.constant 0 : index
    %c0_13 = arith.constant 0 : index
    %37 = vector.load %arg2[%c0_12, %c0_13] : memref<1x16xf32, #tpu.memory_space<vmem>>, vector<1x16xf32>
    %38 = vector.broadcast %37 : vector<1x16xf32> to vector<640x16xf32>
    %39 = arith.addf %36, %38 : vector<640x16xf32>
    %cst_14 = arith.constant 0.000000e+00 : f32
    %40 = vector.broadcast %cst_14 : f32 to vector<640x16xf32>
    %41 = arith.maximumf %39, %40 : vector<640x16xf32>
    %cst_15 = arith.constant 0.000000e+00 : f32
    %42 = vector.broadcast %cst_15 : f32 to vector<512x16xf32>
    %43 = vector.extract_strided_slice %41 {offsets = [0, 0], sizes = [512, 16], strides = [1, 1]} : vector<640x16xf32> to vector<512x16xf32>
    %c0_16 = arith.constant 0 : index
    %c0_17 = arith.constant 0 : index
    %c0_18 = arith.constant 0 : index
    %44 = vector.load %arg3[%c0_16, %c0_17, %c0_18] : memref<5x16x16xf32, #tpu.memory_space<vmem>>, vector<1x16x16xf32>
    %45 = vector.shape_cast %44 : vector<1x16x16xf32> to vector<16x16xf32>
    %cst_19 = arith.constant dense<0.000000e+00> : vector<512x16xf32>
    %46 = tpu.matmul %43, %45, %cst_19 {dimension_numbers = #tpu.dot_dimension_numbers<[1], [0], [0], [1], [0, 0, 1, 1], [], []>} : vector<512x16xf32>, vector<16x16xf32>, vector<512x16xf32> -> vector<512x16xf32>
    %47 = arith.addf %42, %46 : vector<512x16xf32>
    %48 = vector.extract_strided_slice %41 {offsets = [32, 0], sizes = [512, 16], strides = [1, 1]} : vector<640x16xf32> to vector<512x16xf32>
    %c1_20 = arith.constant 1 : index
    %c0_21 = arith.constant 0 : index
    %c0_22 = arith.constant 0 : index
    %49 = vector.load %arg3[%c1_20, %c0_21, %c0_22] : memref<5x16x16xf32, #tpu.memory_space<vmem>>, vector<1x16x16xf32>
    %50 = vector.shape_cast %49 : vector<1x16x16xf32> to vector<16x16xf32>
    %cst_23 = arith.constant dense<0.000000e+00> : vector<512x16xf32>
    %51 = tpu.matmul %48, %50, %cst_23 {dimension_numbers = #tpu.dot_dimension_numbers<[1], [0], [0], [1], [0, 0, 1, 1], [], []>} : vector<512x16xf32>, vector<16x16xf32>, vector<512x16xf32> -> vector<512x16xf32>
    %52 = arith.addf %47, %51 : vector<512x16xf32>
    %53 = vector.extract_strided_slice %41 {offsets = [64, 0], sizes = [512, 16], strides = [1, 1]} : vector<640x16xf32> to vector<512x16xf32>
    %c2_24 = arith.constant 2 : index
    %c0_25 = arith.constant 0 : index
    %c0_26 = arith.constant 0 : index
    %54 = vector.load %arg3[%c2_24, %c0_25, %c0_26] : memref<5x16x16xf32, #tpu.memory_space<vmem>>, vector<1x16x16xf32>
    %55 = vector.shape_cast %54 : vector<1x16x16xf32> to vector<16x16xf32>
    %cst_27 = arith.constant dense<0.000000e+00> : vector<512x16xf32>
    %56 = tpu.matmul %53, %55, %cst_27 {dimension_numbers = #tpu.dot_dimension_numbers<[1], [0], [0], [1], [0, 0, 1, 1], [], []>} : vector<512x16xf32>, vector<16x16xf32>, vector<512x16xf32> -> vector<512x16xf32>
    %57 = arith.addf %52, %56 : vector<512x16xf32>
    %58 = vector.extract_strided_slice %41 {offsets = [96, 0], sizes = [512, 16], strides = [1, 1]} : vector<640x16xf32> to vector<512x16xf32>
    %c3_28 = arith.constant 3 : index
    %c0_29 = arith.constant 0 : index
    %c0_30 = arith.constant 0 : index
    %59 = vector.load %arg3[%c3_28, %c0_29, %c0_30] : memref<5x16x16xf32, #tpu.memory_space<vmem>>, vector<1x16x16xf32>
    %60 = vector.shape_cast %59 : vector<1x16x16xf32> to vector<16x16xf32>
    %cst_31 = arith.constant dense<0.000000e+00> : vector<512x16xf32>
    %61 = tpu.matmul %58, %60, %cst_31 {dimension_numbers = #tpu.dot_dimension_numbers<[1], [0], [0], [1], [0, 0, 1, 1], [], []>} : vector<512x16xf32>, vector<16x16xf32>, vector<512x16xf32> -> vector<512x16xf32>
    %62 = arith.addf %57, %61 : vector<512x16xf32>
    %63 = vector.extract_strided_slice %41 {offsets = [128, 0], sizes = [512, 16], strides = [1, 1]} : vector<640x16xf32> to vector<512x16xf32>
    %c4_32 = arith.constant 4 : index
    %c0_33 = arith.constant 0 : index
    %c0_34 = arith.constant 0 : index
    %64 = vector.load %arg3[%c4_32, %c0_33, %c0_34] : memref<5x16x16xf32, #tpu.memory_space<vmem>>, vector<1x16x16xf32>
    %65 = vector.shape_cast %64 : vector<1x16x16xf32> to vector<16x16xf32>
    %cst_35 = arith.constant dense<0.000000e+00> : vector<512x16xf32>
    %66 = tpu.matmul %63, %65, %cst_35 {dimension_numbers = #tpu.dot_dimension_numbers<[1], [0], [0], [1], [0, 0, 1, 1], [], []>} : vector<512x16xf32>, vector<16x16xf32>, vector<512x16xf32> -> vector<512x16xf32>
    %67 = arith.addf %62, %66 : vector<512x16xf32>
    %c0_36 = arith.constant 0 : index
    %c0_37 = arith.constant 0 : index
    %68 = vector.load %arg4[%c0_36, %c0_37] : memref<1x16xf32, #tpu.memory_space<vmem>>, vector<1x16xf32>
    %69 = vector.broadcast %68 : vector<1x16xf32> to vector<512x16xf32>
    %70 = arith.addf %67, %69 : vector<512x16xf32>
    %cst_38 = arith.constant 0.000000e+00 : f32
    %71 = vector.broadcast %cst_38 : f32 to vector<512x16xf32>
    %72 = arith.maximumf %70, %71 : vector<512x16xf32>
    %cst_39 = arith.constant 0.000000e+00 : f32
    %73 = vector.broadcast %cst_39 : f32 to vector<384x16xf32>
    %74 = vector.extract_strided_slice %72 {offsets = [0, 0], sizes = [384, 16], strides = [1, 1]} : vector<512x16xf32> to vector<384x16xf32>
    %c0_40 = arith.constant 0 : index
    %c0_41 = arith.constant 0 : index
    %c0_42 = arith.constant 0 : index
    %75 = vector.load %arg5[%c0_40, %c0_41, %c0_42] : memref<5x16x16xf32, #tpu.memory_space<vmem>>, vector<1x16x16xf32>
    %76 = vector.shape_cast %75 : vector<1x16x16xf32> to vector<16x16xf32>
    %cst_43 = arith.constant dense<0.000000e+00> : vector<384x16xf32>
    %77 = tpu.matmul %74, %76, %cst_43 {dimension_numbers = #tpu.dot_dimension_numbers<[1], [0], [0], [1], [0, 0, 1, 1], [], []>} : vector<384x16xf32>, vector<16x16xf32>, vector<384x16xf32> -> vector<384x16xf32>
    %78 = arith.addf %73, %77 : vector<384x16xf32>
    %79 = vector.extract_strided_slice %72 {offsets = [32, 0], sizes = [384, 16], strides = [1, 1]} : vector<512x16xf32> to vector<384x16xf32>
    %c1_44 = arith.constant 1 : index
    %c0_45 = arith.constant 0 : index
    %c0_46 = arith.constant 0 : index
    %80 = vector.load %arg5[%c1_44, %c0_45, %c0_46] : memref<5x16x16xf32, #tpu.memory_space<vmem>>, vector<1x16x16xf32>
    %81 = vector.shape_cast %80 : vector<1x16x16xf32> to vector<16x16xf32>
    %cst_47 = arith.constant dense<0.000000e+00> : vector<384x16xf32>
    %82 = tpu.matmul %79, %81, %cst_47 {dimension_numbers = #tpu.dot_dimension_numbers<[1], [0], [0], [1], [0, 0, 1, 1], [], []>} : vector<384x16xf32>, vector<16x16xf32>, vector<384x16xf32> -> vector<384x16xf32>
    %83 = arith.addf %78, %82 : vector<384x16xf32>
    %84 = vector.extract_strided_slice %72 {offsets = [64, 0], sizes = [384, 16], strides = [1, 1]} : vector<512x16xf32> to vector<384x16xf32>
    %c2_48 = arith.constant 2 : index
    %c0_49 = arith.constant 0 : index
    %c0_50 = arith.constant 0 : index
    %85 = vector.load %arg5[%c2_48, %c0_49, %c0_50] : memref<5x16x16xf32, #tpu.memory_space<vmem>>, vector<1x16x16xf32>
    %86 = vector.shape_cast %85 : vector<1x16x16xf32> to vector<16x16xf32>
    %cst_51 = arith.constant dense<0.000000e+00> : vector<384x16xf32>
    %87 = tpu.matmul %84, %86, %cst_51 {dimension_numbers = #tpu.dot_dimension_numbers<[1], [0], [0], [1], [0, 0, 1, 1], [], []>} : vector<384x16xf32>, vector<16x16xf32>, vector<384x16xf32> -> vector<384x16xf32>
    %88 = arith.addf %83, %87 : vector<384x16xf32>
    %89 = vector.extract_strided_slice %72 {offsets = [96, 0], sizes = [384, 16], strides = [1, 1]} : vector<512x16xf32> to vector<384x16xf32>
    %c3_52 = arith.constant 3 : index
    %c0_53 = arith.constant 0 : index
    %c0_54 = arith.constant 0 : index
    %90 = vector.load %arg5[%c3_52, %c0_53, %c0_54] : memref<5x16x16xf32, #tpu.memory_space<vmem>>, vector<1x16x16xf32>
    %91 = vector.shape_cast %90 : vector<1x16x16xf32> to vector<16x16xf32>
    %cst_55 = arith.constant dense<0.000000e+00> : vector<384x16xf32>
    %92 = tpu.matmul %89, %91, %cst_55 {dimension_numbers = #tpu.dot_dimension_numbers<[1], [0], [0], [1], [0, 0, 1, 1], [], []>} : vector<384x16xf32>, vector<16x16xf32>, vector<384x16xf32> -> vector<384x16xf32>
    %93 = arith.addf %88, %92 : vector<384x16xf32>
    %94 = vector.extract_strided_slice %72 {offsets = [128, 0], sizes = [384, 16], strides = [1, 1]} : vector<512x16xf32> to vector<384x16xf32>
    %c4_56 = arith.constant 4 : index
    %c0_57 = arith.constant 0 : index
    %c0_58 = arith.constant 0 : index
    %95 = vector.load %arg5[%c4_56, %c0_57, %c0_58] : memref<5x16x16xf32, #tpu.memory_space<vmem>>, vector<1x16x16xf32>
    %96 = vector.shape_cast %95 : vector<1x16x16xf32> to vector<16x16xf32>
    %cst_59 = arith.constant dense<0.000000e+00> : vector<384x16xf32>
    %97 = tpu.matmul %94, %96, %cst_59 {dimension_numbers = #tpu.dot_dimension_numbers<[1], [0], [0], [1], [0, 0, 1, 1], [], []>} : vector<384x16xf32>, vector<16x16xf32>, vector<384x16xf32> -> vector<384x16xf32>
    %98 = arith.addf %93, %97 : vector<384x16xf32>
    %c0_60 = arith.constant 0 : index
    %c0_61 = arith.constant 0 : index
    %99 = vector.load %arg6[%c0_60, %c0_61] : memref<1x16xf32, #tpu.memory_space<vmem>>, vector<1x16xf32>
    %100 = vector.broadcast %99 : vector<1x16xf32> to vector<384x16xf32>
    %101 = arith.addf %98, %100 : vector<384x16xf32>
    %cst_62 = arith.constant 0.000000e+00 : f32
    %102 = vector.broadcast %cst_62 : f32 to vector<384x16xf32>
    %103 = arith.maximumf %101, %102 : vector<384x16xf32>
    %cst_63 = arith.constant 0.000000e+00 : f32
    %104 = vector.broadcast %cst_63 : f32 to vector<256x16xf32>
    %105 = vector.extract_strided_slice %103 {offsets = [0, 0], sizes = [256, 16], strides = [1, 1]} : vector<384x16xf32> to vector<256x16xf32>
    %c0_64 = arith.constant 0 : index
    %c0_65 = arith.constant 0 : index
    %c0_66 = arith.constant 0 : index
    %106 = vector.load %arg7[%c0_64, %c0_65, %c0_66] : memref<5x16x16xf32, #tpu.memory_space<vmem>>, vector<1x16x16xf32>
    %107 = vector.shape_cast %106 : vector<1x16x16xf32> to vector<16x16xf32>
    %cst_67 = arith.constant dense<0.000000e+00> : vector<256x16xf32>
    %108 = tpu.matmul %105, %107, %cst_67 {dimension_numbers = #tpu.dot_dimension_numbers<[1], [0], [0], [1], [0, 0, 1, 1], [], []>} : vector<256x16xf32>, vector<16x16xf32>, vector<256x16xf32> -> vector<256x16xf32>
    %109 = arith.addf %104, %108 : vector<256x16xf32>
    %110 = vector.extract_strided_slice %103 {offsets = [32, 0], sizes = [256, 16], strides = [1, 1]} : vector<384x16xf32> to vector<256x16xf32>
    %c1_68 = arith.constant 1 : index
    %c0_69 = arith.constant 0 : index
    %c0_70 = arith.constant 0 : index
    %111 = vector.load %arg7[%c1_68, %c0_69, %c0_70] : memref<5x16x16xf32, #tpu.memory_space<vmem>>, vector<1x16x16xf32>
    %112 = vector.shape_cast %111 : vector<1x16x16xf32> to vector<16x16xf32>
    %cst_71 = arith.constant dense<0.000000e+00> : vector<256x16xf32>
    %113 = tpu.matmul %110, %112, %cst_71 {dimension_numbers = #tpu.dot_dimension_numbers<[1], [0], [0], [1], [0, 0, 1, 1], [], []>} : vector<256x16xf32>, vector<16x16xf32>, vector<256x16xf32> -> vector<256x16xf32>
    %114 = arith.addf %109, %113 : vector<256x16xf32>
    %115 = vector.extract_strided_slice %103 {offsets = [64, 0], sizes = [256, 16], strides = [1, 1]} : vector<384x16xf32> to vector<256x16xf32>
    %c2_72 = arith.constant 2 : index
    %c0_73 = arith.constant 0 : index
    %c0_74 = arith.constant 0 : index
    %116 = vector.load %arg7[%c2_72, %c0_73, %c0_74] : memref<5x16x16xf32, #tpu.memory_space<vmem>>, vector<1x16x16xf32>
    %117 = vector.shape_cast %116 : vector<1x16x16xf32> to vector<16x16xf32>
    %cst_75 = arith.constant dense<0.000000e+00> : vector<256x16xf32>
    %118 = tpu.matmul %115, %117, %cst_75 {dimension_numbers = #tpu.dot_dimension_numbers<[1], [0], [0], [1], [0, 0, 1, 1], [], []>} : vector<256x16xf32>, vector<16x16xf32>, vector<256x16xf32> -> vector<256x16xf32>
    %119 = arith.addf %114, %118 : vector<256x16xf32>
    %120 = vector.extract_strided_slice %103 {offsets = [96, 0], sizes = [256, 16], strides = [1, 1]} : vector<384x16xf32> to vector<256x16xf32>
    %c3_76 = arith.constant 3 : index
    %c0_77 = arith.constant 0 : index
    %c0_78 = arith.constant 0 : index
    %121 = vector.load %arg7[%c3_76, %c0_77, %c0_78] : memref<5x16x16xf32, #tpu.memory_space<vmem>>, vector<1x16x16xf32>
    %122 = vector.shape_cast %121 : vector<1x16x16xf32> to vector<16x16xf32>
    %cst_79 = arith.constant dense<0.000000e+00> : vector<256x16xf32>
    %123 = tpu.matmul %120, %122, %cst_79 {dimension_numbers = #tpu.dot_dimension_numbers<[1], [0], [0], [1], [0, 0, 1, 1], [], []>} : vector<256x16xf32>, vector<16x16xf32>, vector<256x16xf32> -> vector<256x16xf32>
    %124 = arith.addf %119, %123 : vector<256x16xf32>
    %125 = vector.extract_strided_slice %103 {offsets = [128, 0], sizes = [256, 16], strides = [1, 1]} : vector<384x16xf32> to vector<256x16xf32>
    %c4_80 = arith.constant 4 : index
    %c0_81 = arith.constant 0 : index
    %c0_82 = arith.constant 0 : index
    %126 = vector.load %arg7[%c4_80, %c0_81, %c0_82] : memref<5x16x16xf32, #tpu.memory_space<vmem>>, vector<1x16x16xf32>
    %127 = vector.shape_cast %126 : vector<1x16x16xf32> to vector<16x16xf32>
    %cst_83 = arith.constant dense<0.000000e+00> : vector<256x16xf32>
    %128 = tpu.matmul %125, %127, %cst_83 {dimension_numbers = #tpu.dot_dimension_numbers<[1], [0], [0], [1], [0, 0, 1, 1], [], []>} : vector<256x16xf32>, vector<16x16xf32>, vector<256x16xf32> -> vector<256x16xf32>
    %129 = arith.addf %124, %128 : vector<256x16xf32>
    %c0_84 = arith.constant 0 : index
    %c0_85 = arith.constant 0 : index
    %130 = vector.load %arg8[%c0_84, %c0_85] : memref<1x16xf32, #tpu.memory_space<vmem>>, vector<1x16xf32>
    %131 = vector.broadcast %130 : vector<1x16xf32> to vector<256x16xf32>
    %132 = arith.addf %129, %131 : vector<256x16xf32>
    %cst_86 = arith.constant 0.000000e+00 : f32
    %133 = vector.broadcast %cst_86 : f32 to vector<256x16xf32>
    %134 = arith.maximumf %132, %133 : vector<256x16xf32>
    %c0_87 = arith.constant 0 : index
    %c0_88 = arith.constant 0 : index
    %135 = vector.load %arg9[%c0_87, %c0_88] : memref<16x512xf32, #tpu.memory_space<vmem>>, vector<16x512xf32>
    %cst_89 = arith.constant dense<0.000000e+00> : vector<256x512xf32>
    %136 = tpu.matmul %134, %135, %cst_89 {dimension_numbers = #tpu.dot_dimension_numbers<[1], [0], [0], [1], [0, 0, 1, 1], [], []>} : vector<256x16xf32>, vector<16x512xf32>, vector<256x512xf32> -> vector<256x512xf32>
    %c0_90 = arith.constant 0 : index
    %c0_91 = arith.constant 0 : index
    %137 = vector.load %arg11[%c0_90, %c0_91] : memref<1x128xf32, #tpu.memory_space<vmem>>, vector<1x128xf32>
    %c0_92 = arith.constant 0 : index
    %c0_93 = arith.constant 0 : index
    %138 = vector.load %arg13[%c0_92, %c0_93] : memref<1x128xf32, #tpu.memory_space<vmem>>, vector<1x128xf32>
    %c0_94 = arith.constant 0 : index
    %c0_95 = arith.constant 0 : index
    %139 = vector.load %arg10[%c0_94, %c0_95] : memref<32x128xf32, #tpu.memory_space<vmem>>, vector<32x128xf32>
    %c0_96 = arith.constant 0 : index
    %c0_97 = arith.constant 0 : index
    %140 = vector.load %arg12[%c0_96, %c0_97] : memref<64x128xf32, #tpu.memory_space<vmem>>, vector<64x128xf32>
    %141 = vector.extract_strided_slice %136 {offsets = [0, 0], sizes = [8, 128], strides = [1, 1]} : vector<256x512xf32> to vector<8x128xf32>
    %142 = vector.broadcast %137 : vector<1x128xf32> to vector<8x128xf32>
    %143 = arith.addf %142, %141 : vector<8x128xf32>
    %144 = vector.extract_strided_slice %136 {offsets = [8, 128], sizes = [8, 128], strides = [1, 1]} : vector<256x512xf32> to vector<8x128xf32>
    %145 = arith.addf %143, %144 : vector<8x128xf32>
    %146 = vector.extract_strided_slice %136 {offsets = [16, 256], sizes = [8, 128], strides = [1, 1]} : vector<256x512xf32> to vector<8x128xf32>
    %147 = arith.addf %145, %146 : vector<8x128xf32>
    %148 = vector.extract_strided_slice %136 {offsets = [24, 384], sizes = [8, 128], strides = [1, 1]} : vector<256x512xf32> to vector<8x128xf32>
    %149 = arith.addf %147, %148 : vector<8x128xf32>
    %150 = vector.extract_strided_slice %136 {offsets = [32, 0], sizes = [8, 128], strides = [1, 1]} : vector<256x512xf32> to vector<8x128xf32>
    %151 = vector.broadcast %137 : vector<1x128xf32> to vector<8x128xf32>
    %152 = arith.addf %151, %150 : vector<8x128xf32>
    %153 = vector.extract_strided_slice %136 {offsets = [40, 128], sizes = [8, 128], strides = [1, 1]} : vector<256x512xf32> to vector<8x128xf32>
    %154 = arith.addf %152, %153 : vector<8x128xf32>
    %155 = vector.extract_strided_slice %136 {offsets = [48, 256], sizes = [8, 128], strides = [1, 1]} : vector<256x512xf32> to vector<8x128xf32>
    %156 = arith.addf %154, %155 : vector<8x128xf32>
    %157 = vector.extract_strided_slice %136 {offsets = [56, 384], sizes = [8, 128], strides = [1, 1]} : vector<256x512xf32> to vector<8x128xf32>
    %158 = arith.addf %156, %157 : vector<8x128xf32>
    %159 = vector.extract_strided_slice %136 {offsets = [64, 0], sizes = [8, 128], strides = [1, 1]} : vector<256x512xf32> to vector<8x128xf32>
    %160 = vector.broadcast %137 : vector<1x128xf32> to vector<8x128xf32>
    %161 = arith.addf %160, %159 : vector<8x128xf32>
    %162 = vector.extract_strided_slice %136 {offsets = [72, 128], sizes = [8, 128], strides = [1, 1]} : vector<256x512xf32> to vector<8x128xf32>
    %163 = arith.addf %161, %162 : vector<8x128xf32>
    %164 = vector.extract_strided_slice %136 {offsets = [80, 256], sizes = [8, 128], strides = [1, 1]} : vector<256x512xf32> to vector<8x128xf32>
    %165 = arith.addf %163, %164 : vector<8x128xf32>
    %166 = vector.extract_strided_slice %136 {offsets = [88, 384], sizes = [8, 128], strides = [1, 1]} : vector<256x512xf32> to vector<8x128xf32>
    %167 = arith.addf %165, %166 : vector<8x128xf32>
    %168 = vector.extract_strided_slice %136 {offsets = [96, 0], sizes = [8, 128], strides = [1, 1]} : vector<256x512xf32> to vector<8x128xf32>
    %169 = vector.broadcast %137 : vector<1x128xf32> to vector<8x128xf32>
    %170 = arith.addf %169, %168 : vector<8x128xf32>
    %171 = vector.extract_strided_slice %136 {offsets = [104, 128], sizes = [8, 128], strides = [1, 1]} : vector<256x512xf32> to vector<8x128xf32>
    %172 = arith.addf %170, %171 : vector<8x128xf32>
    %173 = vector.extract_strided_slice %136 {offsets = [112, 256], sizes = [8, 128], strides = [1, 1]} : vector<256x512xf32> to vector<8x128xf32>
    %174 = arith.addf %172, %173 : vector<8x128xf32>
    %175 = vector.extract_strided_slice %136 {offsets = [120, 384], sizes = [8, 128], strides = [1, 1]} : vector<256x512xf32> to vector<8x128xf32>
    %176 = arith.addf %174, %175 : vector<8x128xf32>
    %177 = vector.extract_strided_slice %136 {offsets = [128, 0], sizes = [8, 128], strides = [1, 1]} : vector<256x512xf32> to vector<8x128xf32>
    %178 = vector.broadcast %137 : vector<1x128xf32> to vector<8x128xf32>
    %179 = arith.addf %178, %177 : vector<8x128xf32>
    %180 = vector.extract_strided_slice %136 {offsets = [136, 128], sizes = [8, 128], strides = [1, 1]} : vector<256x512xf32> to vector<8x128xf32>
    %181 = arith.addf %179, %180 : vector<8x128xf32>
    %182 = vector.extract_strided_slice %136 {offsets = [144, 256], sizes = [8, 128], strides = [1, 1]} : vector<256x512xf32> to vector<8x128xf32>
    %183 = arith.addf %181, %182 : vector<8x128xf32>
    %184 = vector.extract_strided_slice %136 {offsets = [152, 384], sizes = [8, 128], strides = [1, 1]} : vector<256x512xf32> to vector<8x128xf32>
    %185 = arith.addf %183, %184 : vector<8x128xf32>
    %186 = vector.extract_strided_slice %136 {offsets = [160, 0], sizes = [8, 128], strides = [1, 1]} : vector<256x512xf32> to vector<8x128xf32>
    %187 = vector.broadcast %137 : vector<1x128xf32> to vector<8x128xf32>
    %188 = arith.addf %187, %186 : vector<8x128xf32>
    %189 = vector.extract_strided_slice %136 {offsets = [168, 128], sizes = [8, 128], strides = [1, 1]} : vector<256x512xf32> to vector<8x128xf32>
    %190 = arith.addf %188, %189 : vector<8x128xf32>
    %191 = vector.extract_strided_slice %136 {offsets = [176, 256], sizes = [8, 128], strides = [1, 1]} : vector<256x512xf32> to vector<8x128xf32>
    %192 = arith.addf %190, %191 : vector<8x128xf32>
    %193 = vector.extract_strided_slice %136 {offsets = [184, 384], sizes = [8, 128], strides = [1, 1]} : vector<256x512xf32> to vector<8x128xf32>
    %194 = arith.addf %192, %193 : vector<8x128xf32>
    %195 = vector.extract_strided_slice %136 {offsets = [192, 0], sizes = [8, 128], strides = [1, 1]} : vector<256x512xf32> to vector<8x128xf32>
    %196 = vector.broadcast %137 : vector<1x128xf32> to vector<8x128xf32>
    %197 = arith.addf %196, %195 : vector<8x128xf32>
    %198 = vector.extract_strided_slice %136 {offsets = [200, 128], sizes = [8, 128], strides = [1, 1]} : vector<256x512xf32> to vector<8x128xf32>
    %199 = arith.addf %197, %198 : vector<8x128xf32>
    %200 = vector.extract_strided_slice %136 {offsets = [208, 256], sizes = [8, 128], strides = [1, 1]} : vector<256x512xf32> to vector<8x128xf32>
    %201 = arith.addf %199, %200 : vector<8x128xf32>
    %202 = vector.extract_strided_slice %136 {offsets = [216, 384], sizes = [8, 128], strides = [1, 1]} : vector<256x512xf32> to vector<8x128xf32>
    %203 = arith.addf %201, %202 : vector<8x128xf32>
    %204 = vector.extract_strided_slice %136 {offsets = [224, 0], sizes = [8, 128], strides = [1, 1]} : vector<256x512xf32> to vector<8x128xf32>
    %205 = vector.broadcast %137 : vector<1x128xf32> to vector<8x128xf32>
    %206 = arith.addf %205, %204 : vector<8x128xf32>
    %207 = vector.extract_strided_slice %136 {offsets = [232, 128], sizes = [8, 128], strides = [1, 1]} : vector<256x512xf32> to vector<8x128xf32>
    %208 = arith.addf %206, %207 : vector<8x128xf32>
    %209 = vector.extract_strided_slice %136 {offsets = [240, 256], sizes = [8, 128], strides = [1, 1]} : vector<256x512xf32> to vector<8x128xf32>
    %210 = arith.addf %208, %209 : vector<8x128xf32>
    %211 = vector.extract_strided_slice %136 {offsets = [248, 384], sizes = [8, 128], strides = [1, 1]} : vector<256x512xf32> to vector<8x128xf32>
    %212 = arith.addf %210, %211 : vector<8x128xf32>
    %cst_98 = arith.constant 0.000000e+00 : f32
    %213 = vector.broadcast %cst_98 : f32 to vector<8x32xf32>
    %cst_99 = arith.constant 0.000000e+00 : f32
    %214 = vector.broadcast %cst_99 : f32 to vector<8x32xf32>
    %cst_100 = arith.constant 0.000000e+00 : f32
    %215 = vector.broadcast %cst_100 : f32 to vector<8x32xf32>
    %cst_101 = arith.constant 0.000000e+00 : f32
    %216 = vector.broadcast %cst_101 : f32 to vector<8x32xf32>
    %cst_102 = arith.constant dense<0.000000e+00> : vector<8x128xf32>
    %217 = tpu.matmul %213, %139, %cst_102 {dimension_numbers = #tpu.dot_dimension_numbers<[1], [0], [0], [1], [0, 0, 1, 1], [], []>} : vector<8x32xf32>, vector<32x128xf32>, vector<8x128xf32> -> vector<8x128xf32>
    %218 = arith.addf %149, %217 : vector<8x128xf32>
    %219 = arith.negf %218 : vector<8x128xf32>
    %220 = math.exp %219 : vector<8x128xf32>
    %cst_103 = arith.constant 1.000000e+00 : f32
    %221 = vector.broadcast %cst_103 : f32 to vector<8x128xf32>
    %222 = arith.addf %221, %220 : vector<8x128xf32>
    %223 = arith.divf %221, %222 : vector<8x128xf32>
    %224 = math.tanh %218 : vector<8x128xf32>
    %225 = vector.extract_strided_slice %223 {offsets = [0, 0], sizes = [8, 32], strides = [1, 1]} : vector<8x128xf32> to vector<8x32xf32>
    %226 = vector.extract_strided_slice %223 {offsets = [0, 32], sizes = [8, 32], strides = [1, 1]} : vector<8x128xf32> to vector<8x32xf32>
    %227 = vector.extract_strided_slice %224 {offsets = [0, 64], sizes = [8, 32], strides = [1, 1]} : vector<8x128xf32> to vector<8x32xf32>
    %228 = vector.extract_strided_slice %223 {offsets = [0, 96], sizes = [8, 32], strides = [1, 1]} : vector<8x128xf32> to vector<8x32xf32>
    %229 = arith.mulf %226, %214 : vector<8x32xf32>
    %230 = arith.mulf %225, %227 : vector<8x32xf32>
    %231 = arith.addf %229, %230 : vector<8x32xf32>
    %232 = math.tanh %231 : vector<8x32xf32>
    %233 = arith.mulf %228, %232 : vector<8x32xf32>
    %234 = tpu.concatenate %233, %215 in 1 : vector<8x32xf32>, vector<8x32xf32> -> vector<8x64xf32>
    %cst_104 = arith.constant dense<0.000000e+00> : vector<8x128xf32>
    %235 = tpu.matmul %234, %140, %cst_104 {dimension_numbers = #tpu.dot_dimension_numbers<[1], [0], [0], [1], [0, 0, 1, 1], [], []>} : vector<8x64xf32>, vector<64x128xf32>, vector<8x128xf32> -> vector<8x128xf32>
    %236 = vector.broadcast %138 : vector<1x128xf32> to vector<8x128xf32>
    %237 = arith.addf %235, %236 : vector<8x128xf32>
    %238 = arith.negf %237 : vector<8x128xf32>
    %239 = math.exp %238 : vector<8x128xf32>
    %cst_105 = arith.constant 1.000000e+00 : f32
    %240 = vector.broadcast %cst_105 : f32 to vector<8x128xf32>
    %241 = arith.addf %240, %239 : vector<8x128xf32>
    %242 = arith.divf %240, %241 : vector<8x128xf32>
    %243 = math.tanh %237 : vector<8x128xf32>
    %244 = vector.extract_strided_slice %242 {offsets = [0, 0], sizes = [8, 32], strides = [1, 1]} : vector<8x128xf32> to vector<8x32xf32>
    %245 = vector.extract_strided_slice %242 {offsets = [0, 32], sizes = [8, 32], strides = [1, 1]} : vector<8x128xf32> to vector<8x32xf32>
    %246 = vector.extract_strided_slice %243 {offsets = [0, 64], sizes = [8, 32], strides = [1, 1]} : vector<8x128xf32> to vector<8x32xf32>
    %247 = vector.extract_strided_slice %242 {offsets = [0, 96], sizes = [8, 32], strides = [1, 1]} : vector<8x128xf32> to vector<8x32xf32>
    %248 = arith.mulf %245, %216 : vector<8x32xf32>
    %249 = arith.mulf %244, %246 : vector<8x32xf32>
    %250 = arith.addf %248, %249 : vector<8x32xf32>
    %251 = math.tanh %250 : vector<8x32xf32>
    %252 = arith.mulf %247, %251 : vector<8x32xf32>
    %cst_106 = arith.constant dense<0.000000e+00> : vector<8x128xf32>
    %253 = tpu.matmul %233, %139, %cst_106 {dimension_numbers = #tpu.dot_dimension_numbers<[1], [0], [0], [1], [0, 0, 1, 1], [], []>} : vector<8x32xf32>, vector<32x128xf32>, vector<8x128xf32> -> vector<8x128xf32>
    %254 = arith.addf %158, %253 : vector<8x128xf32>
    %255 = arith.negf %254 : vector<8x128xf32>
    %256 = math.exp %255 : vector<8x128xf32>
    %cst_107 = arith.constant 1.000000e+00 : f32
    %257 = vector.broadcast %cst_107 : f32 to vector<8x128xf32>
    %258 = arith.addf %257, %256 : vector<8x128xf32>
    %259 = arith.divf %257, %258 : vector<8x128xf32>
    %260 = math.tanh %254 : vector<8x128xf32>
    %261 = vector.extract_strided_slice %259 {offsets = [0, 0], sizes = [8, 32], strides = [1, 1]} : vector<8x128xf32> to vector<8x32xf32>
    %262 = vector.extract_strided_slice %259 {offsets = [0, 32], sizes = [8, 32], strides = [1, 1]} : vector<8x128xf32> to vector<8x32xf32>
    %263 = vector.extract_strided_slice %260 {offsets = [0, 64], sizes = [8, 32], strides = [1, 1]} : vector<8x128xf32> to vector<8x32xf32>
    %264 = vector.extract_strided_slice %259 {offsets = [0, 96], sizes = [8, 32], strides = [1, 1]} : vector<8x128xf32> to vector<8x32xf32>
    %265 = arith.mulf %262, %231 : vector<8x32xf32>
    %266 = arith.mulf %261, %263 : vector<8x32xf32>
    %267 = arith.addf %265, %266 : vector<8x32xf32>
    %268 = math.tanh %267 : vector<8x32xf32>
    %269 = arith.mulf %264, %268 : vector<8x32xf32>
    %270 = tpu.concatenate %269, %252 in 1 : vector<8x32xf32>, vector<8x32xf32> -> vector<8x64xf32>
    %cst_108 = arith.constant dense<0.000000e+00> : vector<8x128xf32>
    %271 = tpu.matmul %270, %140, %cst_108 {dimension_numbers = #tpu.dot_dimension_numbers<[1], [0], [0], [1], [0, 0, 1, 1], [], []>} : vector<8x64xf32>, vector<64x128xf32>, vector<8x128xf32> -> vector<8x128xf32>
    %272 = vector.broadcast %138 : vector<1x128xf32> to vector<8x128xf32>
    %273 = arith.addf %271, %272 : vector<8x128xf32>
    %274 = arith.negf %273 : vector<8x128xf32>
    %275 = math.exp %274 : vector<8x128xf32>
    %cst_109 = arith.constant 1.000000e+00 : f32
    %276 = vector.broadcast %cst_109 : f32 to vector<8x128xf32>
    %277 = arith.addf %276, %275 : vector<8x128xf32>
    %278 = arith.divf %276, %277 : vector<8x128xf32>
    %279 = math.tanh %273 : vector<8x128xf32>
    %280 = vector.extract_strided_slice %278 {offsets = [0, 0], sizes = [8, 32], strides = [1, 1]} : vector<8x128xf32> to vector<8x32xf32>
    %281 = vector.extract_strided_slice %278 {offsets = [0, 32], sizes = [8, 32], strides = [1, 1]} : vector<8x128xf32> to vector<8x32xf32>
    %282 = vector.extract_strided_slice %279 {offsets = [0, 64], sizes = [8, 32], strides = [1, 1]} : vector<8x128xf32> to vector<8x32xf32>
    %283 = vector.extract_strided_slice %278 {offsets = [0, 96], sizes = [8, 32], strides = [1, 1]} : vector<8x128xf32> to vector<8x32xf32>
    %284 = arith.mulf %281, %250 : vector<8x32xf32>
    %285 = arith.mulf %280, %282 : vector<8x32xf32>
    %286 = arith.addf %284, %285 : vector<8x32xf32>
    %287 = math.tanh %286 : vector<8x32xf32>
    %288 = arith.mulf %283, %287 : vector<8x32xf32>
    %cst_110 = arith.constant dense<0.000000e+00> : vector<8x128xf32>
    %289 = tpu.matmul %269, %139, %cst_110 {dimension_numbers = #tpu.dot_dimension_numbers<[1], [0], [0], [1], [0, 0, 1, 1], [], []>} : vector<8x32xf32>, vector<32x128xf32>, vector<8x128xf32> -> vector<8x128xf32>
    %290 = arith.addf %167, %289 : vector<8x128xf32>
    %291 = arith.negf %290 : vector<8x128xf32>
    %292 = math.exp %291 : vector<8x128xf32>
    %cst_111 = arith.constant 1.000000e+00 : f32
    %293 = vector.broadcast %cst_111 : f32 to vector<8x128xf32>
    %294 = arith.addf %293, %292 : vector<8x128xf32>
    %295 = arith.divf %293, %294 : vector<8x128xf32>
    %296 = math.tanh %290 : vector<8x128xf32>
    %297 = vector.extract_strided_slice %295 {offsets = [0, 0], sizes = [8, 32], strides = [1, 1]} : vector<8x128xf32> to vector<8x32xf32>
    %298 = vector.extract_strided_slice %295 {offsets = [0, 32], sizes = [8, 32], strides = [1, 1]} : vector<8x128xf32> to vector<8x32xf32>
    %299 = vector.extract_strided_slice %296 {offsets = [0, 64], sizes = [8, 32], strides = [1, 1]} : vector<8x128xf32> to vector<8x32xf32>
    %300 = vector.extract_strided_slice %295 {offsets = [0, 96], sizes = [8, 32], strides = [1, 1]} : vector<8x128xf32> to vector<8x32xf32>
    %301 = arith.mulf %298, %267 : vector<8x32xf32>
    %302 = arith.mulf %297, %299 : vector<8x32xf32>
    %303 = arith.addf %301, %302 : vector<8x32xf32>
    %304 = math.tanh %303 : vector<8x32xf32>
    %305 = arith.mulf %300, %304 : vector<8x32xf32>
    %306 = tpu.concatenate %305, %288 in 1 : vector<8x32xf32>, vector<8x32xf32> -> vector<8x64xf32>
    %cst_112 = arith.constant dense<0.000000e+00> : vector<8x128xf32>
    %307 = tpu.matmul %306, %140, %cst_112 {dimension_numbers = #tpu.dot_dimension_numbers<[1], [0], [0], [1], [0, 0, 1, 1], [], []>} : vector<8x64xf32>, vector<64x128xf32>, vector<8x128xf32> -> vector<8x128xf32>
    %308 = vector.broadcast %138 : vector<1x128xf32> to vector<8x128xf32>
    %309 = arith.addf %307, %308 : vector<8x128xf32>
    %310 = arith.negf %309 : vector<8x128xf32>
    %311 = math.exp %310 : vector<8x128xf32>
    %cst_113 = arith.constant 1.000000e+00 : f32
    %312 = vector.broadcast %cst_113 : f32 to vector<8x128xf32>
    %313 = arith.addf %312, %311 : vector<8x128xf32>
    %314 = arith.divf %312, %313 : vector<8x128xf32>
    %315 = math.tanh %309 : vector<8x128xf32>
    %316 = vector.extract_strided_slice %314 {offsets = [0, 0], sizes = [8, 32], strides = [1, 1]} : vector<8x128xf32> to vector<8x32xf32>
    %317 = vector.extract_strided_slice %314 {offsets = [0, 32], sizes = [8, 32], strides = [1, 1]} : vector<8x128xf32> to vector<8x32xf32>
    %318 = vector.extract_strided_slice %315 {offsets = [0, 64], sizes = [8, 32], strides = [1, 1]} : vector<8x128xf32> to vector<8x32xf32>
    %319 = vector.extract_strided_slice %314 {offsets = [0, 96], sizes = [8, 32], strides = [1, 1]} : vector<8x128xf32> to vector<8x32xf32>
    %320 = arith.mulf %317, %286 : vector<8x32xf32>
    %321 = arith.mulf %316, %318 : vector<8x32xf32>
    %322 = arith.addf %320, %321 : vector<8x32xf32>
    %323 = math.tanh %322 : vector<8x32xf32>
    %324 = arith.mulf %319, %323 : vector<8x32xf32>
    %cst_114 = arith.constant dense<0.000000e+00> : vector<8x128xf32>
    %325 = tpu.matmul %305, %139, %cst_114 {dimension_numbers = #tpu.dot_dimension_numbers<[1], [0], [0], [1], [0, 0, 1, 1], [], []>} : vector<8x32xf32>, vector<32x128xf32>, vector<8x128xf32> -> vector<8x128xf32>
    %326 = arith.addf %176, %325 : vector<8x128xf32>
    %327 = arith.negf %326 : vector<8x128xf32>
    %328 = math.exp %327 : vector<8x128xf32>
    %cst_115 = arith.constant 1.000000e+00 : f32
    %329 = vector.broadcast %cst_115 : f32 to vector<8x128xf32>
    %330 = arith.addf %329, %328 : vector<8x128xf32>
    %331 = arith.divf %329, %330 : vector<8x128xf32>
    %332 = math.tanh %326 : vector<8x128xf32>
    %333 = vector.extract_strided_slice %331 {offsets = [0, 0], sizes = [8, 32], strides = [1, 1]} : vector<8x128xf32> to vector<8x32xf32>
    %334 = vector.extract_strided_slice %331 {offsets = [0, 32], sizes = [8, 32], strides = [1, 1]} : vector<8x128xf32> to vector<8x32xf32>
    %335 = vector.extract_strided_slice %332 {offsets = [0, 64], sizes = [8, 32], strides = [1, 1]} : vector<8x128xf32> to vector<8x32xf32>
    %336 = vector.extract_strided_slice %331 {offsets = [0, 96], sizes = [8, 32], strides = [1, 1]} : vector<8x128xf32> to vector<8x32xf32>
    %337 = arith.mulf %334, %303 : vector<8x32xf32>
    %338 = arith.mulf %333, %335 : vector<8x32xf32>
    %339 = arith.addf %337, %338 : vector<8x32xf32>
    %340 = math.tanh %339 : vector<8x32xf32>
    %341 = arith.mulf %336, %340 : vector<8x32xf32>
    %342 = tpu.concatenate %341, %324 in 1 : vector<8x32xf32>, vector<8x32xf32> -> vector<8x64xf32>
    %cst_116 = arith.constant dense<0.000000e+00> : vector<8x128xf32>
    %343 = tpu.matmul %342, %140, %cst_116 {dimension_numbers = #tpu.dot_dimension_numbers<[1], [0], [0], [1], [0, 0, 1, 1], [], []>} : vector<8x64xf32>, vector<64x128xf32>, vector<8x128xf32> -> vector<8x128xf32>
    %344 = vector.broadcast %138 : vector<1x128xf32> to vector<8x128xf32>
    %345 = arith.addf %343, %344 : vector<8x128xf32>
    %346 = arith.negf %345 : vector<8x128xf32>
    %347 = math.exp %346 : vector<8x128xf32>
    %cst_117 = arith.constant 1.000000e+00 : f32
    %348 = vector.broadcast %cst_117 : f32 to vector<8x128xf32>
    %349 = arith.addf %348, %347 : vector<8x128xf32>
    %350 = arith.divf %348, %349 : vector<8x128xf32>
    %351 = math.tanh %345 : vector<8x128xf32>
    %352 = vector.extract_strided_slice %350 {offsets = [0, 0], sizes = [8, 32], strides = [1, 1]} : vector<8x128xf32> to vector<8x32xf32>
    %353 = vector.extract_strided_slice %350 {offsets = [0, 32], sizes = [8, 32], strides = [1, 1]} : vector<8x128xf32> to vector<8x32xf32>
    %354 = vector.extract_strided_slice %351 {offsets = [0, 64], sizes = [8, 32], strides = [1, 1]} : vector<8x128xf32> to vector<8x32xf32>
    %355 = vector.extract_strided_slice %350 {offsets = [0, 96], sizes = [8, 32], strides = [1, 1]} : vector<8x128xf32> to vector<8x32xf32>
    %356 = arith.mulf %353, %322 : vector<8x32xf32>
    %357 = arith.mulf %352, %354 : vector<8x32xf32>
    %358 = arith.addf %356, %357 : vector<8x32xf32>
    %359 = math.tanh %358 : vector<8x32xf32>
    %360 = arith.mulf %355, %359 : vector<8x32xf32>
    %cst_118 = arith.constant dense<0.000000e+00> : vector<8x128xf32>
    %361 = tpu.matmul %341, %139, %cst_118 {dimension_numbers = #tpu.dot_dimension_numbers<[1], [0], [0], [1], [0, 0, 1, 1], [], []>} : vector<8x32xf32>, vector<32x128xf32>, vector<8x128xf32> -> vector<8x128xf32>
    %362 = arith.addf %185, %361 : vector<8x128xf32>
    %363 = arith.negf %362 : vector<8x128xf32>
    %364 = math.exp %363 : vector<8x128xf32>
    %cst_119 = arith.constant 1.000000e+00 : f32
    %365 = vector.broadcast %cst_119 : f32 to vector<8x128xf32>
    %366 = arith.addf %365, %364 : vector<8x128xf32>
    %367 = arith.divf %365, %366 : vector<8x128xf32>
    %368 = math.tanh %362 : vector<8x128xf32>
    %369 = vector.extract_strided_slice %367 {offsets = [0, 0], sizes = [8, 32], strides = [1, 1]} : vector<8x128xf32> to vector<8x32xf32>
    %370 = vector.extract_strided_slice %367 {offsets = [0, 32], sizes = [8, 32], strides = [1, 1]} : vector<8x128xf32> to vector<8x32xf32>
    %371 = vector.extract_strided_slice %368 {offsets = [0, 64], sizes = [8, 32], strides = [1, 1]} : vector<8x128xf32> to vector<8x32xf32>
    %372 = vector.extract_strided_slice %367 {offsets = [0, 96], sizes = [8, 32], strides = [1, 1]} : vector<8x128xf32> to vector<8x32xf32>
    %373 = arith.mulf %370, %339 : vector<8x32xf32>
    %374 = arith.mulf %369, %371 : vector<8x32xf32>
    %375 = arith.addf %373, %374 : vector<8x32xf32>
    %376 = math.tanh %375 : vector<8x32xf32>
    %377 = arith.mulf %372, %376 : vector<8x32xf32>
    %378 = tpu.concatenate %377, %360 in 1 : vector<8x32xf32>, vector<8x32xf32> -> vector<8x64xf32>
    %cst_120 = arith.constant dense<0.000000e+00> : vector<8x128xf32>
    %379 = tpu.matmul %378, %140, %cst_120 {dimension_numbers = #tpu.dot_dimension_numbers<[1], [0], [0], [1], [0, 0, 1, 1], [], []>} : vector<8x64xf32>, vector<64x128xf32>, vector<8x128xf32> -> vector<8x128xf32>
    %380 = vector.broadcast %138 : vector<1x128xf32> to vector<8x128xf32>
    %381 = arith.addf %379, %380 : vector<8x128xf32>
    %382 = arith.negf %381 : vector<8x128xf32>
    %383 = math.exp %382 : vector<8x128xf32>
    %cst_121 = arith.constant 1.000000e+00 : f32
    %384 = vector.broadcast %cst_121 : f32 to vector<8x128xf32>
    %385 = arith.addf %384, %383 : vector<8x128xf32>
    %386 = arith.divf %384, %385 : vector<8x128xf32>
    %387 = math.tanh %381 : vector<8x128xf32>
    %388 = vector.extract_strided_slice %386 {offsets = [0, 0], sizes = [8, 32], strides = [1, 1]} : vector<8x128xf32> to vector<8x32xf32>
    %389 = vector.extract_strided_slice %386 {offsets = [0, 32], sizes = [8, 32], strides = [1, 1]} : vector<8x128xf32> to vector<8x32xf32>
    %390 = vector.extract_strided_slice %387 {offsets = [0, 64], sizes = [8, 32], strides = [1, 1]} : vector<8x128xf32> to vector<8x32xf32>
    %391 = vector.extract_strided_slice %386 {offsets = [0, 96], sizes = [8, 32], strides = [1, 1]} : vector<8x128xf32> to vector<8x32xf32>
    %392 = arith.mulf %389, %358 : vector<8x32xf32>
    %393 = arith.mulf %388, %390 : vector<8x32xf32>
    %394 = arith.addf %392, %393 : vector<8x32xf32>
    %395 = math.tanh %394 : vector<8x32xf32>
    %396 = arith.mulf %391, %395 : vector<8x32xf32>
    %cst_122 = arith.constant dense<0.000000e+00> : vector<8x128xf32>
    %397 = tpu.matmul %377, %139, %cst_122 {dimension_numbers = #tpu.dot_dimension_numbers<[1], [0], [0], [1], [0, 0, 1, 1], [], []>} : vector<8x32xf32>, vector<32x128xf32>, vector<8x128xf32> -> vector<8x128xf32>
    %398 = arith.addf %194, %397 : vector<8x128xf32>
    %399 = arith.negf %398 : vector<8x128xf32>
    %400 = math.exp %399 : vector<8x128xf32>
    %cst_123 = arith.constant 1.000000e+00 : f32
    %401 = vector.broadcast %cst_123 : f32 to vector<8x128xf32>
    %402 = arith.addf %401, %400 : vector<8x128xf32>
    %403 = arith.divf %401, %402 : vector<8x128xf32>
    %404 = math.tanh %398 : vector<8x128xf32>
    %405 = vector.extract_strided_slice %403 {offsets = [0, 0], sizes = [8, 32], strides = [1, 1]} : vector<8x128xf32> to vector<8x32xf32>
    %406 = vector.extract_strided_slice %403 {offsets = [0, 32], sizes = [8, 32], strides = [1, 1]} : vector<8x128xf32> to vector<8x32xf32>
    %407 = vector.extract_strided_slice %404 {offsets = [0, 64], sizes = [8, 32], strides = [1, 1]} : vector<8x128xf32> to vector<8x32xf32>
    %408 = vector.extract_strided_slice %403 {offsets = [0, 96], sizes = [8, 32], strides = [1, 1]} : vector<8x128xf32> to vector<8x32xf32>
    %409 = arith.mulf %406, %375 : vector<8x32xf32>
    %410 = arith.mulf %405, %407 : vector<8x32xf32>
    %411 = arith.addf %409, %410 : vector<8x32xf32>
    %412 = math.tanh %411 : vector<8x32xf32>
    %413 = arith.mulf %408, %412 : vector<8x32xf32>
    %414 = tpu.concatenate %413, %396 in 1 : vector<8x32xf32>, vector<8x32xf32> -> vector<8x64xf32>
    %cst_124 = arith.constant dense<0.000000e+00> : vector<8x128xf32>
    %415 = tpu.matmul %414, %140, %cst_124 {dimension_numbers = #tpu.dot_dimension_numbers<[1], [0], [0], [1], [0, 0, 1, 1], [], []>} : vector<8x64xf32>, vector<64x128xf32>, vector<8x128xf32> -> vector<8x128xf32>
    %416 = vector.broadcast %138 : vector<1x128xf32> to vector<8x128xf32>
    %417 = arith.addf %415, %416 : vector<8x128xf32>
    %418 = arith.negf %417 : vector<8x128xf32>
    %419 = math.exp %418 : vector<8x128xf32>
    %cst_125 = arith.constant 1.000000e+00 : f32
    %420 = vector.broadcast %cst_125 : f32 to vector<8x128xf32>
    %421 = arith.addf %420, %419 : vector<8x128xf32>
    %422 = arith.divf %420, %421 : vector<8x128xf32>
    %423 = math.tanh %417 : vector<8x128xf32>
    %424 = vector.extract_strided_slice %422 {offsets = [0, 0], sizes = [8, 32], strides = [1, 1]} : vector<8x128xf32> to vector<8x32xf32>
    %425 = vector.extract_strided_slice %422 {offsets = [0, 32], sizes = [8, 32], strides = [1, 1]} : vector<8x128xf32> to vector<8x32xf32>
    %426 = vector.extract_strided_slice %423 {offsets = [0, 64], sizes = [8, 32], strides = [1, 1]} : vector<8x128xf32> to vector<8x32xf32>
    %427 = vector.extract_strided_slice %422 {offsets = [0, 96], sizes = [8, 32], strides = [1, 1]} : vector<8x128xf32> to vector<8x32xf32>
    %428 = arith.mulf %425, %394 : vector<8x32xf32>
    %429 = arith.mulf %424, %426 : vector<8x32xf32>
    %430 = arith.addf %428, %429 : vector<8x32xf32>
    %431 = math.tanh %430 : vector<8x32xf32>
    %432 = arith.mulf %427, %431 : vector<8x32xf32>
    %cst_126 = arith.constant dense<0.000000e+00> : vector<8x128xf32>
    %433 = tpu.matmul %413, %139, %cst_126 {dimension_numbers = #tpu.dot_dimension_numbers<[1], [0], [0], [1], [0, 0, 1, 1], [], []>} : vector<8x32xf32>, vector<32x128xf32>, vector<8x128xf32> -> vector<8x128xf32>
    %434 = arith.addf %203, %433 : vector<8x128xf32>
    %435 = arith.negf %434 : vector<8x128xf32>
    %436 = math.exp %435 : vector<8x128xf32>
    %cst_127 = arith.constant 1.000000e+00 : f32
    %437 = vector.broadcast %cst_127 : f32 to vector<8x128xf32>
    %438 = arith.addf %437, %436 : vector<8x128xf32>
    %439 = arith.divf %437, %438 : vector<8x128xf32>
    %440 = math.tanh %434 : vector<8x128xf32>
    %441 = vector.extract_strided_slice %439 {offsets = [0, 0], sizes = [8, 32], strides = [1, 1]} : vector<8x128xf32> to vector<8x32xf32>
    %442 = vector.extract_strided_slice %439 {offsets = [0, 32], sizes = [8, 32], strides = [1, 1]} : vector<8x128xf32> to vector<8x32xf32>
    %443 = vector.extract_strided_slice %440 {offsets = [0, 64], sizes = [8, 32], strides = [1, 1]} : vector<8x128xf32> to vector<8x32xf32>
    %444 = vector.extract_strided_slice %439 {offsets = [0, 96], sizes = [8, 32], strides = [1, 1]} : vector<8x128xf32> to vector<8x32xf32>
    %445 = arith.mulf %442, %411 : vector<8x32xf32>
    %446 = arith.mulf %441, %443 : vector<8x32xf32>
    %447 = arith.addf %445, %446 : vector<8x32xf32>
    %448 = math.tanh %447 : vector<8x32xf32>
    %449 = arith.mulf %444, %448 : vector<8x32xf32>
    %450 = tpu.concatenate %449, %432 in 1 : vector<8x32xf32>, vector<8x32xf32> -> vector<8x64xf32>
    %cst_128 = arith.constant dense<0.000000e+00> : vector<8x128xf32>
    %451 = tpu.matmul %450, %140, %cst_128 {dimension_numbers = #tpu.dot_dimension_numbers<[1], [0], [0], [1], [0, 0, 1, 1], [], []>} : vector<8x64xf32>, vector<64x128xf32>, vector<8x128xf32> -> vector<8x128xf32>
    %452 = vector.broadcast %138 : vector<1x128xf32> to vector<8x128xf32>
    %453 = arith.addf %451, %452 : vector<8x128xf32>
    %454 = arith.negf %453 : vector<8x128xf32>
    %455 = math.exp %454 : vector<8x128xf32>
    %cst_129 = arith.constant 1.000000e+00 : f32
    %456 = vector.broadcast %cst_129 : f32 to vector<8x128xf32>
    %457 = arith.addf %456, %455 : vector<8x128xf32>
    %458 = arith.divf %456, %457 : vector<8x128xf32>
    %459 = math.tanh %453 : vector<8x128xf32>
    %460 = vector.extract_strided_slice %458 {offsets = [0, 0], sizes = [8, 32], strides = [1, 1]} : vector<8x128xf32> to vector<8x32xf32>
    %461 = vector.extract_strided_slice %458 {offsets = [0, 32], sizes = [8, 32], strides = [1, 1]} : vector<8x128xf32> to vector<8x32xf32>
    %462 = vector.extract_strided_slice %459 {offsets = [0, 64], sizes = [8, 32], strides = [1, 1]} : vector<8x128xf32> to vector<8x32xf32>
    %463 = vector.extract_strided_slice %458 {offsets = [0, 96], sizes = [8, 32], strides = [1, 1]} : vector<8x128xf32> to vector<8x32xf32>
    %464 = arith.mulf %461, %430 : vector<8x32xf32>
    %465 = arith.mulf %460, %462 : vector<8x32xf32>
    %466 = arith.addf %464, %465 : vector<8x32xf32>
    %467 = math.tanh %466 : vector<8x32xf32>
    %468 = arith.mulf %463, %467 : vector<8x32xf32>
    %cst_130 = arith.constant dense<0.000000e+00> : vector<8x128xf32>
    %469 = tpu.matmul %449, %139, %cst_130 {dimension_numbers = #tpu.dot_dimension_numbers<[1], [0], [0], [1], [0, 0, 1, 1], [], []>} : vector<8x32xf32>, vector<32x128xf32>, vector<8x128xf32> -> vector<8x128xf32>
    %470 = arith.addf %212, %469 : vector<8x128xf32>
    %471 = arith.negf %470 : vector<8x128xf32>
    %472 = math.exp %471 : vector<8x128xf32>
    %cst_131 = arith.constant 1.000000e+00 : f32
    %473 = vector.broadcast %cst_131 : f32 to vector<8x128xf32>
    %474 = arith.addf %473, %472 : vector<8x128xf32>
    %475 = arith.divf %473, %474 : vector<8x128xf32>
    %476 = math.tanh %470 : vector<8x128xf32>
    %477 = vector.extract_strided_slice %475 {offsets = [0, 0], sizes = [8, 32], strides = [1, 1]} : vector<8x128xf32> to vector<8x32xf32>
    %478 = vector.extract_strided_slice %475 {offsets = [0, 32], sizes = [8, 32], strides = [1, 1]} : vector<8x128xf32> to vector<8x32xf32>
    %479 = vector.extract_strided_slice %476 {offsets = [0, 64], sizes = [8, 32], strides = [1, 1]} : vector<8x128xf32> to vector<8x32xf32>
    %480 = vector.extract_strided_slice %475 {offsets = [0, 96], sizes = [8, 32], strides = [1, 1]} : vector<8x128xf32> to vector<8x32xf32>
    %481 = arith.mulf %478, %447 : vector<8x32xf32>
    %482 = arith.mulf %477, %479 : vector<8x32xf32>
    %483 = arith.addf %481, %482 : vector<8x32xf32>
    %484 = math.tanh %483 : vector<8x32xf32>
    %485 = arith.mulf %480, %484 : vector<8x32xf32>
    %486 = tpu.concatenate %485, %468 in 1 : vector<8x32xf32>, vector<8x32xf32> -> vector<8x64xf32>
    %cst_132 = arith.constant dense<0.000000e+00> : vector<8x128xf32>
    %487 = tpu.matmul %486, %140, %cst_132 {dimension_numbers = #tpu.dot_dimension_numbers<[1], [0], [0], [1], [0, 0, 1, 1], [], []>} : vector<8x64xf32>, vector<64x128xf32>, vector<8x128xf32> -> vector<8x128xf32>
    %488 = vector.broadcast %138 : vector<1x128xf32> to vector<8x128xf32>
    %489 = arith.addf %487, %488 : vector<8x128xf32>
    %490 = arith.negf %489 : vector<8x128xf32>
    %491 = math.exp %490 : vector<8x128xf32>
    %cst_133 = arith.constant 1.000000e+00 : f32
    %492 = vector.broadcast %cst_133 : f32 to vector<8x128xf32>
    %493 = arith.addf %492, %491 : vector<8x128xf32>
    %494 = arith.divf %492, %493 : vector<8x128xf32>
    %495 = math.tanh %489 : vector<8x128xf32>
    %496 = vector.extract_strided_slice %494 {offsets = [0, 0], sizes = [8, 32], strides = [1, 1]} : vector<8x128xf32> to vector<8x32xf32>
    %497 = vector.extract_strided_slice %494 {offsets = [0, 32], sizes = [8, 32], strides = [1, 1]} : vector<8x128xf32> to vector<8x32xf32>
    %498 = vector.extract_strided_slice %495 {offsets = [0, 64], sizes = [8, 32], strides = [1, 1]} : vector<8x128xf32> to vector<8x32xf32>
    %499 = vector.extract_strided_slice %494 {offsets = [0, 96], sizes = [8, 32], strides = [1, 1]} : vector<8x128xf32> to vector<8x32xf32>
    %500 = arith.mulf %497, %466 : vector<8x32xf32>
    %501 = arith.mulf %496, %498 : vector<8x32xf32>
    %502 = arith.addf %500, %501 : vector<8x32xf32>
    %503 = math.tanh %502 : vector<8x32xf32>
    %504 = arith.mulf %499, %503 : vector<8x32xf32>
    %c0_134 = arith.constant 0 : index
    %c0_135 = arith.constant 0 : index
    %505 = vector.load %arg14[%c0_134, %c0_135] : memref<8x32xf32, #tpu.memory_space<vmem>>, vector<8x32xf32>
    tpu.vector_store %arg14[%c0_134, %c0_135], %504 {strides = array<i32>} : memref<8x32xf32, #tpu.memory_space<vmem>>, vector<8x32xf32>,
    return
  }
}

</mosaic_0001>

<llo_original>
// kernel: _lambda_.1
$region0: #{_lambda_.1}
  #allocation0 [shape = 'u32[]', space=smem, size = 0x4, offset = 0x4, fixed_abs, tag = 'smem constant byte address 0x4 - core index']
  #allocation1 [shape = 'u32[144,128]{1,0:T(1,128)}', space=vmem, size = 0x12000, scoped, tag = 'internal scratch']
  %s0 = inlined_call_operand.vmem [shape: f32[768,1], index: 0, kind: input, shape index: {}]
  %s1 = inlined_call_operand.vmem [shape: f32[5,1,16], index: 1, kind: input, shape index: {}]
  %s2 = inlined_call_operand.vmem [shape: f32[1,16], index: 2, kind: input, shape index: {}]
  %s3 = inlined_call_operand.vmem [shape: f32[5,16,16], index: 3, kind: input, shape index: {}]
  %s4 = inlined_call_operand.vmem [shape: f32[1,16], index: 4, kind: input, shape index: {}]
  %s5 = inlined_call_operand.vmem [shape: f32[5,16,16], index: 5, kind: input, shape index: {}]
  %s6 = inlined_call_operand.vmem [shape: f32[1,16], index: 6, kind: input, shape index: {}]
  %s7 = inlined_call_operand.vmem [shape: f32[5,16,16], index: 7, kind: input, shape index: {}]
  %s8 = inlined_call_operand.vmem [shape: f32[1,16], index: 8, kind: input, shape index: {}]
  %s9 = inlined_call_operand.vmem [shape: f32[16,512], index: 9, kind: input, shape index: {}]
  %s10 = inlined_call_operand.vmem [shape: f32[32,128], index: 10, kind: input, shape index: {}]
  %s11 = inlined_call_operand.vmem [shape: f32[1,128], index: 11, kind: input, shape index: {}]
  %s12 = inlined_call_operand.vmem [shape: f32[64,128], index: 12, kind: input, shape index: {}]
  %s13 = inlined_call_operand.vmem [shape: f32[1,128], index: 13, kind: input, shape index: {}]
  %s14 = inlined_call_operand.hbm [shape: f32[8,32], index: 14, kind: output, shape index: {}]
  %s15 = sld [smem:[#allocation0]]
  $region66: #{_lambda_.1} parent=0
    _
  %s17 = ssub.s32 1, %s15
  %s18 = scalar_select 0, %s17, %s15
  $region1: #{_lambda_.1} parent=0
    #allocation2 [shape = 'u8[4096]{0}', space=vmem, size = 0x1000, scoped, tag = 'output window, operand 0, single buffered']
    #allocation3 [shape = 's32[1]{0}', space=sflag, size = 0x4, scoped, tag = 'scoped memory for _lambda_.1']
    %19 = vsyncpa [#allocation3], 0
    // Predicated region
    $region2: #{_lambda_.1} parent=1 // pred_check
      _
    $region3: #{_lambda_.1} parent=1 // pred_check_branch
      %21 = sbr.rel (0) target = $region5
    $region4: #{_lambda_.1} parent=1 // pred_region
      _
    $region5: #{_lambda_.1} parent=1 // pred_fallthru
      _
    // Predicated region
    $region6: #{_lambda_.1} parent=1 // pred_check
      _
    $region7: #{_lambda_.1} parent=1 // pred_check_branch
      %23 = sbr.rel (0) target = $region9
    $region8: #{_lambda_.1} parent=1 // pred_region
      _
    $region9: #{_lambda_.1} parent=1 // pred_fallthru
      _
    // Predicated region
    $region10: #{_lambda_.1} parent=1 // pred_check
      _
    $region11: #{_lambda_.1} parent=1 // pred_check_branch
      %25 = sbr.rel (0) target = $region13
    $region12: #{_lambda_.1} parent=1 // pred_region
      _
    $region13: #{_lambda_.1} parent=1 // pred_fallthru
      _
    // Predicated region
    $region14: #{_lambda_.1} parent=1 // pred_check
      _
    $region15: #{_lambda_.1} parent=1 // pred_check_branch
      %27 = sbr.rel (0) target = $region17
    $region16: #{_lambda_.1} parent=1 // pred_region
      _
    $region17: #{_lambda_.1} parent=1 // pred_fallthru
      _
    // Predicated region
    $region18: #{_lambda_.1} parent=1 // pred_check
      _
    $region19: #{_lambda_.1} parent=1 // pred_check_branch
      %29 = sbr.rel (0) target = $region21
    $region20: #{_lambda_.1} parent=1 // pred_region
      _
    $region21: #{_lambda_.1} parent=1 // pred_fallthru
      _
    // Predicated region
    $region22: #{_lambda_.1} parent=1 // pred_check
      _
    $region23: #{_lambda_.1} parent=1 // pred_check_branch
      %31 = sbr.rel (0) target = $region25
    $region24: #{_lambda_.1} parent=1 // pred_region
      _
    $region25: #{_lambda_.1} parent=1 // pred_fallthru
      _
    // Predicated region
    $region26: #{_lambda_.1} parent=1 // pred_check
      _
    $region27: #{_lambda_.1} parent=1 // pred_check_branch
      %33 = sbr.rel (0) target = $region29
    $region28: #{_lambda_.1} parent=1 // pred_region
      _
    $region29: #{_lambda_.1} parent=1 // pred_fallthru
      _
    // Predicated region
    $region30: #{_lambda_.1} parent=1 // pred_check
      _
    $region31: #{_lambda_.1} parent=1 // pred_check_branch
      %35 = sbr.rel (0) target = $region33
    $region32: #{_lambda_.1} parent=1 // pred_region
      _
    $region33: #{_lambda_.1} parent=1 // pred_fallthru
      _
    // Predicated region
    $region34: #{_lambda_.1} parent=1 // pred_check
      _
    $region35: #{_lambda_.1} parent=1 // pred_check_branch
      %37 = sbr.rel (0) target = $region37
    $region36: #{_lambda_.1} parent=1 // pred_region
      _
    $region37: #{_lambda_.1} parent=1 // pred_fallthru
      _
    // Predicated region
    $region38: #{_lambda_.1} parent=1 // pred_check
      _
    $region39: #{_lambda_.1} parent=1 // pred_check_branch
      %39 = sbr.rel (0) target = $region41
    $region40: #{_lambda_.1} parent=1 // pred_region
      _
    $region41: #{_lambda_.1} parent=1 // pred_fallthru
      _
    // Predicated region
    $region42: #{_lambda_.1} parent=1 // pred_check
      _
    $region43: #{_lambda_.1} parent=1 // pred_check_branch
      %41 = sbr.rel (0) target = $region45
    $region44: #{_lambda_.1} parent=1 // pred_region
      _
    $region45: #{_lambda_.1} parent=1 // pred_fallthru
      _
    // Predicated region
    $region46: #{_lambda_.1} parent=1 // pred_check
      _
    $region47: #{_lambda_.1} parent=1 // pred_check_branch
      %43 = sbr.rel (0) target = $region49
    $region48: #{_lambda_.1} parent=1 // pred_region
      _
    $region49: #{_lambda_.1} parent=1 // pred_fallthru
      _
    // Predicated region
    $region50: #{_lambda_.1} parent=1 // pred_check
      _
    $region51: #{_lambda_.1} parent=1 // pred_check_branch
      %45 = sbr.rel (0) target = $region53
    $region52: #{_lambda_.1} parent=1 // pred_region
      _
    $region53: #{_lambda_.1} parent=1 // pred_fallthru
      _
    // Predicated region
    $region54: #{_lambda_.1} parent=1 // pred_check
      _
    $region55: #{_lambda_.1} parent=1 // pred_check_branch
      %47 = sbr.rel (0) target = $region57
    $region56: #{_lambda_.1} parent=1 // pred_region
      _
    $region57: #{_lambda_.1} parent=1 // pred_fallthru
      _
    %v48 = vld [vmem:[%s0] sm:$0xff]
    %v49 = vld [vmem:[%s0 + $0x8] sm:$0xff]
    %v50 = vld [vmem:[%s0 + $0x10] sm:$0xff]
    %v51 = vld [vmem:[%s0 + $0x18] sm:$0xff]
    %v52 = vld [vmem:[%s0 + $0x20] sm:$0xff]
    %v53 = vld [vmem:[%s0 + $0x28] sm:$0xff]
    %v54 = vld [vmem:[%s0 + $0x30] sm:$0xff]
    %v55 = vld [vmem:[%s0 + $0x38] sm:$0xff]
    %v56 = vld [vmem:[%s0 + $0x40] sm:$0xff]
    %v57 = vld [vmem:[%s0 + $0x48] sm:$0xff]
    %v58 = vld [vmem:[%s0 + $0x50] sm:$0xff]
    %v59 = vld [vmem:[%s0 + $0x58] sm:$0xff]
    %v60 = vld [vmem:[%s0 + $0x60] sm:$0xff]
    %v61 = vld [vmem:[%s0 + $0x68] sm:$0xff]
    %v62 = vld [vmem:[%s0 + $0x70] sm:$0xff]
    %v63 = vld [vmem:[%s0 + $0x78] sm:$0xff]
    %v64 = vld [vmem:[%s0 + $0x80] sm:$0xff]
    %v65 = vld [vmem:[%s0 + $0x88] sm:$0xff]
    %v66 = vld [vmem:[%s0 + $0x90] sm:$0xff]
    %v67 = vld [vmem:[%s0 + $0x98] sm:$0xff]
    %v68 = vld [vmem:[%s0 + $0xa0] sm:$0xff]
    %v69 = vld [vmem:[%s0 + $0xa8] sm:$0xff]
    %v70 = vld [vmem:[%s0 + $0xb0] sm:$0xff]
    %v71 = vld [vmem:[%s0 + $0xb8] sm:$0xff]
    %v72 = vld [vmem:[%s0 + $0xc0] sm:$0xff]
    %v73 = vld [vmem:[%s0 + $0xc8] sm:$0xff]
    %v74 = vld [vmem:[%s0 + $0xd0] sm:$0xff]
    %v75 = vld [vmem:[%s0 + $0xd8] sm:$0xff]
    %v76 = vld [vmem:[%s0 + $0xe0] sm:$0xff]
    %v77 = vld [vmem:[%s0 + $0xe8] sm:$0xff]
    %v78 = vld [vmem:[%s0 + $0xf0] sm:$0xff]
    %v79 = vld [vmem:[%s0 + $0xf8] sm:$0xff]
    %v80 = vld [vmem:[%s0 + $0x100] sm:$0xff]
    %v81 = vld [vmem:[%s0 + $0x108] sm:$0xff]
    %v82 = vld [vmem:[%s0 + $0x110] sm:$0xff]
    %v83 = vld [vmem:[%s0 + $0x118] sm:$0xff]
    %v84 = vld [vmem:[%s0 + $0x120] sm:$0xff]
    %v85 = vld [vmem:[%s0 + $0x128] sm:$0xff]
    %v86 = vld [vmem:[%s0 + $0x130] sm:$0xff]
    %v87 = vld [vmem:[%s0 + $0x138] sm:$0xff]
    %v88 = vld [vmem:[%s0 + $0x140] sm:$0xff]
    %v89 = vld [vmem:[%s0 + $0x148] sm:$0xff]
    %v90 = vld [vmem:[%s0 + $0x150] sm:$0xff]
    %v91 = vld [vmem:[%s0 + $0x158] sm:$0xff]
    %v92 = vld [vmem:[%s0 + $0x160] sm:$0xff]
    %v93 = vld [vmem:[%s0 + $0x168] sm:$0xff]
    %v94 = vld [vmem:[%s0 + $0x170] sm:$0xff]
    %v95 = vld [vmem:[%s0 + $0x178] sm:$0xff]
    %v96 = vld [vmem:[%s0 + $0x180] sm:$0xff]
    %v97 = vld [vmem:[%s0 + $0x188] sm:$0xff]
    %v98 = vld [vmem:[%s0 + $0x190] sm:$0xff]
    %v99 = vld [vmem:[%s0 + $0x198] sm:$0xff]
    %v100 = vld [vmem:[%s0 + $0x1a0] sm:$0xff]
    %v101 = vld [vmem:[%s0 + $0x1a8] sm:$0xff]
    %v102 = vld [vmem:[%s0 + $0x1b0] sm:$0xff]
    %v103 = vld [vmem:[%s0 + $0x1b8] sm:$0xff]
    %v104 = vld [vmem:[%s0 + $0x1c0] sm:$0xff]
    %v105 = vld [vmem:[%s0 + $0x1c8] sm:$0xff]
    %v106 = vld [vmem:[%s0 + $0x1d0] sm:$0xff]
    %v107 = vld [vmem:[%s0 + $0x1d8] sm:$0xff]
    %v108 = vld [vmem:[%s0 + $0x1e0] sm:$0xff]
    %v109 = vld [vmem:[%s0 + $0x1e8] sm:$0xff]
    %v110 = vld [vmem:[%s0 + $0x1f0] sm:$0xff]
    %v111 = vld [vmem:[%s0 + $0x1f8] sm:$0xff]
    %v112 = vld [vmem:[%s0 + $0x200] sm:$0xff]
    %v113 = vld [vmem:[%s0 + $0x208] sm:$0xff]
    %v114 = vld [vmem:[%s0 + $0x210] sm:$0xff]
    %v115 = vld [vmem:[%s0 + $0x218] sm:$0xff]
    %v116 = vld [vmem:[%s0 + $0x220] sm:$0xff]
    %v117 = vld [vmem:[%s0 + $0x228] sm:$0xff]
    %v118 = vld [vmem:[%s0 + $0x230] sm:$0xff]
    %v119 = vld [vmem:[%s0 + $0x238] sm:$0xff]
    %v120 = vld [vmem:[%s0 + $0x240] sm:$0xff]
    %v121 = vld [vmem:[%s0 + $0x248] sm:$0xff]
    %v122 = vld [vmem:[%s0 + $0x250] sm:$0xff]
    %v123 = vld [vmem:[%s0 + $0x258] sm:$0xff]
    %v124 = vld [vmem:[%s0 + $0x260] sm:$0xff]
    %v125 = vld [vmem:[%s0 + $0x268] sm:$0xff]
    %v126 = vld [vmem:[%s0 + $0x270] sm:$0xff]
    %v127 = vld [vmem:[%s0 + $0x278] sm:$0xff]
    %v128 = vld [vmem:[%s0 + $0x280] sm:$0xff]
    %v129 = vld [vmem:[%s0 + $0x288] sm:$0xff]
    %v130 = vld [vmem:[%s0 + $0x290] sm:$0xff]
    %v131 = vld [vmem:[%s0 + $0x298] sm:$0xff]
    %v132 = vld [vmem:[%s0 + $0x2a0] sm:$0xff]
    %v133 = vld [vmem:[%s0 + $0x2a8] sm:$0xff]
    %v134 = vld [vmem:[%s0 + $0x2b0] sm:$0xff]
    %v135 = vld [vmem:[%s0 + $0x2b8] sm:$0xff]
    %v136 = vld [vmem:[%s0 + $0x2c0] sm:$0xff]
    %v137 = vld [vmem:[%s0 + $0x2c8] sm:$0xff]
    %v138 = vld [vmem:[%s0 + $0x2d0] sm:$0xff]
    %v139 = vld [vmem:[%s0 + $0x2d8] sm:$0xff]
    %v140 = vld [vmem:[%s0 + $0x2e0] sm:$0xff]
    %v141 = vld [vmem:[%s0 + $0x2e8] sm:$0xff]
    %v142 = vld [vmem:[%s0 + $0x2f0] sm:$0xff]
    %v143 = vld [vmem:[%s0 + $0x2f8] sm:$0xff]
    %v144 = vld [vmem:[%s1] sm:$0x1]
    %146 = vset.pattern.permute.xlu0 0
    %147 = vperm.xlu0 %146, %v48
    %v148 = vpop.permute.xlu0 %147
    %151 = vset.pattern.permute.xlu0 0
    %152 = vperm.xlu0 %151, %v49
    %v153 = vpop.permute.xlu0 %152
    %156 = vset.pattern.permute.xlu0 0
    %157 = vperm.xlu0 %156, %v50
    %v158 = vpop.permute.xlu0 %157
    %161 = vset.pattern.permute.xlu0 0
    %162 = vperm.xlu0 %161, %v51
    %v163 = vpop.permute.xlu0 %162
    %166 = vset.pattern.permute.xlu0 0
    %167 = vperm.xlu0 %166, %v52
    %v168 = vpop.permute.xlu0 %167
    %171 = vset.pattern.permute.xlu0 0
    %172 = vperm.xlu0 %171, %v53
    %v173 = vpop.permute.xlu0 %172
    %176 = vset.pattern.permute.xlu0 0
    %177 = vperm.xlu0 %176, %v54
    %v178 = vpop.permute.xlu0 %177
    %181 = vset.pattern.permute.xlu0 0
    %182 = vperm.xlu0 %181, %v55
    %v183 = vpop.permute.xlu0 %182
    %186 = vset.pattern.permute.xlu0 0
    %187 = vperm.xlu0 %186, %v56
    %v188 = vpop.permute.xlu0 %187
    %191 = vset.pattern.permute.xlu0 0
    %192 = vperm.xlu0 %191, %v57
    %v193 = vpop.permute.xlu0 %192
    %196 = vset.pattern.permute.xlu0 0
    %197 = vperm.xlu0 %196, %v58
    %v198 = vpop.permute.xlu0 %197
    %201 = vset.pattern.permute.xlu0 0
    %202 = vperm.xlu0 %201, %v59
    %v203 = vpop.permute.xlu0 %202
    %206 = vset.pattern.permute.xlu0 0
    %207 = vperm.xlu0 %206, %v60
    %v208 = vpop.permute.xlu0 %207
    %211 = vset.pattern.permute.xlu0 0
    %212 = vperm.xlu0 %211, %v61
    %v213 = vpop.permute.xlu0 %212
    %216 = vset.pattern.permute.xlu0 0
    %217 = vperm.xlu0 %216, %v62
    %v218 = vpop.permute.xlu0 %217
    %221 = vset.pattern.permute.xlu0 0
    %222 = vperm.xlu0 %221, %v63
    %v223 = vpop.permute.xlu0 %222
    %226 = vset.pattern.permute.xlu0 0
    %227 = vperm.xlu0 %226, %v64
    %v228 = vpop.permute.xlu0 %227
    %231 = vset.pattern.permute.xlu0 0
    %232 = vperm.xlu0 %231, %v65
    %v233 = vpop.permute.xlu0 %232
    %236 = vset.pattern.permute.xlu0 0
    %237 = vperm.xlu0 %236, %v66
    %v238 = vpop.permute.xlu0 %237
    %241 = vset.pattern.permute.xlu0 0
    %242 = vperm.xlu0 %241, %v67
    %v243 = vpop.permute.xlu0 %242
    %246 = vset.pattern.permute.xlu0 0
    %247 = vperm.xlu0 %246, %v68
    %v248 = vpop.permute.xlu0 %247
    %251 = vset.pattern.permute.xlu0 0
    %252 = vperm.xlu0 %251, %v69
    %v253 = vpop.permute.xlu0 %252
    %256 = vset.pattern.permute.xlu0 0
    %257 = vperm.xlu0 %256, %v70
    %v258 = vpop.permute.xlu0 %257
    %261 = vset.pattern.permute.xlu0 0
    %262 = vperm.xlu0 %261, %v71
    %v263 = vpop.permute.xlu0 %262
    %266 = vset.pattern.permute.xlu0 0
    %267 = vperm.xlu0 %266, %v72
    %v268 = vpop.permute.xlu0 %267
    %271 = vset.pattern.permute.xlu0 0
    %272 = vperm.xlu0 %271, %v73
    %v273 = vpop.permute.xlu0 %272
    %276 = vset.pattern.permute.xlu0 0
    %277 = vperm.xlu0 %276, %v74
    %v278 = vpop.permute.xlu0 %277
    %281 = vset.pattern.permute.xlu0 0
    %282 = vperm.xlu0 %281, %v75
    %v283 = vpop.permute.xlu0 %282
    %286 = vset.pattern.permute.xlu0 0
    %287 = vperm.xlu0 %286, %v76
    %v288 = vpop.permute.xlu0 %287
    %291 = vset.pattern.permute.xlu0 0
    %292 = vperm.xlu0 %291, %v77
    %v293 = vpop.permute.xlu0 %292
    %296 = vset.pattern.permute.xlu0 0
    %297 = vperm.xlu0 %296, %v78
    %v298 = vpop.permute.xlu0 %297
    %301 = vset.pattern.permute.xlu0 0
    %302 = vperm.xlu0 %301, %v79
    %v303 = vpop.permute.xlu0 %302
    %306 = vset.pattern.permute.xlu0 0
    %307 = vperm.xlu0 %306, %v80
    %v308 = vpop.permute.xlu0 %307
    %311 = vset.pattern.permute.xlu0 0
    %312 = vperm.xlu0 %311, %v81
    %v313 = vpop.permute.xlu0 %312
    %316 = vset.pattern.permute.xlu0 0
    %317 = vperm.xlu0 %316, %v82
    %v318 = vpop.permute.xlu0 %317
    %321 = vset.pattern.permute.xlu0 0
    %322 = vperm.xlu0 %321, %v83
    %v323 = vpop.permute.xlu0 %322
    %326 = vset.pattern.permute.xlu0 0
    %327 = vperm.xlu0 %326, %v84
    %v328 = vpop.permute.xlu0 %327
    %331 = vset.pattern.permute.xlu0 0
    %332 = vperm.xlu0 %331, %v85
    %v333 = vpop.permute.xlu0 %332
    %336 = vset.pattern.permute.xlu0 0
    %337 = vperm.xlu0 %336, %v86
    %v338 = vpop.permute.xlu0 %337
    %341 = vset.pattern.permute.xlu0 0
    %342 = vperm.xlu0 %341, %v87
    %v343 = vpop.permute.xlu0 %342
    %346 = vset.pattern.permute.xlu0 0
    %347 = vperm.xlu0 %346, %v88
    %v348 = vpop.permute.xlu0 %347
    %351 = vset.pattern.permute.xlu0 0
    %352 = vperm.xlu0 %351, %v89
    %v353 = vpop.permute.xlu0 %352
    %356 = vset.pattern.permute.xlu0 0
    %357 = vperm.xlu0 %356, %v90
    %v358 = vpop.permute.xlu0 %357
    %361 = vset.pattern.permute.xlu0 0
    %362 = vperm.xlu0 %361, %v91
    %v363 = vpop.permute.xlu0 %362
    %366 = vset.pattern.permute.xlu0 0
    %367 = vperm.xlu0 %366, %v92
    %v368 = vpop.permute.xlu0 %367
    %371 = vset.pattern.permute.xlu0 0
    %372 = vperm.xlu0 %371, %v93
    %v373 = vpop.permute.xlu0 %372
    %376 = vset.pattern.permute.xlu0 0
    %377 = vperm.xlu0 %376, %v94
    %v378 = vpop.permute.xlu0 %377
    %381 = vset.pattern.permute.xlu0 0
    %382 = vperm.xlu0 %381, %v95
    %v383 = vpop.permute.xlu0 %382
    %386 = vset.pattern.permute.xlu0 0
    %387 = vperm.xlu0 %386, %v96
    %v388 = vpop.permute.xlu0 %387
    %391 = vset.pattern.permute.xlu0 0
    %392 = vperm.xlu0 %391, %v97
    %v393 = vpop.permute.xlu0 %392
    %396 = vset.pattern.permute.xlu0 0
    %397 = vperm.xlu0 %396, %v98
    %v398 = vpop.permute.xlu0 %397
    %401 = vset.pattern.permute.xlu0 0
    %402 = vperm.xlu0 %401, %v99
    %v403 = vpop.permute.xlu0 %402
    %406 = vset.pattern.permute.xlu0 0
    %407 = vperm.xlu0 %406, %v100
    %v408 = vpop.permute.xlu0 %407
    %411 = vset.pattern.permute.xlu0 0
    %412 = vperm.xlu0 %411, %v101
    %v413 = vpop.permute.xlu0 %412
    %416 = vset.pattern.permute.xlu0 0
    %417 = vperm.xlu0 %416, %v102
    %v418 = vpop.permute.xlu0 %417
    %421 = vset.pattern.permute.xlu0 0
    %422 = vperm.xlu0 %421, %v103
    %v423 = vpop.permute.xlu0 %422
    %426 = vset.pattern.permute.xlu0 0
    %427 = vperm.xlu0 %426, %v104
    %v428 = vpop.permute.xlu0 %427
    %431 = vset.pattern.permute.xlu0 0
    %432 = vperm.xlu0 %431, %v105
    %v433 = vpop.permute.xlu0 %432
    %436 = vset.pattern.permute.xlu0 0
    %437 = vperm.xlu0 %436, %v106
    %v438 = vpop.permute.xlu0 %437
    %441 = vset.pattern.permute.xlu0 0
    %442 = vperm.xlu0 %441, %v107
    %v443 = vpop.permute.xlu0 %442
    %446 = vset.pattern.permute.xlu0 0
    %447 = vperm.xlu0 %446, %v108
    %v448 = vpop.permute.xlu0 %447
    %451 = vset.pattern.permute.xlu0 0
    %452 = vperm.xlu0 %451, %v109
    %v453 = vpop.permute.xlu0 %452
    %456 = vset.pattern.permute.xlu0 0
    %457 = vperm.xlu0 %456, %v110
    %v458 = vpop.permute.xlu0 %457
    %461 = vset.pattern.permute.xlu0 0
    %462 = vperm.xlu0 %461, %v111
    %v463 = vpop.permute.xlu0 %462
    %466 = vset.pattern.permute.xlu0 0
    %467 = vperm.xlu0 %466, %v112
    %v468 = vpop.permute.xlu0 %467
    %471 = vset.pattern.permute.xlu0 0
    %472 = vperm.xlu0 %471, %v113
    %v473 = vpop.permute.xlu0 %472
    %476 = vset.pattern.permute.xlu0 0
    %477 = vperm.xlu0 %476, %v114
    %v478 = vpop.permute.xlu0 %477
    %481 = vset.pattern.permute.xlu0 0
    %482 = vperm.xlu0 %481, %v115
    %v483 = vpop.permute.xlu0 %482
    %486 = vset.pattern.permute.xlu0 0
    %487 = vperm.xlu0 %486, %v116
    %v488 = vpop.permute.xlu0 %487
    %491 = vset.pattern.permute.xlu0 0
    %492 = vperm.xlu0 %491, %v117
    %v493 = vpop.permute.xlu0 %492
    %496 = vset.pattern.permute.xlu0 0
    %497 = vperm.xlu0 %496, %v118
    %v498 = vpop.permute.xlu0 %497
    %501 = vset.pattern.permute.xlu0 0
    %502 = vperm.xlu0 %501, %v119
    %v503 = vpop.permute.xlu0 %502
    %506 = vset.pattern.permute.xlu0 0
    %507 = vperm.xlu0 %506, %v120
    %v508 = vpop.permute.xlu0 %507
    %511 = vset.pattern.permute.xlu0 0
    %512 = vperm.xlu0 %511, %v121
    %v513 = vpop.permute.xlu0 %512
    %516 = vset.pattern.permute.xlu0 0
    %517 = vperm.xlu0 %516, %v122
    %v518 = vpop.permute.xlu0 %517
    %521 = vset.pattern.permute.xlu0 0
    %522 = vperm.xlu0 %521, %v123
    %v523 = vpop.permute.xlu0 %522
    %526 = vset.pattern.permute.xlu0 0
    %527 = vperm.xlu0 %526, %v124
    %v528 = vpop.permute.xlu0 %527
    %531 = vset.pattern.permute.xlu0 0
    %532 = vperm.xlu0 %531, %v125
    %v533 = vpop.permute.xlu0 %532
    %536 = vset.pattern.permute.xlu0 0
    %537 = vperm.xlu0 %536, %v126
    %v538 = vpop.permute.xlu0 %537
    %541 = vset.pattern.permute.xlu0 0
    %542 = vperm.xlu0 %541, %v127
    %v543 = vpop.permute.xlu0 %542
    %v546 = vlaneseq
    %v547 = vshrl.u32 %v546, 7
    %v548 = vsub.s32 0, %v547
    %v549 = vrot.slane %v144, %v548
    %v551 = vmul.f32 %v148, %v549
    %v552 = vmul.f32 %v153, %v549
    %v553 = vmul.f32 %v158, %v549
    %v554 = vmul.f32 %v163, %v549
    %v555 = vmul.f32 %v168, %v549
    %v556 = vmul.f32 %v173, %v549
    %v557 = vmul.f32 %v178, %v549
    %v558 = vmul.f32 %v183, %v549
    %v559 = vmul.f32 %v188, %v549
    %v560 = vmul.f32 %v193, %v549
    %v561 = vmul.f32 %v198, %v549
    %v562 = vmul.f32 %v203, %v549
    %v563 = vmul.f32 %v208, %v549
    %v564 = vmul.f32 %v213, %v549
    %v565 = vmul.f32 %v218, %v549
    %v566 = vmul.f32 %v223, %v549
    %v567 = vmul.f32 %v228, %v549
    %v568 = vmul.f32 %v233, %v549
    %v569 = vmul.f32 %v238, %v549
    %v570 = vmul.f32 %v243, %v549
    %v571 = vmul.f32 %v248, %v549
    %v572 = vmul.f32 %v253, %v549
    %v573 = vmul.f32 %v258, %v549
    %v574 = vmul.f32 %v263, %v549
    %v575 = vmul.f32 %v268, %v549
    %v576 = vmul.f32 %v273, %v549
    %v577 = vmul.f32 %v278, %v549
    %v578 = vmul.f32 %v283, %v549
    %v579 = vmul.f32 %v288, %v549
    %v580 = vmul.f32 %v293, %v549
    %v581 = vmul.f32 %v298, %v549
    %v582 = vmul.f32 %v303, %v549
    %v583 = vmul.f32 %v308, %v549
    %v584 = vmul.f32 %v313, %v549
    %v585 = vmul.f32 %v318, %v549
    %v586 = vmul.f32 %v323, %v549
    %v587 = vmul.f32 %v328, %v549
    %v588 = vmul.f32 %v333, %v549
    %v589 = vmul.f32 %v338, %v549
    %v590 = vmul.f32 %v343, %v549
    %v591 = vmul.f32 %v348, %v549
    %v592 = vmul.f32 %v353, %v549
    %v593 = vmul.f32 %v358, %v549
    %v594 = vmul.f32 %v363, %v549
    %v595 = vmul.f32 %v368, %v549
    %v596 = vmul.f32 %v373, %v549
    %v597 = vmul.f32 %v378, %v549
    %v598 = vmul.f32 %v383, %v549
    %v599 = vmul.f32 %v388, %v549
    %v600 = vmul.f32 %v393, %v549
    %v601 = vmul.f32 %v398, %v549
    %v602 = vmul.f32 %v403, %v549
    %v603 = vmul.f32 %v408, %v549
    %v604 = vmul.f32 %v413, %v549
    %v605 = vmul.f32 %v418, %v549
    %v606 = vmul.f32 %v423, %v549
    %v607 = vmul.f32 %v428, %v549
    %v608 = vmul.f32 %v433, %v549
    %v609 = vmul.f32 %v438, %v549
    %v610 = vmul.f32 %v443, %v549
    %v611 = vmul.f32 %v448, %v549
    %v612 = vmul.f32 %v453, %v549
    %v613 = vmul.f32 %v458, %v549
    %v614 = vmul.f32 %v463, %v549
    %v615 = vmul.f32 %v468, %v549
    %v616 = vmul.f32 %v473, %v549
    %v617 = vmul.f32 %v478, %v549
    %v618 = vmul.f32 %v483, %v549
    %v619 = vmul.f32 %v488, %v549
    %v620 = vmul.f32 %v493, %v549
    %v621 = vmul.f32 %v498, %v549
    %v622 = vmul.f32 %v503, %v549
    %v623 = vmul.f32 %v508, %v549
    %v624 = vmul.f32 %v513, %v549
    %v625 = vmul.f32 %v518, %v549
    %v626 = vmul.f32 %v523, %v549
    %v627 = vmul.f32 %v528, %v549
    %v628 = vmul.f32 %v533, %v549
    %v629 = vmul.f32 %v538, %v549
    %v630 = vmul.f32 %v543, %v549
    %v631 = vadd.f32 %v551, 0.0
    %v632 = vadd.f32 %v552, 0.0
    %v633 = vadd.f32 %v553, 0.0
    %v634 = vadd.f32 %v554, 0.0
    %v635 = vadd.f32 %v555, 0.0
    %v636 = vadd.f32 %v556, 0.0
    %v637 = vadd.f32 %v557, 0.0
    %v638 = vadd.f32 %v558, 0.0
    %v639 = vadd.f32 %v559, 0.0
    %v640 = vadd.f32 %v560, 0.0
    %v641 = vadd.f32 %v561, 0.0
    %v642 = vadd.f32 %v562, 0.0
    %v643 = vadd.f32 %v563, 0.0
    %v644 = vadd.f32 %v564, 0.0
    %v645 = vadd.f32 %v565, 0.0
    %v646 = vadd.f32 %v566, 0.0
    %v647 = vadd.f32 %v567, 0.0
    %v648 = vadd.f32 %v568, 0.0
    %v649 = vadd.f32 %v569, 0.0
    %v650 = vadd.f32 %v570, 0.0
    %v651 = vadd.f32 %v571, 0.0
    %v652 = vadd.f32 %v572, 0.0
    %v653 = vadd.f32 %v573, 0.0
    %v654 = vadd.f32 %v574, 0.0
    %v655 = vadd.f32 %v575, 0.0
    %v656 = vadd.f32 %v576, 0.0
    %v657 = vadd.f32 %v577, 0.0
    %v658 = vadd.f32 %v578, 0.0
    %v659 = vadd.f32 %v579, 0.0
    %v660 = vadd.f32 %v580, 0.0
    %v661 = vadd.f32 %v581, 0.0
    %v662 = vadd.f32 %v582, 0.0
    %v663 = vadd.f32 %v583, 0.0
    %v664 = vadd.f32 %v584, 0.0
    %v665 = vadd.f32 %v585, 0.0
    %v666 = vadd.f32 %v586, 0.0
    %v667 = vadd.f32 %v587, 0.0
    %v668 = vadd.f32 %v588, 0.0
    %v669 = vadd.f32 %v589, 0.0
    %v670 = vadd.f32 %v590, 0.0
    %v671 = vadd.f32 %v591, 0.0
    %v672 = vadd.f32 %v592, 0.0
    %v673 = vadd.f32 %v593, 0.0
    %v674 = vadd.f32 %v594, 0.0
    %v675 = vadd.f32 %v595, 0.0
    %v676 = vadd.f32 %v596, 0.0
    %v677 = vadd.f32 %v597, 0.0
    %v678 = vadd.f32 %v598, 0.0
    %v679 = vadd.f32 %v599, 0.0
    %v680 = vadd.f32 %v600, 0.0
    %v681 = vadd.f32 %v601, 0.0
    %v682 = vadd.f32 %v602, 0.0
    %v683 = vadd.f32 %v603, 0.0
    %v684 = vadd.f32 %v604, 0.0
    %v685 = vadd.f32 %v605, 0.0
    %v686 = vadd.f32 %v606, 0.0
    %v687 = vadd.f32 %v607, 0.0
    %v688 = vadd.f32 %v608, 0.0
    %v689 = vadd.f32 %v609, 0.0
    %v690 = vadd.f32 %v610, 0.0
    %v691 = vadd.f32 %v611, 0.0
    %v692 = vadd.f32 %v612, 0.0
    %v693 = vadd.f32 %v613, 0.0
    %v694 = vadd.f32 %v614, 0.0
    %v695 = vadd.f32 %v615, 0.0
    %v696 = vadd.f32 %v616, 0.0
    %v697 = vadd.f32 %v617, 0.0
    %v698 = vadd.f32 %v618, 0.0
    %v699 = vadd.f32 %v619, 0.0
    %v700 = vadd.f32 %v620, 0.0
    %v701 = vadd.f32 %v621, 0.0
    %v702 = vadd.f32 %v622, 0.0
    %v703 = vadd.f32 %v623, 0.0
    %v704 = vadd.f32 %v624, 0.0
    %v705 = vadd.f32 %v625, 0.0
    %v706 = vadd.f32 %v626, 0.0
    %v707 = vadd.f32 %v627, 0.0
    %v708 = vadd.f32 %v628, 0.0
    %v709 = vadd.f32 %v629, 0.0
    %v710 = vadd.f32 %v630, 0.0
    %s711 = scalar_lea.vmem %s1, 1
    %v712 = vld [vmem:[%s711] sm:$0x1]
    %714 = vset.pattern.permute.xlu0 0
    %715 = vperm.xlu0 %714, %v128
    %v716 = vpop.permute.xlu0 %715
    %719 = vset.pattern.permute.xlu0 0
    %720 = vperm.xlu0 %719, %v129
    %v721 = vpop.permute.xlu0 %720
    %724 = vset.pattern.permute.xlu0 0
    %725 = vperm.xlu0 %724, %v130
    %v726 = vpop.permute.xlu0 %725
    %729 = vset.pattern.permute.xlu0 0
    %730 = vperm.xlu0 %729, %v131
    %v731 = vpop.permute.xlu0 %730
    %v734 = vlaneseq
    %v735 = vshrl.u32 %v734, 7
    %v736 = vsub.s32 0, %v735
    %v737 = vrot.slane %v712, %v736
    %v739 = vmul.f32 %v168, %v737
    %v740 = vmul.f32 %v173, %v737
    %v741 = vmul.f32 %v178, %v737
    %v742 = vmul.f32 %v183, %v737
    %v743 = vmul.f32 %v188, %v737
    %v744 = vmul.f32 %v193, %v737
    %v745 = vmul.f32 %v198, %v737
    %v746 = vmul.f32 %v203, %v737
    %v747 = vmul.f32 %v208, %v737
    %v748 = vmul.f32 %v213, %v737
    %v749 = vmul.f32 %v218, %v737
    %v750 = vmul.f32 %v223, %v737
    %v751 = vmul.f32 %v228, %v737
    %v752 = vmul.f32 %v233, %v737
    %v753 = vmul.f32 %v238, %v737
    %v754 = vmul.f32 %v243, %v737
    %v755 = vmul.f32 %v248, %v737
    %v756 = vmul.f32 %v253, %v737
    %v757 = vmul.f32 %v258, %v737
    %v758 = vmul.f32 %v263, %v737
    %v759 = vmul.f32 %v268, %v737
    %v760 = vmul.f32 %v273, %v737
    %v761 = vmul.f32 %v278, %v737
    %v762 = vmul.f32 %v283, %v737
    %v763 = vmul.f32 %v288, %v737
    %v764 = vmul.f32 %v293, %v737
    %v765 = vmul.f32 %v298, %v737
    %v766 = vmul.f32 %v303, %v737
    %v767 = vmul.f32 %v308, %v737
    %v768 = vmul.f32 %v313, %v737
    %v769 = vmul.f32 %v318, %v737
    %v770 = vmul.f32 %v323, %v737
    %v771 = vmul.f32 %v328, %v737
    %v772 = vmul.f32 %v333, %v737
    %v773 = vmul.f32 %v338, %v737
    %v774 = vmul.f32 %v343, %v737
    %v775 = vmul.f32 %v348, %v737
    %v776 = vmul.f32 %v353, %v737
    %v777 = vmul.f32 %v358, %v737
    %v778 = vmul.f32 %v363, %v737
    %v779 = vmul.f32 %v368, %v737
    %v780 = vmul.f32 %v373, %v737
    %v781 = vmul.f32 %v378, %v737
    %v782 = vmul.f32 %v383, %v737
    %v783 = vmul.f32 %v388, %v737
    %v784 = vmul.f32 %v393, %v737
    %v785 = vmul.f32 %v398, %v737
    %v786 = vmul.f32 %v403, %v737
    %v787 = vmul.f32 %v408, %v737
    %v788 = vmul.f32 %v413, %v737
    %v789 = vmul.f32 %v418, %v737
    %v790 = vmul.f32 %v423, %v737
    %v791 = vmul.f32 %v428, %v737
    %v792 = vmul.f32 %v433, %v737
    %v793 = vmul.f32 %v438, %v737
    %v794 = vmul.f32 %v443, %v737
    %v795 = vmul.f32 %v448, %v737
    %v796 = vmul.f32 %v453, %v737
    %v797 = vmul.f32 %v458, %v737
    %v798 = vmul.f32 %v463, %v737
    %v799 = vmul.f32 %v468, %v737
    %v800 = vmul.f32 %v473, %v737
    %v801 = vmul.f32 %v478, %v737
    %v802 = vmul.f32 %v483, %v737
    %v803 = vmul.f32 %v488, %v737
    %v804 = vmul.f32 %v493, %v737
    %v805 = vmul.f32 %v498, %v737
    %v806 = vmul.f32 %v503, %v737
    %v807 = vmul.f32 %v508, %v737
    %v808 = vmul.f32 %v513, %v737
    %v809 = vmul.f32 %v518, %v737
    %v810 = vmul.f32 %v523, %v737
    %v811 = vmul.f32 %v528, %v737
    %v812 = vmul.f32 %v533, %v737
    %v813 = vmul.f32 %v538, %v737
    %v814 = vmul.f32 %v543, %v737
    %v815 = vmul.f32 %v716, %v737
    %v816 = vmul.f32 %v721, %v737
    %v817 = vmul.f32 %v726, %v737
    %v818 = vmul.f32 %v731, %v737
    %v819 = vadd.f32 %v631, %v739
    %v820 = vadd.f32 %v632, %v740
    %v821 = vadd.f32 %v633, %v741
    %v822 = vadd.f32 %v634, %v742
    %v823 = vadd.f32 %v635, %v743
    %v824 = vadd.f32 %v636, %v744
    %v825 = vadd.f32 %v637, %v745
    %v826 = vadd.f32 %v638, %v746
    %v827 = vadd.f32 %v639, %v747
    %v828 = vadd.f32 %v640, %v748
    %v829 = vadd.f32 %v641, %v749
    %v830 = vadd.f32 %v642, %v750
    %v831 = vadd.f32 %v643, %v751
    %v832 = vadd.f32 %v644, %v752
    %v833 = vadd.f32 %v645, %v753
    %v834 = vadd.f32 %v646, %v754
    %v835 = vadd.f32 %v647, %v755
    %v836 = vadd.f32 %v648, %v756
    %v837 = vadd.f32 %v649, %v757
    %v838 = vadd.f32 %v650, %v758
    %v839 = vadd.f32 %v651, %v759
    %v840 = vadd.f32 %v652, %v760
    %v841 = vadd.f32 %v653, %v761
    %v842 = vadd.f32 %v654, %v762
    %v843 = vadd.f32 %v655, %v763
    %v844 = vadd.f32 %v656, %v764
    %v845 = vadd.f32 %v657, %v765
    %v846 = vadd.f32 %v658, %v766
    %v847 = vadd.f32 %v659, %v767
    %v848 = vadd.f32 %v660, %v768
    %v849 = vadd.f32 %v661, %v769
    %v850 = vadd.f32 %v662, %v770
    %v851 = vadd.f32 %v663, %v771
    %v852 = vadd.f32 %v664, %v772
    %v853 = vadd.f32 %v665, %v773
    %v854 = vadd.f32 %v666, %v774
    %v855 = vadd.f32 %v667, %v775
    %v856 = vadd.f32 %v668, %v776
    %v857 = vadd.f32 %v669, %v777
    %v858 = vadd.f32 %v670, %v778
    %v859 = vadd.f32 %v671, %v779
    %v860 = vadd.f32 %v672, %v780
    %v861 = vadd.f32 %v673, %v781
    %v862 = vadd.f32 %v674, %v782
    %v863 = vadd.f32 %v675, %v783
    %v864 = vadd.f32 %v676, %v784
    %v865 = vadd.f32 %v677, %v785
    %v866 = vadd.f32 %v678, %v786
    %v867 = vadd.f32 %v679, %v787
    %v868 = vadd.f32 %v680, %v788
    %v869 = vadd.f32 %v681, %v789
    %v870 = vadd.f32 %v682, %v790
    %v871 = vadd.f32 %v683, %v791
    %v872 = vadd.f32 %v684, %v792
    %v873 = vadd.f32 %v685, %v793
    %v874 = vadd.f32 %v686, %v794
    %v875 = vadd.f32 %v687, %v795
    %v876 = vadd.f32 %v688, %v796
    %v877 = vadd.f32 %v689, %v797
    %v878 = vadd.f32 %v690, %v798
    %v879 = vadd.f32 %v691, %v799
    %v880 = vadd.f32 %v692, %v800
    %v881 = vadd.f32 %v693, %v801
    %v882 = vadd.f32 %v694, %v802
    %v883 = vadd.f32 %v695, %v803
    %v884 = vadd.f32 %v696, %v804
    %v885 = vadd.f32 %v697, %v805
    %v886 = vadd.f32 %v698, %v806
    %v887 = vadd.f32 %v699, %v807
    %v888 = vadd.f32 %v700, %v808
    %v889 = vadd.f32 %v701, %v809
    %v890 = vadd.f32 %v702, %v810
    %v891 = vadd.f32 %v703, %v811
    %v892 = vadd.f32 %v704, %v812
    %v893 = vadd.f32 %v705, %v813
    %v894 = vadd.f32 %v706, %v814
    %v895 = vadd.f32 %v707, %v815
    %v896 = vadd.f32 %v708, %v816
    %v897 = vadd.f32 %v709, %v817
    %v898 = vadd.f32 %v710, %v818
    %s899 = scalar_lea.vmem %s1, 2
    %v900 = vld [vmem:[%s899] sm:$0x1]
    %902 = vset.pattern.permute.xlu0 0
    %903 = vperm.xlu0 %902, %v132
    %v904 = vpop.permute.xlu0 %903
    %907 = vset.pattern.permute.xlu0 0
    %908 = vperm.xlu0 %907, %v133
    %v909 = vpop.permute.xlu0 %908
    %912 = vset.pattern.permute.xlu0 0
    %913 = vperm.xlu0 %912, %v134
    %v914 = vpop.permute.xlu0 %913
    %917 = vset.pattern.permute.xlu0 0
    %918 = vperm.xlu0 %917, %v135
    %v919 = vpop.permute.xlu0 %918
    %v922 = vlaneseq
    %v923 = vshrl.u32 %v922, 7
    %v924 = vsub.s32 0, %v923
    %v925 = vrot.slane %v900, %v924
    %v927 = vmul.f32 %v188, %v925
    %v928 = vmul.f32 %v193, %v925
    %v929 = vmul.f32 %v198, %v925
    %v930 = vmul.f32 %v203, %v925
    %v931 = vmul.f32 %v208, %v925
    %v932 = vmul.f32 %v213, %v925
    %v933 = vmul.f32 %v218, %v925
    %v934 = vmul.f32 %v223, %v925
    %v935 = vmul.f32 %v228, %v925
    %v936 = vmul.f32 %v233, %v925
    %v937 = vmul.f32 %v238, %v925
    %v938 = vmul.f32 %v243, %v925
    %v939 = vmul.f32 %v248, %v925
    %v940 = vmul.f32 %v253, %v925
    %v941 = vmul.f32 %v258, %v925
    %v942 = vmul.f32 %v263, %v925
    %v943 = vmul.f32 %v268, %v925
    %v944 = vmul.f32 %v273, %v925
    %v945 = vmul.f32 %v278, %v925
    %v946 = vmul.f32 %v283, %v925
    %v947 = vmul.f32 %v288, %v925
    %v948 = vmul.f32 %v293, %v925
    %v949 = vmul.f32 %v298, %v925
    %v950 = vmul.f32 %v303, %v925
    %v951 = vmul.f32 %v308, %v925
    %v952 = vmul.f32 %v313, %v925
    %v953 = vmul.f32 %v318, %v925
    %v954 = vmul.f32 %v323, %v925
    %v955 = vmul.f32 %v328, %v925
    %v956 = vmul.f32 %v333, %v925
    %v957 = vmul.f32 %v338, %v925
    %v958 = vmul.f32 %v343, %v925
    %v959 = vmul.f32 %v348, %v925
    %v960 = vmul.f32 %v353, %v925
    %v961 = vmul.f32 %v358, %v925
    %v962 = vmul.f32 %v363, %v925
    %v963 = vmul.f32 %v368, %v925
    %v964 = vmul.f32 %v373, %v925
    %v965 = vmul.f32 %v378, %v925
    %v966 = vmul.f32 %v383, %v925
    %v967 = vmul.f32 %v388, %v925
    %v968 = vmul.f32 %v393, %v925
    %v969 = vmul.f32 %v398, %v925
    %v970 = vmul.f32 %v403, %v925
    %v971 = vmul.f32 %v408, %v925
    %v972 = vmul.f32 %v413, %v925
    %v973 = vmul.f32 %v418, %v925
    %v974 = vmul.f32 %v423, %v925
    %v975 = vmul.f32 %v428, %v925
    %v976 = vmul.f32 %v433, %v925
    %v977 = vmul.f32 %v438, %v925
    %v978 = vmul.f32 %v443, %v925
    %v979 = vmul.f32 %v448, %v925
    %v980 = vmul.f32 %v453, %v925
    %v981 = vmul.f32 %v458, %v925
    %v982 = vmul.f32 %v463, %v925
    %v983 = vmul.f32 %v468, %v925
    %v984 = vmul.f32 %v473, %v925
    %v985 = vmul.f32 %v478, %v925
    %v986 = vmul.f32 %v483, %v925
    %v987 = vmul.f32 %v488, %v925
    %v988 = vmul.f32 %v493, %v925
    %v989 = vmul.f32 %v498, %v925
    %v990 = vmul.f32 %v503, %v925
    %v991 = vmul.f32 %v508, %v925
    %v992 = vmul.f32 %v513, %v925
    %v993 = vmul.f32 %v518, %v925
    %v994 = vmul.f32 %v523, %v925
    %v995 = vmul.f32 %v528, %v925
    %v996 = vmul.f32 %v533, %v925
    %v997 = vmul.f32 %v538, %v925
    %v998 = vmul.f32 %v543, %v925
    %v999 = vmul.f32 %v716, %v925
    %v1000 = vmul.f32 %v721, %v925
    %v1001 = vmul.f32 %v726, %v925
    %v1002 = vmul.f32 %v731, %v925
    %v1003 = vmul.f32 %v904, %v925
    %v1004 = vmul.f32 %v909, %v925
    %v1005 = vmul.f32 %v914, %v925
    %v1006 = vmul.f32 %v919, %v925
    %v1007 = vadd.f32 %v819, %v927
    %v1008 = vadd.f32 %v820, %v928
    %v1009 = vadd.f32 %v821, %v929
    %v1010 = vadd.f32 %v822, %v930
    %v1011 = vadd.f32 %v823, %v931
    %v1012 = vadd.f32 %v824, %v932
    %v1013 = vadd.f32 %v825, %v933
    %v1014 = vadd.f32 %v826, %v934
    %v1015 = vadd.f32 %v827, %v935
    %v1016 = vadd.f32 %v828, %v936
    %v1017 = vadd.f32 %v829, %v937
    %v1018 = vadd.f32 %v830, %v938
    %v1019 = vadd.f32 %v831, %v939
    %v1020 = vadd.f32 %v832, %v940
    %v1021 = vadd.f32 %v833, %v941
    %v1022 = vadd.f32 %v834, %v942
    %v1023 = vadd.f32 %v835, %v943
    %v1024 = vadd.f32 %v836, %v944
    %v1025 = vadd.f32 %v837, %v945
    %v1026 = vadd.f32 %v838, %v946
    %v1027 = vadd.f32 %v839, %v947
    %v1028 = vadd.f32 %v840, %v948
    %v1029 = vadd.f32 %v841, %v949
    %v1030 = vadd.f32 %v842, %v950
    %v1031 = vadd.f32 %v843, %v951
    %v1032 = vadd.f32 %v844, %v952
    %v1033 = vadd.f32 %v845, %v953
    %v1034 = vadd.f32 %v846, %v954
    %v1035 = vadd.f32 %v847, %v955
    %v1036 = vadd.f32 %v848, %v956
    %v1037 = vadd.f32 %v849, %v957
    %v1038 = vadd.f32 %v850, %v958
    %v1039 = vadd.f32 %v851, %v959
    %v1040 = vadd.f32 %v852, %v960
    %v1041 = vadd.f32 %v853, %v961
    %v1042 = vadd.f32 %v854, %v962
    %v1043 = vadd.f32 %v855, %v963
    %v1044 = vadd.f32 %v856, %v964
    %v1045 = vadd.f32 %v857, %v965
    %v1046 = vadd.f32 %v858, %v966
    %v1047 = vadd.f32 %v859, %v967
    %v1048 = vadd.f32 %v860, %v968
    %v1049 = vadd.f32 %v861, %v969
    %v1050 = vadd.f32 %v862, %v970
    %v1051 = vadd.f32 %v863, %v971
    %v1052 = vadd.f32 %v864, %v972
    %v1053 = vadd.f32 %v865, %v973
    %v1054 = vadd.f32 %v866, %v974
    %v1055 = vadd.f32 %v867, %v975
    %v1056 = vadd.f32 %v868, %v976
    %v1057 = vadd.f32 %v869, %v977
    %v1058 = vadd.f32 %v870, %v978
    %v1059 = vadd.f32 %v871, %v979
    %v1060 = vadd.f32 %v872, %v980
    %v1061 = vadd.f32 %v873, %v981
    %v1062 = vadd.f32 %v874, %v982
    %v1063 = vadd.f32 %v875, %v983
    %v1064 = vadd.f32 %v876, %v984
    %v1065 = vadd.f32 %v877, %v985
    %v1066 = vadd.f32 %v878, %v986
    %v1067 = vadd.f32 %v879, %v987
    %v1068 = vadd.f32 %v880, %v988
    %v1069 = vadd.f32 %v881, %v989
    %v1070 = vadd.f32 %v882, %v990
    %v1071 = vadd.f32 %v883, %v991
    %v1072 = vadd.f32 %v884, %v992
    %v1073 = vadd.f32 %v885, %v993
    %v1074 = vadd.f32 %v886, %v994
    %v1075 = vadd.f32 %v887, %v995
    %v1076 = vadd.f32 %v888, %v996
    %v1077 = vadd.f32 %v889, %v997
    %v1078 = vadd.f32 %v890, %v998
    %v1079 = vadd.f32 %v891, %v999
    %v1080 = vadd.f32 %v892, %v1000
    %v1081 = vadd.f32 %v893, %v1001
    %v1082 = vadd.f32 %v894, %v1002
    %v1083 = vadd.f32 %v895, %v1003
    %v1084 = vadd.f32 %v896, %v1004
    %v1085 = vadd.f32 %v897, %v1005
    %v1086 = vadd.f32 %v898, %v1006
    %s1087 = scalar_lea.vmem %s1, 3
    %v1088 = vld [vmem:[%s1087] sm:$0x1]
    %1090 = vset.pattern.permute.xlu0 0
    %1091 = vperm.xlu0 %1090, %v136
    %v1092 = vpop.permute.xlu0 %1091
    %1095 = vset.pattern.permute.xlu0 0
    %1096 = vperm.xlu0 %1095, %v137
    %v1097 = vpop.permute.xlu0 %1096
    %1100 = vset.pattern.permute.xlu0 0
    %1101 = vperm.xlu0 %1100, %v138
    %v1102 = vpop.permute.xlu0 %1101
    %1105 = vset.pattern.permute.xlu0 0
    %1106 = vperm.xlu0 %1105, %v139
    %v1107 = vpop.permute.xlu0 %1106
    %v1110 = vlaneseq
    %v1111 = vshrl.u32 %v1110, 7
    %v1112 = vsub.s32 0, %v1111
    %v1113 = vrot.slane %v1088, %v1112
    %v1115 = vmul.f32 %v208, %v1113
    %v1116 = vmul.f32 %v213, %v1113
    %v1117 = vmul.f32 %v218, %v1113
    %v1118 = vmul.f32 %v223, %v1113
    %v1119 = vmul.f32 %v228, %v1113
    %v1120 = vmul.f32 %v233, %v1113
    %v1121 = vmul.f32 %v238, %v1113
    %v1122 = vmul.f32 %v243, %v1113
    %v1123 = vmul.f32 %v248, %v1113
    %v1124 = vmul.f32 %v253, %v1113
    %v1125 = vmul.f32 %v258, %v1113
    %v1126 = vmul.f32 %v263, %v1113
    %v1127 = vmul.f32 %v268, %v1113
    %v1128 = vmul.f32 %v273, %v1113
    %v1129 = vmul.f32 %v278, %v1113
    %v1130 = vmul.f32 %v283, %v1113
    %v1131 = vmul.f32 %v288, %v1113
    %v1132 = vmul.f32 %v293, %v1113
    %v1133 = vmul.f32 %v298, %v1113
    %v1134 = vmul.f32 %v303, %v1113
    %v1135 = vmul.f32 %v308, %v1113
    %v1136 = vmul.f32 %v313, %v1113
    %v1137 = vmul.f32 %v318, %v1113
    %v1138 = vmul.f32 %v323, %v1113
    %v1139 = vmul.f32 %v328, %v1113
    %v1140 = vmul.f32 %v333, %v1113
    %v1141 = vmul.f32 %v338, %v1113
    %v1142 = vmul.f32 %v343, %v1113
    %v1143 = vmul.f32 %v348, %v1113
    %v1144 = vmul.f32 %v353, %v1113
    %v1145 = vmul.f32 %v358, %v1113
    %v1146 = vmul.f32 %v363, %v1113
    %v1147 = vmul.f32 %v368, %v1113
    %v1148 = vmul.f32 %v373, %v1113
    %v1149 = vmul.f32 %v378, %v1113
    %v1150 = vmul.f32 %v383, %v1113
    %v1151 = vmul.f32 %v388, %v1113
    %v1152 = vmul.f32 %v393, %v1113
    %v1153 = vmul.f32 %v398, %v1113
    %v1154 = vmul.f32 %v403, %v1113
    %v1155 = vmul.f32 %v408, %v1113
    %v1156 = vmul.f32 %v413, %v1113
    %v1157 = vmul.f32 %v418, %v1113
    %v1158 = vmul.f32 %v423, %v1113
    %v1159 = vmul.f32 %v428, %v1113
    %v1160 = vmul.f32 %v433, %v1113
    %v1161 = vmul.f32 %v438, %v1113
    %v1162 = vmul.f32 %v443, %v1113
    %v1163 = vmul.f32 %v448, %v1113
    %v1164 = vmul.f32 %v453, %v1113
    %v1165 = vmul.f32 %v458, %v1113
    %v1166 = vmul.f32 %v463, %v1113
    %v1167 = vmul.f32 %v468, %v1113
    %v1168 = vmul.f32 %v473, %v1113
    %v1169 = vmul.f32 %v478, %v1113
    %v1170 = vmul.f32 %v483, %v1113
    %v1171 = vmul.f32 %v488, %v1113
    %v1172 = vmul.f32 %v493, %v1113
    %v1173 = vmul.f32 %v498, %v1113
    %v1174 = vmul.f32 %v503, %v1113
    %v1175 = vmul.f32 %v508, %v1113
    %v1176 = vmul.f32 %v513, %v1113
    %v1177 = vmul.f32 %v518, %v1113
    %v1178 = vmul.f32 %v523, %v1113
    %v1179 = vmul.f32 %v528, %v1113
    %v1180 = vmul.f32 %v533, %v1113
    %v1181 = vmul.f32 %v538, %v1113
    %v1182 = vmul.f32 %v543, %v1113
    %v1183 = vmul.f32 %v716, %v1113
    %v1184 = vmul.f32 %v721, %v1113
    %v1185 = vmul.f32 %v726, %v1113
    %v1186 = vmul.f32 %v731, %v1113
    %v1187 = vmul.f32 %v904, %v1113
    %v1188 = vmul.f32 %v909, %v1113
    %v1189 = vmul.f32 %v914, %v1113
    %v1190 = vmul.f32 %v919, %v1113
    %v1191 = vmul.f32 %v1092, %v1113
    %v1192 = vmul.f32 %v1097, %v1113
    %v1193 = vmul.f32 %v1102, %v1113
    %v1194 = vmul.f32 %v1107, %v1113
    %v1195 = vadd.f32 %v1007, %v1115
    %v1196 = vadd.f32 %v1008, %v1116
    %v1197 = vadd.f32 %v1009, %v1117
    %v1198 = vadd.f32 %v1010, %v1118
    %v1199 = vadd.f32 %v1011, %v1119
    %v1200 = vadd.f32 %v1012, %v1120
    %v1201 = vadd.f32 %v1013, %v1121
    %v1202 = vadd.f32 %v1014, %v1122
    %v1203 = vadd.f32 %v1015, %v1123
    %v1204 = vadd.f32 %v1016, %v1124
    %v1205 = vadd.f32 %v1017, %v1125
    %v1206 = vadd.f32 %v1018, %v1126
    %v1207 = vadd.f32 %v1019, %v1127
    %v1208 = vadd.f32 %v1020, %v1128
    %v1209 = vadd.f32 %v1021, %v1129
    %v1210 = vadd.f32 %v1022, %v1130
    %v1211 = vadd.f32 %v1023, %v1131
    %v1212 = vadd.f32 %v1024, %v1132
    %v1213 = vadd.f32 %v1025, %v1133
    %v1214 = vadd.f32 %v1026, %v1134
    %v1215 = vadd.f32 %v1027, %v1135
    %v1216 = vadd.f32 %v1028, %v1136
    %v1217 = vadd.f32 %v1029, %v1137
    %v1218 = vadd.f32 %v1030, %v1138
    %v1219 = vadd.f32 %v1031, %v1139
    %v1220 = vadd.f32 %v1032, %v1140
    %v1221 = vadd.f32 %v1033, %v1141
    %v1222 = vadd.f32 %v1034, %v1142
    %v1223 = vadd.f32 %v1035, %v1143
    %v1224 = vadd.f32 %v1036, %v1144
    %v1225 = vadd.f32 %v1037, %v1145
    %v1226 = vadd.f32 %v1038, %v1146
    %v1227 = vadd.f32 %v1039, %v1147
    %v1228 = vadd.f32 %v1040, %v1148
    %v1229 = vadd.f32 %v1041, %v1149
    %v1230 = vadd.f32 %v1042, %v1150
    %v1231 = vadd.f32 %v1043, %v1151
    %v1232 = vadd.f32 %v1044, %v1152
    %v1233 = vadd.f32 %v1045, %v1153
    %v1234 = vadd.f32 %v1046, %v1154
    %v1235 = vadd.f32 %v1047, %v1155
    %v1236 = vadd.f32 %v1048, %v1156
    %v1237 = vadd.f32 %v1049, %v1157
    %v1238 = vadd.f32 %v1050, %v1158
    %v1239 = vadd.f32 %v1051, %v1159
    %v1240 = vadd.f32 %v1052, %v1160
    %v1241 = vadd.f32 %v1053, %v1161
    %v1242 = vadd.f32 %v1054, %v1162
    %v1243 = vadd.f32 %v1055, %v1163
    %v1244 = vadd.f32 %v1056, %v1164
    %v1245 = vadd.f32 %v1057, %v1165
    %v1246 = vadd.f32 %v1058, %v1166
    %v1247 = vadd.f32 %v1059, %v1167
    %v1248 = vadd.f32 %v1060, %v1168
    %v1249 = vadd.f32 %v1061, %v1169
    %v1250 = vadd.f32 %v1062, %v1170
    %v1251 = vadd.f32 %v1063, %v1171
    %v1252 = vadd.f32 %v1064, %v1172
    %v1253 = vadd.f32 %v1065, %v1173
    %v1254 = vadd.f32 %v1066, %v1174
    %v1255 = vadd.f32 %v1067, %v1175
    %v1256 = vadd.f32 %v1068, %v1176
    %v1257 = vadd.f32 %v1069, %v1177
    %v1258 = vadd.f32 %v1070, %v1178
    %v1259 = vadd.f32 %v1071, %v1179
    %v1260 = vadd.f32 %v1072, %v1180
    %v1261 = vadd.f32 %v1073, %v1181
    %v1262 = vadd.f32 %v1074, %v1182
    %v1263 = vadd.f32 %v1075, %v1183
    %v1264 = vadd.f32 %v1076, %v1184
    %v1265 = vadd.f32 %v1077, %v1185
    %v1266 = vadd.f32 %v1078, %v1186
    %v1267 = vadd.f32 %v1079, %v1187
    %v1268 = vadd.f32 %v1080, %v1188
    %v1269 = vadd.f32 %v1081, %v1189
    %v1270 = vadd.f32 %v1082, %v1190
    %v1271 = vadd.f32 %v1083, %v1191
    %v1272 = vadd.f32 %v1084, %v1192
    %v1273 = vadd.f32 %v1085, %v1193
    %v1274 = vadd.f32 %v1086, %v1194
    %s1275 = scalar_lea.vmem %s1, 4
    %v1276 = vld [vmem:[%s1275] sm:$0x1]
    %1278 = vset.pattern.permute.xlu0 0
    %1279 = vperm.xlu0 %1278, %v140
    %v1280 = vpop.permute.xlu0 %1279
    %1283 = vset.pattern.permute.xlu0 0
    %1284 = vperm.xlu0 %1283, %v141
    %v1285 = vpop.permute.xlu0 %1284
    %1288 = vset.pattern.permute.xlu0 0
    %1289 = vperm.xlu0 %1288, %v142
    %v1290 = vpop.permute.xlu0 %1289
    %1293 = vset.pattern.permute.xlu0 0
    %1294 = vperm.xlu0 %1293, %v143
    %v1295 = vpop.permute.xlu0 %1294
    %v1298 = vlaneseq
    %v1299 = vshrl.u32 %v1298, 7
    %v1300 = vsub.s32 0, %v1299
    %v1301 = vrot.slane %v1276, %v1300
    %v1303 = vmul.f32 %v228, %v1301
    %v1304 = vmul.f32 %v233, %v1301
    %v1305 = vmul.f32 %v238, %v1301
    %v1306 = vmul.f32 %v243, %v1301
    %v1307 = vmul.f32 %v248, %v1301
    %v1308 = vmul.f32 %v253, %v1301
    %v1309 = vmul.f32 %v258, %v1301
    %v1310 = vmul.f32 %v263, %v1301
    %v1311 = vmul.f32 %v268, %v1301
    %v1312 = vmul.f32 %v273, %v1301
    %v1313 = vmul.f32 %v278, %v1301
    %v1314 = vmul.f32 %v283, %v1301
    %v1315 = vmul.f32 %v288, %v1301
    %v1316 = vmul.f32 %v293, %v1301
    %v1317 = vmul.f32 %v298, %v1301
    %v1318 = vmul.f32 %v303, %v1301
    %v1319 = vmul.f32 %v308, %v1301
    %v1320 = vmul.f32 %v313, %v1301
    %v1321 = vmul.f32 %v318, %v1301
    %v1322 = vmul.f32 %v323, %v1301
    %v1323 = vmul.f32 %v328, %v1301
    %v1324 = vmul.f32 %v333, %v1301
    %v1325 = vmul.f32 %v338, %v1301
    %v1326 = vmul.f32 %v343, %v1301
    %v1327 = vmul.f32 %v348, %v1301
    %v1328 = vmul.f32 %v353, %v1301
    %v1329 = vmul.f32 %v358, %v1301
    %v1330 = vmul.f32 %v363, %v1301
    %v1331 = vmul.f32 %v368, %v1301
    %v1332 = vmul.f32 %v373, %v1301
    %v1333 = vmul.f32 %v378, %v1301
    %v1334 = vmul.f32 %v383, %v1301
    %v1335 = vmul.f32 %v388, %v1301
    %v1336 = vmul.f32 %v393, %v1301
    %v1337 = vmul.f32 %v398, %v1301
    %v1338 = vmul.f32 %v403, %v1301
    %v1339 = vmul.f32 %v408, %v1301
    %v1340 = vmul.f32 %v413, %v1301
    %v1341 = vmul.f32 %v418, %v1301
    %v1342 = vmul.f32 %v423, %v1301
    %v1343 = vmul.f32 %v428, %v1301
    %v1344 = vmul.f32 %v433, %v1301
    %v1345 = vmul.f32 %v438, %v1301
    %v1346 = vmul.f32 %v443, %v1301
    %v1347 = vmul.f32 %v448, %v1301
    %v1348 = vmul.f32 %v453, %v1301
    %v1349 = vmul.f32 %v458, %v1301
    %v1350 = vmul.f32 %v463, %v1301
    %v1351 = vmul.f32 %v468, %v1301
    %v1352 = vmul.f32 %v473, %v1301
    %v1353 = vmul.f32 %v478, %v1301
    %v1354 = vmul.f32 %v483, %v1301
    %v1355 = vmul.f32 %v488, %v1301
    %v1356 = vmul.f32 %v493, %v1301
    %v1357 = vmul.f32 %v498, %v1301
    %v1358 = vmul.f32 %v503, %v1301
    %v1359 = vmul.f32 %v508, %v1301
    %v1360 = vmul.f32 %v513, %v1301
    %v1361 = vmul.f32 %v518, %v1301
    %v1362 = vmul.f32 %v523, %v1301
    %v1363 = vmul.f32 %v528, %v1301
    %v1364 = vmul.f32 %v533, %v1301
    %v1365 = vmul.f32 %v538, %v1301
    %v1366 = vmul.f32 %v543, %v1301
    %v1367 = vmul.f32 %v716, %v1301
    %v1368 = vmul.f32 %v721, %v1301
    %v1369 = vmul.f32 %v726, %v1301
    %v1370 = vmul.f32 %v731, %v1301
    %v1371 = vmul.f32 %v904, %v1301
    %v1372 = vmul.f32 %v909, %v1301
    %v1373 = vmul.f32 %v914, %v1301
    %v1374 = vmul.f32 %v919, %v1301
    %v1375 = vmul.f32 %v1092, %v1301
    %v1376 = vmul.f32 %v1097, %v1301
    %v1377 = vmul.f32 %v1102, %v1301
    %v1378 = vmul.f32 %v1107, %v1301
    %v1379 = vmul.f32 %v1280, %v1301
    %v1380 = vmul.f32 %v1285, %v1301
    %v1381 = vmul.f32 %v1290, %v1301
    %v1382 = vmul.f32 %v1295, %v1301
    %v1383 = vadd.f32 %v1195, %v1303
    %v1384 = vadd.f32 %v1196, %v1304
    %v1385 = vadd.f32 %v1197, %v1305
    %v1386 = vadd.f32 %v1198, %v1306
    %v1387 = vadd.f32 %v1199, %v1307
    %v1388 = vadd.f32 %v1200, %v1308
    %v1389 = vadd.f32 %v1201, %v1309
    %v1390 = vadd.f32 %v1202, %v1310
    %v1391 = vadd.f32 %v1203, %v1311
    %v1392 = vadd.f32 %v1204, %v1312
    %v1393 = vadd.f32 %v1205, %v1313
    %v1394 = vadd.f32 %v1206, %v1314
    %v1395 = vadd.f32 %v1207, %v1315
    %v1396 = vadd.f32 %v1208, %v1316
    %v1397 = vadd.f32 %v1209, %v1317
    %v1398 = vadd.f32 %v1210, %v1318
    %v1399 = vadd.f32 %v1211, %v1319
    %v1400 = vadd.f32 %v1212, %v1320
    %v1401 = vadd.f32 %v1213, %v1321
    %v1402 = vadd.f32 %v1214, %v1322
    %v1403 = vadd.f32 %v1215, %v1323
    %v1404 = vadd.f32 %v1216, %v1324
    %v1405 = vadd.f32 %v1217, %v1325
    %v1406 = vadd.f32 %v1218, %v1326
    %v1407 = vadd.f32 %v1219, %v1327
    %v1408 = vadd.f32 %v1220, %v1328
    %v1409 = vadd.f32 %v1221, %v1329
    %v1410 = vadd.f32 %v1222, %v1330
    %v1411 = vadd.f32 %v1223, %v1331
    %v1412 = vadd.f32 %v1224, %v1332
    %v1413 = vadd.f32 %v1225, %v1333
    %v1414 = vadd.f32 %v1226, %v1334
    %v1415 = vadd.f32 %v1227, %v1335
    %v1416 = vadd.f32 %v1228, %v1336
    %v1417 = vadd.f32 %v1229, %v1337
    %v1418 = vadd.f32 %v1230, %v1338
    %v1419 = vadd.f32 %v1231, %v1339
    %v1420 = vadd.f32 %v1232, %v1340
    %v1421 = vadd.f32 %v1233, %v1341
    %v1422 = vadd.f32 %v1234, %v1342
    %v1423 = vadd.f32 %v1235, %v1343
    %v1424 = vadd.f32 %v1236, %v1344
    %v1425 = vadd.f32 %v1237, %v1345
    %v1426 = vadd.f32 %v1238, %v1346
    %v1427 = vadd.f32 %v1239, %v1347
    %v1428 = vadd.f32 %v1240, %v1348
    %v1429 = vadd.f32 %v1241, %v1349
    %v1430 = vadd.f32 %v1242, %v1350
    %v1431 = vadd.f32 %v1243, %v1351
    %v1432 = vadd.f32 %v1244, %v1352
    %v1433 = vadd.f32 %v1245, %v1353
    %v1434 = vadd.f32 %v1246, %v1354
    %v1435 = vadd.f32 %v1247, %v1355
    %v1436 = vadd.f32 %v1248, %v1356
    %v1437 = vadd.f32 %v1249, %v1357
    %v1438 = vadd.f32 %v1250, %v1358
    %v1439 = vadd.f32 %v1251, %v1359
    %v1440 = vadd.f32 %v1252, %v1360
    %v1441 = vadd.f32 %v1253, %v1361
    %v1442 = vadd.f32 %v1254, %v1362
    %v1443 = vadd.f32 %v1255, %v1363
    %v1444 = vadd.f32 %v1256, %v1364
    %v1445 = vadd.f32 %v1257, %v1365
    %v1446 = vadd.f32 %v1258, %v1366
    %v1447 = vadd.f32 %v1259, %v1367
    %v1448 = vadd.f32 %v1260, %v1368
    %v1449 = vadd.f32 %v1261, %v1369
    %v1450 = vadd.f32 %v1262, %v1370
    %v1451 = vadd.f32 %v1263, %v1371
    %v1452 = vadd.f32 %v1264, %v1372
    %v1453 = vadd.f32 %v1265, %v1373
    %v1454 = vadd.f32 %v1266, %v1374
    %v1455 = vadd.f32 %v1267, %v1375
    %v1456 = vadd.f32 %v1268, %v1376
    %v1457 = vadd.f32 %v1269, %v1377
    %v1458 = vadd.f32 %v1270, %v1378
    %v1459 = vadd.f32 %v1271, %v1379
    %v1460 = vadd.f32 %v1272, %v1380
    %v1461 = vadd.f32 %v1273, %v1381
    %v1462 = vadd.f32 %v1274, %v1382
    %v1463 = vld [vmem:[%s2] sm:$0x1]
    %v1465 = vlaneseq
    %v1466 = vshrl.u32 %v1465, 7
    %v1467 = vsub.s32 0, %v1466
    %v1468 = vrot.slane %v1463, %v1467
    %v1470 = vadd.f32 %v1383, %v1468
    %v1471 = vadd.f32 %v1384, %v1468
    %v1472 = vadd.f32 %v1385, %v1468
    %v1473 = vadd.f32 %v1386, %v1468
    %v1474 = vadd.f32 %v1387, %v1468
    %v1475 = vadd.f32 %v1388, %v1468
    %v1476 = vadd.f32 %v1389, %v1468
    %v1477 = vadd.f32 %v1390, %v1468
    %v1478 = vadd.f32 %v1391, %v1468
    %v1479 = vadd.f32 %v1392, %v1468
    %v1480 = vadd.f32 %v1393, %v1468
    %v1481 = vadd.f32 %v1394, %v1468
    %v1482 = vadd.f32 %v1395, %v1468
    %v1483 = vadd.f32 %v1396, %v1468
    %v1484 = vadd.f32 %v1397, %v1468
    %v1485 = vadd.f32 %v1398, %v1468
    %v1486 = vadd.f32 %v1399, %v1468
    %v1487 = vadd.f32 %v1400, %v1468
    %v1488 = vadd.f32 %v1401, %v1468
    %v1489 = vadd.f32 %v1402, %v1468
    %v1490 = vadd.f32 %v1403, %v1468
    %v1491 = vadd.f32 %v1404, %v1468
    %v1492 = vadd.f32 %v1405, %v1468
    %v1493 = vadd.f32 %v1406, %v1468
    %v1494 = vadd.f32 %v1407, %v1468
    %v1495 = vadd.f32 %v1408, %v1468
    %v1496 = vadd.f32 %v1409, %v1468
    %v1497 = vadd.f32 %v1410, %v1468
    %v1498 = vadd.f32 %v1411, %v1468
    %v1499 = vadd.f32 %v1412, %v1468
    %v1500 = vadd.f32 %v1413, %v1468
    %v1501 = vadd.f32 %v1414, %v1468
    %v1502 = vadd.f32 %v1415, %v1468
    %v1503 = vadd.f32 %v1416, %v1468
    %v1504 = vadd.f32 %v1417, %v1468
    %v1505 = vadd.f32 %v1418, %v1468
    %v1506 = vadd.f32 %v1419, %v1468
    %v1507 = vadd.f32 %v1420, %v1468
    %v1508 = vadd.f32 %v1421, %v1468
    %v1509 = vadd.f32 %v1422, %v1468
    %v1510 = vadd.f32 %v1423, %v1468
    %v1511 = vadd.f32 %v1424, %v1468
    %v1512 = vadd.f32 %v1425, %v1468
    %v1513 = vadd.f32 %v1426, %v1468
    %v1514 = vadd.f32 %v1427, %v1468
    %v1515 = vadd.f32 %v1428, %v1468
    %v1516 = vadd.f32 %v1429, %v1468
    %v1517 = vadd.f32 %v1430, %v1468
    %v1518 = vadd.f32 %v1431, %v1468
    %v1519 = vadd.f32 %v1432, %v1468
    %v1520 = vadd.f32 %v1433, %v1468
    %v1521 = vadd.f32 %v1434, %v1468
    %v1522 = vadd.f32 %v1435, %v1468
    %v1523 = vadd.f32 %v1436, %v1468
    %v1524 = vadd.f32 %v1437, %v1468
    %v1525 = vadd.f32 %v1438, %v1468
    %v1526 = vadd.f32 %v1439, %v1468
    %v1527 = vadd.f32 %v1440, %v1468
    %v1528 = vadd.f32 %v1441, %v1468
    %v1529 = vadd.f32 %v1442, %v1468
    %v1530 = vadd.f32 %v1443, %v1468
    %v1531 = vadd.f32 %v1444, %v1468
    %v1532 = vadd.f32 %v1445, %v1468
    %v1533 = vadd.f32 %v1446, %v1468
    %v1534 = vadd.f32 %v1447, %v1468
    %v1535 = vadd.f32 %v1448, %v1468
    %v1536 = vadd.f32 %v1449, %v1468
    %v1537 = vadd.f32 %v1450, %v1468
    %v1538 = vadd.f32 %v1451, %v1468
    %v1539 = vadd.f32 %v1452, %v1468
    %v1540 = vadd.f32 %v1453, %v1468
    %v1541 = vadd.f32 %v1454, %v1468
    %v1542 = vadd.f32 %v1455, %v1468
    %v1543 = vadd.f32 %v1456, %v1468
    %v1544 = vadd.f32 %v1457, %v1468
    %v1545 = vadd.f32 %v1458, %v1468
    %v1546 = vadd.f32 %v1459, %v1468
    %v1547 = vadd.f32 %v1460, %v1468
    %v1548 = vadd.f32 %v1461, %v1468
    %v1549 = vadd.f32 %v1462, %v1468
    %v1550 = vmax.f32 %v1470, 0.0
    %v1551 = vmax.f32 %v1471, 0.0
    %v1552 = vmax.f32 %v1472, 0.0
    %v1553 = vmax.f32 %v1473, 0.0
    %v1554 = vmax.f32 %v1474, 0.0
    %v1555 = vmax.f32 %v1475, 0.0
    %v1556 = vmax.f32 %v1476, 0.0
    %v1557 = vmax.f32 %v1477, 0.0
    %v1558 = vmax.f32 %v1478, 0.0
    %v1559 = vmax.f32 %v1479, 0.0
    %v1560 = vmax.f32 %v1480, 0.0
    %v1561 = vmax.f32 %v1481, 0.0
    %v1562 = vmax.f32 %v1482, 0.0
    %v1563 = vmax.f32 %v1483, 0.0
    %v1564 = vmax.f32 %v1484, 0.0
    %v1565 = vmax.f32 %v1485, 0.0
    %v1566 = vmax.f32 %v1486, 0.0
    %v1567 = vmax.f32 %v1487, 0.0
    %v1568 = vmax.f32 %v1488, 0.0
    %v1569 = vmax.f32 %v1489, 0.0
    %v1570 = vmax.f32 %v1490, 0.0
    %v1571 = vmax.f32 %v1491, 0.0
    %v1572 = vmax.f32 %v1492, 0.0
    %v1573 = vmax.f32 %v1493, 0.0
    %v1574 = vmax.f32 %v1494, 0.0
    %v1575 = vmax.f32 %v1495, 0.0
    %v1576 = vmax.f32 %v1496, 0.0
    %v1577 = vmax.f32 %v1497, 0.0
    %v1578 = vmax.f32 %v1498, 0.0
    %v1579 = vmax.f32 %v1499, 0.0
    %v1580 = vmax.f32 %v1500, 0.0
    %v1581 = vmax.f32 %v1501, 0.0
    %v1582 = vmax.f32 %v1502, 0.0
    %v1583 = vmax.f32 %v1503, 0.0
    %v1584 = vmax.f32 %v1504, 0.0
    %v1585 = vmax.f32 %v1505, 0.0
    %v1586 = vmax.f32 %v1506, 0.0
    %v1587 = vmax.f32 %v1507, 0.0
    %v1588 = vmax.f32 %v1508, 0.0
    %v1589 = vmax.f32 %v1509, 0.0
    %v1590 = vmax.f32 %v1510, 0.0
    %v1591 = vmax.f32 %v1511, 0.0
    %v1592 = vmax.f32 %v1512, 0.0
    %v1593 = vmax.f32 %v1513, 0.0
    %v1594 = vmax.f32 %v1514, 0.0
    %v1595 = vmax.f32 %v1515, 0.0
    %v1596 = vmax.f32 %v1516, 0.0
    %v1597 = vmax.f32 %v1517, 0.0
    %v1598 = vmax.f32 %v1518, 0.0
    %v1599 = vmax.f32 %v1519, 0.0
    %v1600 = vmax.f32 %v1520, 0.0
    %v1601 = vmax.f32 %v1521, 0.0
    %v1602 = vmax.f32 %v1522, 0.0
    %v1603 = vmax.f32 %v1523, 0.0
    %v1604 = vmax.f32 %v1524, 0.0
    %v1605 = vmax.f32 %v1525, 0.0
    %v1606 = vmax.f32 %v1526, 0.0
    %v1607 = vmax.f32 %v1527, 0.0
    %v1608 = vmax.f32 %v1528, 0.0
    %v1609 = vmax.f32 %v1529, 0.0
    %v1610 = vmax.f32 %v1530, 0.0
    %v1611 = vmax.f32 %v1531, 0.0
    %v1612 = vmax.f32 %v1532, 0.0
    %v1613 = vmax.f32 %v1533, 0.0
    %v1614 = vmax.f32 %v1534, 0.0
    %v1615 = vmax.f32 %v1535, 0.0
    %v1616 = vmax.f32 %v1536, 0.0
    %v1617 = vmax.f32 %v1537, 0.0
    %v1618 = vmax.f32 %v1538, 0.0
    %v1619 = vmax.f32 %v1539, 0.0
    %v1620 = vmax.f32 %v1540, 0.0
    %v1621 = vmax.f32 %v1541, 0.0
    %v1622 = vmax.f32 %v1542, 0.0
    %v1623 = vmax.f32 %v1543, 0.0
    %v1624 = vmax.f32 %v1544, 0.0
    %v1625 = vmax.f32 %v1545, 0.0
    %v1626 = vmax.f32 %v1546, 0.0
    %v1627 = vmax.f32 %v1547, 0.0
    %v1628 = vmax.f32 %v1548, 0.0
    %v1629 = vmax.f32 %v1549, 0.0
    %v1630 = vld [vmem:[%s3] sm:$0xff]
    %v1631 = vld [vmem:[%s3 + $0x8] sm:$0xff]
    %s1632 = scalar_lea.vmem %s3, 16
    %v1633 = vld [vmem:[%s1632] sm:$0xff]
    %v1634 = vld [vmem:[%s1632 + $0x8] sm:$0xff]
    %vm1635 = vcmask 130048
    %v1637 = vsel %vm1635, %v1554, 0
    %v1640 = vsel %vm1635, %v1555, 0
    %v1643 = vsel %vm1635, %v1556, 0
    %v1646 = vsel %vm1635, %v1557, 0
    %v1649 = vsel %vm1635, %v1558, 0
    %v1652 = vsel %vm1635, %v1559, 0
    %v1655 = vsel %vm1635, %v1560, 0
    %v1658 = vsel %vm1635, %v1561, 0
    %v1661 = vsel %vm1635, %v1562, 0
    %v1664 = vsel %vm1635, %v1563, 0
    %v1667 = vsel %vm1635, %v1564, 0
    %v1670 = vsel %vm1635, %v1565, 0
    %v1673 = vsel %vm1635, %v1566, 0
    %v1676 = vsel %vm1635, %v1567, 0
    %v1679 = vsel %vm1635, %v1568, 0
    %v1682 = vsel %vm1635, %v1569, 0
    %v1685 = vsel %vm1635, %v1570, 0
    %v1688 = vsel %vm1635, %v1571, 0
    %v1691 = vsel %vm1635, %v1572, 0
    %v1694 = vsel %vm1635, %v1573, 0
    %v1697 = vsel %vm1635, %v1574, 0
    %v1700 = vsel %vm1635, %v1575, 0
    %v1703 = vsel %vm1635, %v1576, 0
    %v1706 = vsel %vm1635, %v1577, 0
    %v1709 = vsel %vm1635, %v1578, 0
    %v1712 = vsel %vm1635, %v1579, 0
    %v1715 = vsel %vm1635, %v1580, 0
    %v1718 = vsel %vm1635, %v1581, 0
    %v1721 = vsel %vm1635, %v1582, 0
    %v1724 = vsel %vm1635, %v1583, 0
    %v1727 = vsel %vm1635, %v1584, 0
    %v1730 = vsel %vm1635, %v1585, 0
    %v1733 = vsel %vm1635, %v1586, 0
    %v1736 = vsel %vm1635, %v1587, 0
    %v1739 = vsel %vm1635, %v1588, 0
    %v1742 = vsel %vm1635, %v1589, 0
    %v1745 = vsel %vm1635, %v1590, 0
    %v1748 = vsel %vm1635, %v1591, 0
    %v1751 = vsel %vm1635, %v1592, 0
    %v1754 = vsel %vm1635, %v1593, 0
    %v1757 = vsel %vm1635, %v1594, 0
    %v1760 = vsel %vm1635, %v1595, 0
    %v1763 = vsel %vm1635, %v1596, 0
    %v1766 = vsel %vm1635, %v1597, 0
    %v1769 = vsel %vm1635, %v1598, 0
    %v1772 = vsel %vm1635, %v1599, 0
    %v1775 = vsel %vm1635, %v1600, 0
    %v1778 = vsel %vm1635, %v1601, 0
    %v1781 = vsel %vm1635, %v1602, 0
    %v1784 = vsel %vm1635, %v1603, 0
    %v1787 = vsel %vm1635, %v1604, 0
    %v1790 = vsel %vm1635, %v1605, 0
    %v1793 = vsel %vm1635, %v1606, 0
    %v1796 = vsel %vm1635, %v1607, 0
    %v1799 = vsel %vm1635, %v1608, 0
    %v1802 = vsel %vm1635, %v1609, 0
    %v1805 = vsel %vm1635, %v1610, 0
    %v1808 = vsel %vm1635, %v1611, 0
    %v1811 = vsel %vm1635, %v1612, 0
    %v1814 = vsel %vm1635, %v1613, 0
    %v1817 = vsel %vm1635, %v1614, 0
    %v1820 = vsel %vm1635, %v1615, 0
    %v1823 = vsel %vm1635, %v1616, 0
    %v1826 = vsel %vm1635, %v1617, 0
    %1828 = vmatprep.subr.mxu0 0.0
    %1829 = vmatpush1.msra.mxu0 0.0
    %1830 = vmatprep.subr.mxu0 0.0
    %1831 = vmatpush1.msra.mxu0 0.0
    %1832 = vmatprep.subr.mxu0 0.0
    %1833 = vmatpush1.msra.mxu0 0.0
    %1834 = vmatprep.subr.mxu0 0.0
    %1835 = vmatpush1.msra.mxu0 0.0
    %1836 = vmatprep.subr.mxu0 0.0
    %1837 = vmatpush1.msra.mxu0 0.0
    %1838 = vmatprep.subr.mxu0 0.0
    %1839 = vmatpush1.msra.mxu0 0.0
    %1840 = vmatprep.subr.mxu0 0.0
    %1841 = vmatpush1.msra.mxu0 0.0
    %1842 = vmatprep.subr.mxu0 0.0
    %1843 = vmatpush1.msra.mxu0 0.0
    %1844 = vmatprep.subr.mxu0 0.0
    %1845 = vmatpush1.msra.mxu0 0.0
    %1846 = vmatprep.subr.mxu0 0.0
    %1847 = vmatpush1.msra.mxu0 0.0
    %1848 = vmatprep.subr.mxu0 0.0
    %1849 = vmatpush1.msra.mxu0 0.0
    %1850 = vmatprep.subr.mxu0 0.0
    %1851 = vmatpush1.msra.mxu0 0.0
    %1852 = vmatprep.subr.mxu0 0.0
    %1853 = vmatpush1.msra.mxu0 0.0
    %1854 = vmatprep.subr.mxu0 0.0
    %1855 = vmatpush1.msra.mxu0 0.0
    %1856 = vmatprep.subr.mxu0 0.0
    %1857 = vmatpush1.msra.mxu0 %v1634
    %1858 = vmatprep.subr.mxu0 0.0
    %1859 = vmatpush1.msra.mxu0 %v1633
    %1860 = vmatprep.subr.mxu0 0.0
    %1861 = vmatpush2.msra.mxu0 0.0
    %1862 = vmatprep.subr.mxu0 0.0
    %1863 = vmatpush2.msra.mxu0 0.0
    %1864 = vmatprep.subr.mxu0 0.0
    %1865 = vmatpush2.msra.mxu0 0.0
    %1866 = vmatprep.subr.mxu0 0.0
    %1867 = vmatpush2.msra.mxu0 0.0
    %1868 = vmatprep.subr.mxu0 0.0
    %1869 = vmatpush2.msra.mxu0 0.0
    %1870 = vmatprep.subr.mxu0 0.0
    %1871 = vmatpush2.msra.mxu0 0.0
    %1872 = vmatprep.subr.mxu0 0.0
    %1873 = vmatpush2.msra.mxu0 0.0
    %1874 = vmatprep.subr.mxu0 0.0
    %1875 = vmatpush2.msra.mxu0 0.0
    %1876 = vmatprep.subr.mxu0 0.0
    %1877 = vmatpush2.msra.mxu0 0.0
    %1878 = vmatprep.subr.mxu0 0.0
    %1879 = vmatpush2.msra.mxu0 0.0
    %1880 = vmatprep.subr.mxu0 0.0
    %1881 = vmatpush2.msra.mxu0 0.0
    %1882 = vmatprep.subr.mxu0 0.0
    %1883 = vmatpush2.msra.mxu0 0.0
    %1884 = vmatprep.subr.mxu0 0.0
    %1885 = vmatpush2.msra.mxu0 0.0
    %1886 = vmatprep.subr.mxu0 0.0
    %1887 = vmatpush2.msra.mxu0 0.0
    %1888 = vmatprep.subr.mxu0 0.0
    %1889 = vmatpush2.msra.mxu0 0.0
    %1890 = vmatprep.subr.mxu0 0.0
    %1891 = vmatpush2.msra.mxu0 0.0
    %1892 = vmatprep.mubr.f32.mxu0 0.0
    %1893 = vmatmul.mubr.f32.gmra.mxu0 %v1637
    %v1894 = vpop.f32.mrf.mxu0
    %v1895 = vadd.f32 0.0, %v1894
    %v1896 = vpop.f32.mrf.mxu0
    %1897 = vmatprep.mubr.f32.mxu0 0.0
    %1898 = vmatmul.mubr.f32.gmra.mxu0 %v1640
    %v1899 = vpop.f32.mrf.mxu0
    %v1900 = vadd.f32 0.0, %v1899
    %v1901 = vpop.f32.mrf.mxu0
    %1902 = vmatprep.mubr.f32.mxu0 0.0
    %1903 = vmatmul.mubr.f32.gmra.mxu0 %v1643
    %v1904 = vpop.f32.mrf.mxu0
    %v1905 = vadd.f32 0.0, %v1904
    %v1906 = vpop.f32.mrf.mxu0
    %1907 = vmatprep.mubr.f32.mxu0 0.0
    %1908 = vmatmul.mubr.f32.gmra.mxu0 %v1646
    %v1909 = vpop.f32.mrf.mxu0
    %v1910 = vadd.f32 0.0, %v1909
    %v1911 = vpop.f32.mrf.mxu0
    %1912 = vmatprep.mubr.f32.mxu0 0.0
    %1913 = vmatmul.mubr.f32.gmra.mxu0 %v1649
    %v1914 = vpop.f32.mrf.mxu0
    %v1915 = vadd.f32 0.0, %v1914
    %v1916 = vpop.f32.mrf.mxu0
    %1917 = vmatprep.mubr.f32.mxu0 0.0
    %1918 = vmatmul.mubr.f32.gmra.mxu0 %v1652
    %v1919 = vpop.f32.mrf.mxu0
    %v1920 = vadd.f32 0.0, %v1919
    %v1921 = vpop.f32.mrf.mxu0
    %1922 = vmatprep.mubr.f32.mxu0 0.0
    %1923 = vmatmul.mubr.f32.gmra.mxu0 %v1655
    %v1924 = vpop.f32.mrf.mxu0
    %v1925 = vadd.f32 0.0, %v1924
    %v1926 = vpop.f32.mrf.mxu0
    %1927 = vmatprep.mubr.f32.mxu0 0.0
    %1928 = vmatmul.mubr.f32.gmra.mxu0 %v1658
    %v1929 = vpop.f32.mrf.mxu0
    %v1930 = vadd.f32 0.0, %v1929
    %v1931 = vpop.f32.mrf.mxu0
    %1932 = vmatprep.mubr.f32.mxu0 0.0
    %1933 = vmatmul.mubr.f32.gmra.mxu0 %v1661
    %v1934 = vpop.f32.mrf.mxu0
    %v1935 = vadd.f32 0.0, %v1934
    %v1936 = vpop.f32.mrf.mxu0
    %1937 = vmatprep.mubr.f32.mxu0 0.0
    %1938 = vmatmul.mubr.f32.gmra.mxu0 %v1664
    %v1939 = vpop.f32.mrf.mxu0
    %v1940 = vadd.f32 0.0, %v1939
    %v1941 = vpop.f32.mrf.mxu0
    %1942 = vmatprep.mubr.f32.mxu0 0.0
    %1943 = vmatmul.mubr.f32.gmra.mxu0 %v1667
    %v1944 = vpop.f32.mrf.mxu0
    %v1945 = vadd.f32 0.0, %v1944
    %v1946 = vpop.f32.mrf.mxu0
    %1947 = vmatprep.mubr.f32.mxu0 0.0
    %1948 = vmatmul.mubr.f32.gmra.mxu0 %v1670
    %v1949 = vpop.f32.mrf.mxu0
    %v1950 = vadd.f32 0.0, %v1949
    %v1951 = vpop.f32.mrf.mxu0
    %1952 = vmatprep.mubr.f32.mxu0 0.0
    %1953 = vmatmul.mubr.f32.gmra.mxu0 %v1673
    %v1954 = vpop.f32.mrf.mxu0
    %v1955 = vadd.f32 0.0, %v1954
    %v1956 = vpop.f32.mrf.mxu0
    %1957 = vmatprep.mubr.f32.mxu0 0.0
    %1958 = vmatmul.mubr.f32.gmra.mxu0 %v1676
    %v1959 = vpop.f32.mrf.mxu0
    %v1960 = vadd.f32 0.0, %v1959
    %v1961 = vpop.f32.mrf.mxu0
    %1962 = vmatprep.mubr.f32.mxu0 0.0
    %1963 = vmatmul.mubr.f32.gmra.mxu0 %v1679
    %v1964 = vpop.f32.mrf.mxu0
    %v1965 = vadd.f32 0.0, %v1964
    %v1966 = vpop.f32.mrf.mxu0
    %1967 = vmatprep.mubr.f32.mxu0 0.0
    %1968 = vmatmul.mubr.f32.gmra.mxu0 %v1682
    %v1969 = vpop.f32.mrf.mxu0
    %v1970 = vadd.f32 0.0, %v1969
    %v1971 = vpop.f32.mrf.mxu0
    %1972 = vmatprep.mubr.f32.mxu0 0.0
    %1973 = vmatmul.mubr.f32.gmra.mxu0 %v1685
    %v1974 = vpop.f32.mrf.mxu0
    %v1975 = vadd.f32 0.0, %v1974
    %v1976 = vpop.f32.mrf.mxu0
    %1977 = vmatprep.mubr.f32.mxu0 0.0
    %1978 = vmatmul.mubr.f32.gmra.mxu0 %v1688
    %v1979 = vpop.f32.mrf.mxu0
    %v1980 = vadd.f32 0.0, %v1979
    %v1981 = vpop.f32.mrf.mxu0
    %1982 = vmatprep.mubr.f32.mxu0 0.0
    %1983 = vmatmul.mubr.f32.gmra.mxu0 %v1691
    %v1984 = vpop.f32.mrf.mxu0
    %v1985 = vadd.f32 0.0, %v1984
    %v1986 = vpop.f32.mrf.mxu0
    %1987 = vmatprep.mubr.f32.mxu0 0.0
    %1988 = vmatmul.mubr.f32.gmra.mxu0 %v1694
    %v1989 = vpop.f32.mrf.mxu0
    %v1990 = vadd.f32 0.0, %v1989
    %v1991 = vpop.f32.mrf.mxu0
    %1992 = vmatprep.mubr.f32.mxu0 0.0
    %1993 = vmatmul.mubr.f32.gmra.mxu0 %v1697
    %v1994 = vpop.f32.mrf.mxu0
    %v1995 = vadd.f32 0.0, %v1994
    %v1996 = vpop.f32.mrf.mxu0
    %1997 = vmatprep.mubr.f32.mxu0 0.0
    %1998 = vmatmul.mubr.f32.gmra.mxu0 %v1700
    %v1999 = vpop.f32.mrf.mxu0
    %v2000 = vadd.f32 0.0, %v1999
    %v2001 = vpop.f32.mrf.mxu0
    %2002 = vmatprep.mubr.f32.mxu0 0.0
    %2003 = vmatmul.mubr.f32.gmra.mxu0 %v1703
    %v2004 = vpop.f32.mrf.mxu0
    %v2005 = vadd.f32 0.0, %v2004
    %v2006 = vpop.f32.mrf.mxu0
    %2007 = vmatprep.mubr.f32.mxu0 0.0
    %2008 = vmatmul.mubr.f32.gmra.mxu0 %v1706
    %v2009 = vpop.f32.mrf.mxu0
    %v2010 = vadd.f32 0.0, %v2009
    %v2011 = vpop.f32.mrf.mxu0
    %2012 = vmatprep.mubr.f32.mxu0 0.0
    %2013 = vmatmul.mubr.f32.gmra.mxu0 %v1709
    %v2014 = vpop.f32.mrf.mxu0
    %v2015 = vadd.f32 0.0, %v2014
    %v2016 = vpop.f32.mrf.mxu0
    %2017 = vmatprep.mubr.f32.mxu0 0.0
    %2018 = vmatmul.mubr.f32.gmra.mxu0 %v1712
    %v2019 = vpop.f32.mrf.mxu0
    %v2020 = vadd.f32 0.0, %v2019
    %v2021 = vpop.f32.mrf.mxu0
    %2022 = vmatprep.mubr.f32.mxu0 0.0
    %2023 = vmatmul.mubr.f32.gmra.mxu0 %v1715
    %v2024 = vpop.f32.mrf.mxu0
    %v2025 = vadd.f32 0.0, %v2024
    %v2026 = vpop.f32.mrf.mxu0
    %2027 = vmatprep.mubr.f32.mxu0 0.0
    %2028 = vmatmul.mubr.f32.gmra.mxu0 %v1718
    %v2029 = vpop.f32.mrf.mxu0
    %v2030 = vadd.f32 0.0, %v2029
    %v2031 = vpop.f32.mrf.mxu0
    %2032 = vmatprep.mubr.f32.mxu0 0.0
    %2033 = vmatmul.mubr.f32.gmra.mxu0 %v1721
    %v2034 = vpop.f32.mrf.mxu0
    %v2035 = vadd.f32 0.0, %v2034
    %v2036 = vpop.f32.mrf.mxu0
    %2037 = vmatprep.mubr.f32.mxu0 0.0
    %2038 = vmatmul.mubr.f32.gmra.mxu0 %v1724
    %v2039 = vpop.f32.mrf.mxu0
    %v2040 = vadd.f32 0.0, %v2039
    %v2041 = vpop.f32.mrf.mxu0
    %2042 = vmatprep.mubr.f32.mxu0 0.0
    %2043 = vmatmul.mubr.f32.gmra.mxu0 %v1727
    %v2044 = vpop.f32.mrf.mxu0
    %v2045 = vadd.f32 0.0, %v2044
    %v2046 = vpop.f32.mrf.mxu0
    %2047 = vmatprep.mubr.f32.mxu0 0.0
    %2048 = vmatmul.mubr.f32.gmra.mxu0 %v1730
    %v2049 = vpop.f32.mrf.mxu0
    %v2050 = vadd.f32 0.0, %v2049
    %v2051 = vpop.f32.mrf.mxu0
    %2052 = vmatprep.mubr.f32.mxu0 0.0
    %2053 = vmatmul.mubr.f32.gmra.mxu0 %v1733
    %v2054 = vpop.f32.mrf.mxu0
    %v2055 = vadd.f32 0.0, %v2054
    %v2056 = vpop.f32.mrf.mxu0
    %2057 = vmatprep.mubr.f32.mxu0 0.0
    %2058 = vmatmul.mubr.f32.gmra.mxu0 %v1736
    %v2059 = vpop.f32.mrf.mxu0
    %v2060 = vadd.f32 0.0, %v2059
    %v2061 = vpop.f32.mrf.mxu0
    %2062 = vmatprep.mubr.f32.mxu0 0.0
    %2063 = vmatmul.mubr.f32.gmra.mxu0 %v1739
    %v2064 = vpop.f32.mrf.mxu0
    %v2065 = vadd.f32 0.0, %v2064
    %v2066 = vpop.f32.mrf.mxu0
    %2067 = vmatprep.mubr.f32.mxu0 0.0
    %2068 = vmatmul.mubr.f32.gmra.mxu0 %v1742
    %v2069 = vpop.f32.mrf.mxu0
    %v2070 = vadd.f32 0.0, %v2069
    %v2071 = vpop.f32.mrf.mxu0
    %2072 = vmatprep.mubr.f32.mxu0 0.0
    %2073 = vmatmul.mubr.f32.gmra.mxu0 %v1745
    %v2074 = vpop.f32.mrf.mxu0
    %v2075 = vadd.f32 0.0, %v2074
    %v2076 = vpop.f32.mrf.mxu0
    %2077 = vmatprep.mubr.f32.mxu0 0.0
    %2078 = vmatmul.mubr.f32.gmra.mxu0 %v1748
    %v2079 = vpop.f32.mrf.mxu0
    %v2080 = vadd.f32 0.0, %v2079
    %v2081 = vpop.f32.mrf.mxu0
    %2082 = vmatprep.mubr.f32.mxu0 0.0
    %2083 = vmatmul.mubr.f32.gmra.mxu0 %v1751
    %v2084 = vpop.f32.mrf.mxu0
    %v2085 = vadd.f32 0.0, %v2084
    %v2086 = vpop.f32.mrf.mxu0
    %2087 = vmatprep.mubr.f32.mxu0 0.0
    %2088 = vmatmul.mubr.f32.gmra.mxu0 %v1754
    %v2089 = vpop.f32.mrf.mxu0
    %v2090 = vadd.f32 0.0, %v2089
    %v2091 = vpop.f32.mrf.mxu0
    %2092 = vmatprep.mubr.f32.mxu0 0.0
    %2093 = vmatmul.mubr.f32.gmra.mxu0 %v1757
    %v2094 = vpop.f32.mrf.mxu0
    %v2095 = vadd.f32 0.0, %v2094
    %v2096 = vpop.f32.mrf.mxu0
    %2097 = vmatprep.mubr.f32.mxu0 0.0
    %2098 = vmatmul.mubr.f32.gmra.mxu0 %v1760
    %v2099 = vpop.f32.mrf.mxu0
    %v2100 = vadd.f32 0.0, %v2099
    %v2101 = vpop.f32.mrf.mxu0
    %2102 = vmatprep.mubr.f32.mxu0 0.0
    %2103 = vmatmul.mubr.f32.gmra.mxu0 %v1763
    %v2104 = vpop.f32.mrf.mxu0
    %v2105 = vadd.f32 0.0, %v2104
    %v2106 = vpop.f32.mrf.mxu0
    %2107 = vmatprep.mubr.f32.mxu0 0.0
    %2108 = vmatmul.mubr.f32.gmra.mxu0 %v1766
    %v2109 = vpop.f32.mrf.mxu0
    %v2110 = vadd.f32 0.0, %v2109
    %v2111 = vpop.f32.mrf.mxu0
    %2112 = vmatprep.mubr.f32.mxu0 0.0
    %2113 = vmatmul.mubr.f32.gmra.mxu0 %v1769
    %v2114 = vpop.f32.mrf.mxu0
    %v2115 = vadd.f32 0.0, %v2114
    %v2116 = vpop.f32.mrf.mxu0
    %2117 = vmatprep.mubr.f32.mxu0 0.0
    %2118 = vmatmul.mubr.f32.gmra.mxu0 %v1772
    %v2119 = vpop.f32.mrf.mxu0
    %v2120 = vadd.f32 0.0, %v2119
    %v2121 = vpop.f32.mrf.mxu0
    %2122 = vmatprep.mubr.f32.mxu0 0.0
    %2123 = vmatmul.mubr.f32.gmra.mxu0 %v1775
    %v2124 = vpop.f32.mrf.mxu0
    %v2125 = vadd.f32 0.0, %v2124
    %v2126 = vpop.f32.mrf.mxu0
    %2127 = vmatprep.mubr.f32.mxu0 0.0
    %2128 = vmatmul.mubr.f32.gmra.mxu0 %v1778
    %v2129 = vpop.f32.mrf.mxu0
    %v2130 = vadd.f32 0.0, %v2129
    %v2131 = vpop.f32.mrf.mxu0
    %2132 = vmatprep.mubr.f32.mxu0 0.0
    %2133 = vmatmul.mubr.f32.gmra.mxu0 %v1781
    %v2134 = vpop.f32.mrf.mxu0
    %v2135 = vadd.f32 0.0, %v2134
    %v2136 = vpop.f32.mrf.mxu0
    %2137 = vmatprep.mubr.f32.mxu0 0.0
    %2138 = vmatmul.mubr.f32.gmra.mxu0 %v1784
    %v2139 = vpop.f32.mrf.mxu0
    %v2140 = vadd.f32 0.0, %v2139
    %v2141 = vpop.f32.mrf.mxu0
    %2142 = vmatprep.mubr.f32.mxu0 0.0
    %2143 = vmatmul.mubr.f32.gmra.mxu0 %v1787
    %v2144 = vpop.f32.mrf.mxu0
    %v2145 = vadd.f32 0.0, %v2144
    %v2146 = vpop.f32.mrf.mxu0
    %2147 = vmatprep.mubr.f32.mxu0 0.0
    %2148 = vmatmul.mubr.f32.gmra.mxu0 %v1790
    %v2149 = vpop.f32.mrf.mxu0
    %v2150 = vadd.f32 0.0, %v2149
    %v2151 = vpop.f32.mrf.mxu0
    %2152 = vmatprep.mubr.f32.mxu0 0.0
    %2153 = vmatmul.mubr.f32.gmra.mxu0 %v1793
    %v2154 = vpop.f32.mrf.mxu0
    %v2155 = vadd.f32 0.0, %v2154
    %v2156 = vpop.f32.mrf.mxu0
    %2157 = vmatprep.mubr.f32.mxu0 0.0
    %2158 = vmatmul.mubr.f32.gmra.mxu0 %v1796
    %v2159 = vpop.f32.mrf.mxu0
    %v2160 = vadd.f32 0.0, %v2159
    %v2161 = vpop.f32.mrf.mxu0
    %2162 = vmatprep.mubr.f32.mxu0 0.0
    %2163 = vmatmul.mubr.f32.gmra.mxu0 %v1799
    %v2164 = vpop.f32.mrf.mxu0
    %v2165 = vadd.f32 0.0, %v2164
    %v2166 = vpop.f32.mrf.mxu0
    %2167 = vmatprep.mubr.f32.mxu0 0.0
    %2168 = vmatmul.mubr.f32.gmra.mxu0 %v1802
    %v2169 = vpop.f32.mrf.mxu0
    %v2170 = vadd.f32 0.0, %v2169
    %v2171 = vpop.f32.mrf.mxu0
    %2172 = vmatprep.mubr.f32.mxu0 0.0
    %2173 = vmatmul.mubr.f32.gmra.mxu0 %v1805
    %v2174 = vpop.f32.mrf.mxu0
    %v2175 = vadd.f32 0.0, %v2174
    %v2176 = vpop.f32.mrf.mxu0
    %2177 = vmatprep.mubr.f32.mxu0 0.0
    %2178 = vmatmul.mubr.f32.gmra.mxu0 %v1808
    %v2179 = vpop.f32.mrf.mxu0
    %v2180 = vadd.f32 0.0, %v2179
    %v2181 = vpop.f32.mrf.mxu0
    %2182 = vmatprep.mubr.f32.mxu0 0.0
    %2183 = vmatmul.mubr.f32.gmra.mxu0 %v1811
    %v2184 = vpop.f32.mrf.mxu0
    %v2185 = vadd.f32 0.0, %v2184
    %v2186 = vpop.f32.mrf.mxu0
    %2187 = vmatprep.mubr.f32.mxu0 0.0
    %2188 = vmatmul.mubr.f32.gmra.mxu0 %v1814
    %v2189 = vpop.f32.mrf.mxu0
    %v2190 = vadd.f32 0.0, %v2189
    %v2191 = vpop.f32.mrf.mxu0
    %2192 = vmatprep.mubr.f32.mxu0 0.0
    %2193 = vmatmul.mubr.f32.gmra.mxu0 %v1817
    %v2194 = vpop.f32.mrf.mxu0
    %v2195 = vadd.f32 0.0, %v2194
    %v2196 = vpop.f32.mrf.mxu0
    %2197 = vmatprep.mubr.f32.mxu0 0.0
    %2198 = vmatmul.mubr.f32.gmra.mxu0 %v1820
    %v2199 = vpop.f32.mrf.mxu0
    %v2200 = vadd.f32 0.0, %v2199
    %v2201 = vpop.f32.mrf.mxu0
    %2202 = vmatprep.mubr.f32.mxu0 0.0
    %2203 = vmatmul.mubr.f32.gmra.mxu0 %v1823
    %v2204 = vpop.f32.mrf.mxu0
    %v2205 = vadd.f32 0.0, %v2204
    %v2206 = vpop.f32.mrf.mxu0
    %2207 = vmatprep.mubr.f32.mxu0 0.0
    %2208 = vmatmul.mubr.f32.gmra.mxu0 %v1826
    %v2209 = vpop.f32.mrf.mxu0
    %v2210 = vadd.f32 0.0, %v2209
    %v2211 = vpop.f32.mrf.mxu0
    %2212 = vdwg.mxu0
    %v2214 = vsel %vm1635, %v1550, 0
    %v2217 = vsel %vm1635, %v1551, 0
    %v2220 = vsel %vm1635, %v1552, 0
    %v2223 = vsel %vm1635, %v1553, 0
    %2225 = vmatprep.subr.mxu0 0.0
    %2226 = vmatpush1.msra.mxu0 0.0
    %2227 = vmatprep.subr.mxu0 0.0
    %2228 = vmatpush1.msra.mxu0 0.0
    %2229 = vmatprep.subr.mxu0 0.0
    %2230 = vmatpush1.msra.mxu0 0.0
    %2231 = vmatprep.subr.mxu0 0.0
    %2232 = vmatpush1.msra.mxu0 0.0
    %2233 = vmatprep.subr.mxu0 0.0
    %2234 = vmatpush1.msra.mxu0 0.0
    %2235 = vmatprep.subr.mxu0 0.0
    %2236 = vmatpush1.msra.mxu0 0.0
    %2237 = vmatprep.subr.mxu0 0.0
    %2238 = vmatpush1.msra.mxu0 0.0
    %2239 = vmatprep.subr.mxu0 0.0
    %2240 = vmatpush1.msra.mxu0 0.0
    %2241 = vmatprep.subr.mxu0 0.0
    %2242 = vmatpush1.msra.mxu0 0.0
    %2243 = vmatprep.subr.mxu0 0.0
    %2244 = vmatpush1.msra.mxu0 0.0
    %2245 = vmatprep.subr.mxu0 0.0
    %2246 = vmatpush1.msra.mxu0 0.0
    %2247 = vmatprep.subr.mxu0 0.0
    %2248 = vmatpush1.msra.mxu0 0.0
    %2249 = vmatprep.subr.mxu0 0.0
    %2250 = vmatpush1.msra.mxu0 0.0
    %2251 = vmatprep.subr.mxu0 0.0
    %2252 = vmatpush1.msra.mxu0 0.0
    %2253 = vmatprep.subr.mxu0 0.0
    %2254 = vmatpush1.msra.mxu0 %v1631
    %2255 = vmatprep.subr.mxu0 0.0
    %2256 = vmatpush1.msra.mxu0 %v1630
    %2257 = vmatprep.subr.mxu0 0.0
    %2258 = vmatpush2.msra.mxu0 0.0
    %2259 = vmatprep.subr.mxu0 0.0
    %2260 = vmatpush2.msra.mxu0 0.0
    %2261 = vmatprep.subr.mxu0 0.0
    %2262 = vmatpush2.msra.mxu0 0.0
    %2263 = vmatprep.subr.mxu0 0.0
    %2264 = vmatpush2.msra.mxu0 0.0
    %2265 = vmatprep.subr.mxu0 0.0
    %2266 = vmatpush2.msra.mxu0 0.0
    %2267 = vmatprep.subr.mxu0 0.0
    %2268 = vmatpush2.msra.mxu0 0.0
    %2269 = vmatprep.subr.mxu0 0.0
    %2270 = vmatpush2.msra.mxu0 0.0
    %2271 = vmatprep.subr.mxu0 0.0
    %2272 = vmatpush2.msra.mxu0 0.0
    %2273 = vmatprep.subr.mxu0 0.0
    %2274 = vmatpush2.msra.mxu0 0.0
    %2275 = vmatprep.subr.mxu0 0.0
    %2276 = vmatpush2.msra.mxu0 0.0
    %2277 = vmatprep.subr.mxu0 0.0
    %2278 = vmatpush2.msra.mxu0 0.0
    %2279 = vmatprep.subr.mxu0 0.0
    %2280 = vmatpush2.msra.mxu0 0.0
    %2281 = vmatprep.subr.mxu0 0.0
    %2282 = vmatpush2.msra.mxu0 0.0
    %2283 = vmatprep.subr.mxu0 0.0
    %2284 = vmatpush2.msra.mxu0 0.0
    %2285 = vmatprep.subr.mxu0 0.0
    %2286 = vmatpush2.msra.mxu0 0.0
    %2287 = vmatprep.subr.mxu0 0.0
    %2288 = vmatpush2.msra.mxu0 0.0
    %2289 = vmatprep.mubr.f32.mxu0 0.0
    %2290 = vmatmul.mubr.f32.gmra.mxu0 %v2214
    %v2291 = vpop.f32.mrf.mxu0
    %v2292 = vadd.f32 %v1895, %v2291
    %v2293 = vpop.f32.mrf.mxu0
    %2294 = vmatprep.mubr.f32.mxu0 0.0
    %2295 = vmatmul.mubr.f32.gmra.mxu0 %v2217
    %v2296 = vpop.f32.mrf.mxu0
    %v2297 = vadd.f32 %v1900, %v2296
    %v2298 = vpop.f32.mrf.mxu0
    %2299 = vmatprep.mubr.f32.mxu0 0.0
    %2300 = vmatmul.mubr.f32.gmra.mxu0 %v2220
    %v2301 = vpop.f32.mrf.mxu0
    %v2302 = vadd.f32 %v1905, %v2301
    %v2303 = vpop.f32.mrf.mxu0
    %2304 = vmatprep.mubr.f32.mxu0 0.0
    %2305 = vmatmul.mubr.f32.gmra.mxu0 %v2223
    %v2306 = vpop.f32.mrf.mxu0
    %v2307 = vadd.f32 %v1910, %v2306
    %v2308 = vpop.f32.mrf.mxu0
    %2309 = vmatprep.mubr.f32.mxu0 0.0
    %2310 = vmatmul.mubr.f32.gmra.mxu0 %v1637
    %v2311 = vpop.f32.mrf.mxu0
    %v2312 = vadd.f32 %v1915, %v2311
    %v2313 = vpop.f32.mrf.mxu0
    %2314 = vmatprep.mubr.f32.mxu0 0.0
    %2315 = vmatmul.mubr.f32.gmra.mxu0 %v1640
    %v2316 = vpop.f32.mrf.mxu0
    %v2317 = vadd.f32 %v1920, %v2316
    %v2318 = vpop.f32.mrf.mxu0
    %2319 = vmatprep.mubr.f32.mxu0 0.0
    %2320 = vmatmul.mubr.f32.gmra.mxu0 %v1643
    %v2321 = vpop.f32.mrf.mxu0
    %v2322 = vadd.f32 %v1925, %v2321
    %v2323 = vpop.f32.mrf.mxu0
    %2324 = vmatprep.mubr.f32.mxu0 0.0
    %2325 = vmatmul.mubr.f32.gmra.mxu0 %v1646
    %v2326 = vpop.f32.mrf.mxu0
    %v2327 = vadd.f32 %v1930, %v2326
    %v2328 = vpop.f32.mrf.mxu0
    %2329 = vmatprep.mubr.f32.mxu0 0.0
    %2330 = vmatmul.mubr.f32.gmra.mxu0 %v1649
    %v2331 = vpop.f32.mrf.mxu0
    %v2332 = vadd.f32 %v1935, %v2331
    %v2333 = vpop.f32.mrf.mxu0
    %2334 = vmatprep.mubr.f32.mxu0 0.0
    %2335 = vmatmul.mubr.f32.gmra.mxu0 %v1652
    %v2336 = vpop.f32.mrf.mxu0
    %v2337 = vadd.f32 %v1940, %v2336
    %v2338 = vpop.f32.mrf.mxu0
    %2339 = vmatprep.mubr.f32.mxu0 0.0
    %2340 = vmatmul.mubr.f32.gmra.mxu0 %v1655
    %v2341 = vpop.f32.mrf.mxu0
    %v2342 = vadd.f32 %v1945, %v2341
    %v2343 = vpop.f32.mrf.mxu0
    %2344 = vmatprep.mubr.f32.mxu0 0.0
    %2345 = vmatmul.mubr.f32.gmra.mxu0 %v1658
    %v2346 = vpop.f32.mrf.mxu0
    %v2347 = vadd.f32 %v1950, %v2346
    %v2348 = vpop.f32.mrf.mxu0
    %2349 = vmatprep.mubr.f32.mxu0 0.0
    %2350 = vmatmul.mubr.f32.gmra.mxu0 %v1661
    %v2351 = vpop.f32.mrf.mxu0
    %v2352 = vadd.f32 %v1955, %v2351
    %v2353 = vpop.f32.mrf.mxu0
    %2354 = vmatprep.mubr.f32.mxu0 0.0
    %2355 = vmatmul.mubr.f32.gmra.mxu0 %v1664
    %v2356 = vpop.f32.mrf.mxu0
    %v2357 = vadd.f32 %v1960, %v2356
    %v2358 = vpop.f32.mrf.mxu0
    %2359 = vmatprep.mubr.f32.mxu0 0.0
    %2360 = vmatmul.mubr.f32.gmra.mxu0 %v1667
    %v2361 = vpop.f32.mrf.mxu0
    %v2362 = vadd.f32 %v1965, %v2361
    %v2363 = vpop.f32.mrf.mxu0
    %2364 = vmatprep.mubr.f32.mxu0 0.0
    %2365 = vmatmul.mubr.f32.gmra.mxu0 %v1670
    %v2366 = vpop.f32.mrf.mxu0
    %v2367 = vadd.f32 %v1970, %v2366
    %v2368 = vpop.f32.mrf.mxu0
    %2369 = vmatprep.mubr.f32.mxu0 0.0
    %2370 = vmatmul.mubr.f32.gmra.mxu0 %v1673
    %v2371 = vpop.f32.mrf.mxu0
    %v2372 = vadd.f32 %v1975, %v2371
    %v2373 = vpop.f32.mrf.mxu0
    %2374 = vmatprep.mubr.f32.mxu0 0.0
    %2375 = vmatmul.mubr.f32.gmra.mxu0 %v1676
    %v2376 = vpop.f32.mrf.mxu0
    %v2377 = vadd.f32 %v1980, %v2376
    %v2378 = vpop.f32.mrf.mxu0
    %2379 = vmatprep.mubr.f32.mxu0 0.0
    %2380 = vmatmul.mubr.f32.gmra.mxu0 %v1679
    %v2381 = vpop.f32.mrf.mxu0
    %v2382 = vadd.f32 %v1985, %v2381
    %v2383 = vpop.f32.mrf.mxu0
    %2384 = vmatprep.mubr.f32.mxu0 0.0
    %2385 = vmatmul.mubr.f32.gmra.mxu0 %v1682
    %v2386 = vpop.f32.mrf.mxu0
    %v2387 = vadd.f32 %v1990, %v2386
    %v2388 = vpop.f32.mrf.mxu0
    %2389 = vmatprep.mubr.f32.mxu0 0.0
    %2390 = vmatmul.mubr.f32.gmra.mxu0 %v1685
    %v2391 = vpop.f32.mrf.mxu0
    %v2392 = vadd.f32 %v1995, %v2391
    %v2393 = vpop.f32.mrf.mxu0
    %2394 = vmatprep.mubr.f32.mxu0 0.0
    %2395 = vmatmul.mubr.f32.gmra.mxu0 %v1688
    %v2396 = vpop.f32.mrf.mxu0
    %v2397 = vadd.f32 %v2000, %v2396
    %v2398 = vpop.f32.mrf.mxu0
    %2399 = vmatprep.mubr.f32.mxu0 0.0
    %2400 = vmatmul.mubr.f32.gmra.mxu0 %v1691
    %v2401 = vpop.f32.mrf.mxu0
    %v2402 = vadd.f32 %v2005, %v2401
    %v2403 = vpop.f32.mrf.mxu0
    %2404 = vmatprep.mubr.f32.mxu0 0.0
    %2405 = vmatmul.mubr.f32.gmra.mxu0 %v1694
    %v2406 = vpop.f32.mrf.mxu0
    %v2407 = vadd.f32 %v2010, %v2406
    %v2408 = vpop.f32.mrf.mxu0
    %2409 = vmatprep.mubr.f32.mxu0 0.0
    %2410 = vmatmul.mubr.f32.gmra.mxu0 %v1697
    %v2411 = vpop.f32.mrf.mxu0
    %v2412 = vadd.f32 %v2015, %v2411
    %v2413 = vpop.f32.mrf.mxu0
    %2414 = vmatprep.mubr.f32.mxu0 0.0
    %2415 = vmatmul.mubr.f32.gmra.mxu0 %v1700
    %v2416 = vpop.f32.mrf.mxu0
    %v2417 = vadd.f32 %v2020, %v2416
    %v2418 = vpop.f32.mrf.mxu0
    %2419 = vmatprep.mubr.f32.mxu0 0.0
    %2420 = vmatmul.mubr.f32.gmra.mxu0 %v1703
    %v2421 = vpop.f32.mrf.mxu0
    %v2422 = vadd.f32 %v2025, %v2421
    %v2423 = vpop.f32.mrf.mxu0
    %2424 = vmatprep.mubr.f32.mxu0 0.0
    %2425 = vmatmul.mubr.f32.gmra.mxu0 %v1706
    %v2426 = vpop.f32.mrf.mxu0
    %v2427 = vadd.f32 %v2030, %v2426
    %v2428 = vpop.f32.mrf.mxu0
    %2429 = vmatprep.mubr.f32.mxu0 0.0
    %2430 = vmatmul.mubr.f32.gmra.mxu0 %v1709
    %v2431 = vpop.f32.mrf.mxu0
    %v2432 = vadd.f32 %v2035, %v2431
    %v2433 = vpop.f32.mrf.mxu0
    %2434 = vmatprep.mubr.f32.mxu0 0.0
    %2435 = vmatmul.mubr.f32.gmra.mxu0 %v1712
    %v2436 = vpop.f32.mrf.mxu0
    %v2437 = vadd.f32 %v2040, %v2436
    %v2438 = vpop.f32.mrf.mxu0
    %2439 = vmatprep.mubr.f32.mxu0 0.0
    %2440 = vmatmul.mubr.f32.gmra.mxu0 %v1715
    %v2441 = vpop.f32.mrf.mxu0
    %v2442 = vadd.f32 %v2045, %v2441
    %v2443 = vpop.f32.mrf.mxu0
    %2444 = vmatprep.mubr.f32.mxu0 0.0
    %2445 = vmatmul.mubr.f32.gmra.mxu0 %v1718
    %v2446 = vpop.f32.mrf.mxu0
    %v2447 = vadd.f32 %v2050, %v2446
    %v2448 = vpop.f32.mrf.mxu0
    %2449 = vmatprep.mubr.f32.mxu0 0.0
    %2450 = vmatmul.mubr.f32.gmra.mxu0 %v1721
    %v2451 = vpop.f32.mrf.mxu0
    %v2452 = vadd.f32 %v2055, %v2451
    %v2453 = vpop.f32.mrf.mxu0
    %2454 = vmatprep.mubr.f32.mxu0 0.0
    %2455 = vmatmul.mubr.f32.gmra.mxu0 %v1724
    %v2456 = vpop.f32.mrf.mxu0
    %v2457 = vadd.f32 %v2060, %v2456
    %v2458 = vpop.f32.mrf.mxu0
    %2459 = vmatprep.mubr.f32.mxu0 0.0
    %2460 = vmatmul.mubr.f32.gmra.mxu0 %v1727
    %v2461 = vpop.f32.mrf.mxu0
    %v2462 = vadd.f32 %v2065, %v2461
    %v2463 = vpop.f32.mrf.mxu0
    %2464 = vmatprep.mubr.f32.mxu0 0.0
    %2465 = vmatmul.mubr.f32.gmra.mxu0 %v1730
    %v2466 = vpop.f32.mrf.mxu0
    %v2467 = vadd.f32 %v2070, %v2466
    %v2468 = vpop.f32.mrf.mxu0
    %2469 = vmatprep.mubr.f32.mxu0 0.0
    %2470 = vmatmul.mubr.f32.gmra.mxu0 %v1733
    %v2471 = vpop.f32.mrf.mxu0
    %v2472 = vadd.f32 %v2075, %v2471
    %v2473 = vpop.f32.mrf.mxu0
    %2474 = vmatprep.mubr.f32.mxu0 0.0
    %2475 = vmatmul.mubr.f32.gmra.mxu0 %v1736
    %v2476 = vpop.f32.mrf.mxu0
    %v2477 = vadd.f32 %v2080, %v2476
    %v2478 = vpop.f32.mrf.mxu0
    %2479 = vmatprep.mubr.f32.mxu0 0.0
    %2480 = vmatmul.mubr.f32.gmra.mxu0 %v1739
    %v2481 = vpop.f32.mrf.mxu0
    %v2482 = vadd.f32 %v2085, %v2481
    %v2483 = vpop.f32.mrf.mxu0
    %2484 = vmatprep.mubr.f32.mxu0 0.0
    %2485 = vmatmul.mubr.f32.gmra.mxu0 %v1742
    %v2486 = vpop.f32.mrf.mxu0
    %v2487 = vadd.f32 %v2090, %v2486
    %v2488 = vpop.f32.mrf.mxu0
    %2489 = vmatprep.mubr.f32.mxu0 0.0
    %2490 = vmatmul.mubr.f32.gmra.mxu0 %v1745
    %v2491 = vpop.f32.mrf.mxu0
    %v2492 = vadd.f32 %v2095, %v2491
    %v2493 = vpop.f32.mrf.mxu0
    %2494 = vmatprep.mubr.f32.mxu0 0.0
    %2495 = vmatmul.mubr.f32.gmra.mxu0 %v1748
    %v2496 = vpop.f32.mrf.mxu0
    %v2497 = vadd.f32 %v2100, %v2496
    %v2498 = vpop.f32.mrf.mxu0
    %2499 = vmatprep.mubr.f32.mxu0 0.0
    %2500 = vmatmul.mubr.f32.gmra.mxu0 %v1751
    %v2501 = vpop.f32.mrf.mxu0
    %v2502 = vadd.f32 %v2105, %v2501
    %v2503 = vpop.f32.mrf.mxu0
    %2504 = vmatprep.mubr.f32.mxu0 0.0
    %2505 = vmatmul.mubr.f32.gmra.mxu0 %v1754
    %v2506 = vpop.f32.mrf.mxu0
    %v2507 = vadd.f32 %v2110, %v2506
    %v2508 = vpop.f32.mrf.mxu0
    %2509 = vmatprep.mubr.f32.mxu0 0.0
    %2510 = vmatmul.mubr.f32.gmra.mxu0 %v1757
    %v2511 = vpop.f32.mrf.mxu0
    %v2512 = vadd.f32 %v2115, %v2511
    %v2513 = vpop.f32.mrf.mxu0
    %2514 = vmatprep.mubr.f32.mxu0 0.0
    %2515 = vmatmul.mubr.f32.gmra.mxu0 %v1760
    %v2516 = vpop.f32.mrf.mxu0
    %v2517 = vadd.f32 %v2120, %v2516
    %v2518 = vpop.f32.mrf.mxu0
    %2519 = vmatprep.mubr.f32.mxu0 0.0
    %2520 = vmatmul.mubr.f32.gmra.mxu0 %v1763
    %v2521 = vpop.f32.mrf.mxu0
    %v2522 = vadd.f32 %v2125, %v2521
    %v2523 = vpop.f32.mrf.mxu0
    %2524 = vmatprep.mubr.f32.mxu0 0.0
    %2525 = vmatmul.mubr.f32.gmra.mxu0 %v1766
    %v2526 = vpop.f32.mrf.mxu0
    %v2527 = vadd.f32 %v2130, %v2526
    %v2528 = vpop.f32.mrf.mxu0
    %2529 = vmatprep.mubr.f32.mxu0 0.0
    %2530 = vmatmul.mubr.f32.gmra.mxu0 %v1769
    %v2531 = vpop.f32.mrf.mxu0
    %v2532 = vadd.f32 %v2135, %v2531
    %v2533 = vpop.f32.mrf.mxu0
    %2534 = vmatprep.mubr.f32.mxu0 0.0
    %2535 = vmatmul.mubr.f32.gmra.mxu0 %v1772
    %v2536 = vpop.f32.mrf.mxu0
    %v2537 = vadd.f32 %v2140, %v2536
    %v2538 = vpop.f32.mrf.mxu0
    %2539 = vmatprep.mubr.f32.mxu0 0.0
    %2540 = vmatmul.mubr.f32.gmra.mxu0 %v1775
    %v2541 = vpop.f32.mrf.mxu0
    %v2542 = vadd.f32 %v2145, %v2541
    %v2543 = vpop.f32.mrf.mxu0
    %2544 = vmatprep.mubr.f32.mxu0 0.0
    %2545 = vmatmul.mubr.f32.gmra.mxu0 %v1778
    %v2546 = vpop.f32.mrf.mxu0
    %v2547 = vadd.f32 %v2150, %v2546
    %v2548 = vpop.f32.mrf.mxu0
    %2549 = vmatprep.mubr.f32.mxu0 0.0
    %2550 = vmatmul.mubr.f32.gmra.mxu0 %v1781
    %v2551 = vpop.f32.mrf.mxu0
    %v2552 = vadd.f32 %v2155, %v2551
    %v2553 = vpop.f32.mrf.mxu0
    %2554 = vmatprep.mubr.f32.mxu0 0.0
    %2555 = vmatmul.mubr.f32.gmra.mxu0 %v1784
    %v2556 = vpop.f32.mrf.mxu0
    %v2557 = vadd.f32 %v2160, %v2556
    %v2558 = vpop.f32.mrf.mxu0
    %2559 = vmatprep.mubr.f32.mxu0 0.0
    %2560 = vmatmul.mubr.f32.gmra.mxu0 %v1787
    %v2561 = vpop.f32.mrf.mxu0
    %v2562 = vadd.f32 %v2165, %v2561
    %v2563 = vpop.f32.mrf.mxu0
    %2564 = vmatprep.mubr.f32.mxu0 0.0
    %2565 = vmatmul.mubr.f32.gmra.mxu0 %v1790
    %v2566 = vpop.f32.mrf.mxu0
    %v2567 = vadd.f32 %v2170, %v2566
    %v2568 = vpop.f32.mrf.mxu0
    %2569 = vmatprep.mubr.f32.mxu0 0.0
    %2570 = vmatmul.mubr.f32.gmra.mxu0 %v1793
    %v2571 = vpop.f32.mrf.mxu0
    %v2572 = vadd.f32 %v2175, %v2571
    %v2573 = vpop.f32.mrf.mxu0
    %2574 = vmatprep.mubr.f32.mxu0 0.0
    %2575 = vmatmul.mubr.f32.gmra.mxu0 %v1796
    %v2576 = vpop.f32.mrf.mxu0
    %v2577 = vadd.f32 %v2180, %v2576
    %v2578 = vpop.f32.mrf.mxu0
    %2579 = vmatprep.mubr.f32.mxu0 0.0
    %2580 = vmatmul.mubr.f32.gmra.mxu0 %v1799
    %v2581 = vpop.f32.mrf.mxu0
    %v2582 = vadd.f32 %v2185, %v2581
    %v2583 = vpop.f32.mrf.mxu0
    %2584 = vmatprep.mubr.f32.mxu0 0.0
    %2585 = vmatmul.mubr.f32.gmra.mxu0 %v1802
    %v2586 = vpop.f32.mrf.mxu0
    %v2587 = vadd.f32 %v2190, %v2586
    %v2588 = vpop.f32.mrf.mxu0
    %2589 = vmatprep.mubr.f32.mxu0 0.0
    %2590 = vmatmul.mubr.f32.gmra.mxu0 %v1805
    %v2591 = vpop.f32.mrf.mxu0
    %v2592 = vadd.f32 %v2195, %v2591
    %v2593 = vpop.f32.mrf.mxu0
    %2594 = vmatprep.mubr.f32.mxu0 0.0
    %2595 = vmatmul.mubr.f32.gmra.mxu0 %v1808
    %v2596 = vpop.f32.mrf.mxu0
    %v2597 = vadd.f32 %v2200, %v2596
    %v2598 = vpop.f32.mrf.mxu0
    %2599 = vmatprep.mubr.f32.mxu0 0.0
    %2600 = vmatmul.mubr.f32.gmra.mxu0 %v1811
    %v2601 = vpop.f32.mrf.mxu0
    %v2602 = vadd.f32 %v2205, %v2601
    %v2603 = vpop.f32.mrf.mxu0
    %2604 = vmatprep.mubr.f32.mxu0 0.0
    %2605 = vmatmul.mubr.f32.gmra.mxu0 %v1814
    %v2606 = vpop.f32.mrf.mxu0
    %v2607 = vadd.f32 %v2210, %v2606
    %v2608 = vpop.f32.mrf.mxu0
    %2609 = vdwg.mxu0
    %s2610 = scalar_lea.vmem %s3, 32
    %v2611 = vld [vmem:[%s2610] sm:$0xff]
    %v2612 = vld [vmem:[%s2610 + $0x8] sm:$0xff]
    %v2614 = vsel %vm1635, %v1618, 0
    %v2617 = vsel %vm1635, %v1619, 0
    %v2620 = vsel %vm1635, %v1620, 0
    %v2623 = vsel %vm1635, %v1621, 0
    %2625 = vmatprep.subr.mxu0 0.0
    %2626 = vmatpush1.msra.mxu0 0.0
    %2627 = vmatprep.subr.mxu0 0.0
    %2628 = vmatpush1.msra.mxu0 0.0
    %2629 = vmatprep.subr.mxu0 0.0
    %2630 = vmatpush1.msra.mxu0 0.0
    %2631 = vmatprep.subr.mxu0 0.0
    %2632 = vmatpush1.msra.mxu0 0.0
    %2633 = vmatprep.subr.mxu0 0.0
    %2634 = vmatpush1.msra.mxu0 0.0
    %2635 = vmatprep.subr.mxu0 0.0
    %2636 = vmatpush1.msra.mxu0 0.0
    %2637 = vmatprep.subr.mxu0 0.0
    %2638 = vmatpush1.msra.mxu0 0.0
    %2639 = vmatprep.subr.mxu0 0.0
    %2640 = vmatpush1.msra.mxu0 0.0
    %2641 = vmatprep.subr.mxu0 0.0
    %2642 = vmatpush1.msra.mxu0 0.0
    %2643 = vmatprep.subr.mxu0 0.0
    %2644 = vmatpush1.msra.mxu0 0.0
    %2645 = vmatprep.subr.mxu0 0.0
    %2646 = vmatpush1.msra.mxu0 0.0
    %2647 = vmatprep.subr.mxu0 0.0
    %2648 = vmatpush1.msra.mxu0 0.0
    %2649 = vmatprep.subr.mxu0 0.0
    %2650 = vmatpush1.msra.mxu0 0.0
    %2651 = vmatprep.subr.mxu0 0.0
    %2652 = vmatpush1.msra.mxu0 0.0
    %2653 = vmatprep.subr.mxu0 0.0
    %2654 = vmatpush1.msra.mxu0 %v2612
    %2655 = vmatprep.subr.mxu0 0.0
    %2656 = vmatpush1.msra.mxu0 %v2611
    %2657 = vmatprep.subr.mxu0 0.0
    %2658 = vmatpush2.msra.mxu0 0.0
    %2659 = vmatprep.subr.mxu0 0.0
    %2660 = vmatpush2.msra.mxu0 0.0
    %2661 = vmatprep.subr.mxu0 0.0
    %2662 = vmatpush2.msra.mxu0 0.0
    %2663 = vmatprep.subr.mxu0 0.0
    %2664 = vmatpush2.msra.mxu0 0.0
    %2665 = vmatprep.subr.mxu0 0.0
    %2666 = vmatpush2.msra.mxu0 0.0
    %2667 = vmatprep.subr.mxu0 0.0
    %2668 = vmatpush2.msra.mxu0 0.0
    %2669 = vmatprep.subr.mxu0 0.0
    %2670 = vmatpush2.msra.mxu0 0.0
    %2671 = vmatprep.subr.mxu0 0.0
    %2672 = vmatpush2.msra.mxu0 0.0
    %2673 = vmatprep.subr.mxu0 0.0
    %2674 = vmatpush2.msra.mxu0 0.0
    %2675 = vmatprep.subr.mxu0 0.0
    %2676 = vmatpush2.msra.mxu0 0.0
    %2677 = vmatprep.subr.mxu0 0.0
    %2678 = vmatpush2.msra.mxu0 0.0
    %2679 = vmatprep.subr.mxu0 0.0
    %2680 = vmatpush2.msra.mxu0 0.0
    %2681 = vmatprep.subr.mxu0 0.0
    %2682 = vmatpush2.msra.mxu0 0.0
    %2683 = vmatprep.subr.mxu0 0.0
    %2684 = vmatpush2.msra.mxu0 0.0
    %2685 = vmatprep.subr.mxu0 0.0
    %2686 = vmatpush2.msra.mxu0 0.0
    %2687 = vmatprep.subr.mxu0 0.0
    %2688 = vmatpush2.msra.mxu0 0.0
    %2689 = vmatprep.mubr.f32.mxu0 0.0
    %2690 = vmatmul.mubr.f32.gmra.mxu0 %v1649
    %v2691 = vpop.f32.mrf.mxu0
    %v2692 = vadd.f32 0.0, %v2691
    %v2693 = vpop.f32.mrf.mxu0
    %2694 = vmatprep.mubr.f32.mxu0 0.0
    %2695 = vmatmul.mubr.f32.gmra.mxu0 %v1652
    %v2696 = vpop.f32.mrf.mxu0
    %v2697 = vadd.f32 0.0, %v2696
    %v2698 = vpop.f32.mrf.mxu0
    %2699 = vmatprep.mubr.f32.mxu0 0.0
    %2700 = vmatmul.mubr.f32.gmra.mxu0 %v1655
    %v2701 = vpop.f32.mrf.mxu0
    %v2702 = vadd.f32 0.0, %v2701
    %v2703 = vpop.f32.mrf.mxu0
    %2704 = vmatprep.mubr.f32.mxu0 0.0
    %2705 = vmatmul.mubr.f32.gmra.mxu0 %v1658
    %v2706 = vpop.f32.mrf.mxu0
    %v2707 = vadd.f32 0.0, %v2706
    %v2708 = vpop.f32.mrf.mxu0
    %2709 = vmatprep.mubr.f32.mxu0 0.0
    %2710 = vmatmul.mubr.f32.gmra.mxu0 %v1661
    %v2711 = vpop.f32.mrf.mxu0
    %v2712 = vadd.f32 0.0, %v2711
    %v2713 = vpop.f32.mrf.mxu0
    %2714 = vmatprep.mubr.f32.mxu0 0.0
    %2715 = vmatmul.mubr.f32.gmra.mxu0 %v1664
    %v2716 = vpop.f32.mrf.mxu0
    %v2717 = vadd.f32 0.0, %v2716
    %v2718 = vpop.f32.mrf.mxu0
    %2719 = vmatprep.mubr.f32.mxu0 0.0
    %2720 = vmatmul.mubr.f32.gmra.mxu0 %v1667
    %v2721 = vpop.f32.mrf.mxu0
    %v2722 = vadd.f32 0.0, %v2721
    %v2723 = vpop.f32.mrf.mxu0
    %2724 = vmatprep.mubr.f32.mxu0 0.0
    %2725 = vmatmul.mubr.f32.gmra.mxu0 %v1670
    %v2726 = vpop.f32.mrf.mxu0
    %v2727 = vadd.f32 0.0, %v2726
    %v2728 = vpop.f32.mrf.mxu0
    %2729 = vmatprep.mubr.f32.mxu0 0.0
    %2730 = vmatmul.mubr.f32.gmra.mxu0 %v1673
    %v2731 = vpop.f32.mrf.mxu0
    %v2732 = vadd.f32 0.0, %v2731
    %v2733 = vpop.f32.mrf.mxu0
    %2734 = vmatprep.mubr.f32.mxu0 0.0
    %2735 = vmatmul.mubr.f32.gmra.mxu0 %v1676
    %v2736 = vpop.f32.mrf.mxu0
    %v2737 = vadd.f32 0.0, %v2736
    %v2738 = vpop.f32.mrf.mxu0
    %2739 = vmatprep.mubr.f32.mxu0 0.0
    %2740 = vmatmul.mubr.f32.gmra.mxu0 %v1679
    %v2741 = vpop.f32.mrf.mxu0
    %v2742 = vadd.f32 0.0, %v2741
    %v2743 = vpop.f32.mrf.mxu0
    %2744 = vmatprep.mubr.f32.mxu0 0.0
    %2745 = vmatmul.mubr.f32.gmra.mxu0 %v1682
    %v2746 = vpop.f32.mrf.mxu0
    %v2747 = vadd.f32 0.0, %v2746
    %v2748 = vpop.f32.mrf.mxu0
    %2749 = vmatprep.mubr.f32.mxu0 0.0
    %2750 = vmatmul.mubr.f32.gmra.mxu0 %v1685
    %v2751 = vpop.f32.mrf.mxu0
    %v2752 = vadd.f32 0.0, %v2751
    %v2753 = vpop.f32.mrf.mxu0
    %2754 = vmatprep.mubr.f32.mxu0 0.0
    %2755 = vmatmul.mubr.f32.gmra.mxu0 %v1688
    %v2756 = vpop.f32.mrf.mxu0
    %v2757 = vadd.f32 0.0, %v2756
    %v2758 = vpop.f32.mrf.mxu0
    %2759 = vmatprep.mubr.f32.mxu0 0.0
    %2760 = vmatmul.mubr.f32.gmra.mxu0 %v1691
    %v2761 = vpop.f32.mrf.mxu0
    %v2762 = vadd.f32 0.0, %v2761
    %v2763 = vpop.f32.mrf.mxu0
    %2764 = vmatprep.mubr.f32.mxu0 0.0
    %2765 = vmatmul.mubr.f32.gmra.mxu0 %v1694
    %v2766 = vpop.f32.mrf.mxu0
    %v2767 = vadd.f32 0.0, %v2766
    %v2768 = vpop.f32.mrf.mxu0
    %2769 = vmatprep.mubr.f32.mxu0 0.0
    %2770 = vmatmul.mubr.f32.gmra.mxu0 %v1697
    %v2771 = vpop.f32.mrf.mxu0
    %v2772 = vadd.f32 0.0, %v2771
    %v2773 = vpop.f32.mrf.mxu0
    %2774 = vmatprep.mubr.f32.mxu0 0.0
    %2775 = vmatmul.mubr.f32.gmra.mxu0 %v1700
    %v2776 = vpop.f32.mrf.mxu0
    %v2777 = vadd.f32 0.0, %v2776
    %v2778 = vpop.f32.mrf.mxu0
    %2779 = vmatprep.mubr.f32.mxu0 0.0
    %2780 = vmatmul.mubr.f32.gmra.mxu0 %v1703
    %v2781 = vpop.f32.mrf.mxu0
    %v2782 = vadd.f32 0.0, %v2781
    %v2783 = vpop.f32.mrf.mxu0
    %2784 = vmatprep.mubr.f32.mxu0 0.0
    %2785 = vmatmul.mubr.f32.gmra.mxu0 %v1706
    %v2786 = vpop.f32.mrf.mxu0
    %v2787 = vadd.f32 0.0, %v2786
    %v2788 = vpop.f32.mrf.mxu0
    %2789 = vmatprep.mubr.f32.mxu0 0.0
    %2790 = vmatmul.mubr.f32.gmra.mxu0 %v1709
    %v2791 = vpop.f32.mrf.mxu0
    %v2792 = vadd.f32 0.0, %v2791
    %v2793 = vpop.f32.mrf.mxu0
    %2794 = vmatprep.mubr.f32.mxu0 0.0
    %2795 = vmatmul.mubr.f32.gmra.mxu0 %v1712
    %v2796 = vpop.f32.mrf.mxu0
    %v2797 = vadd.f32 0.0, %v2796
    %v2798 = vpop.f32.mrf.mxu0
    %2799 = vmatprep.mubr.f32.mxu0 0.0
    %2800 = vmatmul.mubr.f32.gmra.mxu0 %v1715
    %v2801 = vpop.f32.mrf.mxu0
    %v2802 = vadd.f32 0.0, %v2801
    %v2803 = vpop.f32.mrf.mxu0
    %2804 = vmatprep.mubr.f32.mxu0 0.0
    %2805 = vmatmul.mubr.f32.gmra.mxu0 %v1718
    %v2806 = vpop.f32.mrf.mxu0
    %v2807 = vadd.f32 0.0, %v2806
    %v2808 = vpop.f32.mrf.mxu0
    %2809 = vmatprep.mubr.f32.mxu0 0.0
    %2810 = vmatmul.mubr.f32.gmra.mxu0 %v1721
    %v2811 = vpop.f32.mrf.mxu0
    %v2812 = vadd.f32 0.0, %v2811
    %v2813 = vpop.f32.mrf.mxu0
    %2814 = vmatprep.mubr.f32.mxu0 0.0
    %2815 = vmatmul.mubr.f32.gmra.mxu0 %v1724
    %v2816 = vpop.f32.mrf.mxu0
    %v2817 = vadd.f32 0.0, %v2816
    %v2818 = vpop.f32.mrf.mxu0
    %2819 = vmatprep.mubr.f32.mxu0 0.0
    %2820 = vmatmul.mubr.f32.gmra.mxu0 %v1727
    %v2821 = vpop.f32.mrf.mxu0
    %v2822 = vadd.f32 0.0, %v2821
    %v2823 = vpop.f32.mrf.mxu0
    %2824 = vmatprep.mubr.f32.mxu0 0.0
    %2825 = vmatmul.mubr.f32.gmra.mxu0 %v1730
    %v2826 = vpop.f32.mrf.mxu0
    %v2827 = vadd.f32 0.0, %v2826
    %v2828 = vpop.f32.mrf.mxu0
    %2829 = vmatprep.mubr.f32.mxu0 0.0
    %2830 = vmatmul.mubr.f32.gmra.mxu0 %v1733
    %v2831 = vpop.f32.mrf.mxu0
    %v2832 = vadd.f32 0.0, %v2831
    %v2833 = vpop.f32.mrf.mxu0
    %2834 = vmatprep.mubr.f32.mxu0 0.0
    %2835 = vmatmul.mubr.f32.gmra.mxu0 %v1736
    %v2836 = vpop.f32.mrf.mxu0
    %v2837 = vadd.f32 0.0, %v2836
    %v2838 = vpop.f32.mrf.mxu0
    %2839 = vmatprep.mubr.f32.mxu0 0.0
    %2840 = vmatmul.mubr.f32.gmra.mxu0 %v1739
    %v2841 = vpop.f32.mrf.mxu0
    %v2842 = vadd.f32 0.0, %v2841
    %v2843 = vpop.f32.mrf.mxu0
    %2844 = vmatprep.mubr.f32.mxu0 0.0
    %2845 = vmatmul.mubr.f32.gmra.mxu0 %v1742
    %v2846 = vpop.f32.mrf.mxu0
    %v2847 = vadd.f32 0.0, %v2846
    %v2848 = vpop.f32.mrf.mxu0
    %2849 = vmatprep.mubr.f32.mxu0 0.0
    %2850 = vmatmul.mubr.f32.gmra.mxu0 %v1745
    %v2851 = vpop.f32.mrf.mxu0
    %v2852 = vadd.f32 0.0, %v2851
    %v2853 = vpop.f32.mrf.mxu0
    %2854 = vmatprep.mubr.f32.mxu0 0.0
    %2855 = vmatmul.mubr.f32.gmra.mxu0 %v1748
    %v2856 = vpop.f32.mrf.mxu0
    %v2857 = vadd.f32 0.0, %v2856
    %v2858 = vpop.f32.mrf.mxu0
    %2859 = vmatprep.mubr.f32.mxu0 0.0
    %2860 = vmatmul.mubr.f32.gmra.mxu0 %v1751
    %v2861 = vpop.f32.mrf.mxu0
    %v2862 = vadd.f32 0.0, %v2861
    %v2863 = vpop.f32.mrf.mxu0
    %2864 = vmatprep.mubr.f32.mxu0 0.0
    %2865 = vmatmul.mubr.f32.gmra.mxu0 %v1754
    %v2866 = vpop.f32.mrf.mxu0
    %v2867 = vadd.f32 0.0, %v2866
    %v2868 = vpop.f32.mrf.mxu0
    %2869 = vmatprep.mubr.f32.mxu0 0.0
    %2870 = vmatmul.mubr.f32.gmra.mxu0 %v1757
    %v2871 = vpop.f32.mrf.mxu0
    %v2872 = vadd.f32 0.0, %v2871
    %v2873 = vpop.f32.mrf.mxu0
    %2874 = vmatprep.mubr.f32.mxu0 0.0
    %2875 = vmatmul.mubr.f32.gmra.mxu0 %v1760
    %v2876 = vpop.f32.mrf.mxu0
    %v2877 = vadd.f32 0.0, %v2876
    %v2878 = vpop.f32.mrf.mxu0
    %2879 = vmatprep.mubr.f32.mxu0 0.0
    %2880 = vmatmul.mubr.f32.gmra.mxu0 %v1763
    %v2881 = vpop.f32.mrf.mxu0
    %v2882 = vadd.f32 0.0, %v2881
    %v2883 = vpop.f32.mrf.mxu0
    %2884 = vmatprep.mubr.f32.mxu0 0.0
    %2885 = vmatmul.mubr.f32.gmra.mxu0 %v1766
    %v2886 = vpop.f32.mrf.mxu0
    %v2887 = vadd.f32 0.0, %v2886
    %v2888 = vpop.f32.mrf.mxu0
    %2889 = vmatprep.mubr.f32.mxu0 0.0
    %2890 = vmatmul.mubr.f32.gmra.mxu0 %v1769
    %v2891 = vpop.f32.mrf.mxu0
    %v2892 = vadd.f32 0.0, %v2891
    %v2893 = vpop.f32.mrf.mxu0
    %2894 = vmatprep.mubr.f32.mxu0 0.0
    %2895 = vmatmul.mubr.f32.gmra.mxu0 %v1772
    %v2896 = vpop.f32.mrf.mxu0
    %v2897 = vadd.f32 0.0, %v2896
    %v2898 = vpop.f32.mrf.mxu0
    %2899 = vmatprep.mubr.f32.mxu0 0.0
    %2900 = vmatmul.mubr.f32.gmra.mxu0 %v1775
    %v2901 = vpop.f32.mrf.mxu0
    %v2902 = vadd.f32 0.0, %v2901
    %v2903 = vpop.f32.mrf.mxu0
    %2904 = vmatprep.mubr.f32.mxu0 0.0
    %2905 = vmatmul.mubr.f32.gmra.mxu0 %v1778
    %v2906 = vpop.f32.mrf.mxu0
    %v2907 = vadd.f32 0.0, %v2906
    %v2908 = vpop.f32.mrf.mxu0
    %2909 = vmatprep.mubr.f32.mxu0 0.0
    %2910 = vmatmul.mubr.f32.gmra.mxu0 %v1781
    %v2911 = vpop.f32.mrf.mxu0
    %v2912 = vadd.f32 0.0, %v2911
    %v2913 = vpop.f32.mrf.mxu0
    %2914 = vmatprep.mubr.f32.mxu0 0.0
    %2915 = vmatmul.mubr.f32.gmra.mxu0 %v1784
    %v2916 = vpop.f32.mrf.mxu0
    %v2917 = vadd.f32 0.0, %v2916
    %v2918 = vpop.f32.mrf.mxu0
    %2919 = vmatprep.mubr.f32.mxu0 0.0
    %2920 = vmatmul.mubr.f32.gmra.mxu0 %v1787
    %v2921 = vpop.f32.mrf.mxu0
    %v2922 = vadd.f32 0.0, %v2921
    %v2923 = vpop.f32.mrf.mxu0
    %2924 = vmatprep.mubr.f32.mxu0 0.0
    %2925 = vmatmul.mubr.f32.gmra.mxu0 %v1790
    %v2926 = vpop.f32.mrf.mxu0
    %v2927 = vadd.f32 0.0, %v2926
    %v2928 = vpop.f32.mrf.mxu0
    %2929 = vmatprep.mubr.f32.mxu0 0.0
    %2930 = vmatmul.mubr.f32.gmra.mxu0 %v1793
    %v2931 = vpop.f32.mrf.mxu0
    %v2932 = vadd.f32 0.0, %v2931
    %v2933 = vpop.f32.mrf.mxu0
    %2934 = vmatprep.mubr.f32.mxu0 0.0
    %2935 = vmatmul.mubr.f32.gmra.mxu0 %v1796
    %v2936 = vpop.f32.mrf.mxu0
    %v2937 = vadd.f32 0.0, %v2936
    %v2938 = vpop.f32.mrf.mxu0
    %2939 = vmatprep.mubr.f32.mxu0 0.0
    %2940 = vmatmul.mubr.f32.gmra.mxu0 %v1799
    %v2941 = vpop.f32.mrf.mxu0
    %v2942 = vadd.f32 0.0, %v2941
    %v2943 = vpop.f32.mrf.mxu0
    %2944 = vmatprep.mubr.f32.mxu0 0.0
    %2945 = vmatmul.mubr.f32.gmra.mxu0 %v1802
    %v2946 = vpop.f32.mrf.mxu0
    %v2947 = vadd.f32 0.0, %v2946
    %v2948 = vpop.f32.mrf.mxu0
    %2949 = vmatprep.mubr.f32.mxu0 0.0
    %2950 = vmatmul.mubr.f32.gmra.mxu0 %v1805
    %v2951 = vpop.f32.mrf.mxu0
    %v2952 = vadd.f32 0.0, %v2951
    %v2953 = vpop.f32.mrf.mxu0
    %2954 = vmatprep.mubr.f32.mxu0 0.0
    %2955 = vmatmul.mubr.f32.gmra.mxu0 %v1808
    %v2956 = vpop.f32.mrf.mxu0
    %v2957 = vadd.f32 0.0, %v2956
    %v2958 = vpop.f32.mrf.mxu0
    %2959 = vmatprep.mubr.f32.mxu0 0.0
    %2960 = vmatmul.mubr.f32.gmra.mxu0 %v1811
    %v2961 = vpop.f32.mrf.mxu0
    %v2962 = vadd.f32 0.0, %v2961
    %v2963 = vpop.f32.mrf.mxu0
    %2964 = vmatprep.mubr.f32.mxu0 0.0
    %2965 = vmatmul.mubr.f32.gmra.mxu0 %v1814
    %v2966 = vpop.f32.mrf.mxu0
    %v2967 = vadd.f32 0.0, %v2966
    %v2968 = vpop.f32.mrf.mxu0
    %2969 = vmatprep.mubr.f32.mxu0 0.0
    %2970 = vmatmul.mubr.f32.gmra.mxu0 %v1817
    %v2971 = vpop.f32.mrf.mxu0
    %v2972 = vadd.f32 0.0, %v2971
    %v2973 = vpop.f32.mrf.mxu0
    %2974 = vmatprep.mubr.f32.mxu0 0.0
    %2975 = vmatmul.mubr.f32.gmra.mxu0 %v1820
    %v2976 = vpop.f32.mrf.mxu0
    %v2977 = vadd.f32 0.0, %v2976
    %v2978 = vpop.f32.mrf.mxu0
    %2979 = vmatprep.mubr.f32.mxu0 0.0
    %2980 = vmatmul.mubr.f32.gmra.mxu0 %v1823
    %v2981 = vpop.f32.mrf.mxu0
    %v2982 = vadd.f32 0.0, %v2981
    %v2983 = vpop.f32.mrf.mxu0
    %2984 = vmatprep.mubr.f32.mxu0 0.0
    %2985 = vmatmul.mubr.f32.gmra.mxu0 %v1826
    %v2986 = vpop.f32.mrf.mxu0
    %v2987 = vadd.f32 0.0, %v2986
    %v2988 = vpop.f32.mrf.mxu0
    %2989 = vmatprep.mubr.f32.mxu0 0.0
    %2990 = vmatmul.mubr.f32.gmra.mxu0 %v2614
    %v2991 = vpop.f32.mrf.mxu0
    %v2992 = vadd.f32 0.0, %v2991
    %v2993 = vpop.f32.mrf.mxu0
    %2994 = vmatprep.mubr.f32.mxu0 0.0
    %2995 = vmatmul.mubr.f32.gmra.mxu0 %v2617
    %v2996 = vpop.f32.mrf.mxu0
    %v2997 = vadd.f32 0.0, %v2996
    %v2998 = vpop.f32.mrf.mxu0
    %2999 = vmatprep.mubr.f32.mxu0 0.0
    %3000 = vmatmul.mubr.f32.gmra.mxu0 %v2620
    %v3001 = vpop.f32.mrf.mxu0
    %v3002 = vadd.f32 0.0, %v3001
    %v3003 = vpop.f32.mrf.mxu0
    %3004 = vmatprep.mubr.f32.mxu0 0.0
    %3005 = vmatmul.mubr.f32.gmra.mxu0 %v2623
    %v3006 = vpop.f32.mrf.mxu0
    %v3007 = vadd.f32 0.0, %v3006
    %v3008 = vpop.f32.mrf.mxu0
    %3009 = vdwg.mxu0
    %v3010 = vadd.f32 %v2292, %v2692
    %v3011 = vadd.f32 %v2297, %v2697
    %v3012 = vadd.f32 %v2302, %v2702
    %v3013 = vadd.f32 %v2307, %v2707
    %v3014 = vadd.f32 %v2312, %v2712
    %v3015 = vadd.f32 %v2317, %v2717
    %v3016 = vadd.f32 %v2322, %v2722
    %v3017 = vadd.f32 %v2327, %v2727
    %v3018 = vadd.f32 %v2332, %v2732
    %v3019 = vadd.f32 %v2337, %v2737
    %v3020 = vadd.f32 %v2342, %v2742
    %v3021 = vadd.f32 %v2347, %v2747
    %v3022 = vadd.f32 %v2352, %v2752
    %v3023 = vadd.f32 %v2357, %v2757
    %v3024 = vadd.f32 %v2362, %v2762
    %v3025 = vadd.f32 %v2367, %v2767
    %v3026 = vadd.f32 %v2372, %v2772
    %v3027 = vadd.f32 %v2377, %v2777
    %v3028 = vadd.f32 %v2382, %v2782
    %v3029 = vadd.f32 %v2387, %v2787
    %v3030 = vadd.f32 %v2392, %v2792
    %v3031 = vadd.f32 %v2397, %v2797
    %v3032 = vadd.f32 %v2402, %v2802
    %v3033 = vadd.f32 %v2407, %v2807
    %v3034 = vadd.f32 %v2412, %v2812
    %v3035 = vadd.f32 %v2417, %v2817
    %v3036 = vadd.f32 %v2422, %v2822
    %v3037 = vadd.f32 %v2427, %v2827
    %v3038 = vadd.f32 %v2432, %v2832
    %v3039 = vadd.f32 %v2437, %v2837
    %v3040 = vadd.f32 %v2442, %v2842
    %v3041 = vadd.f32 %v2447, %v2847
    %v3042 = vadd.f32 %v2452, %v2852
    %v3043 = vadd.f32 %v2457, %v2857
    %v3044 = vadd.f32 %v2462, %v2862
    %v3045 = vadd.f32 %v2467, %v2867
    %v3046 = vadd.f32 %v2472, %v2872
    %v3047 = vadd.f32 %v2477, %v2877
    %v3048 = vadd.f32 %v2482, %v2882
    %v3049 = vadd.f32 %v2487, %v2887
    %v3050 = vadd.f32 %v2492, %v2892
    %v3051 = vadd.f32 %v2497, %v2897
    %v3052 = vadd.f32 %v2502, %v2902
    %v3053 = vadd.f32 %v2507, %v2907
    %v3054 = vadd.f32 %v2512, %v2912
    %v3055 = vadd.f32 %v2517, %v2917
    %v3056 = vadd.f32 %v2522, %v2922
    %v3057 = vadd.f32 %v2527, %v2927
    %v3058 = vadd.f32 %v2532, %v2932
    %v3059 = vadd.f32 %v2537, %v2937
    %v3060 = vadd.f32 %v2542, %v2942
    %v3061 = vadd.f32 %v2547, %v2947
    %v3062 = vadd.f32 %v2552, %v2952
    %v3063 = vadd.f32 %v2557, %v2957
    %v3064 = vadd.f32 %v2562, %v2962
    %v3065 = vadd.f32 %v2567, %v2967
    %v3066 = vadd.f32 %v2572, %v2972
    %v3067 = vadd.f32 %v2577, %v2977
    %v3068 = vadd.f32 %v2582, %v2982
    %v3069 = vadd.f32 %v2587, %v2987
    %v3070 = vadd.f32 %v2592, %v2992
    %v3071 = vadd.f32 %v2597, %v2997
    %v3072 = vadd.f32 %v2602, %v3002
    %v3073 = vadd.f32 %v2607, %v3007
    %s3074 = scalar_lea.vmem %s3, 48
    %v3075 = vld [vmem:[%s3074] sm:$0xff]
    %v3076 = vld [vmem:[%s3074 + $0x8] sm:$0xff]
    %v3078 = vsel %vm1635, %v1622, 0
    %v3081 = vsel %vm1635, %v1623, 0
    %v3084 = vsel %vm1635, %v1624, 0
    %v3087 = vsel %vm1635, %v1625, 0
    %3089 = vmatprep.subr.mxu0 0.0
    %3090 = vmatpush1.msra.mxu0 0.0
    %3091 = vmatprep.subr.mxu0 0.0
    %3092 = vmatpush1.msra.mxu0 0.0
    %3093 = vmatprep.subr.mxu0 0.0
    %3094 = vmatpush1.msra.mxu0 0.0
    %3095 = vmatprep.subr.mxu0 0.0
    %3096 = vmatpush1.msra.mxu0 0.0
    %3097 = vmatprep.subr.mxu0 0.0
    %3098 = vmatpush1.msra.mxu0 0.0
    %3099 = vmatprep.subr.mxu0 0.0
    %3100 = vmatpush1.msra.mxu0 0.0
    %3101 = vmatprep.subr.mxu0 0.0
    %3102 = vmatpush1.msra.mxu0 0.0
    %3103 = vmatprep.subr.mxu0 0.0
    %3104 = vmatpush1.msra.mxu0 0.0
    %3105 = vmatprep.subr.mxu0 0.0
    %3106 = vmatpush1.msra.mxu0 0.0
    %3107 = vmatprep.subr.mxu0 0.0
    %3108 = vmatpush1.msra.mxu0 0.0
    %3109 = vmatprep.subr.mxu0 0.0
    %3110 = vmatpush1.msra.mxu0 0.0
    %3111 = vmatprep.subr.mxu0 0.0
    %3112 = vmatpush1.msra.mxu0 0.0
    %3113 = vmatprep.subr.mxu0 0.0
    %3114 = vmatpush1.msra.mxu0 0.0
    %3115 = vmatprep.subr.mxu0 0.0
    %3116 = vmatpush1.msra.mxu0 0.0
    %3117 = vmatprep.subr.mxu0 0.0
    %3118 = vmatpush1.msra.mxu0 %v3076
    %3119 = vmatprep.subr.mxu0 0.0
    %3120 = vmatpush1.msra.mxu0 %v3075
    %3121 = vmatprep.subr.mxu0 0.0
    %3122 = vmatpush2.msra.mxu0 0.0
    %3123 = vmatprep.subr.mxu0 0.0
    %3124 = vmatpush2.msra.mxu0 0.0
    %3125 = vmatprep.subr.mxu0 0.0
    %3126 = vmatpush2.msra.mxu0 0.0
    %3127 = vmatprep.subr.mxu0 0.0
    %3128 = vmatpush2.msra.mxu0 0.0
    %3129 = vmatprep.subr.mxu0 0.0
    %3130 = vmatpush2.msra.mxu0 0.0
    %3131 = vmatprep.subr.mxu0 0.0
    %3132 = vmatpush2.msra.mxu0 0.0
    %3133 = vmatprep.subr.mxu0 0.0
    %3134 = vmatpush2.msra.mxu0 0.0
    %3135 = vmatprep.subr.mxu0 0.0
    %3136 = vmatpush2.msra.mxu0 0.0
    %3137 = vmatprep.subr.mxu0 0.0
    %3138 = vmatpush2.msra.mxu0 0.0
    %3139 = vmatprep.subr.mxu0 0.0
    %3140 = vmatpush2.msra.mxu0 0.0
    %3141 = vmatprep.subr.mxu0 0.0
    %3142 = vmatpush2.msra.mxu0 0.0
    %3143 = vmatprep.subr.mxu0 0.0
    %3144 = vmatpush2.msra.mxu0 0.0
    %3145 = vmatprep.subr.mxu0 0.0
    %3146 = vmatpush2.msra.mxu0 0.0
    %3147 = vmatprep.subr.mxu0 0.0
    %3148 = vmatpush2.msra.mxu0 0.0
    %3149 = vmatprep.subr.mxu0 0.0
    %3150 = vmatpush2.msra.mxu0 0.0
    %3151 = vmatprep.subr.mxu0 0.0
    %3152 = vmatpush2.msra.mxu0 0.0
    %3153 = vmatprep.mubr.f32.mxu0 0.0
    %3154 = vmatmul.mubr.f32.gmra.mxu0 %v1661
    %v3155 = vpop.f32.mrf.mxu0
    %v3156 = vadd.f32 0.0, %v3155
    %v3157 = vpop.f32.mrf.mxu0
    %3158 = vmatprep.mubr.f32.mxu0 0.0
    %3159 = vmatmul.mubr.f32.gmra.mxu0 %v1664
    %v3160 = vpop.f32.mrf.mxu0
    %v3161 = vadd.f32 0.0, %v3160
    %v3162 = vpop.f32.mrf.mxu0
    %3163 = vmatprep.mubr.f32.mxu0 0.0
    %3164 = vmatmul.mubr.f32.gmra.mxu0 %v1667
    %v3165 = vpop.f32.mrf.mxu0
    %v3166 = vadd.f32 0.0, %v3165
    %v3167 = vpop.f32.mrf.mxu0
    %3168 = vmatprep.mubr.f32.mxu0 0.0
    %3169 = vmatmul.mubr.f32.gmra.mxu0 %v1670
    %v3170 = vpop.f32.mrf.mxu0
    %v3171 = vadd.f32 0.0, %v3170
    %v3172 = vpop.f32.mrf.mxu0
    %3173 = vmatprep.mubr.f32.mxu0 0.0
    %3174 = vmatmul.mubr.f32.gmra.mxu0 %v1673
    %v3175 = vpop.f32.mrf.mxu0
    %v3176 = vadd.f32 0.0, %v3175
    %v3177 = vpop.f32.mrf.mxu0
    %3178 = vmatprep.mubr.f32.mxu0 0.0
    %3179 = vmatmul.mubr.f32.gmra.mxu0 %v1676
    %v3180 = vpop.f32.mrf.mxu0
    %v3181 = vadd.f32 0.0, %v3180
    %v3182 = vpop.f32.mrf.mxu0
    %3183 = vmatprep.mubr.f32.mxu0 0.0
    %3184 = vmatmul.mubr.f32.gmra.mxu0 %v1679
    %v3185 = vpop.f32.mrf.mxu0
    %v3186 = vadd.f32 0.0, %v3185
    %v3187 = vpop.f32.mrf.mxu0
    %3188 = vmatprep.mubr.f32.mxu0 0.0
    %3189 = vmatmul.mubr.f32.gmra.mxu0 %v1682
    %v3190 = vpop.f32.mrf.mxu0
    %v3191 = vadd.f32 0.0, %v3190
    %v3192 = vpop.f32.mrf.mxu0
    %3193 = vmatprep.mubr.f32.mxu0 0.0
    %3194 = vmatmul.mubr.f32.gmra.mxu0 %v1685
    %v3195 = vpop.f32.mrf.mxu0
    %v3196 = vadd.f32 0.0, %v3195
    %v3197 = vpop.f32.mrf.mxu0
    %3198 = vmatprep.mubr.f32.mxu0 0.0
    %3199 = vmatmul.mubr.f32.gmra.mxu0 %v1688
    %v3200 = vpop.f32.mrf.mxu0
    %v3201 = vadd.f32 0.0, %v3200
    %v3202 = vpop.f32.mrf.mxu0
    %3203 = vmatprep.mubr.f32.mxu0 0.0
    %3204 = vmatmul.mubr.f32.gmra.mxu0 %v1691
    %v3205 = vpop.f32.mrf.mxu0
    %v3206 = vadd.f32 0.0, %v3205
    %v3207 = vpop.f32.mrf.mxu0
    %3208 = vmatprep.mubr.f32.mxu0 0.0
    %3209 = vmatmul.mubr.f32.gmra.mxu0 %v1694
    %v3210 = vpop.f32.mrf.mxu0
    %v3211 = vadd.f32 0.0, %v3210
    %v3212 = vpop.f32.mrf.mxu0
    %3213 = vmatprep.mubr.f32.mxu0 0.0
    %3214 = vmatmul.mubr.f32.gmra.mxu0 %v1697
    %v3215 = vpop.f32.mrf.mxu0
    %v3216 = vadd.f32 0.0, %v3215
    %v3217 = vpop.f32.mrf.mxu0
    %3218 = vmatprep.mubr.f32.mxu0 0.0
    %3219 = vmatmul.mubr.f32.gmra.mxu0 %v1700
    %v3220 = vpop.f32.mrf.mxu0
    %v3221 = vadd.f32 0.0, %v3220
    %v3222 = vpop.f32.mrf.mxu0
    %3223 = vmatprep.mubr.f32.mxu0 0.0
    %3224 = vmatmul.mubr.f32.gmra.mxu0 %v1703
    %v3225 = vpop.f32.mrf.mxu0
    %v3226 = vadd.f32 0.0, %v3225
    %v3227 = vpop.f32.mrf.mxu0
    %3228 = vmatprep.mubr.f32.mxu0 0.0
    %3229 = vmatmul.mubr.f32.gmra.mxu0 %v1706
    %v3230 = vpop.f32.mrf.mxu0
    %v3231 = vadd.f32 0.0, %v3230
    %v3232 = vpop.f32.mrf.mxu0
    %3233 = vmatprep.mubr.f32.mxu0 0.0
    %3234 = vmatmul.mubr.f32.gmra.mxu0 %v1709
    %v3235 = vpop.f32.mrf.mxu0
    %v3236 = vadd.f32 0.0, %v3235
    %v3237 = vpop.f32.mrf.mxu0
    %3238 = vmatprep.mubr.f32.mxu0 0.0
    %3239 = vmatmul.mubr.f32.gmra.mxu0 %v1712
    %v3240 = vpop.f32.mrf.mxu0
    %v3241 = vadd.f32 0.0, %v3240
    %v3242 = vpop.f32.mrf.mxu0
    %3243 = vmatprep.mubr.f32.mxu0 0.0
    %3244 = vmatmul.mubr.f32.gmra.mxu0 %v1715
    %v3245 = vpop.f32.mrf.mxu0
    %v3246 = vadd.f32 0.0, %v3245
    %v3247 = vpop.f32.mrf.mxu0
    %3248 = vmatprep.mubr.f32.mxu0 0.0
    %3249 = vmatmul.mubr.f32.gmra.mxu0 %v1718
    %v3250 = vpop.f32.mrf.mxu0
    %v3251 = vadd.f32 0.0, %v3250
    %v3252 = vpop.f32.mrf.mxu0
    %3253 = vmatprep.mubr.f32.mxu0 0.0
    %3254 = vmatmul.mubr.f32.gmra.mxu0 %v1721
    %v3255 = vpop.f32.mrf.mxu0
    %v3256 = vadd.f32 0.0, %v3255
    %v3257 = vpop.f32.mrf.mxu0
    %3258 = vmatprep.mubr.f32.mxu0 0.0
    %3259 = vmatmul.mubr.f32.gmra.mxu0 %v1724
    %v3260 = vpop.f32.mrf.mxu0
    %v3261 = vadd.f32 0.0, %v3260
    %v3262 = vpop.f32.mrf.mxu0
    %3263 = vmatprep.mubr.f32.mxu0 0.0
    %3264 = vmatmul.mubr.f32.gmra.mxu0 %v1727
    %v3265 = vpop.f32.mrf.mxu0
    %v3266 = vadd.f32 0.0, %v3265
    %v3267 = vpop.f32.mrf.mxu0
    %3268 = vmatprep.mubr.f32.mxu0 0.0
    %3269 = vmatmul.mubr.f32.gmra.mxu0 %v1730
    %v3270 = vpop.f32.mrf.mxu0
    %v3271 = vadd.f32 0.0, %v3270
    %v3272 = vpop.f32.mrf.mxu0
    %3273 = vmatprep.mubr.f32.mxu0 0.0
    %3274 = vmatmul.mubr.f32.gmra.mxu0 %v1733
    %v3275 = vpop.f32.mrf.mxu0
    %v3276 = vadd.f32 0.0, %v3275
    %v3277 = vpop.f32.mrf.mxu0
    %3278 = vmatprep.mubr.f32.mxu0 0.0
    %3279 = vmatmul.mubr.f32.gmra.mxu0 %v1736
    %v3280 = vpop.f32.mrf.mxu0
    %v3281 = vadd.f32 0.0, %v3280
    %v3282 = vpop.f32.mrf.mxu0
    %3283 = vmatprep.mubr.f32.mxu0 0.0
    %3284 = vmatmul.mubr.f32.gmra.mxu0 %v1739
    %v3285 = vpop.f32.mrf.mxu0
    %v3286 = vadd.f32 0.0, %v3285
    %v3287 = vpop.f32.mrf.mxu0
    %3288 = vmatprep.mubr.f32.mxu0 0.0
    %3289 = vmatmul.mubr.f32.gmra.mxu0 %v1742
    %v3290 = vpop.f32.mrf.mxu0
    %v3291 = vadd.f32 0.0, %v3290
    %v3292 = vpop.f32.mrf.mxu0
    %3293 = vmatprep.mubr.f32.mxu0 0.0
    %3294 = vmatmul.mubr.f32.gmra.mxu0 %v1745
    %v3295 = vpop.f32.mrf.mxu0
    %v3296 = vadd.f32 0.0, %v3295
    %v3297 = vpop.f32.mrf.mxu0
    %3298 = vmatprep.mubr.f32.mxu0 0.0
    %3299 = vmatmul.mubr.f32.gmra.mxu0 %v1748
    %v3300 = vpop.f32.mrf.mxu0
    %v3301 = vadd.f32 0.0, %v3300
    %v3302 = vpop.f32.mrf.mxu0
    %3303 = vmatprep.mubr.f32.mxu0 0.0
    %3304 = vmatmul.mubr.f32.gmra.mxu0 %v1751
    %v3305 = vpop.f32.mrf.mxu0
    %v3306 = vadd.f32 0.0, %v3305
    %v3307 = vpop.f32.mrf.mxu0
    %3308 = vmatprep.mubr.f32.mxu0 0.0
    %3309 = vmatmul.mubr.f32.gmra.mxu0 %v1754
    %v3310 = vpop.f32.mrf.mxu0
    %v3311 = vadd.f32 0.0, %v3310
    %v3312 = vpop.f32.mrf.mxu0
    %3313 = vmatprep.mubr.f32.mxu0 0.0
    %3314 = vmatmul.mubr.f32.gmra.mxu0 %v1757
    %v3315 = vpop.f32.mrf.mxu0
    %v3316 = vadd.f32 0.0, %v3315
    %v3317 = vpop.f32.mrf.mxu0
    %3318 = vmatprep.mubr.f32.mxu0 0.0
    %3319 = vmatmul.mubr.f32.gmra.mxu0 %v1760
    %v3320 = vpop.f32.mrf.mxu0
    %v3321 = vadd.f32 0.0, %v3320
    %v3322 = vpop.f32.mrf.mxu0
    %3323 = vmatprep.mubr.f32.mxu0 0.0
    %3324 = vmatmul.mubr.f32.gmra.mxu0 %v1763
    %v3325 = vpop.f32.mrf.mxu0
    %v3326 = vadd.f32 0.0, %v3325
    %v3327 = vpop.f32.mrf.mxu0
    %3328 = vmatprep.mubr.f32.mxu0 0.0
    %3329 = vmatmul.mubr.f32.gmra.mxu0 %v1766
    %v3330 = vpop.f32.mrf.mxu0
    %v3331 = vadd.f32 0.0, %v3330
    %v3332 = vpop.f32.mrf.mxu0
    %3333 = vmatprep.mubr.f32.mxu0 0.0
    %3334 = vmatmul.mubr.f32.gmra.mxu0 %v1769
    %v3335 = vpop.f32.mrf.mxu0
    %v3336 = vadd.f32 0.0, %v3335
    %v3337 = vpop.f32.mrf.mxu0
    %3338 = vmatprep.mubr.f32.mxu0 0.0
    %3339 = vmatmul.mubr.f32.gmra.mxu0 %v1772
    %v3340 = vpop.f32.mrf.mxu0
    %v3341 = vadd.f32 0.0, %v3340
    %v3342 = vpop.f32.mrf.mxu0
    %3343 = vmatprep.mubr.f32.mxu0 0.0
    %3344 = vmatmul.mubr.f32.gmra.mxu0 %v1775
    %v3345 = vpop.f32.mrf.mxu0
    %v3346 = vadd.f32 0.0, %v3345
    %v3347 = vpop.f32.mrf.mxu0
    %3348 = vmatprep.mubr.f32.mxu0 0.0
    %3349 = vmatmul.mubr.f32.gmra.mxu0 %v1778
    %v3350 = vpop.f32.mrf.mxu0
    %v3351 = vadd.f32 0.0, %v3350
    %v3352 = vpop.f32.mrf.mxu0
    %3353 = vmatprep.mubr.f32.mxu0 0.0
    %3354 = vmatmul.mubr.f32.gmra.mxu0 %v1781
    %v3355 = vpop.f32.mrf.mxu0
    %v3356 = vadd.f32 0.0, %v3355
    %v3357 = vpop.f32.mrf.mxu0
    %3358 = vmatprep.mubr.f32.mxu0 0.0
    %3359 = vmatmul.mubr.f32.gmra.mxu0 %v1784
    %v3360 = vpop.f32.mrf.mxu0
    %v3361 = vadd.f32 0.0, %v3360
    %v3362 = vpop.f32.mrf.mxu0
    %3363 = vmatprep.mubr.f32.mxu0 0.0
    %3364 = vmatmul.mubr.f32.gmra.mxu0 %v1787
    %v3365 = vpop.f32.mrf.mxu0
    %v3366 = vadd.f32 0.0, %v3365
    %v3367 = vpop.f32.mrf.mxu0
    %3368 = vmatprep.mubr.f32.mxu0 0.0
    %3369 = vmatmul.mubr.f32.gmra.mxu0 %v1790
    %v3370 = vpop.f32.mrf.mxu0
    %v3371 = vadd.f32 0.0, %v3370
    %v3372 = vpop.f32.mrf.mxu0
    %3373 = vmatprep.mubr.f32.mxu0 0.0
    %3374 = vmatmul.mubr.f32.gmra.mxu0 %v1793
    %v3375 = vpop.f32.mrf.mxu0
    %v3376 = vadd.f32 0.0, %v3375
    %v3377 = vpop.f32.mrf.mxu0
    %3378 = vmatprep.mubr.f32.mxu0 0.0
    %3379 = vmatmul.mubr.f32.gmra.mxu0 %v1796
    %v3380 = vpop.f32.mrf.mxu0
    %v3381 = vadd.f32 0.0, %v3380
    %v3382 = vpop.f32.mrf.mxu0
    %3383 = vmatprep.mubr.f32.mxu0 0.0
    %3384 = vmatmul.mubr.f32.gmra.mxu0 %v1799
    %v3385 = vpop.f32.mrf.mxu0
    %v3386 = vadd.f32 0.0, %v3385
    %v3387 = vpop.f32.mrf.mxu0
    %3388 = vmatprep.mubr.f32.mxu0 0.0
    %3389 = vmatmul.mubr.f32.gmra.mxu0 %v1802
    %v3390 = vpop.f32.mrf.mxu0
    %v3391 = vadd.f32 0.0, %v3390
    %v3392 = vpop.f32.mrf.mxu0
    %3393 = vmatprep.mubr.f32.mxu0 0.0
    %3394 = vmatmul.mubr.f32.gmra.mxu0 %v1805
    %v3395 = vpop.f32.mrf.mxu0
    %v3396 = vadd.f32 0.0, %v3395
    %v3397 = vpop.f32.mrf.mxu0
    %3398 = vmatprep.mubr.f32.mxu0 0.0
    %3399 = vmatmul.mubr.f32.gmra.mxu0 %v1808
    %v3400 = vpop.f32.mrf.mxu0
    %v3401 = vadd.f32 0.0, %v3400
    %v3402 = vpop.f32.mrf.mxu0
    %3403 = vmatprep.mubr.f32.mxu0 0.0
    %3404 = vmatmul.mubr.f32.gmra.mxu0 %v1811
    %v3405 = vpop.f32.mrf.mxu0
    %v3406 = vadd.f32 0.0, %v3405
    %v3407 = vpop.f32.mrf.mxu0
    %3408 = vmatprep.mubr.f32.mxu0 0.0
    %3409 = vmatmul.mubr.f32.gmra.mxu0 %v1814
    %v3410 = vpop.f32.mrf.mxu0
    %v3411 = vadd.f32 0.0, %v3410
    %v3412 = vpop.f32.mrf.mxu0
    %3413 = vmatprep.mubr.f32.mxu0 0.0
    %3414 = vmatmul.mubr.f32.gmra.mxu0 %v1817
    %v3415 = vpop.f32.mrf.mxu0
    %v3416 = vadd.f32 0.0, %v3415
    %v3417 = vpop.f32.mrf.mxu0
    %3418 = vmatprep.mubr.f32.mxu0 0.0
    %3419 = vmatmul.mubr.f32.gmra.mxu0 %v1820
    %v3420 = vpop.f32.mrf.mxu0
    %v3421 = vadd.f32 0.0, %v3420
    %v3422 = vpop.f32.mrf.mxu0
    %3423 = vmatprep.mubr.f32.mxu0 0.0
    %3424 = vmatmul.mubr.f32.gmra.mxu0 %v1823
    %v3425 = vpop.f32.mrf.mxu0
    %v3426 = vadd.f32 0.0, %v3425
    %v3427 = vpop.f32.mrf.mxu0
    %3428 = vmatprep.mubr.f32.mxu0 0.0
    %3429 = vmatmul.mubr.f32.gmra.mxu0 %v1826
    %v3430 = vpop.f32.mrf.mxu0
    %v3431 = vadd.f32 0.0, %v3430
    %v3432 = vpop.f32.mrf.mxu0
    %3433 = vmatprep.mubr.f32.mxu0 0.0
    %3434 = vmatmul.mubr.f32.gmra.mxu0 %v2614
    %v3435 = vpop.f32.mrf.mxu0
    %v3436 = vadd.f32 0.0, %v3435
    %v3437 = vpop.f32.mrf.mxu0
    %3438 = vmatprep.mubr.f32.mxu0 0.0
    %3439 = vmatmul.mubr.f32.gmra.mxu0 %v2617
    %v3440 = vpop.f32.mrf.mxu0
    %v3441 = vadd.f32 0.0, %v3440
    %v3442 = vpop.f32.mrf.mxu0
    %3443 = vmatprep.mubr.f32.mxu0 0.0
    %3444 = vmatmul.mubr.f32.gmra.mxu0 %v2620
    %v3445 = vpop.f32.mrf.mxu0
    %v3446 = vadd.f32 0.0, %v3445
    %v3447 = vpop.f32.mrf.mxu0
    %3448 = vmatprep.mubr.f32.mxu0 0.0
    %3449 = vmatmul.mubr.f32.gmra.mxu0 %v2623
    %v3450 = vpop.f32.mrf.mxu0
    %v3451 = vadd.f32 0.0, %v3450
    %v3452 = vpop.f32.mrf.mxu0
    %3453 = vmatprep.mubr.f32.mxu0 0.0
    %3454 = vmatmul.mubr.f32.gmra.mxu0 %v3078
    %v3455 = vpop.f32.mrf.mxu0
    %v3456 = vadd.f32 0.0, %v3455
    %v3457 = vpop.f32.mrf.mxu0
    %3458 = vmatprep.mubr.f32.mxu0 0.0
    %3459 = vmatmul.mubr.f32.gmra.mxu0 %v3081
    %v3460 = vpop.f32.mrf.mxu0
    %v3461 = vadd.f32 0.0, %v3460
    %v3462 = vpop.f32.mrf.mxu0
    %3463 = vmatprep.mubr.f32.mxu0 0.0
    %3464 = vmatmul.mubr.f32.gmra.mxu0 %v3084
    %v3465 = vpop.f32.mrf.mxu0
    %v3466 = vadd.f32 0.0, %v3465
    %v3467 = vpop.f32.mrf.mxu0
    %3468 = vmatprep.mubr.f32.mxu0 0.0
    %3469 = vmatmul.mubr.f32.gmra.mxu0 %v3087
    %v3470 = vpop.f32.mrf.mxu0
    %v3471 = vadd.f32 0.0, %v3470
    %v3472 = vpop.f32.mrf.mxu0
    %3473 = vdwg.mxu0
    %v3474 = vadd.f32 %v3010, %v3156
    %v3475 = vadd.f32 %v3011, %v3161
    %v3476 = vadd.f32 %v3012, %v3166
    %v3477 = vadd.f32 %v3013, %v3171
    %v3478 = vadd.f32 %v3014, %v3176
    %v3479 = vadd.f32 %v3015, %v3181
    %v3480 = vadd.f32 %v3016, %v3186
    %v3481 = vadd.f32 %v3017, %v3191
    %v3482 = vadd.f32 %v3018, %v3196
    %v3483 = vadd.f32 %v3019, %v3201
    %v3484 = vadd.f32 %v3020, %v3206
    %v3485 = vadd.f32 %v3021, %v3211
    %v3486 = vadd.f32 %v3022, %v3216
    %v3487 = vadd.f32 %v3023, %v3221
    %v3488 = vadd.f32 %v3024, %v3226
    %v3489 = vadd.f32 %v3025, %v3231
    %v3490 = vadd.f32 %v3026, %v3236
    %v3491 = vadd.f32 %v3027, %v3241
    %v3492 = vadd.f32 %v3028, %v3246
    %v3493 = vadd.f32 %v3029, %v3251
    %v3494 = vadd.f32 %v3030, %v3256
    %v3495 = vadd.f32 %v3031, %v3261
    %v3496 = vadd.f32 %v3032, %v3266
    %v3497 = vadd.f32 %v3033, %v3271
    %v3498 = vadd.f32 %v3034, %v3276
    %v3499 = vadd.f32 %v3035, %v3281
    %v3500 = vadd.f32 %v3036, %v3286
    %v3501 = vadd.f32 %v3037, %v3291
    %v3502 = vadd.f32 %v3038, %v3296
    %v3503 = vadd.f32 %v3039, %v3301
    %v3504 = vadd.f32 %v3040, %v3306
    %v3505 = vadd.f32 %v3041, %v3311
    %v3506 = vadd.f32 %v3042, %v3316
    %v3507 = vadd.f32 %v3043, %v3321
    %v3508 = vadd.f32 %v3044, %v3326
    %v3509 = vadd.f32 %v3045, %v3331
    %v3510 = vadd.f32 %v3046, %v3336
    %v3511 = vadd.f32 %v3047, %v3341
    %v3512 = vadd.f32 %v3048, %v3346
    %v3513 = vadd.f32 %v3049, %v3351
    %v3514 = vadd.f32 %v3050, %v3356
    %v3515 = vadd.f32 %v3051, %v3361
    %v3516 = vadd.f32 %v3052, %v3366
    %v3517 = vadd.f32 %v3053, %v3371
    %v3518 = vadd.f32 %v3054, %v3376
    %v3519 = vadd.f32 %v3055, %v3381
    %v3520 = vadd.f32 %v3056, %v3386
    %v3521 = vadd.f32 %v3057, %v3391
    %v3522 = vadd.f32 %v3058, %v3396
    %v3523 = vadd.f32 %v3059, %v3401
    %v3524 = vadd.f32 %v3060, %v3406
    %v3525 = vadd.f32 %v3061, %v3411
    %v3526 = vadd.f32 %v3062, %v3416
    %v3527 = vadd.f32 %v3063, %v3421
    %v3528 = vadd.f32 %v3064, %v3426
    %v3529 = vadd.f32 %v3065, %v3431
    %v3530 = vadd.f32 %v3066, %v3436
    %v3531 = vadd.f32 %v3067, %v3441
    %v3532 = vadd.f32 %v3068, %v3446
    %v3533 = vadd.f32 %v3069, %v3451
    %v3534 = vadd.f32 %v3070, %v3456
    %v3535 = vadd.f32 %v3071, %v3461
    %v3536 = vadd.f32 %v3072, %v3466
    %v3537 = vadd.f32 %v3073, %v3471
    %s3538 = scalar_lea.vmem %s3, 64
    %v3539 = vld [vmem:[%s3538] sm:$0xff]
    %v3540 = vld [vmem:[%s3538 + $0x8] sm:$0xff]
    %v3542 = vsel %vm1635, %v1626, 0
    %v3545 = vsel %vm1635, %v1627, 0
    %v3548 = vsel %vm1635, %v1628, 0
    %v3551 = vsel %vm1635, %v1629, 0
    %3553 = vmatprep.subr.mxu0 0.0
    %3554 = vmatpush1.msra.mxu0 0.0
    %3555 = vmatprep.subr.mxu0 0.0
    %3556 = vmatpush1.msra.mxu0 0.0
    %3557 = vmatprep.subr.mxu0 0.0
    %3558 = vmatpush1.msra.mxu0 0.0
    %3559 = vmatprep.subr.mxu0 0.0
    %3560 = vmatpush1.msra.mxu0 0.0
    %3561 = vmatprep.subr.mxu0 0.0
    %3562 = vmatpush1.msra.mxu0 0.0
    %3563 = vmatprep.subr.mxu0 0.0
    %3564 = vmatpush1.msra.mxu0 0.0
    %3565 = vmatprep.subr.mxu0 0.0
    %3566 = vmatpush1.msra.mxu0 0.0
    %3567 = vmatprep.subr.mxu0 0.0
    %3568 = vmatpush1.msra.mxu0 0.0
    %3569 = vmatprep.subr.mxu0 0.0
    %3570 = vmatpush1.msra.mxu0 0.0
    %3571 = vmatprep.subr.mxu0 0.0
    %3572 = vmatpush1.msra.mxu0 0.0
    %3573 = vmatprep.subr.mxu0 0.0
    %3574 = vmatpush1.msra.mxu0 0.0
    %3575 = vmatprep.subr.mxu0 0.0
    %3576 = vmatpush1.msra.mxu0 0.0
    %3577 = vmatprep.subr.mxu0 0.0
    %3578 = vmatpush1.msra.mxu0 0.0
    %3579 = vmatprep.subr.mxu0 0.0
    %3580 = vmatpush1.msra.mxu0 0.0
    %3581 = vmatprep.subr.mxu0 0.0
    %3582 = vmatpush1.msra.mxu0 %v3540
    %3583 = vmatprep.subr.mxu0 0.0
    %3584 = vmatpush1.msra.mxu0 %v3539
    %3585 = vmatprep.subr.mxu0 0.0
    %3586 = vmatpush2.msra.mxu0 0.0
    %3587 = vmatprep.subr.mxu0 0.0
    %3588 = vmatpush2.msra.mxu0 0.0
    %3589 = vmatprep.subr.mxu0 0.0
    %3590 = vmatpush2.msra.mxu0 0.0
    %3591 = vmatprep.subr.mxu0 0.0
    %3592 = vmatpush2.msra.mxu0 0.0
    %3593 = vmatprep.subr.mxu0 0.0
    %3594 = vmatpush2.msra.mxu0 0.0
    %3595 = vmatprep.subr.mxu0 0.0
    %3596 = vmatpush2.msra.mxu0 0.0
    %3597 = vmatprep.subr.mxu0 0.0
    %3598 = vmatpush2.msra.mxu0 0.0
    %3599 = vmatprep.subr.mxu0 0.0
    %3600 = vmatpush2.msra.mxu0 0.0
    %3601 = vmatprep.subr.mxu0 0.0
    %3602 = vmatpush2.msra.mxu0 0.0
    %3603 = vmatprep.subr.mxu0 0.0
    %3604 = vmatpush2.msra.mxu0 0.0
    %3605 = vmatprep.subr.mxu0 0.0
    %3606 = vmatpush2.msra.mxu0 0.0
    %3607 = vmatprep.subr.mxu0 0.0
    %3608 = vmatpush2.msra.mxu0 0.0
    %3609 = vmatprep.subr.mxu0 0.0
    %3610 = vmatpush2.msra.mxu0 0.0
    %3611 = vmatprep.subr.mxu0 0.0
    %3612 = vmatpush2.msra.mxu0 0.0
    %3613 = vmatprep.subr.mxu0 0.0
    %3614 = vmatpush2.msra.mxu0 0.0
    %3615 = vmatprep.subr.mxu0 0.0
    %3616 = vmatpush2.msra.mxu0 0.0
    %3617 = vmatprep.mubr.f32.mxu0 0.0
    %3618 = vmatmul.mubr.f32.gmra.mxu0 %v1673
    %v3619 = vpop.f32.mrf.mxu0
    %v3620 = vadd.f32 0.0, %v3619
    %v3621 = vpop.f32.mrf.mxu0
    %3622 = vmatprep.mubr.f32.mxu0 0.0
    %3623 = vmatmul.mubr.f32.gmra.mxu0 %v1676
    %v3624 = vpop.f32.mrf.mxu0
    %v3625 = vadd.f32 0.0, %v3624
    %v3626 = vpop.f32.mrf.mxu0
    %3627 = vmatprep.mubr.f32.mxu0 0.0
    %3628 = vmatmul.mubr.f32.gmra.mxu0 %v1679
    %v3629 = vpop.f32.mrf.mxu0
    %v3630 = vadd.f32 0.0, %v3629
    %v3631 = vpop.f32.mrf.mxu0
    %3632 = vmatprep.mubr.f32.mxu0 0.0
    %3633 = vmatmul.mubr.f32.gmra.mxu0 %v1682
    %v3634 = vpop.f32.mrf.mxu0
    %v3635 = vadd.f32 0.0, %v3634
    %v3636 = vpop.f32.mrf.mxu0
    %3637 = vmatprep.mubr.f32.mxu0 0.0
    %3638 = vmatmul.mubr.f32.gmra.mxu0 %v1685
    %v3639 = vpop.f32.mrf.mxu0
    %v3640 = vadd.f32 0.0, %v3639
    %v3641 = vpop.f32.mrf.mxu0
    %3642 = vmatprep.mubr.f32.mxu0 0.0
    %3643 = vmatmul.mubr.f32.gmra.mxu0 %v1688
    %v3644 = vpop.f32.mrf.mxu0
    %v3645 = vadd.f32 0.0, %v3644
    %v3646 = vpop.f32.mrf.mxu0
    %3647 = vmatprep.mubr.f32.mxu0 0.0
    %3648 = vmatmul.mubr.f32.gmra.mxu0 %v1691
    %v3649 = vpop.f32.mrf.mxu0
    %v3650 = vadd.f32 0.0, %v3649
    %v3651 = vpop.f32.mrf.mxu0
    %3652 = vmatprep.mubr.f32.mxu0 0.0
    %3653 = vmatmul.mubr.f32.gmra.mxu0 %v1694
    %v3654 = vpop.f32.mrf.mxu0
    %v3655 = vadd.f32 0.0, %v3654
    %v3656 = vpop.f32.mrf.mxu0
    %3657 = vmatprep.mubr.f32.mxu0 0.0
    %3658 = vmatmul.mubr.f32.gmra.mxu0 %v1697
    %v3659 = vpop.f32.mrf.mxu0
    %v3660 = vadd.f32 0.0, %v3659
    %v3661 = vpop.f32.mrf.mxu0
    %3662 = vmatprep.mubr.f32.mxu0 0.0
    %3663 = vmatmul.mubr.f32.gmra.mxu0 %v1700
    %v3664 = vpop.f32.mrf.mxu0
    %v3665 = vadd.f32 0.0, %v3664
    %v3666 = vpop.f32.mrf.mxu0
    %3667 = vmatprep.mubr.f32.mxu0 0.0
    %3668 = vmatmul.mubr.f32.gmra.mxu0 %v1703
    %v3669 = vpop.f32.mrf.mxu0
    %v3670 = vadd.f32 0.0, %v3669
    %v3671 = vpop.f32.mrf.mxu0
    %3672 = vmatprep.mubr.f32.mxu0 0.0
    %3673 = vmatmul.mubr.f32.gmra.mxu0 %v1706
    %v3674 = vpop.f32.mrf.mxu0
    %v3675 = vadd.f32 0.0, %v3674
    %v3676 = vpop.f32.mrf.mxu0
    %3677 = vmatprep.mubr.f32.mxu0 0.0
    %3678 = vmatmul.mubr.f32.gmra.mxu0 %v1709
    %v3679 = vpop.f32.mrf.mxu0
    %v3680 = vadd.f32 0.0, %v3679
    %v3681 = vpop.f32.mrf.mxu0
    %3682 = vmatprep.mubr.f32.mxu0 0.0
    %3683 = vmatmul.mubr.f32.gmra.mxu0 %v1712
    %v3684 = vpop.f32.mrf.mxu0
    %v3685 = vadd.f32 0.0, %v3684
    %v3686 = vpop.f32.mrf.mxu0
    %3687 = vmatprep.mubr.f32.mxu0 0.0
    %3688 = vmatmul.mubr.f32.gmra.mxu0 %v1715
    %v3689 = vpop.f32.mrf.mxu0
    %v3690 = vadd.f32 0.0, %v3689
    %v3691 = vpop.f32.mrf.mxu0
    %3692 = vmatprep.mubr.f32.mxu0 0.0
    %3693 = vmatmul.mubr.f32.gmra.mxu0 %v1718
    %v3694 = vpop.f32.mrf.mxu0
    %v3695 = vadd.f32 0.0, %v3694
    %v3696 = vpop.f32.mrf.mxu0
    %3697 = vmatprep.mubr.f32.mxu0 0.0
    %3698 = vmatmul.mubr.f32.gmra.mxu0 %v1721
    %v3699 = vpop.f32.mrf.mxu0
    %v3700 = vadd.f32 0.0, %v3699
    %v3701 = vpop.f32.mrf.mxu0
    %3702 = vmatprep.mubr.f32.mxu0 0.0
    %3703 = vmatmul.mubr.f32.gmra.mxu0 %v1724
    %v3704 = vpop.f32.mrf.mxu0
    %v3705 = vadd.f32 0.0, %v3704
    %v3706 = vpop.f32.mrf.mxu0
    %3707 = vmatprep.mubr.f32.mxu0 0.0
    %3708 = vmatmul.mubr.f32.gmra.mxu0 %v1727
    %v3709 = vpop.f32.mrf.mxu0
    %v3710 = vadd.f32 0.0, %v3709
    %v3711 = vpop.f32.mrf.mxu0
    %3712 = vmatprep.mubr.f32.mxu0 0.0
    %3713 = vmatmul.mubr.f32.gmra.mxu0 %v1730
    %v3714 = vpop.f32.mrf.mxu0
    %v3715 = vadd.f32 0.0, %v3714
    %v3716 = vpop.f32.mrf.mxu0
    %3717 = vmatprep.mubr.f32.mxu0 0.0
    %3718 = vmatmul.mubr.f32.gmra.mxu0 %v1733
    %v3719 = vpop.f32.mrf.mxu0
    %v3720 = vadd.f32 0.0, %v3719
    %v3721 = vpop.f32.mrf.mxu0
    %3722 = vmatprep.mubr.f32.mxu0 0.0
    %3723 = vmatmul.mubr.f32.gmra.mxu0 %v1736
    %v3724 = vpop.f32.mrf.mxu0
    %v3725 = vadd.f32 0.0, %v3724
    %v3726 = vpop.f32.mrf.mxu0
    %3727 = vmatprep.mubr.f32.mxu0 0.0
    %3728 = vmatmul.mubr.f32.gmra.mxu0 %v1739
    %v3729 = vpop.f32.mrf.mxu0
    %v3730 = vadd.f32 0.0, %v3729
    %v3731 = vpop.f32.mrf.mxu0
    %3732 = vmatprep.mubr.f32.mxu0 0.0
    %3733 = vmatmul.mubr.f32.gmra.mxu0 %v1742
    %v3734 = vpop.f32.mrf.mxu0
    %v3735 = vadd.f32 0.0, %v3734
    %v3736 = vpop.f32.mrf.mxu0
    %3737 = vmatprep.mubr.f32.mxu0 0.0
    %3738 = vmatmul.mubr.f32.gmra.mxu0 %v1745
    %v3739 = vpop.f32.mrf.mxu0
    %v3740 = vadd.f32 0.0, %v3739
    %v3741 = vpop.f32.mrf.mxu0
    %3742 = vmatprep.mubr.f32.mxu0 0.0
    %3743 = vmatmul.mubr.f32.gmra.mxu0 %v1748
    %v3744 = vpop.f32.mrf.mxu0
    %v3745 = vadd.f32 0.0, %v3744
    %v3746 = vpop.f32.mrf.mxu0
    %3747 = vmatprep.mubr.f32.mxu0 0.0
    %3748 = vmatmul.mubr.f32.gmra.mxu0 %v1751
    %v3749 = vpop.f32.mrf.mxu0
    %v3750 = vadd.f32 0.0, %v3749
    %v3751 = vpop.f32.mrf.mxu0
    %3752 = vmatprep.mubr.f32.mxu0 0.0
    %3753 = vmatmul.mubr.f32.gmra.mxu0 %v1754
    %v3754 = vpop.f32.mrf.mxu0
    %v3755 = vadd.f32 0.0, %v3754
    %v3756 = vpop.f32.mrf.mxu0
    %3757 = vmatprep.mubr.f32.mxu0 0.0
    %3758 = vmatmul.mubr.f32.gmra.mxu0 %v1757
    %v3759 = vpop.f32.mrf.mxu0
    %v3760 = vadd.f32 0.0, %v3759
    %v3761 = vpop.f32.mrf.mxu0
    %3762 = vmatprep.mubr.f32.mxu0 0.0
    %3763 = vmatmul.mubr.f32.gmra.mxu0 %v1760
    %v3764 = vpop.f32.mrf.mxu0
    %v3765 = vadd.f32 0.0, %v3764
    %v3766 = vpop.f32.mrf.mxu0
    %3767 = vmatprep.mubr.f32.mxu0 0.0
    %3768 = vmatmul.mubr.f32.gmra.mxu0 %v1763
    %v3769 = vpop.f32.mrf.mxu0
    %v3770 = vadd.f32 0.0, %v3769
    %v3771 = vpop.f32.mrf.mxu0
    %3772 = vmatprep.mubr.f32.mxu0 0.0
    %3773 = vmatmul.mubr.f32.gmra.mxu0 %v1766
    %v3774 = vpop.f32.mrf.mxu0
    %v3775 = vadd.f32 0.0, %v3774
    %v3776 = vpop.f32.mrf.mxu0
    %3777 = vmatprep.mubr.f32.mxu0 0.0
    %3778 = vmatmul.mubr.f32.gmra.mxu0 %v1769
    %v3779 = vpop.f32.mrf.mxu0
    %v3780 = vadd.f32 0.0, %v3779
    %v3781 = vpop.f32.mrf.mxu0
    %3782 = vmatprep.mubr.f32.mxu0 0.0
    %3783 = vmatmul.mubr.f32.gmra.mxu0 %v1772
    %v3784 = vpop.f32.mrf.mxu0
    %v3785 = vadd.f32 0.0, %v3784
    %v3786 = vpop.f32.mrf.mxu0
    %3787 = vmatprep.mubr.f32.mxu0 0.0
    %3788 = vmatmul.mubr.f32.gmra.mxu0 %v1775
    %v3789 = vpop.f32.mrf.mxu0
    %v3790 = vadd.f32 0.0, %v3789
    %v3791 = vpop.f32.mrf.mxu0
    %3792 = vmatprep.mubr.f32.mxu0 0.0
    %3793 = vmatmul.mubr.f32.gmra.mxu0 %v1778
    %v3794 = vpop.f32.mrf.mxu0
    %v3795 = vadd.f32 0.0, %v3794
    %v3796 = vpop.f32.mrf.mxu0
    %3797 = vmatprep.mubr.f32.mxu0 0.0
    %3798 = vmatmul.mubr.f32.gmra.mxu0 %v1781
    %v3799 = vpop.f32.mrf.mxu0
    %v3800 = vadd.f32 0.0, %v3799
    %v3801 = vpop.f32.mrf.mxu0
    %3802 = vmatprep.mubr.f32.mxu0 0.0
    %3803 = vmatmul.mubr.f32.gmra.mxu0 %v1784
    %v3804 = vpop.f32.mrf.mxu0
    %v3805 = vadd.f32 0.0, %v3804
    %v3806 = vpop.f32.mrf.mxu0
    %3807 = vmatprep.mubr.f32.mxu0 0.0
    %3808 = vmatmul.mubr.f32.gmra.mxu0 %v1787
    %v3809 = vpop.f32.mrf.mxu0
    %v3810 = vadd.f32 0.0, %v3809
    %v3811 = vpop.f32.mrf.mxu0
    %3812 = vmatprep.mubr.f32.mxu0 0.0
    %3813 = vmatmul.mubr.f32.gmra.mxu0 %v1790
    %v3814 = vpop.f32.mrf.mxu0
    %v3815 = vadd.f32 0.0, %v3814
    %v3816 = vpop.f32.mrf.mxu0
    %3817 = vmatprep.mubr.f32.mxu0 0.0
    %3818 = vmatmul.mubr.f32.gmra.mxu0 %v1793
    %v3819 = vpop.f32.mrf.mxu0
    %v3820 = vadd.f32 0.0, %v3819
    %v3821 = vpop.f32.mrf.mxu0
    %3822 = vmatprep.mubr.f32.mxu0 0.0
    %3823 = vmatmul.mubr.f32.gmra.mxu0 %v1796
    %v3824 = vpop.f32.mrf.mxu0
    %v3825 = vadd.f32 0.0, %v3824
    %v3826 = vpop.f32.mrf.mxu0
    %3827 = vmatprep.mubr.f32.mxu0 0.0
    %3828 = vmatmul.mubr.f32.gmra.mxu0 %v1799
    %v3829 = vpop.f32.mrf.mxu0
    %v3830 = vadd.f32 0.0, %v3829
    %v3831 = vpop.f32.mrf.mxu0
    %3832 = vmatprep.mubr.f32.mxu0 0.0
    %3833 = vmatmul.mubr.f32.gmra.mxu0 %v1802
    %v3834 = vpop.f32.mrf.mxu0
    %v3835 = vadd.f32 0.0, %v3834
    %v3836 = vpop.f32.mrf.mxu0
    %3837 = vmatprep.mubr.f32.mxu0 0.0
    %3838 = vmatmul.mubr.f32.gmra.mxu0 %v1805
    %v3839 = vpop.f32.mrf.mxu0
    %v3840 = vadd.f32 0.0, %v3839
    %v3841 = vpop.f32.mrf.mxu0
    %3842 = vmatprep.mubr.f32.mxu0 0.0
    %3843 = vmatmul.mubr.f32.gmra.mxu0 %v1808
    %v3844 = vpop.f32.mrf.mxu0
    %v3845 = vadd.f32 0.0, %v3844
    %v3846 = vpop.f32.mrf.mxu0
    %3847 = vmatprep.mubr.f32.mxu0 0.0
    %3848 = vmatmul.mubr.f32.gmra.mxu0 %v1811
    %v3849 = vpop.f32.mrf.mxu0
    %v3850 = vadd.f32 0.0, %v3849
    %v3851 = vpop.f32.mrf.mxu0
    %3852 = vmatprep.mubr.f32.mxu0 0.0
    %3853 = vmatmul.mubr.f32.gmra.mxu0 %v1814
    %v3854 = vpop.f32.mrf.mxu0
    %v3855 = vadd.f32 0.0, %v3854
    %v3856 = vpop.f32.mrf.mxu0
    %3857 = vmatprep.mubr.f32.mxu0 0.0
    %3858 = vmatmul.mubr.f32.gmra.mxu0 %v1817
    %v3859 = vpop.f32.mrf.mxu0
    %v3860 = vadd.f32 0.0, %v3859
    %v3861 = vpop.f32.mrf.mxu0
    %3862 = vmatprep.mubr.f32.mxu0 0.0
    %3863 = vmatmul.mubr.f32.gmra.mxu0 %v1820
    %v3864 = vpop.f32.mrf.mxu0
    %v3865 = vadd.f32 0.0, %v3864
    %v3866 = vpop.f32.mrf.mxu0
    %3867 = vmatprep.mubr.f32.mxu0 0.0
    %3868 = vmatmul.mubr.f32.gmra.mxu0 %v1823
    %v3869 = vpop.f32.mrf.mxu0
    %v3870 = vadd.f32 0.0, %v3869
    %v3871 = vpop.f32.mrf.mxu0
    %3872 = vmatprep.mubr.f32.mxu0 0.0
    %3873 = vmatmul.mubr.f32.gmra.mxu0 %v1826
    %v3874 = vpop.f32.mrf.mxu0
    %v3875 = vadd.f32 0.0, %v3874
    %v3876 = vpop.f32.mrf.mxu0
    %3877 = vmatprep.mubr.f32.mxu0 0.0
    %3878 = vmatmul.mubr.f32.gmra.mxu0 %v2614
    %v3879 = vpop.f32.mrf.mxu0
    %v3880 = vadd.f32 0.0, %v3879
    %v3881 = vpop.f32.mrf.mxu0
    %3882 = vmatprep.mubr.f32.mxu0 0.0
    %3883 = vmatmul.mubr.f32.gmra.mxu0 %v2617
    %v3884 = vpop.f32.mrf.mxu0
    %v3885 = vadd.f32 0.0, %v3884
    %v3886 = vpop.f32.mrf.mxu0
    %3887 = vmatprep.mubr.f32.mxu0 0.0
    %3888 = vmatmul.mubr.f32.gmra.mxu0 %v2620
    %v3889 = vpop.f32.mrf.mxu0
    %v3890 = vadd.f32 0.0, %v3889
    %v3891 = vpop.f32.mrf.mxu0
    %3892 = vmatprep.mubr.f32.mxu0 0.0
    %3893 = vmatmul.mubr.f32.gmra.mxu0 %v2623
    %v3894 = vpop.f32.mrf.mxu0
    %v3895 = vadd.f32 0.0, %v3894
    %v3896 = vpop.f32.mrf.mxu0
    %3897 = vmatprep.mubr.f32.mxu0 0.0
    %3898 = vmatmul.mubr.f32.gmra.mxu0 %v3078
    %v3899 = vpop.f32.mrf.mxu0
    %v3900 = vadd.f32 0.0, %v3899
    %v3901 = vpop.f32.mrf.mxu0
    %3902 = vmatprep.mubr.f32.mxu0 0.0
    %3903 = vmatmul.mubr.f32.gmra.mxu0 %v3081
    %v3904 = vpop.f32.mrf.mxu0
    %v3905 = vadd.f32 0.0, %v3904
    %v3906 = vpop.f32.mrf.mxu0
    %3907 = vmatprep.mubr.f32.mxu0 0.0
    %3908 = vmatmul.mubr.f32.gmra.mxu0 %v3084
    %v3909 = vpop.f32.mrf.mxu0
    %v3910 = vadd.f32 0.0, %v3909
    %v3911 = vpop.f32.mrf.mxu0
    %3912 = vmatprep.mubr.f32.mxu0 0.0
    %3913 = vmatmul.mubr.f32.gmra.mxu0 %v3087
    %v3914 = vpop.f32.mrf.mxu0
    %v3915 = vadd.f32 0.0, %v3914
    %v3916 = vpop.f32.mrf.mxu0
    %3917 = vmatprep.mubr.f32.mxu0 0.0
    %3918 = vmatmul.mubr.f32.gmra.mxu0 %v3542
    %v3919 = vpop.f32.mrf.mxu0
    %v3920 = vadd.f32 0.0, %v3919
    %v3921 = vpop.f32.mrf.mxu0
    %3922 = vmatprep.mubr.f32.mxu0 0.0
    %3923 = vmatmul.mubr.f32.gmra.mxu0 %v3545
    %v3924 = vpop.f32.mrf.mxu0
    %v3925 = vadd.f32 0.0, %v3924
    %v3926 = vpop.f32.mrf.mxu0
    %3927 = vmatprep.mubr.f32.mxu0 0.0
    %3928 = vmatmul.mubr.f32.gmra.mxu0 %v3548
    %v3929 = vpop.f32.mrf.mxu0
    %v3930 = vadd.f32 0.0, %v3929
    %v3931 = vpop.f32.mrf.mxu0
    %3932 = vmatprep.mubr.f32.mxu0 0.0
    %3933 = vmatmul.mubr.f32.gmra.mxu0 %v3551
    %v3934 = vpop.f32.mrf.mxu0
    %v3935 = vadd.f32 0.0, %v3934
    %v3936 = vpop.f32.mrf.mxu0
    %3937 = vdwg.mxu0
    %v3938 = vadd.f32 %v3474, %v3620
    %v3939 = vadd.f32 %v3475, %v3625
    %v3940 = vadd.f32 %v3476, %v3630
    %v3941 = vadd.f32 %v3477, %v3635
    %v3942 = vadd.f32 %v3478, %v3640
    %v3943 = vadd.f32 %v3479, %v3645
    %v3944 = vadd.f32 %v3480, %v3650
    %v3945 = vadd.f32 %v3481, %v3655
    %v3946 = vadd.f32 %v3482, %v3660
    %v3947 = vadd.f32 %v3483, %v3665
    %v3948 = vadd.f32 %v3484, %v3670
    %v3949 = vadd.f32 %v3485, %v3675
    %v3950 = vadd.f32 %v3486, %v3680
    %v3951 = vadd.f32 %v3487, %v3685
    %v3952 = vadd.f32 %v3488, %v3690
    %v3953 = vadd.f32 %v3489, %v3695
    %v3954 = vadd.f32 %v3490, %v3700
    %v3955 = vadd.f32 %v3491, %v3705
    %v3956 = vadd.f32 %v3492, %v3710
    %v3957 = vadd.f32 %v3493, %v3715
    %v3958 = vadd.f32 %v3494, %v3720
    %v3959 = vadd.f32 %v3495, %v3725
    %v3960 = vadd.f32 %v3496, %v3730
    %v3961 = vadd.f32 %v3497, %v3735
    %v3962 = vadd.f32 %v3498, %v3740
    %v3963 = vadd.f32 %v3499, %v3745
    %v3964 = vadd.f32 %v3500, %v3750
    %v3965 = vadd.f32 %v3501, %v3755
    %v3966 = vadd.f32 %v3502, %v3760
    %v3967 = vadd.f32 %v3503, %v3765
    %v3968 = vadd.f32 %v3504, %v3770
    %v3969 = vadd.f32 %v3505, %v3775
    %v3970 = vadd.f32 %v3506, %v3780
    %v3971 = vadd.f32 %v3507, %v3785
    %v3972 = vadd.f32 %v3508, %v3790
    %v3973 = vadd.f32 %v3509, %v3795
    %v3974 = vadd.f32 %v3510, %v3800
    %v3975 = vadd.f32 %v3511, %v3805
    %v3976 = vadd.f32 %v3512, %v3810
    %v3977 = vadd.f32 %v3513, %v3815
    %v3978 = vadd.f32 %v3514, %v3820
    %v3979 = vadd.f32 %v3515, %v3825
    %v3980 = vadd.f32 %v3516, %v3830
    %v3981 = vadd.f32 %v3517, %v3835
    %v3982 = vadd.f32 %v3518, %v3840
    %v3983 = vadd.f32 %v3519, %v3845
    %v3984 = vadd.f32 %v3520, %v3850
    %v3985 = vadd.f32 %v3521, %v3855
    %v3986 = vadd.f32 %v3522, %v3860
    %v3987 = vadd.f32 %v3523, %v3865
    %v3988 = vadd.f32 %v3524, %v3870
    %v3989 = vadd.f32 %v3525, %v3875
    %v3990 = vadd.f32 %v3526, %v3880
    %v3991 = vadd.f32 %v3527, %v3885
    %v3992 = vadd.f32 %v3528, %v3890
    %v3993 = vadd.f32 %v3529, %v3895
    %v3994 = vadd.f32 %v3530, %v3900
    %v3995 = vadd.f32 %v3531, %v3905
    %v3996 = vadd.f32 %v3532, %v3910
    %v3997 = vadd.f32 %v3533, %v3915
    %v3998 = vadd.f32 %v3534, %v3920
    %v3999 = vadd.f32 %v3535, %v3925
    %v4000 = vadd.f32 %v3536, %v3930
    %v4001 = vadd.f32 %v3537, %v3935
    %v4002 = vld [vmem:[%s4] sm:$0x1]
    %v4004 = vlaneseq
    %v4005 = vshrl.u32 %v4004, 7
    %v4006 = vsub.s32 0, %v4005
    %v4007 = vrot.slane %v4002, %v4006
    %v4009 = vadd.f32 %v3938, %v4007
    %v4010 = vadd.f32 %v3939, %v4007
    %v4011 = vadd.f32 %v3940, %v4007
    %v4012 = vadd.f32 %v3941, %v4007
    %v4013 = vadd.f32 %v3942, %v4007
    %v4014 = vadd.f32 %v3943, %v4007
    %v4015 = vadd.f32 %v3944, %v4007
    %v4016 = vadd.f32 %v3945, %v4007
    %v4017 = vadd.f32 %v3946, %v4007
    %v4018 = vadd.f32 %v3947, %v4007
    %v4019 = vadd.f32 %v3948, %v4007
    %v4020 = vadd.f32 %v3949, %v4007
    %v4021 = vadd.f32 %v3950, %v4007
    %v4022 = vadd.f32 %v3951, %v4007
    %v4023 = vadd.f32 %v3952, %v4007
    %v4024 = vadd.f32 %v3953, %v4007
    %v4025 = vadd.f32 %v3954, %v4007
    %v4026 = vadd.f32 %v3955, %v4007
    %v4027 = vadd.f32 %v3956, %v4007
    %v4028 = vadd.f32 %v3957, %v4007
    %v4029 = vadd.f32 %v3958, %v4007
    %v4030 = vadd.f32 %v3959, %v4007
    %v4031 = vadd.f32 %v3960, %v4007
    %v4032 = vadd.f32 %v3961, %v4007
    %v4033 = vadd.f32 %v3962, %v4007
    %v4034 = vadd.f32 %v3963, %v4007
    %v4035 = vadd.f32 %v3964, %v4007
    %v4036 = vadd.f32 %v3965, %v4007
    %v4037 = vadd.f32 %v3966, %v4007
    %v4038 = vadd.f32 %v3967, %v4007
    %v4039 = vadd.f32 %v3968, %v4007
    %v4040 = vadd.f32 %v3969, %v4007
    %v4041 = vadd.f32 %v3970, %v4007
    %v4042 = vadd.f32 %v3971, %v4007
    %v4043 = vadd.f32 %v3972, %v4007
    %v4044 = vadd.f32 %v3973, %v4007
    %v4045 = vadd.f32 %v3974, %v4007
    %v4046 = vadd.f32 %v3975, %v4007
    %v4047 = vadd.f32 %v3976, %v4007
    %v4048 = vadd.f32 %v3977, %v4007
    %v4049 = vadd.f32 %v3978, %v4007
    %v4050 = vadd.f32 %v3979, %v4007
    %v4051 = vadd.f32 %v3980, %v4007
    %v4052 = vadd.f32 %v3981, %v4007
    %v4053 = vadd.f32 %v3982, %v4007
    %v4054 = vadd.f32 %v3983, %v4007
    %v4055 = vadd.f32 %v3984, %v4007
    %v4056 = vadd.f32 %v3985, %v4007
    %v4057 = vadd.f32 %v3986, %v4007
    %v4058 = vadd.f32 %v3987, %v4007
    %v4059 = vadd.f32 %v3988, %v4007
    %v4060 = vadd.f32 %v3989, %v4007
    %v4061 = vadd.f32 %v3990, %v4007
    %v4062 = vadd.f32 %v3991, %v4007
    %v4063 = vadd.f32 %v3992, %v4007
    %v4064 = vadd.f32 %v3993, %v4007
    %v4065 = vadd.f32 %v3994, %v4007
    %v4066 = vadd.f32 %v3995, %v4007
    %v4067 = vadd.f32 %v3996, %v4007
    %v4068 = vadd.f32 %v3997, %v4007
    %v4069 = vadd.f32 %v3998, %v4007
    %v4070 = vadd.f32 %v3999, %v4007
    %v4071 = vadd.f32 %v4000, %v4007
    %v4072 = vadd.f32 %v4001, %v4007
    %v4073 = vmax.f32 %v4009, 0.0
    %v4074 = vmax.f32 %v4010, 0.0
    %v4075 = vmax.f32 %v4011, 0.0
    %v4076 = vmax.f32 %v4012, 0.0
    %v4077 = vmax.f32 %v4013, 0.0
    %v4078 = vmax.f32 %v4014, 0.0
    %v4079 = vmax.f32 %v4015, 0.0
    %v4080 = vmax.f32 %v4016, 0.0
    %v4081 = vmax.f32 %v4017, 0.0
    %v4082 = vmax.f32 %v4018, 0.0
    %v4083 = vmax.f32 %v4019, 0.0
    %v4084 = vmax.f32 %v4020, 0.0
    %v4085 = vmax.f32 %v4021, 0.0
    %v4086 = vmax.f32 %v4022, 0.0
    %v4087 = vmax.f32 %v4023, 0.0
    %v4088 = vmax.f32 %v4024, 0.0
    %v4089 = vmax.f32 %v4025, 0.0
    %v4090 = vmax.f32 %v4026, 0.0
    %v4091 = vmax.f32 %v4027, 0.0
    %v4092 = vmax.f32 %v4028, 0.0
    %v4093 = vmax.f32 %v4029, 0.0
    %v4094 = vmax.f32 %v4030, 0.0
    %v4095 = vmax.f32 %v4031, 0.0
    %v4096 = vmax.f32 %v4032, 0.0
    %v4097 = vmax.f32 %v4033, 0.0
    %v4098 = vmax.f32 %v4034, 0.0
    %v4099 = vmax.f32 %v4035, 0.0
    %v4100 = vmax.f32 %v4036, 0.0
    %v4101 = vmax.f32 %v4037, 0.0
    %v4102 = vmax.f32 %v4038, 0.0
    %v4103 = vmax.f32 %v4039, 0.0
    %v4104 = vmax.f32 %v4040, 0.0
    %v4105 = vmax.f32 %v4041, 0.0
    %v4106 = vmax.f32 %v4042, 0.0
    %v4107 = vmax.f32 %v4043, 0.0
    %v4108 = vmax.f32 %v4044, 0.0
    %v4109 = vmax.f32 %v4045, 0.0
    %v4110 = vmax.f32 %v4046, 0.0
    %v4111 = vmax.f32 %v4047, 0.0
    %v4112 = vmax.f32 %v4048, 0.0
    %v4113 = vmax.f32 %v4049, 0.0
    %v4114 = vmax.f32 %v4050, 0.0
    %v4115 = vmax.f32 %v4051, 0.0
    %v4116 = vmax.f32 %v4052, 0.0
    %v4117 = vmax.f32 %v4053, 0.0
    %v4118 = vmax.f32 %v4054, 0.0
    %v4119 = vmax.f32 %v4055, 0.0
    %v4120 = vmax.f32 %v4056, 0.0
    %v4121 = vmax.f32 %v4057, 0.0
    %v4122 = vmax.f32 %v4058, 0.0
    %v4123 = vmax.f32 %v4059, 0.0
    %v4124 = vmax.f32 %v4060, 0.0
    %v4125 = vmax.f32 %v4061, 0.0
    %v4126 = vmax.f32 %v4062, 0.0
    %v4127 = vmax.f32 %v4063, 0.0
    %v4128 = vmax.f32 %v4064, 0.0
    %v4129 = vmax.f32 %v4065, 0.0
    %v4130 = vmax.f32 %v4066, 0.0
    %v4131 = vmax.f32 %v4067, 0.0
    %v4132 = vmax.f32 %v4068, 0.0
    %v4133 = vmax.f32 %v4069, 0.0
    %v4134 = vmax.f32 %v4070, 0.0
    %v4135 = vmax.f32 %v4071, 0.0
    %v4136 = vmax.f32 %v4072, 0.0
    %v4137 = vld [vmem:[%s5] sm:$0xff]
    %v4138 = vld [vmem:[%s5 + $0x8] sm:$0xff]
    %s4139 = scalar_lea.vmem %s5, 16
    %v4140 = vld [vmem:[%s4139] sm:$0xff]
    %v4141 = vld [vmem:[%s4139 + $0x8] sm:$0xff]
    %v4143 = vsel %vm1635, %v4077, 0
    %v4146 = vsel %vm1635, %v4078, 0
    %v4149 = vsel %vm1635, %v4079, 0
    %v4152 = vsel %vm1635, %v4080, 0
    %v4155 = vsel %vm1635, %v4081, 0
    %v4158 = vsel %vm1635, %v4082, 0
    %v4161 = vsel %vm1635, %v4083, 0
    %v4164 = vsel %vm1635, %v4084, 0
    %v4167 = vsel %vm1635, %v4085, 0
    %v4170 = vsel %vm1635, %v4086, 0
    %v4173 = vsel %vm1635, %v4087, 0
    %v4176 = vsel %vm1635, %v4088, 0
    %v4179 = vsel %vm1635, %v4089, 0
    %v4182 = vsel %vm1635, %v4090, 0
    %v4185 = vsel %vm1635, %v4091, 0
    %v4188 = vsel %vm1635, %v4092, 0
    %v4191 = vsel %vm1635, %v4093, 0
    %v4194 = vsel %vm1635, %v4094, 0
    %v4197 = vsel %vm1635, %v4095, 0
    %v4200 = vsel %vm1635, %v4096, 0
    %v4203 = vsel %vm1635, %v4097, 0
    %v4206 = vsel %vm1635, %v4098, 0
    %v4209 = vsel %vm1635, %v4099, 0
    %v4212 = vsel %vm1635, %v4100, 0
    %v4215 = vsel %vm1635, %v4101, 0
    %v4218 = vsel %vm1635, %v4102, 0
    %v4221 = vsel %vm1635, %v4103, 0
    %v4224 = vsel %vm1635, %v4104, 0
    %v4227 = vsel %vm1635, %v4105, 0
    %v4230 = vsel %vm1635, %v4106, 0
    %v4233 = vsel %vm1635, %v4107, 0
    %v4236 = vsel %vm1635, %v4108, 0
    %v4239 = vsel %vm1635, %v4109, 0
    %v4242 = vsel %vm1635, %v4110, 0
    %v4245 = vsel %vm1635, %v4111, 0
    %v4248 = vsel %vm1635, %v4112, 0
    %v4251 = vsel %vm1635, %v4113, 0
    %v4254 = vsel %vm1635, %v4114, 0
    %v4257 = vsel %vm1635, %v4115, 0
    %v4260 = vsel %vm1635, %v4116, 0
    %v4263 = vsel %vm1635, %v4117, 0
    %v4266 = vsel %vm1635, %v4118, 0
    %v4269 = vsel %vm1635, %v4119, 0
    %v4272 = vsel %vm1635, %v4120, 0
    %v4275 = vsel %vm1635, %v4121, 0
    %v4278 = vsel %vm1635, %v4122, 0
    %v4281 = vsel %vm1635, %v4123, 0
    %v4284 = vsel %vm1635, %v4124, 0
    %4286 = vmatprep.subr.mxu0 0.0
    %4287 = vmatpush1.msra.mxu0 0.0
    %4288 = vmatprep.subr.mxu0 0.0
    %4289 = vmatpush1.msra.mxu0 0.0
    %4290 = vmatprep.subr.mxu0 0.0
    %4291 = vmatpush1.msra.mxu0 0.0
    %4292 = vmatprep.subr.mxu0 0.0
    %4293 = vmatpush1.msra.mxu0 0.0
    %4294 = vmatprep.subr.mxu0 0.0
    %4295 = vmatpush1.msra.mxu0 0.0
    %4296 = vmatprep.subr.mxu0 0.0
    %4297 = vmatpush1.msra.mxu0 0.0
    %4298 = vmatprep.subr.mxu0 0.0
    %4299 = vmatpush1.msra.mxu0 0.0
    %4300 = vmatprep.subr.mxu0 0.0
    %4301 = vmatpush1.msra.mxu0 0.0
    %4302 = vmatprep.subr.mxu0 0.0
    %4303 = vmatpush1.msra.mxu0 0.0
    %4304 = vmatprep.subr.mxu0 0.0
    %4305 = vmatpush1.msra.mxu0 0.0
    %4306 = vmatprep.subr.mxu0 0.0
    %4307 = vmatpush1.msra.mxu0 0.0
    %4308 = vmatprep.subr.mxu0 0.0
    %4309 = vmatpush1.msra.mxu0 0.0
    %4310 = vmatprep.subr.mxu0 0.0
    %4311 = vmatpush1.msra.mxu0 0.0
    %4312 = vmatprep.subr.mxu0 0.0
    %4313 = vmatpush1.msra.mxu0 0.0
    %4314 = vmatprep.subr.mxu0 0.0
    %4315 = vmatpush1.msra.mxu0 %v4141
    %4316 = vmatprep.subr.mxu0 0.0
    %4317 = vmatpush1.msra.mxu0 %v4140
    %4318 = vmatprep.subr.mxu0 0.0
    %4319 = vmatpush2.msra.mxu0 0.0
    %4320 = vmatprep.subr.mxu0 0.0
    %4321 = vmatpush2.msra.mxu0 0.0
    %4322 = vmatprep.subr.mxu0 0.0
    %4323 = vmatpush2.msra.mxu0 0.0
    %4324 = vmatprep.subr.mxu0 0.0
    %4325 = vmatpush2.msra.mxu0 0.0
    %4326 = vmatprep.subr.mxu0 0.0
    %4327 = vmatpush2.msra.mxu0 0.0
    %4328 = vmatprep.subr.mxu0 0.0
    %4329 = vmatpush2.msra.mxu0 0.0
    %4330 = vmatprep.subr.mxu0 0.0
    %4331 = vmatpush2.msra.mxu0 0.0
    %4332 = vmatprep.subr.mxu0 0.0
    %4333 = vmatpush2.msra.mxu0 0.0
    %4334 = vmatprep.subr.mxu0 0.0
    %4335 = vmatpush2.msra.mxu0 0.0
    %4336 = vmatprep.subr.mxu0 0.0
    %4337 = vmatpush2.msra.mxu0 0.0
    %4338 = vmatprep.subr.mxu0 0.0
    %4339 = vmatpush2.msra.mxu0 0.0
    %4340 = vmatprep.subr.mxu0 0.0
    %4341 = vmatpush2.msra.mxu0 0.0
    %4342 = vmatprep.subr.mxu0 0.0
    %4343 = vmatpush2.msra.mxu0 0.0
    %4344 = vmatprep.subr.mxu0 0.0
    %4345 = vmatpush2.msra.mxu0 0.0
    %4346 = vmatprep.subr.mxu0 0.0
    %4347 = vmatpush2.msra.mxu0 0.0
    %4348 = vmatprep.subr.mxu0 0.0
    %4349 = vmatpush2.msra.mxu0 0.0
    %4350 = vmatprep.mubr.f32.mxu0 0.0
    %4351 = vmatmul.mubr.f32.gmra.mxu0 %v4143
    %v4352 = vpop.f32.mrf.mxu0
    %v4353 = vadd.f32 0.0, %v4352
    %v4354 = vpop.f32.mrf.mxu0
    %4355 = vmatprep.mubr.f32.mxu0 0.0
    %4356 = vmatmul.mubr.f32.gmra.mxu0 %v4146
    %v4357 = vpop.f32.mrf.mxu0
    %v4358 = vadd.f32 0.0, %v4357
    %v4359 = vpop.f32.mrf.mxu0
    %4360 = vmatprep.mubr.f32.mxu0 0.0
    %4361 = vmatmul.mubr.f32.gmra.mxu0 %v4149
    %v4362 = vpop.f32.mrf.mxu0
    %v4363 = vadd.f32 0.0, %v4362
    %v4364 = vpop.f32.mrf.mxu0
    %4365 = vmatprep.mubr.f32.mxu0 0.0
    %4366 = vmatmul.mubr.f32.gmra.mxu0 %v4152
    %v4367 = vpop.f32.mrf.mxu0
    %v4368 = vadd.f32 0.0, %v4367
    %v4369 = vpop.f32.mrf.mxu0
    %4370 = vmatprep.mubr.f32.mxu0 0.0
    %4371 = vmatmul.mubr.f32.gmra.mxu0 %v4155
    %v4372 = vpop.f32.mrf.mxu0
    %v4373 = vadd.f32 0.0, %v4372
    %v4374 = vpop.f32.mrf.mxu0
    %4375 = vmatprep.mubr.f32.mxu0 0.0
    %4376 = vmatmul.mubr.f32.gmra.mxu0 %v4158
    %v4377 = vpop.f32.mrf.mxu0
    %v4378 = vadd.f32 0.0, %v4377
    %v4379 = vpop.f32.mrf.mxu0
    %4380 = vmatprep.mubr.f32.mxu0 0.0
    %4381 = vmatmul.mubr.f32.gmra.mxu0 %v4161
    %v4382 = vpop.f32.mrf.mxu0
    %v4383 = vadd.f32 0.0, %v4382
    %v4384 = vpop.f32.mrf.mxu0
    %4385 = vmatprep.mubr.f32.mxu0 0.0
    %4386 = vmatmul.mubr.f32.gmra.mxu0 %v4164
    %v4387 = vpop.f32.mrf.mxu0
    %v4388 = vadd.f32 0.0, %v4387
    %v4389 = vpop.f32.mrf.mxu0
    %4390 = vmatprep.mubr.f32.mxu0 0.0
    %4391 = vmatmul.mubr.f32.gmra.mxu0 %v4167
    %v4392 = vpop.f32.mrf.mxu0
    %v4393 = vadd.f32 0.0, %v4392
    %v4394 = vpop.f32.mrf.mxu0
    %4395 = vmatprep.mubr.f32.mxu0 0.0
    %4396 = vmatmul.mubr.f32.gmra.mxu0 %v4170
    %v4397 = vpop.f32.mrf.mxu0
    %v4398 = vadd.f32 0.0, %v4397
    %v4399 = vpop.f32.mrf.mxu0
    %4400 = vmatprep.mubr.f32.mxu0 0.0
    %4401 = vmatmul.mubr.f32.gmra.mxu0 %v4173
    %v4402 = vpop.f32.mrf.mxu0
    %v4403 = vadd.f32 0.0, %v4402
    %v4404 = vpop.f32.mrf.mxu0
    %4405 = vmatprep.mubr.f32.mxu0 0.0
    %4406 = vmatmul.mubr.f32.gmra.mxu0 %v4176
    %v4407 = vpop.f32.mrf.mxu0
    %v4408 = vadd.f32 0.0, %v4407
    %v4409 = vpop.f32.mrf.mxu0
    %4410 = vmatprep.mubr.f32.mxu0 0.0
    %4411 = vmatmul.mubr.f32.gmra.mxu0 %v4179
    %v4412 = vpop.f32.mrf.mxu0
    %v4413 = vadd.f32 0.0, %v4412
    %v4414 = vpop.f32.mrf.mxu0
    %4415 = vmatprep.mubr.f32.mxu0 0.0
    %4416 = vmatmul.mubr.f32.gmra.mxu0 %v4182
    %v4417 = vpop.f32.mrf.mxu0
    %v4418 = vadd.f32 0.0, %v4417
    %v4419 = vpop.f32.mrf.mxu0
    %4420 = vmatprep.mubr.f32.mxu0 0.0
    %4421 = vmatmul.mubr.f32.gmra.mxu0 %v4185
    %v4422 = vpop.f32.mrf.mxu0
    %v4423 = vadd.f32 0.0, %v4422
    %v4424 = vpop.f32.mrf.mxu0
    %4425 = vmatprep.mubr.f32.mxu0 0.0
    %4426 = vmatmul.mubr.f32.gmra.mxu0 %v4188
    %v4427 = vpop.f32.mrf.mxu0
    %v4428 = vadd.f32 0.0, %v4427
    %v4429 = vpop.f32.mrf.mxu0
    %4430 = vmatprep.mubr.f32.mxu0 0.0
    %4431 = vmatmul.mubr.f32.gmra.mxu0 %v4191
    %v4432 = vpop.f32.mrf.mxu0
    %v4433 = vadd.f32 0.0, %v4432
    %v4434 = vpop.f32.mrf.mxu0
    %4435 = vmatprep.mubr.f32.mxu0 0.0
    %4436 = vmatmul.mubr.f32.gmra.mxu0 %v4194
    %v4437 = vpop.f32.mrf.mxu0
    %v4438 = vadd.f32 0.0, %v4437
    %v4439 = vpop.f32.mrf.mxu0
    %4440 = vmatprep.mubr.f32.mxu0 0.0
    %4441 = vmatmul.mubr.f32.gmra.mxu0 %v4197
    %v4442 = vpop.f32.mrf.mxu0
    %v4443 = vadd.f32 0.0, %v4442
    %v4444 = vpop.f32.mrf.mxu0
    %4445 = vmatprep.mubr.f32.mxu0 0.0
    %4446 = vmatmul.mubr.f32.gmra.mxu0 %v4200
    %v4447 = vpop.f32.mrf.mxu0
    %v4448 = vadd.f32 0.0, %v4447
    %v4449 = vpop.f32.mrf.mxu0
    %4450 = vmatprep.mubr.f32.mxu0 0.0
    %4451 = vmatmul.mubr.f32.gmra.mxu0 %v4203
    %v4452 = vpop.f32.mrf.mxu0
    %v4453 = vadd.f32 0.0, %v4452
    %v4454 = vpop.f32.mrf.mxu0
    %4455 = vmatprep.mubr.f32.mxu0 0.0
    %4456 = vmatmul.mubr.f32.gmra.mxu0 %v4206
    %v4457 = vpop.f32.mrf.mxu0
    %v4458 = vadd.f32 0.0, %v4457
    %v4459 = vpop.f32.mrf.mxu0
    %4460 = vmatprep.mubr.f32.mxu0 0.0
    %4461 = vmatmul.mubr.f32.gmra.mxu0 %v4209
    %v4462 = vpop.f32.mrf.mxu0
    %v4463 = vadd.f32 0.0, %v4462
    %v4464 = vpop.f32.mrf.mxu0
    %4465 = vmatprep.mubr.f32.mxu0 0.0
    %4466 = vmatmul.mubr.f32.gmra.mxu0 %v4212
    %v4467 = vpop.f32.mrf.mxu0
    %v4468 = vadd.f32 0.0, %v4467
    %v4469 = vpop.f32.mrf.mxu0
    %4470 = vmatprep.mubr.f32.mxu0 0.0
    %4471 = vmatmul.mubr.f32.gmra.mxu0 %v4215
    %v4472 = vpop.f32.mrf.mxu0
    %v4473 = vadd.f32 0.0, %v4472
    %v4474 = vpop.f32.mrf.mxu0
    %4475 = vmatprep.mubr.f32.mxu0 0.0
    %4476 = vmatmul.mubr.f32.gmra.mxu0 %v4218
    %v4477 = vpop.f32.mrf.mxu0
    %v4478 = vadd.f32 0.0, %v4477
    %v4479 = vpop.f32.mrf.mxu0
    %4480 = vmatprep.mubr.f32.mxu0 0.0
    %4481 = vmatmul.mubr.f32.gmra.mxu0 %v4221
    %v4482 = vpop.f32.mrf.mxu0
    %v4483 = vadd.f32 0.0, %v4482
    %v4484 = vpop.f32.mrf.mxu0
    %4485 = vmatprep.mubr.f32.mxu0 0.0
    %4486 = vmatmul.mubr.f32.gmra.mxu0 %v4224
    %v4487 = vpop.f32.mrf.mxu0
    %v4488 = vadd.f32 0.0, %v4487
    %v4489 = vpop.f32.mrf.mxu0
    %4490 = vmatprep.mubr.f32.mxu0 0.0
    %4491 = vmatmul.mubr.f32.gmra.mxu0 %v4227
    %v4492 = vpop.f32.mrf.mxu0
    %v4493 = vadd.f32 0.0, %v4492
    %v4494 = vpop.f32.mrf.mxu0
    %4495 = vmatprep.mubr.f32.mxu0 0.0
    %4496 = vmatmul.mubr.f32.gmra.mxu0 %v4230
    %v4497 = vpop.f32.mrf.mxu0
    %v4498 = vadd.f32 0.0, %v4497
    %v4499 = vpop.f32.mrf.mxu0
    %4500 = vmatprep.mubr.f32.mxu0 0.0
    %4501 = vmatmul.mubr.f32.gmra.mxu0 %v4233
    %v4502 = vpop.f32.mrf.mxu0
    %v4503 = vadd.f32 0.0, %v4502
    %v4504 = vpop.f32.mrf.mxu0
    %4505 = vmatprep.mubr.f32.mxu0 0.0
    %4506 = vmatmul.mubr.f32.gmra.mxu0 %v4236
    %v4507 = vpop.f32.mrf.mxu0
    %v4508 = vadd.f32 0.0, %v4507
    %v4509 = vpop.f32.mrf.mxu0
    %4510 = vmatprep.mubr.f32.mxu0 0.0
    %4511 = vmatmul.mubr.f32.gmra.mxu0 %v4239
    %v4512 = vpop.f32.mrf.mxu0
    %v4513 = vadd.f32 0.0, %v4512
    %v4514 = vpop.f32.mrf.mxu0
    %4515 = vmatprep.mubr.f32.mxu0 0.0
    %4516 = vmatmul.mubr.f32.gmra.mxu0 %v4242
    %v4517 = vpop.f32.mrf.mxu0
    %v4518 = vadd.f32 0.0, %v4517
    %v4519 = vpop.f32.mrf.mxu0
    %4520 = vmatprep.mubr.f32.mxu0 0.0
    %4521 = vmatmul.mubr.f32.gmra.mxu0 %v4245
    %v4522 = vpop.f32.mrf.mxu0
    %v4523 = vadd.f32 0.0, %v4522
    %v4524 = vpop.f32.mrf.mxu0
    %4525 = vmatprep.mubr.f32.mxu0 0.0
    %4526 = vmatmul.mubr.f32.gmra.mxu0 %v4248
    %v4527 = vpop.f32.mrf.mxu0
    %v4528 = vadd.f32 0.0, %v4527
    %v4529 = vpop.f32.mrf.mxu0
    %4530 = vmatprep.mubr.f32.mxu0 0.0
    %4531 = vmatmul.mubr.f32.gmra.mxu0 %v4251
    %v4532 = vpop.f32.mrf.mxu0
    %v4533 = vadd.f32 0.0, %v4532
    %v4534 = vpop.f32.mrf.mxu0
    %4535 = vmatprep.mubr.f32.mxu0 0.0
    %4536 = vmatmul.mubr.f32.gmra.mxu0 %v4254
    %v4537 = vpop.f32.mrf.mxu0
    %v4538 = vadd.f32 0.0, %v4537
    %v4539 = vpop.f32.mrf.mxu0
    %4540 = vmatprep.mubr.f32.mxu0 0.0
    %4541 = vmatmul.mubr.f32.gmra.mxu0 %v4257
    %v4542 = vpop.f32.mrf.mxu0
    %v4543 = vadd.f32 0.0, %v4542
    %v4544 = vpop.f32.mrf.mxu0
    %4545 = vmatprep.mubr.f32.mxu0 0.0
    %4546 = vmatmul.mubr.f32.gmra.mxu0 %v4260
    %v4547 = vpop.f32.mrf.mxu0
    %v4548 = vadd.f32 0.0, %v4547
    %v4549 = vpop.f32.mrf.mxu0
    %4550 = vmatprep.mubr.f32.mxu0 0.0
    %4551 = vmatmul.mubr.f32.gmra.mxu0 %v4263
    %v4552 = vpop.f32.mrf.mxu0
    %v4553 = vadd.f32 0.0, %v4552
    %v4554 = vpop.f32.mrf.mxu0
    %4555 = vmatprep.mubr.f32.mxu0 0.0
    %4556 = vmatmul.mubr.f32.gmra.mxu0 %v4266
    %v4557 = vpop.f32.mrf.mxu0
    %v4558 = vadd.f32 0.0, %v4557
    %v4559 = vpop.f32.mrf.mxu0
    %4560 = vmatprep.mubr.f32.mxu0 0.0
    %4561 = vmatmul.mubr.f32.gmra.mxu0 %v4269
    %v4562 = vpop.f32.mrf.mxu0
    %v4563 = vadd.f32 0.0, %v4562
    %v4564 = vpop.f32.mrf.mxu0
    %4565 = vmatprep.mubr.f32.mxu0 0.0
    %4566 = vmatmul.mubr.f32.gmra.mxu0 %v4272
    %v4567 = vpop.f32.mrf.mxu0
    %v4568 = vadd.f32 0.0, %v4567
    %v4569 = vpop.f32.mrf.mxu0
    %4570 = vmatprep.mubr.f32.mxu0 0.0
    %4571 = vmatmul.mubr.f32.gmra.mxu0 %v4275
    %v4572 = vpop.f32.mrf.mxu0
    %v4573 = vadd.f32 0.0, %v4572
    %v4574 = vpop.f32.mrf.mxu0
    %4575 = vmatprep.mubr.f32.mxu0 0.0
    %4576 = vmatmul.mubr.f32.gmra.mxu0 %v4278
    %v4577 = vpop.f32.mrf.mxu0
    %v4578 = vadd.f32 0.0, %v4577
    %v4579 = vpop.f32.mrf.mxu0
    %4580 = vmatprep.mubr.f32.mxu0 0.0
    %4581 = vmatmul.mubr.f32.gmra.mxu0 %v4281
    %v4582 = vpop.f32.mrf.mxu0
    %v4583 = vadd.f32 0.0, %v4582
    %v4584 = vpop.f32.mrf.mxu0
    %4585 = vmatprep.mubr.f32.mxu0 0.0
    %4586 = vmatmul.mubr.f32.gmra.mxu0 %v4284
    %v4587 = vpop.f32.mrf.mxu0
    %v4588 = vadd.f32 0.0, %v4587
    %v4589 = vpop.f32.mrf.mxu0
    %4590 = vdwg.mxu0
    %v4592 = vsel %vm1635, %v4073, 0
    %v4595 = vsel %vm1635, %v4074, 0
    %v4598 = vsel %vm1635, %v4075, 0
    %v4601 = vsel %vm1635, %v4076, 0
    %4603 = vmatprep.subr.mxu0 0.0
    %4604 = vmatpush1.msra.mxu0 0.0
    %4605 = vmatprep.subr.mxu0 0.0
    %4606 = vmatpush1.msra.mxu0 0.0
    %4607 = vmatprep.subr.mxu0 0.0
    %4608 = vmatpush1.msra.mxu0 0.0
    %4609 = vmatprep.subr.mxu0 0.0
    %4610 = vmatpush1.msra.mxu0 0.0
    %4611 = vmatprep.subr.mxu0 0.0
    %4612 = vmatpush1.msra.mxu0 0.0
    %4613 = vmatprep.subr.mxu0 0.0
    %4614 = vmatpush1.msra.mxu0 0.0
    %4615 = vmatprep.subr.mxu0 0.0
    %4616 = vmatpush1.msra.mxu0 0.0
    %4617 = vmatprep.subr.mxu0 0.0
    %4618 = vmatpush1.msra.mxu0 0.0
    %4619 = vmatprep.subr.mxu0 0.0
    %4620 = vmatpush1.msra.mxu0 0.0
    %4621 = vmatprep.subr.mxu0 0.0
    %4622 = vmatpush1.msra.mxu0 0.0
    %4623 = vmatprep.subr.mxu0 0.0
    %4624 = vmatpush1.msra.mxu0 0.0
    %4625 = vmatprep.subr.mxu0 0.0
    %4626 = vmatpush1.msra.mxu0 0.0
    %4627 = vmatprep.subr.mxu0 0.0
    %4628 = vmatpush1.msra.mxu0 0.0
    %4629 = vmatprep.subr.mxu0 0.0
    %4630 = vmatpush1.msra.mxu0 0.0
    %4631 = vmatprep.subr.mxu0 0.0
    %4632 = vmatpush1.msra.mxu0 %v4138
    %4633 = vmatprep.subr.mxu0 0.0
    %4634 = vmatpush1.msra.mxu0 %v4137
    %4635 = vmatprep.subr.mxu0 0.0
    %4636 = vmatpush2.msra.mxu0 0.0
    %4637 = vmatprep.subr.mxu0 0.0
    %4638 = vmatpush2.msra.mxu0 0.0
    %4639 = vmatprep.subr.mxu0 0.0
    %4640 = vmatpush2.msra.mxu0 0.0
    %4641 = vmatprep.subr.mxu0 0.0
    %4642 = vmatpush2.msra.mxu0 0.0
    %4643 = vmatprep.subr.mxu0 0.0
    %4644 = vmatpush2.msra.mxu0 0.0
    %4645 = vmatprep.subr.mxu0 0.0
    %4646 = vmatpush2.msra.mxu0 0.0
    %4647 = vmatprep.subr.mxu0 0.0
    %4648 = vmatpush2.msra.mxu0 0.0
    %4649 = vmatprep.subr.mxu0 0.0
    %4650 = vmatpush2.msra.mxu0 0.0
    %4651 = vmatprep.subr.mxu0 0.0
    %4652 = vmatpush2.msra.mxu0 0.0
    %4653 = vmatprep.subr.mxu0 0.0
    %4654 = vmatpush2.msra.mxu0 0.0
    %4655 = vmatprep.subr.mxu0 0.0
    %4656 = vmatpush2.msra.mxu0 0.0
    %4657 = vmatprep.subr.mxu0 0.0
    %4658 = vmatpush2.msra.mxu0 0.0
    %4659 = vmatprep.subr.mxu0 0.0
    %4660 = vmatpush2.msra.mxu0 0.0
    %4661 = vmatprep.subr.mxu0 0.0
    %4662 = vmatpush2.msra.mxu0 0.0
    %4663 = vmatprep.subr.mxu0 0.0
    %4664 = vmatpush2.msra.mxu0 0.0
    %4665 = vmatprep.subr.mxu0 0.0
    %4666 = vmatpush2.msra.mxu0 0.0
    %4667 = vmatprep.mubr.f32.mxu0 0.0
    %4668 = vmatmul.mubr.f32.gmra.mxu0 %v4592
    %v4669 = vpop.f32.mrf.mxu0
    %v4670 = vadd.f32 %v4353, %v4669
    %v4671 = vpop.f32.mrf.mxu0
    %4672 = vmatprep.mubr.f32.mxu0 0.0
    %4673 = vmatmul.mubr.f32.gmra.mxu0 %v4595
    %v4674 = vpop.f32.mrf.mxu0
    %v4675 = vadd.f32 %v4358, %v4674
    %v4676 = vpop.f32.mrf.mxu0
    %4677 = vmatprep.mubr.f32.mxu0 0.0
    %4678 = vmatmul.mubr.f32.gmra.mxu0 %v4598
    %v4679 = vpop.f32.mrf.mxu0
    %v4680 = vadd.f32 %v4363, %v4679
    %v4681 = vpop.f32.mrf.mxu0
    %4682 = vmatprep.mubr.f32.mxu0 0.0
    %4683 = vmatmul.mubr.f32.gmra.mxu0 %v4601
    %v4684 = vpop.f32.mrf.mxu0
    %v4685 = vadd.f32 %v4368, %v4684
    %v4686 = vpop.f32.mrf.mxu0
    %4687 = vmatprep.mubr.f32.mxu0 0.0
    %4688 = vmatmul.mubr.f32.gmra.mxu0 %v4143
    %v4689 = vpop.f32.mrf.mxu0
    %v4690 = vadd.f32 %v4373, %v4689
    %v4691 = vpop.f32.mrf.mxu0
    %4692 = vmatprep.mubr.f32.mxu0 0.0
    %4693 = vmatmul.mubr.f32.gmra.mxu0 %v4146
    %v4694 = vpop.f32.mrf.mxu0
    %v4695 = vadd.f32 %v4378, %v4694
    %v4696 = vpop.f32.mrf.mxu0
    %4697 = vmatprep.mubr.f32.mxu0 0.0
    %4698 = vmatmul.mubr.f32.gmra.mxu0 %v4149
    %v4699 = vpop.f32.mrf.mxu0
    %v4700 = vadd.f32 %v4383, %v4699
    %v4701 = vpop.f32.mrf.mxu0
    %4702 = vmatprep.mubr.f32.mxu0 0.0
    %4703 = vmatmul.mubr.f32.gmra.mxu0 %v4152
    %v4704 = vpop.f32.mrf.mxu0
    %v4705 = vadd.f32 %v4388, %v4704
    %v4706 = vpop.f32.mrf.mxu0
    %4707 = vmatprep.mubr.f32.mxu0 0.0
    %4708 = vmatmul.mubr.f32.gmra.mxu0 %v4155
    %v4709 = vpop.f32.mrf.mxu0
    %v4710 = vadd.f32 %v4393, %v4709
    %v4711 = vpop.f32.mrf.mxu0
    %4712 = vmatprep.mubr.f32.mxu0 0.0
    %4713 = vmatmul.mubr.f32.gmra.mxu0 %v4158
    %v4714 = vpop.f32.mrf.mxu0
    %v4715 = vadd.f32 %v4398, %v4714
    %v4716 = vpop.f32.mrf.mxu0
    %4717 = vmatprep.mubr.f32.mxu0 0.0
    %4718 = vmatmul.mubr.f32.gmra.mxu0 %v4161
    %v4719 = vpop.f32.mrf.mxu0
    %v4720 = vadd.f32 %v4403, %v4719
    %v4721 = vpop.f32.mrf.mxu0
    %4722 = vmatprep.mubr.f32.mxu0 0.0
    %4723 = vmatmul.mubr.f32.gmra.mxu0 %v4164
    %v4724 = vpop.f32.mrf.mxu0
    %v4725 = vadd.f32 %v4408, %v4724
    %v4726 = vpop.f32.mrf.mxu0
    %4727 = vmatprep.mubr.f32.mxu0 0.0
    %4728 = vmatmul.mubr.f32.gmra.mxu0 %v4167
    %v4729 = vpop.f32.mrf.mxu0
    %v4730 = vadd.f32 %v4413, %v4729
    %v4731 = vpop.f32.mrf.mxu0
    %4732 = vmatprep.mubr.f32.mxu0 0.0
    %4733 = vmatmul.mubr.f32.gmra.mxu0 %v4170
    %v4734 = vpop.f32.mrf.mxu0
    %v4735 = vadd.f32 %v4418, %v4734
    %v4736 = vpop.f32.mrf.mxu0
    %4737 = vmatprep.mubr.f32.mxu0 0.0
    %4738 = vmatmul.mubr.f32.gmra.mxu0 %v4173
    %v4739 = vpop.f32.mrf.mxu0
    %v4740 = vadd.f32 %v4423, %v4739
    %v4741 = vpop.f32.mrf.mxu0
    %4742 = vmatprep.mubr.f32.mxu0 0.0
    %4743 = vmatmul.mubr.f32.gmra.mxu0 %v4176
    %v4744 = vpop.f32.mrf.mxu0
    %v4745 = vadd.f32 %v4428, %v4744
    %v4746 = vpop.f32.mrf.mxu0
    %4747 = vmatprep.mubr.f32.mxu0 0.0
    %4748 = vmatmul.mubr.f32.gmra.mxu0 %v4179
    %v4749 = vpop.f32.mrf.mxu0
    %v4750 = vadd.f32 %v4433, %v4749
    %v4751 = vpop.f32.mrf.mxu0
    %4752 = vmatprep.mubr.f32.mxu0 0.0
    %4753 = vmatmul.mubr.f32.gmra.mxu0 %v4182
    %v4754 = vpop.f32.mrf.mxu0
    %v4755 = vadd.f32 %v4438, %v4754
    %v4756 = vpop.f32.mrf.mxu0
    %4757 = vmatprep.mubr.f32.mxu0 0.0
    %4758 = vmatmul.mubr.f32.gmra.mxu0 %v4185
    %v4759 = vpop.f32.mrf.mxu0
    %v4760 = vadd.f32 %v4443, %v4759
    %v4761 = vpop.f32.mrf.mxu0
    %4762 = vmatprep.mubr.f32.mxu0 0.0
    %4763 = vmatmul.mubr.f32.gmra.mxu0 %v4188
    %v4764 = vpop.f32.mrf.mxu0
    %v4765 = vadd.f32 %v4448, %v4764
    %v4766 = vpop.f32.mrf.mxu0
    %4767 = vmatprep.mubr.f32.mxu0 0.0
    %4768 = vmatmul.mubr.f32.gmra.mxu0 %v4191
    %v4769 = vpop.f32.mrf.mxu0
    %v4770 = vadd.f32 %v4453, %v4769
    %v4771 = vpop.f32.mrf.mxu0
    %4772 = vmatprep.mubr.f32.mxu0 0.0
    %4773 = vmatmul.mubr.f32.gmra.mxu0 %v4194
    %v4774 = vpop.f32.mrf.mxu0
    %v4775 = vadd.f32 %v4458, %v4774
    %v4776 = vpop.f32.mrf.mxu0
    %4777 = vmatprep.mubr.f32.mxu0 0.0
    %4778 = vmatmul.mubr.f32.gmra.mxu0 %v4197
    %v4779 = vpop.f32.mrf.mxu0
    %v4780 = vadd.f32 %v4463, %v4779
    %v4781 = vpop.f32.mrf.mxu0
    %4782 = vmatprep.mubr.f32.mxu0 0.0
    %4783 = vmatmul.mubr.f32.gmra.mxu0 %v4200
    %v4784 = vpop.f32.mrf.mxu0
    %v4785 = vadd.f32 %v4468, %v4784
    %v4786 = vpop.f32.mrf.mxu0
    %4787 = vmatprep.mubr.f32.mxu0 0.0
    %4788 = vmatmul.mubr.f32.gmra.mxu0 %v4203
    %v4789 = vpop.f32.mrf.mxu0
    %v4790 = vadd.f32 %v4473, %v4789
    %v4791 = vpop.f32.mrf.mxu0
    %4792 = vmatprep.mubr.f32.mxu0 0.0
    %4793 = vmatmul.mubr.f32.gmra.mxu0 %v4206
    %v4794 = vpop.f32.mrf.mxu0
    %v4795 = vadd.f32 %v4478, %v4794
    %v4796 = vpop.f32.mrf.mxu0
    %4797 = vmatprep.mubr.f32.mxu0 0.0
    %4798 = vmatmul.mubr.f32.gmra.mxu0 %v4209
    %v4799 = vpop.f32.mrf.mxu0
    %v4800 = vadd.f32 %v4483, %v4799
    %v4801 = vpop.f32.mrf.mxu0
    %4802 = vmatprep.mubr.f32.mxu0 0.0
    %4803 = vmatmul.mubr.f32.gmra.mxu0 %v4212
    %v4804 = vpop.f32.mrf.mxu0
    %v4805 = vadd.f32 %v4488, %v4804
    %v4806 = vpop.f32.mrf.mxu0
    %4807 = vmatprep.mubr.f32.mxu0 0.0
    %4808 = vmatmul.mubr.f32.gmra.mxu0 %v4215
    %v4809 = vpop.f32.mrf.mxu0
    %v4810 = vadd.f32 %v4493, %v4809
    %v4811 = vpop.f32.mrf.mxu0
    %4812 = vmatprep.mubr.f32.mxu0 0.0
    %4813 = vmatmul.mubr.f32.gmra.mxu0 %v4218
    %v4814 = vpop.f32.mrf.mxu0
    %v4815 = vadd.f32 %v4498, %v4814
    %v4816 = vpop.f32.mrf.mxu0
    %4817 = vmatprep.mubr.f32.mxu0 0.0
    %4818 = vmatmul.mubr.f32.gmra.mxu0 %v4221
    %v4819 = vpop.f32.mrf.mxu0
    %v4820 = vadd.f32 %v4503, %v4819
    %v4821 = vpop.f32.mrf.mxu0
    %4822 = vmatprep.mubr.f32.mxu0 0.0
    %4823 = vmatmul.mubr.f32.gmra.mxu0 %v4224
    %v4824 = vpop.f32.mrf.mxu0
    %v4825 = vadd.f32 %v4508, %v4824
    %v4826 = vpop.f32.mrf.mxu0
    %4827 = vmatprep.mubr.f32.mxu0 0.0
    %4828 = vmatmul.mubr.f32.gmra.mxu0 %v4227
    %v4829 = vpop.f32.mrf.mxu0
    %v4830 = vadd.f32 %v4513, %v4829
    %v4831 = vpop.f32.mrf.mxu0
    %4832 = vmatprep.mubr.f32.mxu0 0.0
    %4833 = vmatmul.mubr.f32.gmra.mxu0 %v4230
    %v4834 = vpop.f32.mrf.mxu0
    %v4835 = vadd.f32 %v4518, %v4834
    %v4836 = vpop.f32.mrf.mxu0
    %4837 = vmatprep.mubr.f32.mxu0 0.0
    %4838 = vmatmul.mubr.f32.gmra.mxu0 %v4233
    %v4839 = vpop.f32.mrf.mxu0
    %v4840 = vadd.f32 %v4523, %v4839
    %v4841 = vpop.f32.mrf.mxu0
    %4842 = vmatprep.mubr.f32.mxu0 0.0
    %4843 = vmatmul.mubr.f32.gmra.mxu0 %v4236
    %v4844 = vpop.f32.mrf.mxu0
    %v4845 = vadd.f32 %v4528, %v4844
    %v4846 = vpop.f32.mrf.mxu0
    %4847 = vmatprep.mubr.f32.mxu0 0.0
    %4848 = vmatmul.mubr.f32.gmra.mxu0 %v4239
    %v4849 = vpop.f32.mrf.mxu0
    %v4850 = vadd.f32 %v4533, %v4849
    %v4851 = vpop.f32.mrf.mxu0
    %4852 = vmatprep.mubr.f32.mxu0 0.0
    %4853 = vmatmul.mubr.f32.gmra.mxu0 %v4242
    %v4854 = vpop.f32.mrf.mxu0
    %v4855 = vadd.f32 %v4538, %v4854
    %v4856 = vpop.f32.mrf.mxu0
    %4857 = vmatprep.mubr.f32.mxu0 0.0
    %4858 = vmatmul.mubr.f32.gmra.mxu0 %v4245
    %v4859 = vpop.f32.mrf.mxu0
    %v4860 = vadd.f32 %v4543, %v4859
    %v4861 = vpop.f32.mrf.mxu0
    %4862 = vmatprep.mubr.f32.mxu0 0.0
    %4863 = vmatmul.mubr.f32.gmra.mxu0 %v4248
    %v4864 = vpop.f32.mrf.mxu0
    %v4865 = vadd.f32 %v4548, %v4864
    %v4866 = vpop.f32.mrf.mxu0
    %4867 = vmatprep.mubr.f32.mxu0 0.0
    %4868 = vmatmul.mubr.f32.gmra.mxu0 %v4251
    %v4869 = vpop.f32.mrf.mxu0
    %v4870 = vadd.f32 %v4553, %v4869
    %v4871 = vpop.f32.mrf.mxu0
    %4872 = vmatprep.mubr.f32.mxu0 0.0
    %4873 = vmatmul.mubr.f32.gmra.mxu0 %v4254
    %v4874 = vpop.f32.mrf.mxu0
    %v4875 = vadd.f32 %v4558, %v4874
    %v4876 = vpop.f32.mrf.mxu0
    %4877 = vmatprep.mubr.f32.mxu0 0.0
    %4878 = vmatmul.mubr.f32.gmra.mxu0 %v4257
    %v4879 = vpop.f32.mrf.mxu0
    %v4880 = vadd.f32 %v4563, %v4879
    %v4881 = vpop.f32.mrf.mxu0
    %4882 = vmatprep.mubr.f32.mxu0 0.0
    %4883 = vmatmul.mubr.f32.gmra.mxu0 %v4260
    %v4884 = vpop.f32.mrf.mxu0
    %v4885 = vadd.f32 %v4568, %v4884
    %v4886 = vpop.f32.mrf.mxu0
    %4887 = vmatprep.mubr.f32.mxu0 0.0
    %4888 = vmatmul.mubr.f32.gmra.mxu0 %v4263
    %v4889 = vpop.f32.mrf.mxu0
    %v4890 = vadd.f32 %v4573, %v4889
    %v4891 = vpop.f32.mrf.mxu0
    %4892 = vmatprep.mubr.f32.mxu0 0.0
    %4893 = vmatmul.mubr.f32.gmra.mxu0 %v4266
    %v4894 = vpop.f32.mrf.mxu0
    %v4895 = vadd.f32 %v4578, %v4894
    %v4896 = vpop.f32.mrf.mxu0
    %4897 = vmatprep.mubr.f32.mxu0 0.0
    %4898 = vmatmul.mubr.f32.gmra.mxu0 %v4269
    %v4899 = vpop.f32.mrf.mxu0
    %v4900 = vadd.f32 %v4583, %v4899
    %v4901 = vpop.f32.mrf.mxu0
    %4902 = vmatprep.mubr.f32.mxu0 0.0
    %4903 = vmatmul.mubr.f32.gmra.mxu0 %v4272
    %v4904 = vpop.f32.mrf.mxu0
    %v4905 = vadd.f32 %v4588, %v4904
    %v4906 = vpop.f32.mrf.mxu0
    %4907 = vdwg.mxu0
    %s4908 = scalar_lea.vmem %s5, 32
    %v4909 = vld [vmem:[%s4908] sm:$0xff]
    %v4910 = vld [vmem:[%s4908 + $0x8] sm:$0xff]
    %v4912 = vsel %vm1635, %v4125, 0
    %v4915 = vsel %vm1635, %v4126, 0
    %v4918 = vsel %vm1635, %v4127, 0
    %v4921 = vsel %vm1635, %v4128, 0
    %4923 = vmatprep.subr.mxu0 0.0
    %4924 = vmatpush1.msra.mxu0 0.0
    %4925 = vmatprep.subr.mxu0 0.0
    %4926 = vmatpush1.msra.mxu0 0.0
    %4927 = vmatprep.subr.mxu0 0.0
    %4928 = vmatpush1.msra.mxu0 0.0
    %4929 = vmatprep.subr.mxu0 0.0
    %4930 = vmatpush1.msra.mxu0 0.0
    %4931 = vmatprep.subr.mxu0 0.0
    %4932 = vmatpush1.msra.mxu0 0.0
    %4933 = vmatprep.subr.mxu0 0.0
    %4934 = vmatpush1.msra.mxu0 0.0
    %4935 = vmatprep.subr.mxu0 0.0
    %4936 = vmatpush1.msra.mxu0 0.0
    %4937 = vmatprep.subr.mxu0 0.0
    %4938 = vmatpush1.msra.mxu0 0.0
    %4939 = vmatprep.subr.mxu0 0.0
    %4940 = vmatpush1.msra.mxu0 0.0
    %4941 = vmatprep.subr.mxu0 0.0
    %4942 = vmatpush1.msra.mxu0 0.0
    %4943 = vmatprep.subr.mxu0 0.0
    %4944 = vmatpush1.msra.mxu0 0.0
    %4945 = vmatprep.subr.mxu0 0.0
    %4946 = vmatpush1.msra.mxu0 0.0
    %4947 = vmatprep.subr.mxu0 0.0
    %4948 = vmatpush1.msra.mxu0 0.0
    %4949 = vmatprep.subr.mxu0 0.0
    %4950 = vmatpush1.msra.mxu0 0.0
    %4951 = vmatprep.subr.mxu0 0.0
    %4952 = vmatpush1.msra.mxu0 %v4910
    %4953 = vmatprep.subr.mxu0 0.0
    %4954 = vmatpush1.msra.mxu0 %v4909
    %4955 = vmatprep.subr.mxu0 0.0
    %4956 = vmatpush2.msra.mxu0 0.0
    %4957 = vmatprep.subr.mxu0 0.0
    %4958 = vmatpush2.msra.mxu0 0.0
    %4959 = vmatprep.subr.mxu0 0.0
    %4960 = vmatpush2.msra.mxu0 0.0
    %4961 = vmatprep.subr.mxu0 0.0
    %4962 = vmatpush2.msra.mxu0 0.0
    %4963 = vmatprep.subr.mxu0 0.0
    %4964 = vmatpush2.msra.mxu0 0.0
    %4965 = vmatprep.subr.mxu0 0.0
    %4966 = vmatpush2.msra.mxu0 0.0
    %4967 = vmatprep.subr.mxu0 0.0
    %4968 = vmatpush2.msra.mxu0 0.0
    %4969 = vmatprep.subr.mxu0 0.0
    %4970 = vmatpush2.msra.mxu0 0.0
    %4971 = vmatprep.subr.mxu0 0.0
    %4972 = vmatpush2.msra.mxu0 0.0
    %4973 = vmatprep.subr.mxu0 0.0
    %4974 = vmatpush2.msra.mxu0 0.0
    %4975 = vmatprep.subr.mxu0 0.0
    %4976 = vmatpush2.msra.mxu0 0.0
    %4977 = vmatprep.subr.mxu0 0.0
    %4978 = vmatpush2.msra.mxu0 0.0
    %4979 = vmatprep.subr.mxu0 0.0
    %4980 = vmatpush2.msra.mxu0 0.0
    %4981 = vmatprep.subr.mxu0 0.0
    %4982 = vmatpush2.msra.mxu0 0.0
    %4983 = vmatprep.subr.mxu0 0.0
    %4984 = vmatpush2.msra.mxu0 0.0
    %4985 = vmatprep.subr.mxu0 0.0
    %4986 = vmatpush2.msra.mxu0 0.0
    %4987 = vmatprep.mubr.f32.mxu0 0.0
    %4988 = vmatmul.mubr.f32.gmra.mxu0 %v4155
    %v4989 = vpop.f32.mrf.mxu0
    %v4990 = vadd.f32 0.0, %v4989
    %v4991 = vpop.f32.mrf.mxu0
    %4992 = vmatprep.mubr.f32.mxu0 0.0
    %4993 = vmatmul.mubr.f32.gmra.mxu0 %v4158
    %v4994 = vpop.f32.mrf.mxu0
    %v4995 = vadd.f32 0.0, %v4994
    %v4996 = vpop.f32.mrf.mxu0
    %4997 = vmatprep.mubr.f32.mxu0 0.0
    %4998 = vmatmul.mubr.f32.gmra.mxu0 %v4161
    %v4999 = vpop.f32.mrf.mxu0
    %v5000 = vadd.f32 0.0, %v4999
    %v5001 = vpop.f32.mrf.mxu0
    %5002 = vmatprep.mubr.f32.mxu0 0.0
    %5003 = vmatmul.mubr.f32.gmra.mxu0 %v4164
    %v5004 = vpop.f32.mrf.mxu0
    %v5005 = vadd.f32 0.0, %v5004
    %v5006 = vpop.f32.mrf.mxu0
    %5007 = vmatprep.mubr.f32.mxu0 0.0
    %5008 = vmatmul.mubr.f32.gmra.mxu0 %v4167
    %v5009 = vpop.f32.mrf.mxu0
    %v5010 = vadd.f32 0.0, %v5009
    %v5011 = vpop.f32.mrf.mxu0
    %5012 = vmatprep.mubr.f32.mxu0 0.0
    %5013 = vmatmul.mubr.f32.gmra.mxu0 %v4170
    %v5014 = vpop.f32.mrf.mxu0
    %v5015 = vadd.f32 0.0, %v5014
    %v5016 = vpop.f32.mrf.mxu0
    %5017 = vmatprep.mubr.f32.mxu0 0.0
    %5018 = vmatmul.mubr.f32.gmra.mxu0 %v4173
    %v5019 = vpop.f32.mrf.mxu0
    %v5020 = vadd.f32 0.0, %v5019
    %v5021 = vpop.f32.mrf.mxu0
    %5022 = vmatprep.mubr.f32.mxu0 0.0
    %5023 = vmatmul.mubr.f32.gmra.mxu0 %v4176
    %v5024 = vpop.f32.mrf.mxu0
    %v5025 = vadd.f32 0.0, %v5024
    %v5026 = vpop.f32.mrf.mxu0
    %5027 = vmatprep.mubr.f32.mxu0 0.0
    %5028 = vmatmul.mubr.f32.gmra.mxu0 %v4179
    %v5029 = vpop.f32.mrf.mxu0
    %v5030 = vadd.f32 0.0, %v5029
    %v5031 = vpop.f32.mrf.mxu0
    %5032 = vmatprep.mubr.f32.mxu0 0.0
    %5033 = vmatmul.mubr.f32.gmra.mxu0 %v4182
    %v5034 = vpop.f32.mrf.mxu0
    %v5035 = vadd.f32 0.0, %v5034
    %v5036 = vpop.f32.mrf.mxu0
    %5037 = vmatprep.mubr.f32.mxu0 0.0
    %5038 = vmatmul.mubr.f32.gmra.mxu0 %v4185
    %v5039 = vpop.f32.mrf.mxu0
    %v5040 = vadd.f32 0.0, %v5039
    %v5041 = vpop.f32.mrf.mxu0
    %5042 = vmatprep.mubr.f32.mxu0 0.0
    %5043 = vmatmul.mubr.f32.gmra.mxu0 %v4188
    %v5044 = vpop.f32.mrf.mxu0
    %v5045 = vadd.f32 0.0, %v5044
    %v5046 = vpop.f32.mrf.mxu0
    %5047 = vmatprep.mubr.f32.mxu0 0.0
    %5048 = vmatmul.mubr.f32.gmra.mxu0 %v4191
    %v5049 = vpop.f32.mrf.mxu0
    %v5050 = vadd.f32 0.0, %v5049
    %v5051 = vpop.f32.mrf.mxu0
    %5052 = vmatprep.mubr.f32.mxu0 0.0
    %5053 = vmatmul.mubr.f32.gmra.mxu0 %v4194
    %v5054 = vpop.f32.mrf.mxu0
    %v5055 = vadd.f32 0.0, %v5054
    %v5056 = vpop.f32.mrf.mxu0
    %5057 = vmatprep.mubr.f32.mxu0 0.0
    %5058 = vmatmul.mubr.f32.gmra.mxu0 %v4197
    %v5059 = vpop.f32.mrf.mxu0
    %v5060 = vadd.f32 0.0, %v5059
    %v5061 = vpop.f32.mrf.mxu0
    %5062 = vmatprep.mubr.f32.mxu0 0.0
    %5063 = vmatmul.mubr.f32.gmra.mxu0 %v4200
    %v5064 = vpop.f32.mrf.mxu0
    %v5065 = vadd.f32 0.0, %v5064
    %v5066 = vpop.f32.mrf.mxu0
    %5067 = vmatprep.mubr.f32.mxu0 0.0
    %5068 = vmatmul.mubr.f32.gmra.mxu0 %v4203
    %v5069 = vpop.f32.mrf.mxu0
    %v5070 = vadd.f32 0.0, %v5069
    %v5071 = vpop.f32.mrf.mxu0
    %5072 = vmatprep.mubr.f32.mxu0 0.0
    %5073 = vmatmul.mubr.f32.gmra.mxu0 %v4206
    %v5074 = vpop.f32.mrf.mxu0
    %v5075 = vadd.f32 0.0, %v5074
    %v5076 = vpop.f32.mrf.mxu0
    %5077 = vmatprep.mubr.f32.mxu0 0.0
    %5078 = vmatmul.mubr.f32.gmra.mxu0 %v4209
    %v5079 = vpop.f32.mrf.mxu0
    %v5080 = vadd.f32 0.0, %v5079
    %v5081 = vpop.f32.mrf.mxu0
    %5082 = vmatprep.mubr.f32.mxu0 0.0
    %5083 = vmatmul.mubr.f32.gmra.mxu0 %v4212
    %v5084 = vpop.f32.mrf.mxu0
    %v5085 = vadd.f32 0.0, %v5084
    %v5086 = vpop.f32.mrf.mxu0
    %5087 = vmatprep.mubr.f32.mxu0 0.0
    %5088 = vmatmul.mubr.f32.gmra.mxu0 %v4215
    %v5089 = vpop.f32.mrf.mxu0
    %v5090 = vadd.f32 0.0, %v5089
    %v5091 = vpop.f32.mrf.mxu0
    %5092 = vmatprep.mubr.f32.mxu0 0.0
    %5093 = vmatmul.mubr.f32.gmra.mxu0 %v4218
    %v5094 = vpop.f32.mrf.mxu0
    %v5095 = vadd.f32 0.0, %v5094
    %v5096 = vpop.f32.mrf.mxu0
    %5097 = vmatprep.mubr.f32.mxu0 0.0
    %5098 = vmatmul.mubr.f32.gmra.mxu0 %v4221
    %v5099 = vpop.f32.mrf.mxu0
    %v5100 = vadd.f32 0.0, %v5099
    %v5101 = vpop.f32.mrf.mxu0
    %5102 = vmatprep.mubr.f32.mxu0 0.0
    %5103 = vmatmul.mubr.f32.gmra.mxu0 %v4224
    %v5104 = vpop.f32.mrf.mxu0
    %v5105 = vadd.f32 0.0, %v5104
    %v5106 = vpop.f32.mrf.mxu0
    %5107 = vmatprep.mubr.f32.mxu0 0.0
    %5108 = vmatmul.mubr.f32.gmra.mxu0 %v4227
    %v5109 = vpop.f32.mrf.mxu0
    %v5110 = vadd.f32 0.0, %v5109
    %v5111 = vpop.f32.mrf.mxu0
    %5112 = vmatprep.mubr.f32.mxu0 0.0
    %5113 = vmatmul.mubr.f32.gmra.mxu0 %v4230
    %v5114 = vpop.f32.mrf.mxu0
    %v5115 = vadd.f32 0.0, %v5114
    %v5116 = vpop.f32.mrf.mxu0
    %5117 = vmatprep.mubr.f32.mxu0 0.0
    %5118 = vmatmul.mubr.f32.gmra.mxu0 %v4233
    %v5119 = vpop.f32.mrf.mxu0
    %v5120 = vadd.f32 0.0, %v5119
    %v5121 = vpop.f32.mrf.mxu0
    %5122 = vmatprep.mubr.f32.mxu0 0.0
    %5123 = vmatmul.mubr.f32.gmra.mxu0 %v4236
    %v5124 = vpop.f32.mrf.mxu0
    %v5125 = vadd.f32 0.0, %v5124
    %v5126 = vpop.f32.mrf.mxu0
    %5127 = vmatprep.mubr.f32.mxu0 0.0
    %5128 = vmatmul.mubr.f32.gmra.mxu0 %v4239
    %v5129 = vpop.f32.mrf.mxu0
    %v5130 = vadd.f32 0.0, %v5129
    %v5131 = vpop.f32.mrf.mxu0
    %5132 = vmatprep.mubr.f32.mxu0 0.0
    %5133 = vmatmul.mubr.f32.gmra.mxu0 %v4242
    %v5134 = vpop.f32.mrf.mxu0
    %v5135 = vadd.f32 0.0, %v5134
    %v5136 = vpop.f32.mrf.mxu0
    %5137 = vmatprep.mubr.f32.mxu0 0.0
    %5138 = vmatmul.mubr.f32.gmra.mxu0 %v4245
    %v5139 = vpop.f32.mrf.mxu0
    %v5140 = vadd.f32 0.0, %v5139
    %v5141 = vpop.f32.mrf.mxu0
    %5142 = vmatprep.mubr.f32.mxu0 0.0
    %5143 = vmatmul.mubr.f32.gmra.mxu0 %v4248
    %v5144 = vpop.f32.mrf.mxu0
    %v5145 = vadd.f32 0.0, %v5144
    %v5146 = vpop.f32.mrf.mxu0
    %5147 = vmatprep.mubr.f32.mxu0 0.0
    %5148 = vmatmul.mubr.f32.gmra.mxu0 %v4251
    %v5149 = vpop.f32.mrf.mxu0
    %v5150 = vadd.f32 0.0, %v5149
    %v5151 = vpop.f32.mrf.mxu0
    %5152 = vmatprep.mubr.f32.mxu0 0.0
    %5153 = vmatmul.mubr.f32.gmra.mxu0 %v4254
    %v5154 = vpop.f32.mrf.mxu0
    %v5155 = vadd.f32 0.0, %v5154
    %v5156 = vpop.f32.mrf.mxu0
    %5157 = vmatprep.mubr.f32.mxu0 0.0
    %5158 = vmatmul.mubr.f32.gmra.mxu0 %v4257
    %v5159 = vpop.f32.mrf.mxu0
    %v5160 = vadd.f32 0.0, %v5159
    %v5161 = vpop.f32.mrf.mxu0
    %5162 = vmatprep.mubr.f32.mxu0 0.0
    %5163 = vmatmul.mubr.f32.gmra.mxu0 %v4260
    %v5164 = vpop.f32.mrf.mxu0
    %v5165 = vadd.f32 0.0, %v5164
    %v5166 = vpop.f32.mrf.mxu0
    %5167 = vmatprep.mubr.f32.mxu0 0.0
    %5168 = vmatmul.mubr.f32.gmra.mxu0 %v4263
    %v5169 = vpop.f32.mrf.mxu0
    %v5170 = vadd.f32 0.0, %v5169
    %v5171 = vpop.f32.mrf.mxu0
    %5172 = vmatprep.mubr.f32.mxu0 0.0
    %5173 = vmatmul.mubr.f32.gmra.mxu0 %v4266
    %v5174 = vpop.f32.mrf.mxu0
    %v5175 = vadd.f32 0.0, %v5174
    %v5176 = vpop.f32.mrf.mxu0
    %5177 = vmatprep.mubr.f32.mxu0 0.0
    %5178 = vmatmul.mubr.f32.gmra.mxu0 %v4269
    %v5179 = vpop.f32.mrf.mxu0
    %v5180 = vadd.f32 0.0, %v5179
    %v5181 = vpop.f32.mrf.mxu0
    %5182 = vmatprep.mubr.f32.mxu0 0.0
    %5183 = vmatmul.mubr.f32.gmra.mxu0 %v4272
    %v5184 = vpop.f32.mrf.mxu0
    %v5185 = vadd.f32 0.0, %v5184
    %v5186 = vpop.f32.mrf.mxu0
    %5187 = vmatprep.mubr.f32.mxu0 0.0
    %5188 = vmatmul.mubr.f32.gmra.mxu0 %v4275
    %v5189 = vpop.f32.mrf.mxu0
    %v5190 = vadd.f32 0.0, %v5189
    %v5191 = vpop.f32.mrf.mxu0
    %5192 = vmatprep.mubr.f32.mxu0 0.0
    %5193 = vmatmul.mubr.f32.gmra.mxu0 %v4278
    %v5194 = vpop.f32.mrf.mxu0
    %v5195 = vadd.f32 0.0, %v5194
    %v5196 = vpop.f32.mrf.mxu0
    %5197 = vmatprep.mubr.f32.mxu0 0.0
    %5198 = vmatmul.mubr.f32.gmra.mxu0 %v4281
    %v5199 = vpop.f32.mrf.mxu0
    %v5200 = vadd.f32 0.0, %v5199
    %v5201 = vpop.f32.mrf.mxu0
    %5202 = vmatprep.mubr.f32.mxu0 0.0
    %5203 = vmatmul.mubr.f32.gmra.mxu0 %v4284
    %v5204 = vpop.f32.mrf.mxu0
    %v5205 = vadd.f32 0.0, %v5204
    %v5206 = vpop.f32.mrf.mxu0
    %5207 = vmatprep.mubr.f32.mxu0 0.0
    %5208 = vmatmul.mubr.f32.gmra.mxu0 %v4912
    %v5209 = vpop.f32.mrf.mxu0
    %v5210 = vadd.f32 0.0, %v5209
    %v5211 = vpop.f32.mrf.mxu0
    %5212 = vmatprep.mubr.f32.mxu0 0.0
    %5213 = vmatmul.mubr.f32.gmra.mxu0 %v4915
    %v5214 = vpop.f32.mrf.mxu0
    %v5215 = vadd.f32 0.0, %v5214
    %v5216 = vpop.f32.mrf.mxu0
    %5217 = vmatprep.mubr.f32.mxu0 0.0
    %5218 = vmatmul.mubr.f32.gmra.mxu0 %v4918
    %v5219 = vpop.f32.mrf.mxu0
    %v5220 = vadd.f32 0.0, %v5219
    %v5221 = vpop.f32.mrf.mxu0
    %5222 = vmatprep.mubr.f32.mxu0 0.0
    %5223 = vmatmul.mubr.f32.gmra.mxu0 %v4921
    %v5224 = vpop.f32.mrf.mxu0
    %v5225 = vadd.f32 0.0, %v5224
    %v5226 = vpop.f32.mrf.mxu0
    %5227 = vdwg.mxu0
    %v5228 = vadd.f32 %v4670, %v4990
    %v5229 = vadd.f32 %v4675, %v4995
    %v5230 = vadd.f32 %v4680, %v5000
    %v5231 = vadd.f32 %v4685, %v5005
    %v5232 = vadd.f32 %v4690, %v5010
    %v5233 = vadd.f32 %v4695, %v5015
    %v5234 = vadd.f32 %v4700, %v5020
    %v5235 = vadd.f32 %v4705, %v5025
    %v5236 = vadd.f32 %v4710, %v5030
    %v5237 = vadd.f32 %v4715, %v5035
    %v5238 = vadd.f32 %v4720, %v5040
    %v5239 = vadd.f32 %v4725, %v5045
    %v5240 = vadd.f32 %v4730, %v5050
    %v5241 = vadd.f32 %v4735, %v5055
    %v5242 = vadd.f32 %v4740, %v5060
    %v5243 = vadd.f32 %v4745, %v5065
    %v5244 = vadd.f32 %v4750, %v5070
    %v5245 = vadd.f32 %v4755, %v5075
    %v5246 = vadd.f32 %v4760, %v5080
    %v5247 = vadd.f32 %v4765, %v5085
    %v5248 = vadd.f32 %v4770, %v5090
    %v5249 = vadd.f32 %v4775, %v5095
    %v5250 = vadd.f32 %v4780, %v5100
    %v5251 = vadd.f32 %v4785, %v5105
    %v5252 = vadd.f32 %v4790, %v5110
    %v5253 = vadd.f32 %v4795, %v5115
    %v5254 = vadd.f32 %v4800, %v5120
    %v5255 = vadd.f32 %v4805, %v5125
    %v5256 = vadd.f32 %v4810, %v5130
    %v5257 = vadd.f32 %v4815, %v5135
    %v5258 = vadd.f32 %v4820, %v5140
    %v5259 = vadd.f32 %v4825, %v5145
    %v5260 = vadd.f32 %v4830, %v5150
    %v5261 = vadd.f32 %v4835, %v5155
    %v5262 = vadd.f32 %v4840, %v5160
    %v5263 = vadd.f32 %v4845, %v5165
    %v5264 = vadd.f32 %v4850, %v5170
    %v5265 = vadd.f32 %v4855, %v5175
    %v5266 = vadd.f32 %v4860, %v5180
    %v5267 = vadd.f32 %v4865, %v5185
    %v5268 = vadd.f32 %v4870, %v5190
    %v5269 = vadd.f32 %v4875, %v5195
    %v5270 = vadd.f32 %v4880, %v5200
    %v5271 = vadd.f32 %v4885, %v5205
    %v5272 = vadd.f32 %v4890, %v5210
    %v5273 = vadd.f32 %v4895, %v5215
    %v5274 = vadd.f32 %v4900, %v5220
    %v5275 = vadd.f32 %v4905, %v5225
    %s5276 = scalar_lea.vmem %s5, 48
    %v5277 = vld [vmem:[%s5276] sm:$0xff]
    %v5278 = vld [vmem:[%s5276 + $0x8] sm:$0xff]
    %v5280 = vsel %vm1635, %v4129, 0
    %v5283 = vsel %vm1635, %v4130, 0
    %v5286 = vsel %vm1635, %v4131, 0
    %v5289 = vsel %vm1635, %v4132, 0
    %5291 = vmatprep.subr.mxu0 0.0
    %5292 = vmatpush1.msra.mxu0 0.0
    %5293 = vmatprep.subr.mxu0 0.0
    %5294 = vmatpush1.msra.mxu0 0.0
    %5295 = vmatprep.subr.mxu0 0.0
    %5296 = vmatpush1.msra.mxu0 0.0
    %5297 = vmatprep.subr.mxu0 0.0
    %5298 = vmatpush1.msra.mxu0 0.0
    %5299 = vmatprep.subr.mxu0 0.0
    %5300 = vmatpush1.msra.mxu0 0.0
    %5301 = vmatprep.subr.mxu0 0.0
    %5302 = vmatpush1.msra.mxu0 0.0
    %5303 = vmatprep.subr.mxu0 0.0
    %5304 = vmatpush1.msra.mxu0 0.0
    %5305 = vmatprep.subr.mxu0 0.0
    %5306 = vmatpush1.msra.mxu0 0.0
    %5307 = vmatprep.subr.mxu0 0.0
    %5308 = vmatpush1.msra.mxu0 0.0
    %5309 = vmatprep.subr.mxu0 0.0
    %5310 = vmatpush1.msra.mxu0 0.0
    %5311 = vmatprep.subr.mxu0 0.0
    %5312 = vmatpush1.msra.mxu0 0.0
    %5313 = vmatprep.subr.mxu0 0.0
    %5314 = vmatpush1.msra.mxu0 0.0
    %5315 = vmatprep.subr.mxu0 0.0
    %5316 = vmatpush1.msra.mxu0 0.0
    %5317 = vmatprep.subr.mxu0 0.0
    %5318 = vmatpush1.msra.mxu0 0.0
    %5319 = vmatprep.subr.mxu0 0.0
    %5320 = vmatpush1.msra.mxu0 %v5278
    %5321 = vmatprep.subr.mxu0 0.0
    %5322 = vmatpush1.msra.mxu0 %v5277
    %5323 = vmatprep.subr.mxu0 0.0
    %5324 = vmatpush2.msra.mxu0 0.0
    %5325 = vmatprep.subr.mxu0 0.0
    %5326 = vmatpush2.msra.mxu0 0.0
    %5327 = vmatprep.subr.mxu0 0.0
    %5328 = vmatpush2.msra.mxu0 0.0
    %5329 = vmatprep.subr.mxu0 0.0
    %5330 = vmatpush2.msra.mxu0 0.0
    %5331 = vmatprep.subr.mxu0 0.0
    %5332 = vmatpush2.msra.mxu0 0.0
    %5333 = vmatprep.subr.mxu0 0.0
    %5334 = vmatpush2.msra.mxu0 0.0
    %5335 = vmatprep.subr.mxu0 0.0
    %5336 = vmatpush2.msra.mxu0 0.0
    %5337 = vmatprep.subr.mxu0 0.0
    %5338 = vmatpush2.msra.mxu0 0.0
    %5339 = vmatprep.subr.mxu0 0.0
    %5340 = vmatpush2.msra.mxu0 0.0
    %5341 = vmatprep.subr.mxu0 0.0
    %5342 = vmatpush2.msra.mxu0 0.0
    %5343 = vmatprep.subr.mxu0 0.0
    %5344 = vmatpush2.msra.mxu0 0.0
    %5345 = vmatprep.subr.mxu0 0.0
    %5346 = vmatpush2.msra.mxu0 0.0
    %5347 = vmatprep.subr.mxu0 0.0
    %5348 = vmatpush2.msra.mxu0 0.0
    %5349 = vmatprep.subr.mxu0 0.0
    %5350 = vmatpush2.msra.mxu0 0.0
    %5351 = vmatprep.subr.mxu0 0.0
    %5352 = vmatpush2.msra.mxu0 0.0
    %5353 = vmatprep.subr.mxu0 0.0
    %5354 = vmatpush2.msra.mxu0 0.0
    %5355 = vmatprep.mubr.f32.mxu0 0.0
    %5356 = vmatmul.mubr.f32.gmra.mxu0 %v4167
    %v5357 = vpop.f32.mrf.mxu0
    %v5358 = vadd.f32 0.0, %v5357
    %v5359 = vpop.f32.mrf.mxu0
    %5360 = vmatprep.mubr.f32.mxu0 0.0
    %5361 = vmatmul.mubr.f32.gmra.mxu0 %v4170
    %v5362 = vpop.f32.mrf.mxu0
    %v5363 = vadd.f32 0.0, %v5362
    %v5364 = vpop.f32.mrf.mxu0
    %5365 = vmatprep.mubr.f32.mxu0 0.0
    %5366 = vmatmul.mubr.f32.gmra.mxu0 %v4173
    %v5367 = vpop.f32.mrf.mxu0
    %v5368 = vadd.f32 0.0, %v5367
    %v5369 = vpop.f32.mrf.mxu0
    %5370 = vmatprep.mubr.f32.mxu0 0.0
    %5371 = vmatmul.mubr.f32.gmra.mxu0 %v4176
    %v5372 = vpop.f32.mrf.mxu0
    %v5373 = vadd.f32 0.0, %v5372
    %v5374 = vpop.f32.mrf.mxu0
    %5375 = vmatprep.mubr.f32.mxu0 0.0
    %5376 = vmatmul.mubr.f32.gmra.mxu0 %v4179
    %v5377 = vpop.f32.mrf.mxu0
    %v5378 = vadd.f32 0.0, %v5377
    %v5379 = vpop.f32.mrf.mxu0
    %5380 = vmatprep.mubr.f32.mxu0 0.0
    %5381 = vmatmul.mubr.f32.gmra.mxu0 %v4182
    %v5382 = vpop.f32.mrf.mxu0
    %v5383 = vadd.f32 0.0, %v5382
    %v5384 = vpop.f32.mrf.mxu0
    %5385 = vmatprep.mubr.f32.mxu0 0.0
    %5386 = vmatmul.mubr.f32.gmra.mxu0 %v4185
    %v5387 = vpop.f32.mrf.mxu0
    %v5388 = vadd.f32 0.0, %v5387
    %v5389 = vpop.f32.mrf.mxu0
    %5390 = vmatprep.mubr.f32.mxu0 0.0
    %5391 = vmatmul.mubr.f32.gmra.mxu0 %v4188
    %v5392 = vpop.f32.mrf.mxu0
    %v5393 = vadd.f32 0.0, %v5392
    %v5394 = vpop.f32.mrf.mxu0
    %5395 = vmatprep.mubr.f32.mxu0 0.0
    %5396 = vmatmul.mubr.f32.gmra.mxu0 %v4191
    %v5397 = vpop.f32.mrf.mxu0
    %v5398 = vadd.f32 0.0, %v5397
    %v5399 = vpop.f32.mrf.mxu0
    %5400 = vmatprep.mubr.f32.mxu0 0.0
    %5401 = vmatmul.mubr.f32.gmra.mxu0 %v4194
    %v5402 = vpop.f32.mrf.mxu0
    %v5403 = vadd.f32 0.0, %v5402
    %v5404 = vpop.f32.mrf.mxu0
    %5405 = vmatprep.mubr.f32.mxu0 0.0
    %5406 = vmatmul.mubr.f32.gmra.mxu0 %v4197
    %v5407 = vpop.f32.mrf.mxu0
    %v5408 = vadd.f32 0.0, %v5407
    %v5409 = vpop.f32.mrf.mxu0
    %5410 = vmatprep.mubr.f32.mxu0 0.0
    %5411 = vmatmul.mubr.f32.gmra.mxu0 %v4200
    %v5412 = vpop.f32.mrf.mxu0
    %v5413 = vadd.f32 0.0, %v5412
    %v5414 = vpop.f32.mrf.mxu0
    %5415 = vmatprep.mubr.f32.mxu0 0.0
    %5416 = vmatmul.mubr.f32.gmra.mxu0 %v4203
    %v5417 = vpop.f32.mrf.mxu0
    %v5418 = vadd.f32 0.0, %v5417
    %v5419 = vpop.f32.mrf.mxu0
    %5420 = vmatprep.mubr.f32.mxu0 0.0
    %5421 = vmatmul.mubr.f32.gmra.mxu0 %v4206
    %v5422 = vpop.f32.mrf.mxu0
    %v5423 = vadd.f32 0.0, %v5422
    %v5424 = vpop.f32.mrf.mxu0
    %5425 = vmatprep.mubr.f32.mxu0 0.0
    %5426 = vmatmul.mubr.f32.gmra.mxu0 %v4209
    %v5427 = vpop.f32.mrf.mxu0
    %v5428 = vadd.f32 0.0, %v5427
    %v5429 = vpop.f32.mrf.mxu0
    %5430 = vmatprep.mubr.f32.mxu0 0.0
    %5431 = vmatmul.mubr.f32.gmra.mxu0 %v4212
    %v5432 = vpop.f32.mrf.mxu0
    %v5433 = vadd.f32 0.0, %v5432
    %v5434 = vpop.f32.mrf.mxu0
    %5435 = vmatprep.mubr.f32.mxu0 0.0
    %5436 = vmatmul.mubr.f32.gmra.mxu0 %v4215
    %v5437 = vpop.f32.mrf.mxu0
    %v5438 = vadd.f32 0.0, %v5437
    %v5439 = vpop.f32.mrf.mxu0
    %5440 = vmatprep.mubr.f32.mxu0 0.0
    %5441 = vmatmul.mubr.f32.gmra.mxu0 %v4218
    %v5442 = vpop.f32.mrf.mxu0
    %v5443 = vadd.f32 0.0, %v5442
    %v5444 = vpop.f32.mrf.mxu0
    %5445 = vmatprep.mubr.f32.mxu0 0.0
    %5446 = vmatmul.mubr.f32.gmra.mxu0 %v4221
    %v5447 = vpop.f32.mrf.mxu0
    %v5448 = vadd.f32 0.0, %v5447
    %v5449 = vpop.f32.mrf.mxu0
    %5450 = vmatprep.mubr.f32.mxu0 0.0
    %5451 = vmatmul.mubr.f32.gmra.mxu0 %v4224
    %v5452 = vpop.f32.mrf.mxu0
    %v5453 = vadd.f32 0.0, %v5452
    %v5454 = vpop.f32.mrf.mxu0
    %5455 = vmatprep.mubr.f32.mxu0 0.0
    %5456 = vmatmul.mubr.f32.gmra.mxu0 %v4227
    %v5457 = vpop.f32.mrf.mxu0
    %v5458 = vadd.f32 0.0, %v5457
    %v5459 = vpop.f32.mrf.mxu0
    %5460 = vmatprep.mubr.f32.mxu0 0.0
    %5461 = vmatmul.mubr.f32.gmra.mxu0 %v4230
    %v5462 = vpop.f32.mrf.mxu0
    %v5463 = vadd.f32 0.0, %v5462
    %v5464 = vpop.f32.mrf.mxu0
    %5465 = vmatprep.mubr.f32.mxu0 0.0
    %5466 = vmatmul.mubr.f32.gmra.mxu0 %v4233
    %v5467 = vpop.f32.mrf.mxu0
    %v5468 = vadd.f32 0.0, %v5467
    %v5469 = vpop.f32.mrf.mxu0
    %5470 = vmatprep.mubr.f32.mxu0 0.0
    %5471 = vmatmul.mubr.f32.gmra.mxu0 %v4236
    %v5472 = vpop.f32.mrf.mxu0
    %v5473 = vadd.f32 0.0, %v5472
    %v5474 = vpop.f32.mrf.mxu0
    %5475 = vmatprep.mubr.f32.mxu0 0.0
    %5476 = vmatmul.mubr.f32.gmra.mxu0 %v4239
    %v5477 = vpop.f32.mrf.mxu0
    %v5478 = vadd.f32 0.0, %v5477
    %v5479 = vpop.f32.mrf.mxu0
    %5480 = vmatprep.mubr.f32.mxu0 0.0
    %5481 = vmatmul.mubr.f32.gmra.mxu0 %v4242
    %v5482 = vpop.f32.mrf.mxu0
    %v5483 = vadd.f32 0.0, %v5482
    %v5484 = vpop.f32.mrf.mxu0
    %5485 = vmatprep.mubr.f32.mxu0 0.0
    %5486 = vmatmul.mubr.f32.gmra.mxu0 %v4245
    %v5487 = vpop.f32.mrf.mxu0
    %v5488 = vadd.f32 0.0, %v5487
    %v5489 = vpop.f32.mrf.mxu0
    %5490 = vmatprep.mubr.f32.mxu0 0.0
    %5491 = vmatmul.mubr.f32.gmra.mxu0 %v4248
    %v5492 = vpop.f32.mrf.mxu0
    %v5493 = vadd.f32 0.0, %v5492
    %v5494 = vpop.f32.mrf.mxu0
    %5495 = vmatprep.mubr.f32.mxu0 0.0
    %5496 = vmatmul.mubr.f32.gmra.mxu0 %v4251
    %v5497 = vpop.f32.mrf.mxu0
    %v5498 = vadd.f32 0.0, %v5497
    %v5499 = vpop.f32.mrf.mxu0
    %5500 = vmatprep.mubr.f32.mxu0 0.0
    %5501 = vmatmul.mubr.f32.gmra.mxu0 %v4254
    %v5502 = vpop.f32.mrf.mxu0
    %v5503 = vadd.f32 0.0, %v5502
    %v5504 = vpop.f32.mrf.mxu0
    %5505 = vmatprep.mubr.f32.mxu0 0.0
    %5506 = vmatmul.mubr.f32.gmra.mxu0 %v4257
    %v5507 = vpop.f32.mrf.mxu0
    %v5508 = vadd.f32 0.0, %v5507
    %v5509 = vpop.f32.mrf.mxu0
    %5510 = vmatprep.mubr.f32.mxu0 0.0
    %5511 = vmatmul.mubr.f32.gmra.mxu0 %v4260
    %v5512 = vpop.f32.mrf.mxu0
    %v5513 = vadd.f32 0.0, %v5512
    %v5514 = vpop.f32.mrf.mxu0
    %5515 = vmatprep.mubr.f32.mxu0 0.0
    %5516 = vmatmul.mubr.f32.gmra.mxu0 %v4263
    %v5517 = vpop.f32.mrf.mxu0
    %v5518 = vadd.f32 0.0, %v5517
    %v5519 = vpop.f32.mrf.mxu0
    %5520 = vmatprep.mubr.f32.mxu0 0.0
    %5521 = vmatmul.mubr.f32.gmra.mxu0 %v4266
    %v5522 = vpop.f32.mrf.mxu0
    %v5523 = vadd.f32 0.0, %v5522
    %v5524 = vpop.f32.mrf.mxu0
    %5525 = vmatprep.mubr.f32.mxu0 0.0
    %5526 = vmatmul.mubr.f32.gmra.mxu0 %v4269
    %v5527 = vpop.f32.mrf.mxu0
    %v5528 = vadd.f32 0.0, %v5527
    %v5529 = vpop.f32.mrf.mxu0
    %5530 = vmatprep.mubr.f32.mxu0 0.0
    %5531 = vmatmul.mubr.f32.gmra.mxu0 %v4272
    %v5532 = vpop.f32.mrf.mxu0
    %v5533 = vadd.f32 0.0, %v5532
    %v5534 = vpop.f32.mrf.mxu0
    %5535 = vmatprep.mubr.f32.mxu0 0.0
    %5536 = vmatmul.mubr.f32.gmra.mxu0 %v4275
    %v5537 = vpop.f32.mrf.mxu0
    %v5538 = vadd.f32 0.0, %v5537
    %v5539 = vpop.f32.mrf.mxu0
    %5540 = vmatprep.mubr.f32.mxu0 0.0
    %5541 = vmatmul.mubr.f32.gmra.mxu0 %v4278
    %v5542 = vpop.f32.mrf.mxu0
    %v5543 = vadd.f32 0.0, %v5542
    %v5544 = vpop.f32.mrf.mxu0
    %5545 = vmatprep.mubr.f32.mxu0 0.0
    %5546 = vmatmul.mubr.f32.gmra.mxu0 %v4281
    %v5547 = vpop.f32.mrf.mxu0
    %v5548 = vadd.f32 0.0, %v5547
    %v5549 = vpop.f32.mrf.mxu0
    %5550 = vmatprep.mubr.f32.mxu0 0.0
    %5551 = vmatmul.mubr.f32.gmra.mxu0 %v4284
    %v5552 = vpop.f32.mrf.mxu0
    %v5553 = vadd.f32 0.0, %v5552
    %v5554 = vpop.f32.mrf.mxu0
    %5555 = vmatprep.mubr.f32.mxu0 0.0
    %5556 = vmatmul.mubr.f32.gmra.mxu0 %v4912
    %v5557 = vpop.f32.mrf.mxu0
    %v5558 = vadd.f32 0.0, %v5557
    %v5559 = vpop.f32.mrf.mxu0
    %5560 = vmatprep.mubr.f32.mxu0 0.0
    %5561 = vmatmul.mubr.f32.gmra.mxu0 %v4915
    %v5562 = vpop.f32.mrf.mxu0
    %v5563 = vadd.f32 0.0, %v5562
    %v5564 = vpop.f32.mrf.mxu0
    %5565 = vmatprep.mubr.f32.mxu0 0.0
    %5566 = vmatmul.mubr.f32.gmra.mxu0 %v4918
    %v5567 = vpop.f32.mrf.mxu0
    %v5568 = vadd.f32 0.0, %v5567
    %v5569 = vpop.f32.mrf.mxu0
    %5570 = vmatprep.mubr.f32.mxu0 0.0
    %5571 = vmatmul.mubr.f32.gmra.mxu0 %v4921
    %v5572 = vpop.f32.mrf.mxu0
    %v5573 = vadd.f32 0.0, %v5572
    %v5574 = vpop.f32.mrf.mxu0
    %5575 = vmatprep.mubr.f32.mxu0 0.0
    %5576 = vmatmul.mubr.f32.gmra.mxu0 %v5280
    %v5577 = vpop.f32.mrf.mxu0
    %v5578 = vadd.f32 0.0, %v5577
    %v5579 = vpop.f32.mrf.mxu0
    %5580 = vmatprep.mubr.f32.mxu0 0.0
    %5581 = vmatmul.mubr.f32.gmra.mxu0 %v5283
    %v5582 = vpop.f32.mrf.mxu0
    %v5583 = vadd.f32 0.0, %v5582
    %v5584 = vpop.f32.mrf.mxu0
    %5585 = vmatprep.mubr.f32.mxu0 0.0
    %5586 = vmatmul.mubr.f32.gmra.mxu0 %v5286
    %v5587 = vpop.f32.mrf.mxu0
    %v5588 = vadd.f32 0.0, %v5587
    %v5589 = vpop.f32.mrf.mxu0
    %5590 = vmatprep.mubr.f32.mxu0 0.0
    %5591 = vmatmul.mubr.f32.gmra.mxu0 %v5289
    %v5592 = vpop.f32.mrf.mxu0
    %v5593 = vadd.f32 0.0, %v5592
    %v5594 = vpop.f32.mrf.mxu0
    %5595 = vdwg.mxu0
    %v5596 = vadd.f32 %v5228, %v5358
    %v5597 = vadd.f32 %v5229, %v5363
    %v5598 = vadd.f32 %v5230, %v5368
    %v5599 = vadd.f32 %v5231, %v5373
    %v5600 = vadd.f32 %v5232, %v5378
    %v5601 = vadd.f32 %v5233, %v5383
    %v5602 = vadd.f32 %v5234, %v5388
    %v5603 = vadd.f32 %v5235, %v5393
    %v5604 = vadd.f32 %v5236, %v5398
    %v5605 = vadd.f32 %v5237, %v5403
    %v5606 = vadd.f32 %v5238, %v5408
    %v5607 = vadd.f32 %v5239, %v5413
    %v5608 = vadd.f32 %v5240, %v5418
    %v5609 = vadd.f32 %v5241, %v5423
    %v5610 = vadd.f32 %v5242, %v5428
    %v5611 = vadd.f32 %v5243, %v5433
    %v5612 = vadd.f32 %v5244, %v5438
    %v5613 = vadd.f32 %v5245, %v5443
    %v5614 = vadd.f32 %v5246, %v5448
    %v5615 = vadd.f32 %v5247, %v5453
    %v5616 = vadd.f32 %v5248, %v5458
    %v5617 = vadd.f32 %v5249, %v5463
    %v5618 = vadd.f32 %v5250, %v5468
    %v5619 = vadd.f32 %v5251, %v5473
    %v5620 = vadd.f32 %v5252, %v5478
    %v5621 = vadd.f32 %v5253, %v5483
    %v5622 = vadd.f32 %v5254, %v5488
    %v5623 = vadd.f32 %v5255, %v5493
    %v5624 = vadd.f32 %v5256, %v5498
    %v5625 = vadd.f32 %v5257, %v5503
    %v5626 = vadd.f32 %v5258, %v5508
    %v5627 = vadd.f32 %v5259, %v5513
    %v5628 = vadd.f32 %v5260, %v5518
    %v5629 = vadd.f32 %v5261, %v5523
    %v5630 = vadd.f32 %v5262, %v5528
    %v5631 = vadd.f32 %v5263, %v5533
    %v5632 = vadd.f32 %v5264, %v5538
    %v5633 = vadd.f32 %v5265, %v5543
    %v5634 = vadd.f32 %v5266, %v5548
    %v5635 = vadd.f32 %v5267, %v5553
    %v5636 = vadd.f32 %v5268, %v5558
    %v5637 = vadd.f32 %v5269, %v5563
    %v5638 = vadd.f32 %v5270, %v5568
    %v5639 = vadd.f32 %v5271, %v5573
    %v5640 = vadd.f32 %v5272, %v5578
    %v5641 = vadd.f32 %v5273, %v5583
    %v5642 = vadd.f32 %v5274, %v5588
    %v5643 = vadd.f32 %v5275, %v5593
    %s5644 = scalar_lea.vmem %s5, 64
    %v5645 = vld [vmem:[%s5644] sm:$0xff]
    %v5646 = vld [vmem:[%s5644 + $0x8] sm:$0xff]
    %v5648 = vsel %vm1635, %v4133, 0
    %v5651 = vsel %vm1635, %v4134, 0
    %v5654 = vsel %vm1635, %v4135, 0
    %v5657 = vsel %vm1635, %v4136, 0
    %5659 = vmatprep.subr.mxu0 0.0
    %5660 = vmatpush1.msra.mxu0 0.0
    %5661 = vmatprep.subr.mxu0 0.0
    %5662 = vmatpush1.msra.mxu0 0.0
    %5663 = vmatprep.subr.mxu0 0.0
    %5664 = vmatpush1.msra.mxu0 0.0
    %5665 = vmatprep.subr.mxu0 0.0
    %5666 = vmatpush1.msra.mxu0 0.0
    %5667 = vmatprep.subr.mxu0 0.0
    %5668 = vmatpush1.msra.mxu0 0.0
    %5669 = vmatprep.subr.mxu0 0.0
    %5670 = vmatpush1.msra.mxu0 0.0
    %5671 = vmatprep.subr.mxu0 0.0
    %5672 = vmatpush1.msra.mxu0 0.0
    %5673 = vmatprep.subr.mxu0 0.0
    %5674 = vmatpush1.msra.mxu0 0.0
    %5675 = vmatprep.subr.mxu0 0.0
    %5676 = vmatpush1.msra.mxu0 0.0
    %5677 = vmatprep.subr.mxu0 0.0
    %5678 = vmatpush1.msra.mxu0 0.0
    %5679 = vmatprep.subr.mxu0 0.0
    %5680 = vmatpush1.msra.mxu0 0.0
    %5681 = vmatprep.subr.mxu0 0.0
    %5682 = vmatpush1.msra.mxu0 0.0
    %5683 = vmatprep.subr.mxu0 0.0
    %5684 = vmatpush1.msra.mxu0 0.0
    %5685 = vmatprep.subr.mxu0 0.0
    %5686 = vmatpush1.msra.mxu0 0.0
    %5687 = vmatprep.subr.mxu0 0.0
    %5688 = vmatpush1.msra.mxu0 %v5646
    %5689 = vmatprep.subr.mxu0 0.0
    %5690 = vmatpush1.msra.mxu0 %v5645
    %5691 = vmatprep.subr.mxu0 0.0
    %5692 = vmatpush2.msra.mxu0 0.0
    %5693 = vmatprep.subr.mxu0 0.0
    %5694 = vmatpush2.msra.mxu0 0.0
    %5695 = vmatprep.subr.mxu0 0.0
    %5696 = vmatpush2.msra.mxu0 0.0
    %5697 = vmatprep.subr.mxu0 0.0
    %5698 = vmatpush2.msra.mxu0 0.0
    %5699 = vmatprep.subr.mxu0 0.0
    %5700 = vmatpush2.msra.mxu0 0.0
    %5701 = vmatprep.subr.mxu0 0.0
    %5702 = vmatpush2.msra.mxu0 0.0
    %5703 = vmatprep.subr.mxu0 0.0
    %5704 = vmatpush2.msra.mxu0 0.0
    %5705 = vmatprep.subr.mxu0 0.0
    %5706 = vmatpush2.msra.mxu0 0.0
    %5707 = vmatprep.subr.mxu0 0.0
    %5708 = vmatpush2.msra.mxu0 0.0
    %5709 = vmatprep.subr.mxu0 0.0
    %5710 = vmatpush2.msra.mxu0 0.0
    %5711 = vmatprep.subr.mxu0 0.0
    %5712 = vmatpush2.msra.mxu0 0.0
    %5713 = vmatprep.subr.mxu0 0.0
    %5714 = vmatpush2.msra.mxu0 0.0
    %5715 = vmatprep.subr.mxu0 0.0
    %5716 = vmatpush2.msra.mxu0 0.0
    %5717 = vmatprep.subr.mxu0 0.0
    %5718 = vmatpush2.msra.mxu0 0.0
    %5719 = vmatprep.subr.mxu0 0.0
    %5720 = vmatpush2.msra.mxu0 0.0
    %5721 = vmatprep.subr.mxu0 0.0
    %5722 = vmatpush2.msra.mxu0 0.0
    %5723 = vmatprep.mubr.f32.mxu0 0.0
    %5724 = vmatmul.mubr.f32.gmra.mxu0 %v4179
    %v5725 = vpop.f32.mrf.mxu0
    %v5726 = vadd.f32 0.0, %v5725
    %v5727 = vpop.f32.mrf.mxu0
    %5728 = vmatprep.mubr.f32.mxu0 0.0
    %5729 = vmatmul.mubr.f32.gmra.mxu0 %v4182
    %v5730 = vpop.f32.mrf.mxu0
    %v5731 = vadd.f32 0.0, %v5730
    %v5732 = vpop.f32.mrf.mxu0
    %5733 = vmatprep.mubr.f32.mxu0 0.0
    %5734 = vmatmul.mubr.f32.gmra.mxu0 %v4185
    %v5735 = vpop.f32.mrf.mxu0
    %v5736 = vadd.f32 0.0, %v5735
    %v5737 = vpop.f32.mrf.mxu0
    %5738 = vmatprep.mubr.f32.mxu0 0.0
    %5739 = vmatmul.mubr.f32.gmra.mxu0 %v4188
    %v5740 = vpop.f32.mrf.mxu0
    %v5741 = vadd.f32 0.0, %v5740
    %v5742 = vpop.f32.mrf.mxu0
    %5743 = vmatprep.mubr.f32.mxu0 0.0
    %5744 = vmatmul.mubr.f32.gmra.mxu0 %v4191
    %v5745 = vpop.f32.mrf.mxu0
    %v5746 = vadd.f32 0.0, %v5745
    %v5747 = vpop.f32.mrf.mxu0
    %5748 = vmatprep.mubr.f32.mxu0 0.0
    %5749 = vmatmul.mubr.f32.gmra.mxu0 %v4194
    %v5750 = vpop.f32.mrf.mxu0
    %v5751 = vadd.f32 0.0, %v5750
    %v5752 = vpop.f32.mrf.mxu0
    %5753 = vmatprep.mubr.f32.mxu0 0.0
    %5754 = vmatmul.mubr.f32.gmra.mxu0 %v4197
    %v5755 = vpop.f32.mrf.mxu0
    %v5756 = vadd.f32 0.0, %v5755
    %v5757 = vpop.f32.mrf.mxu0
    %5758 = vmatprep.mubr.f32.mxu0 0.0
    %5759 = vmatmul.mubr.f32.gmra.mxu0 %v4200
    %v5760 = vpop.f32.mrf.mxu0
    %v5761 = vadd.f32 0.0, %v5760
    %v5762 = vpop.f32.mrf.mxu0
    %5763 = vmatprep.mubr.f32.mxu0 0.0
    %5764 = vmatmul.mubr.f32.gmra.mxu0 %v4203
    %v5765 = vpop.f32.mrf.mxu0
    %v5766 = vadd.f32 0.0, %v5765
    %v5767 = vpop.f32.mrf.mxu0
    %5768 = vmatprep.mubr.f32.mxu0 0.0
    %5769 = vmatmul.mubr.f32.gmra.mxu0 %v4206
    %v5770 = vpop.f32.mrf.mxu0
    %v5771 = vadd.f32 0.0, %v5770
    %v5772 = vpop.f32.mrf.mxu0
    %5773 = vmatprep.mubr.f32.mxu0 0.0
    %5774 = vmatmul.mubr.f32.gmra.mxu0 %v4209
    %v5775 = vpop.f32.mrf.mxu0
    %v5776 = vadd.f32 0.0, %v5775
    %v5777 = vpop.f32.mrf.mxu0
    %5778 = vmatprep.mubr.f32.mxu0 0.0
    %5779 = vmatmul.mubr.f32.gmra.mxu0 %v4212
    %v5780 = vpop.f32.mrf.mxu0
    %v5781 = vadd.f32 0.0, %v5780
    %v5782 = vpop.f32.mrf.mxu0
    %5783 = vmatprep.mubr.f32.mxu0 0.0
    %5784 = vmatmul.mubr.f32.gmra.mxu0 %v4215
    %v5785 = vpop.f32.mrf.mxu0
    %v5786 = vadd.f32 0.0, %v5785
    %v5787 = vpop.f32.mrf.mxu0
    %5788 = vmatprep.mubr.f32.mxu0 0.0
    %5789 = vmatmul.mubr.f32.gmra.mxu0 %v4218
    %v5790 = vpop.f32.mrf.mxu0
    %v5791 = vadd.f32 0.0, %v5790
    %v5792 = vpop.f32.mrf.mxu0
    %5793 = vmatprep.mubr.f32.mxu0 0.0
    %5794 = vmatmul.mubr.f32.gmra.mxu0 %v4221
    %v5795 = vpop.f32.mrf.mxu0
    %v5796 = vadd.f32 0.0, %v5795
    %v5797 = vpop.f32.mrf.mxu0
    %5798 = vmatprep.mubr.f32.mxu0 0.0
    %5799 = vmatmul.mubr.f32.gmra.mxu0 %v4224
    %v5800 = vpop.f32.mrf.mxu0
    %v5801 = vadd.f32 0.0, %v5800
    %v5802 = vpop.f32.mrf.mxu0
    %5803 = vmatprep.mubr.f32.mxu0 0.0
    %5804 = vmatmul.mubr.f32.gmra.mxu0 %v4227
    %v5805 = vpop.f32.mrf.mxu0
    %v5806 = vadd.f32 0.0, %v5805
    %v5807 = vpop.f32.mrf.mxu0
    %5808 = vmatprep.mubr.f32.mxu0 0.0
    %5809 = vmatmul.mubr.f32.gmra.mxu0 %v4230
    %v5810 = vpop.f32.mrf.mxu0
    %v5811 = vadd.f32 0.0, %v5810
    %v5812 = vpop.f32.mrf.mxu0
    %5813 = vmatprep.mubr.f32.mxu0 0.0
    %5814 = vmatmul.mubr.f32.gmra.mxu0 %v4233
    %v5815 = vpop.f32.mrf.mxu0
    %v5816 = vadd.f32 0.0, %v5815
    %v5817 = vpop.f32.mrf.mxu0
    %5818 = vmatprep.mubr.f32.mxu0 0.0
    %5819 = vmatmul.mubr.f32.gmra.mxu0 %v4236
    %v5820 = vpop.f32.mrf.mxu0
    %v5821 = vadd.f32 0.0, %v5820
    %v5822 = vpop.f32.mrf.mxu0
    %5823 = vmatprep.mubr.f32.mxu0 0.0
    %5824 = vmatmul.mubr.f32.gmra.mxu0 %v4239
    %v5825 = vpop.f32.mrf.mxu0
    %v5826 = vadd.f32 0.0, %v5825
    %v5827 = vpop.f32.mrf.mxu0
    %5828 = vmatprep.mubr.f32.mxu0 0.0
    %5829 = vmatmul.mubr.f32.gmra.mxu0 %v4242
    %v5830 = vpop.f32.mrf.mxu0
    %v5831 = vadd.f32 0.0, %v5830
    %v5832 = vpop.f32.mrf.mxu0
    %5833 = vmatprep.mubr.f32.mxu0 0.0
    %5834 = vmatmul.mubr.f32.gmra.mxu0 %v4245
    %v5835 = vpop.f32.mrf.mxu0
    %v5836 = vadd.f32 0.0, %v5835
    %v5837 = vpop.f32.mrf.mxu0
    %5838 = vmatprep.mubr.f32.mxu0 0.0
    %5839 = vmatmul.mubr.f32.gmra.mxu0 %v4248
    %v5840 = vpop.f32.mrf.mxu0
    %v5841 = vadd.f32 0.0, %v5840
    %v5842 = vpop.f32.mrf.mxu0
    %5843 = vmatprep.mubr.f32.mxu0 0.0
    %5844 = vmatmul.mubr.f32.gmra.mxu0 %v4251
    %v5845 = vpop.f32.mrf.mxu0
    %v5846 = vadd.f32 0.0, %v5845
    %v5847 = vpop.f32.mrf.mxu0
    %5848 = vmatprep.mubr.f32.mxu0 0.0
    %5849 = vmatmul.mubr.f32.gmra.mxu0 %v4254
    %v5850 = vpop.f32.mrf.mxu0
    %v5851 = vadd.f32 0.0, %v5850
    %v5852 = vpop.f32.mrf.mxu0
    %5853 = vmatprep.mubr.f32.mxu0 0.0
    %5854 = vmatmul.mubr.f32.gmra.mxu0 %v4257
    %v5855 = vpop.f32.mrf.mxu0
    %v5856 = vadd.f32 0.0, %v5855
    %v5857 = vpop.f32.mrf.mxu0
    %5858 = vmatprep.mubr.f32.mxu0 0.0
    %5859 = vmatmul.mubr.f32.gmra.mxu0 %v4260
    %v5860 = vpop.f32.mrf.mxu0
    %v5861 = vadd.f32 0.0, %v5860
    %v5862 = vpop.f32.mrf.mxu0
    %5863 = vmatprep.mubr.f32.mxu0 0.0
    %5864 = vmatmul.mubr.f32.gmra.mxu0 %v4263
    %v5865 = vpop.f32.mrf.mxu0
    %v5866 = vadd.f32 0.0, %v5865
    %v5867 = vpop.f32.mrf.mxu0
    %5868 = vmatprep.mubr.f32.mxu0 0.0
    %5869 = vmatmul.mubr.f32.gmra.mxu0 %v4266
    %v5870 = vpop.f32.mrf.mxu0
    %v5871 = vadd.f32 0.0, %v5870
    %v5872 = vpop.f32.mrf.mxu0
    %5873 = vmatprep.mubr.f32.mxu0 0.0
    %5874 = vmatmul.mubr.f32.gmra.mxu0 %v4269
    %v5875 = vpop.f32.mrf.mxu0
    %v5876 = vadd.f32 0.0, %v5875
    %v5877 = vpop.f32.mrf.mxu0
    %5878 = vmatprep.mubr.f32.mxu0 0.0
    %5879 = vmatmul.mubr.f32.gmra.mxu0 %v4272
    %v5880 = vpop.f32.mrf.mxu0
    %v5881 = vadd.f32 0.0, %v5880
    %v5882 = vpop.f32.mrf.mxu0
    %5883 = vmatprep.mubr.f32.mxu0 0.0
    %5884 = vmatmul.mubr.f32.gmra.mxu0 %v4275
    %v5885 = vpop.f32.mrf.mxu0
    %v5886 = vadd.f32 0.0, %v5885
    %v5887 = vpop.f32.mrf.mxu0
    %5888 = vmatprep.mubr.f32.mxu0 0.0
    %5889 = vmatmul.mubr.f32.gmra.mxu0 %v4278
    %v5890 = vpop.f32.mrf.mxu0
    %v5891 = vadd.f32 0.0, %v5890
    %v5892 = vpop.f32.mrf.mxu0
    %5893 = vmatprep.mubr.f32.mxu0 0.0
    %5894 = vmatmul.mubr.f32.gmra.mxu0 %v4281
    %v5895 = vpop.f32.mrf.mxu0
    %v5896 = vadd.f32 0.0, %v5895
    %v5897 = vpop.f32.mrf.mxu0
    %5898 = vmatprep.mubr.f32.mxu0 0.0
    %5899 = vmatmul.mubr.f32.gmra.mxu0 %v4284
    %v5900 = vpop.f32.mrf.mxu0
    %v5901 = vadd.f32 0.0, %v5900
    %v5902 = vpop.f32.mrf.mxu0
    %5903 = vmatprep.mubr.f32.mxu0 0.0
    %5904 = vmatmul.mubr.f32.gmra.mxu0 %v4912
    %v5905 = vpop.f32.mrf.mxu0
    %v5906 = vadd.f32 0.0, %v5905
    %v5907 = vpop.f32.mrf.mxu0
    %5908 = vmatprep.mubr.f32.mxu0 0.0
    %5909 = vmatmul.mubr.f32.gmra.mxu0 %v4915
    %v5910 = vpop.f32.mrf.mxu0
    %v5911 = vadd.f32 0.0, %v5910
    %v5912 = vpop.f32.mrf.mxu0
    %5913 = vmatprep.mubr.f32.mxu0 0.0
    %5914 = vmatmul.mubr.f32.gmra.mxu0 %v4918
    %v5915 = vpop.f32.mrf.mxu0
    %v5916 = vadd.f32 0.0, %v5915
    %v5917 = vpop.f32.mrf.mxu0
    %5918 = vmatprep.mubr.f32.mxu0 0.0
    %5919 = vmatmul.mubr.f32.gmra.mxu0 %v4921
    %v5920 = vpop.f32.mrf.mxu0
    %v5921 = vadd.f32 0.0, %v5920
    %v5922 = vpop.f32.mrf.mxu0
    %5923 = vmatprep.mubr.f32.mxu0 0.0
    %5924 = vmatmul.mubr.f32.gmra.mxu0 %v5280
    %v5925 = vpop.f32.mrf.mxu0
    %v5926 = vadd.f32 0.0, %v5925
    %v5927 = vpop.f32.mrf.mxu0
    %5928 = vmatprep.mubr.f32.mxu0 0.0
    %5929 = vmatmul.mubr.f32.gmra.mxu0 %v5283
    %v5930 = vpop.f32.mrf.mxu0
    %v5931 = vadd.f32 0.0, %v5930
    %v5932 = vpop.f32.mrf.mxu0
    %5933 = vmatprep.mubr.f32.mxu0 0.0
    %5934 = vmatmul.mubr.f32.gmra.mxu0 %v5286
    %v5935 = vpop.f32.mrf.mxu0
    %v5936 = vadd.f32 0.0, %v5935
    %v5937 = vpop.f32.mrf.mxu0
    %5938 = vmatprep.mubr.f32.mxu0 0.0
    %5939 = vmatmul.mubr.f32.gmra.mxu0 %v5289
    %v5940 = vpop.f32.mrf.mxu0
    %v5941 = vadd.f32 0.0, %v5940
    %v5942 = vpop.f32.mrf.mxu0
    %5943 = vmatprep.mubr.f32.mxu0 0.0
    %5944 = vmatmul.mubr.f32.gmra.mxu0 %v5648
    %v5945 = vpop.f32.mrf.mxu0
    %v5946 = vadd.f32 0.0, %v5945
    %v5947 = vpop.f32.mrf.mxu0
    %5948 = vmatprep.mubr.f32.mxu0 0.0
    %5949 = vmatmul.mubr.f32.gmra.mxu0 %v5651
    %v5950 = vpop.f32.mrf.mxu0
    %v5951 = vadd.f32 0.0, %v5950
    %v5952 = vpop.f32.mrf.mxu0
    %5953 = vmatprep.mubr.f32.mxu0 0.0
    %5954 = vmatmul.mubr.f32.gmra.mxu0 %v5654
    %v5955 = vpop.f32.mrf.mxu0
    %v5956 = vadd.f32 0.0, %v5955
    %v5957 = vpop.f32.mrf.mxu0
    %5958 = vmatprep.mubr.f32.mxu0 0.0
    %5959 = vmatmul.mubr.f32.gmra.mxu0 %v5657
    %v5960 = vpop.f32.mrf.mxu0
    %v5961 = vadd.f32 0.0, %v5960
    %v5962 = vpop.f32.mrf.mxu0
    %5963 = vdwg.mxu0
    %v5964 = vadd.f32 %v5596, %v5726
    %v5965 = vadd.f32 %v5597, %v5731
    %v5966 = vadd.f32 %v5598, %v5736
    %v5967 = vadd.f32 %v5599, %v5741
    %v5968 = vadd.f32 %v5600, %v5746
    %v5969 = vadd.f32 %v5601, %v5751
    %v5970 = vadd.f32 %v5602, %v5756
    %v5971 = vadd.f32 %v5603, %v5761
    %v5972 = vadd.f32 %v5604, %v5766
    %v5973 = vadd.f32 %v5605, %v5771
    %v5974 = vadd.f32 %v5606, %v5776
    %v5975 = vadd.f32 %v5607, %v5781
    %v5976 = vadd.f32 %v5608, %v5786
    %v5977 = vadd.f32 %v5609, %v5791
    %v5978 = vadd.f32 %v5610, %v5796
    %v5979 = vadd.f32 %v5611, %v5801
    %v5980 = vadd.f32 %v5612, %v5806
    %v5981 = vadd.f32 %v5613, %v5811
    %v5982 = vadd.f32 %v5614, %v5816
    %v5983 = vadd.f32 %v5615, %v5821
    %v5984 = vadd.f32 %v5616, %v5826
    %v5985 = vadd.f32 %v5617, %v5831
    %v5986 = vadd.f32 %v5618, %v5836
    %v5987 = vadd.f32 %v5619, %v5841
    %v5988 = vadd.f32 %v5620, %v5846
    %v5989 = vadd.f32 %v5621, %v5851
    %v5990 = vadd.f32 %v5622, %v5856
    %v5991 = vadd.f32 %v5623, %v5861
    %v5992 = vadd.f32 %v5624, %v5866
    %v5993 = vadd.f32 %v5625, %v5871
    %v5994 = vadd.f32 %v5626, %v5876
    %v5995 = vadd.f32 %v5627, %v5881
    %v5996 = vadd.f32 %v5628, %v5886
    %v5997 = vadd.f32 %v5629, %v5891
    %v5998 = vadd.f32 %v5630, %v5896
    %v5999 = vadd.f32 %v5631, %v5901
    %v6000 = vadd.f32 %v5632, %v5906
    %v6001 = vadd.f32 %v5633, %v5911
    %v6002 = vadd.f32 %v5634, %v5916
    %v6003 = vadd.f32 %v5635, %v5921
    %v6004 = vadd.f32 %v5636, %v5926
    %v6005 = vadd.f32 %v5637, %v5931
    %v6006 = vadd.f32 %v5638, %v5936
    %v6007 = vadd.f32 %v5639, %v5941
    %v6008 = vadd.f32 %v5640, %v5946
    %v6009 = vadd.f32 %v5641, %v5951
    %v6010 = vadd.f32 %v5642, %v5956
    %v6011 = vadd.f32 %v5643, %v5961
    %v6012 = vld [vmem:[%s6] sm:$0x1]
    %v6014 = vlaneseq
    %v6015 = vshrl.u32 %v6014, 7
    %v6016 = vsub.s32 0, %v6015
    %v6017 = vrot.slane %v6012, %v6016
    %v6019 = vadd.f32 %v5964, %v6017
    %v6020 = vadd.f32 %v5965, %v6017
    %v6021 = vadd.f32 %v5966, %v6017
    %v6022 = vadd.f32 %v5967, %v6017
    %v6023 = vadd.f32 %v5968, %v6017
    %v6024 = vadd.f32 %v5969, %v6017
    %v6025 = vadd.f32 %v5970, %v6017
    %v6026 = vadd.f32 %v5971, %v6017
    %v6027 = vadd.f32 %v5972, %v6017
    %v6028 = vadd.f32 %v5973, %v6017
    %v6029 = vadd.f32 %v5974, %v6017
    %v6030 = vadd.f32 %v5975, %v6017
    %v6031 = vadd.f32 %v5976, %v6017
    %v6032 = vadd.f32 %v5977, %v6017
    %v6033 = vadd.f32 %v5978, %v6017
    %v6034 = vadd.f32 %v5979, %v6017
    %v6035 = vadd.f32 %v5980, %v6017
    %v6036 = vadd.f32 %v5981, %v6017
    %v6037 = vadd.f32 %v5982, %v6017
    %v6038 = vadd.f32 %v5983, %v6017
    %v6039 = vadd.f32 %v5984, %v6017
    %v6040 = vadd.f32 %v5985, %v6017
    %v6041 = vadd.f32 %v5986, %v6017
    %v6042 = vadd.f32 %v5987, %v6017
    %v6043 = vadd.f32 %v5988, %v6017
    %v6044 = vadd.f32 %v5989, %v6017
    %v6045 = vadd.f32 %v5990, %v6017
    %v6046 = vadd.f32 %v5991, %v6017
    %v6047 = vadd.f32 %v5992, %v6017
    %v6048 = vadd.f32 %v5993, %v6017
    %v6049 = vadd.f32 %v5994, %v6017
    %v6050 = vadd.f32 %v5995, %v6017
    %v6051 = vadd.f32 %v5996, %v6017
    %v6052 = vadd.f32 %v5997, %v6017
    %v6053 = vadd.f32 %v5998, %v6017
    %v6054 = vadd.f32 %v5999, %v6017
    %v6055 = vadd.f32 %v6000, %v6017
    %v6056 = vadd.f32 %v6001, %v6017
    %v6057 = vadd.f32 %v6002, %v6017
    %v6058 = vadd.f32 %v6003, %v6017
    %v6059 = vadd.f32 %v6004, %v6017
    %v6060 = vadd.f32 %v6005, %v6017
    %v6061 = vadd.f32 %v6006, %v6017
    %v6062 = vadd.f32 %v6007, %v6017
    %v6063 = vadd.f32 %v6008, %v6017
    %v6064 = vadd.f32 %v6009, %v6017
    %v6065 = vadd.f32 %v6010, %v6017
    %v6066 = vadd.f32 %v6011, %v6017
    %v6067 = vmax.f32 %v6019, 0.0
    %v6068 = vmax.f32 %v6020, 0.0
    %v6069 = vmax.f32 %v6021, 0.0
    %v6070 = vmax.f32 %v6022, 0.0
    %v6071 = vmax.f32 %v6023, 0.0
    %v6072 = vmax.f32 %v6024, 0.0
    %v6073 = vmax.f32 %v6025, 0.0
    %v6074 = vmax.f32 %v6026, 0.0
    %v6075 = vmax.f32 %v6027, 0.0
    %v6076 = vmax.f32 %v6028, 0.0
    %v6077 = vmax.f32 %v6029, 0.0
    %v6078 = vmax.f32 %v6030, 0.0
    %v6079 = vmax.f32 %v6031, 0.0
    %v6080 = vmax.f32 %v6032, 0.0
    %v6081 = vmax.f32 %v6033, 0.0
    %v6082 = vmax.f32 %v6034, 0.0
    %v6083 = vmax.f32 %v6035, 0.0
    %v6084 = vmax.f32 %v6036, 0.0
    %v6085 = vmax.f32 %v6037, 0.0
    %v6086 = vmax.f32 %v6038, 0.0
    %v6087 = vmax.f32 %v6039, 0.0
    %v6088 = vmax.f32 %v6040, 0.0
    %v6089 = vmax.f32 %v6041, 0.0
    %v6090 = vmax.f32 %v6042, 0.0
    %v6091 = vmax.f32 %v6043, 0.0
    %v6092 = vmax.f32 %v6044, 0.0
    %v6093 = vmax.f32 %v6045, 0.0
    %v6094 = vmax.f32 %v6046, 0.0
    %v6095 = vmax.f32 %v6047, 0.0
    %v6096 = vmax.f32 %v6048, 0.0
    %v6097 = vmax.f32 %v6049, 0.0
    %v6098 = vmax.f32 %v6050, 0.0
    %v6099 = vmax.f32 %v6051, 0.0
    %v6100 = vmax.f32 %v6052, 0.0
    %v6101 = vmax.f32 %v6053, 0.0
    %v6102 = vmax.f32 %v6054, 0.0
    %v6103 = vmax.f32 %v6055, 0.0
    %v6104 = vmax.f32 %v6056, 0.0
    %v6105 = vmax.f32 %v6057, 0.0
    %v6106 = vmax.f32 %v6058, 0.0
    %v6107 = vmax.f32 %v6059, 0.0
    %v6108 = vmax.f32 %v6060, 0.0
    %v6109 = vmax.f32 %v6061, 0.0
    %v6110 = vmax.f32 %v6062, 0.0
    %v6111 = vmax.f32 %v6063, 0.0
    %v6112 = vmax.f32 %v6064, 0.0
    %v6113 = vmax.f32 %v6065, 0.0
    %v6114 = vmax.f32 %v6066, 0.0
    %v6115 = vld [vmem:[%s7] sm:$0xff]
    %v6116 = vld [vmem:[%s7 + $0x8] sm:$0xff]
    %s6117 = scalar_lea.vmem %s7, 16
    %v6118 = vld [vmem:[%s6117] sm:$0xff]
    %v6119 = vld [vmem:[%s6117 + $0x8] sm:$0xff]
    %v6121 = vsel %vm1635, %v6071, 0
    %v6124 = vsel %vm1635, %v6072, 0
    %v6127 = vsel %vm1635, %v6073, 0
    %v6130 = vsel %vm1635, %v6074, 0
    %v6133 = vsel %vm1635, %v6075, 0
    %v6136 = vsel %vm1635, %v6076, 0
    %v6139 = vsel %vm1635, %v6077, 0
    %v6142 = vsel %vm1635, %v6078, 0
    %v6145 = vsel %vm1635, %v6079, 0
    %v6148 = vsel %vm1635, %v6080, 0
    %v6151 = vsel %vm1635, %v6081, 0
    %v6154 = vsel %vm1635, %v6082, 0
    %v6157 = vsel %vm1635, %v6083, 0
    %v6160 = vsel %vm1635, %v6084, 0
    %v6163 = vsel %vm1635, %v6085, 0
    %v6166 = vsel %vm1635, %v6086, 0
    %v6169 = vsel %vm1635, %v6087, 0
    %v6172 = vsel %vm1635, %v6088, 0
    %v6175 = vsel %vm1635, %v6089, 0
    %v6178 = vsel %vm1635, %v6090, 0
    %v6181 = vsel %vm1635, %v6091, 0
    %v6184 = vsel %vm1635, %v6092, 0
    %v6187 = vsel %vm1635, %v6093, 0
    %v6190 = vsel %vm1635, %v6094, 0
    %v6193 = vsel %vm1635, %v6095, 0
    %v6196 = vsel %vm1635, %v6096, 0
    %v6199 = vsel %vm1635, %v6097, 0
    %v6202 = vsel %vm1635, %v6098, 0
    %v6205 = vsel %vm1635, %v6099, 0
    %v6208 = vsel %vm1635, %v6100, 0
    %v6211 = vsel %vm1635, %v6101, 0
    %v6214 = vsel %vm1635, %v6102, 0
    %6216 = vmatprep.subr.mxu0 0.0
    %6217 = vmatpush1.msra.mxu0 0.0
    %6218 = vmatprep.subr.mxu0 0.0
    %6219 = vmatpush1.msra.mxu0 0.0
    %6220 = vmatprep.subr.mxu0 0.0
    %6221 = vmatpush1.msra.mxu0 0.0
    %6222 = vmatprep.subr.mxu0 0.0
    %6223 = vmatpush1.msra.mxu0 0.0
    %6224 = vmatprep.subr.mxu0 0.0
    %6225 = vmatpush1.msra.mxu0 0.0
    %6226 = vmatprep.subr.mxu0 0.0
    %6227 = vmatpush1.msra.mxu0 0.0
    %6228 = vmatprep.subr.mxu0 0.0
    %6229 = vmatpush1.msra.mxu0 0.0
    %6230 = vmatprep.subr.mxu0 0.0
    %6231 = vmatpush1.msra.mxu0 0.0
    %6232 = vmatprep.subr.mxu0 0.0
    %6233 = vmatpush1.msra.mxu0 0.0
    %6234 = vmatprep.subr.mxu0 0.0
    %6235 = vmatpush1.msra.mxu0 0.0
    %6236 = vmatprep.subr.mxu0 0.0
    %6237 = vmatpush1.msra.mxu0 0.0
    %6238 = vmatprep.subr.mxu0 0.0
    %6239 = vmatpush1.msra.mxu0 0.0
    %6240 = vmatprep.subr.mxu0 0.0
    %6241 = vmatpush1.msra.mxu0 0.0
    %6242 = vmatprep.subr.mxu0 0.0
    %6243 = vmatpush1.msra.mxu0 0.0
    %6244 = vmatprep.subr.mxu0 0.0
    %6245 = vmatpush1.msra.mxu0 %v6119
    %6246 = vmatprep.subr.mxu0 0.0
    %6247 = vmatpush1.msra.mxu0 %v6118
    %6248 = vmatprep.subr.mxu0 0.0
    %6249 = vmatpush2.msra.mxu0 0.0
    %6250 = vmatprep.subr.mxu0 0.0
    %6251 = vmatpush2.msra.mxu0 0.0
    %6252 = vmatprep.subr.mxu0 0.0
    %6253 = vmatpush2.msra.mxu0 0.0
    %6254 = vmatprep.subr.mxu0 0.0
    %6255 = vmatpush2.msra.mxu0 0.0
    %6256 = vmatprep.subr.mxu0 0.0
    %6257 = vmatpush2.msra.mxu0 0.0
    %6258 = vmatprep.subr.mxu0 0.0
    %6259 = vmatpush2.msra.mxu0 0.0
    %6260 = vmatprep.subr.mxu0 0.0
    %6261 = vmatpush2.msra.mxu0 0.0
    %6262 = vmatprep.subr.mxu0 0.0
    %6263 = vmatpush2.msra.mxu0 0.0
    %6264 = vmatprep.subr.mxu0 0.0
    %6265 = vmatpush2.msra.mxu0 0.0
    %6266 = vmatprep.subr.mxu0 0.0
    %6267 = vmatpush2.msra.mxu0 0.0
    %6268 = vmatprep.subr.mxu0 0.0
    %6269 = vmatpush2.msra.mxu0 0.0
    %6270 = vmatprep.subr.mxu0 0.0
    %6271 = vmatpush2.msra.mxu0 0.0
    %6272 = vmatprep.subr.mxu0 0.0
    %6273 = vmatpush2.msra.mxu0 0.0
    %6274 = vmatprep.subr.mxu0 0.0
    %6275 = vmatpush2.msra.mxu0 0.0
    %6276 = vmatprep.subr.mxu0 0.0
    %6277 = vmatpush2.msra.mxu0 0.0
    %6278 = vmatprep.subr.mxu0 0.0
    %6279 = vmatpush2.msra.mxu0 0.0
    %6280 = vmatprep.mubr.f32.mxu0 0.0
    %6281 = vmatmul.mubr.f32.gmra.mxu0 %v6121
    %v6282 = vpop.f32.mrf.mxu0
    %v6283 = vadd.f32 0.0, %v6282
    %v6284 = vpop.f32.mrf.mxu0
    %6285 = vmatprep.mubr.f32.mxu0 0.0
    %6286 = vmatmul.mubr.f32.gmra.mxu0 %v6124
    %v6287 = vpop.f32.mrf.mxu0
    %v6288 = vadd.f32 0.0, %v6287
    %v6289 = vpop.f32.mrf.mxu0
    %6290 = vmatprep.mubr.f32.mxu0 0.0
    %6291 = vmatmul.mubr.f32.gmra.mxu0 %v6127
    %v6292 = vpop.f32.mrf.mxu0
    %v6293 = vadd.f32 0.0, %v6292
    %v6294 = vpop.f32.mrf.mxu0
    %6295 = vmatprep.mubr.f32.mxu0 0.0
    %6296 = vmatmul.mubr.f32.gmra.mxu0 %v6130
    %v6297 = vpop.f32.mrf.mxu0
    %v6298 = vadd.f32 0.0, %v6297
    %v6299 = vpop.f32.mrf.mxu0
    %6300 = vmatprep.mubr.f32.mxu0 0.0
    %6301 = vmatmul.mubr.f32.gmra.mxu0 %v6133
    %v6302 = vpop.f32.mrf.mxu0
    %v6303 = vadd.f32 0.0, %v6302
    %v6304 = vpop.f32.mrf.mxu0
    %6305 = vmatprep.mubr.f32.mxu0 0.0
    %6306 = vmatmul.mubr.f32.gmra.mxu0 %v6136
    %v6307 = vpop.f32.mrf.mxu0
    %v6308 = vadd.f32 0.0, %v6307
    %v6309 = vpop.f32.mrf.mxu0
    %6310 = vmatprep.mubr.f32.mxu0 0.0
    %6311 = vmatmul.mubr.f32.gmra.mxu0 %v6139
    %v6312 = vpop.f32.mrf.mxu0
    %v6313 = vadd.f32 0.0, %v6312
    %v6314 = vpop.f32.mrf.mxu0
    %6315 = vmatprep.mubr.f32.mxu0 0.0
    %6316 = vmatmul.mubr.f32.gmra.mxu0 %v6142
    %v6317 = vpop.f32.mrf.mxu0
    %v6318 = vadd.f32 0.0, %v6317
    %v6319 = vpop.f32.mrf.mxu0
    %6320 = vmatprep.mubr.f32.mxu0 0.0
    %6321 = vmatmul.mubr.f32.gmra.mxu0 %v6145
    %v6322 = vpop.f32.mrf.mxu0
    %v6323 = vadd.f32 0.0, %v6322
    %v6324 = vpop.f32.mrf.mxu0
    %6325 = vmatprep.mubr.f32.mxu0 0.0
    %6326 = vmatmul.mubr.f32.gmra.mxu0 %v6148
    %v6327 = vpop.f32.mrf.mxu0
    %v6328 = vadd.f32 0.0, %v6327
    %v6329 = vpop.f32.mrf.mxu0
    %6330 = vmatprep.mubr.f32.mxu0 0.0
    %6331 = vmatmul.mubr.f32.gmra.mxu0 %v6151
    %v6332 = vpop.f32.mrf.mxu0
    %v6333 = vadd.f32 0.0, %v6332
    %v6334 = vpop.f32.mrf.mxu0
    %6335 = vmatprep.mubr.f32.mxu0 0.0
    %6336 = vmatmul.mubr.f32.gmra.mxu0 %v6154
    %v6337 = vpop.f32.mrf.mxu0
    %v6338 = vadd.f32 0.0, %v6337
    %v6339 = vpop.f32.mrf.mxu0
    %6340 = vmatprep.mubr.f32.mxu0 0.0
    %6341 = vmatmul.mubr.f32.gmra.mxu0 %v6157
    %v6342 = vpop.f32.mrf.mxu0
    %v6343 = vadd.f32 0.0, %v6342
    %v6344 = vpop.f32.mrf.mxu0
    %6345 = vmatprep.mubr.f32.mxu0 0.0
    %6346 = vmatmul.mubr.f32.gmra.mxu0 %v6160
    %v6347 = vpop.f32.mrf.mxu0
    %v6348 = vadd.f32 0.0, %v6347
    %v6349 = vpop.f32.mrf.mxu0
    %6350 = vmatprep.mubr.f32.mxu0 0.0
    %6351 = vmatmul.mubr.f32.gmra.mxu0 %v6163
    %v6352 = vpop.f32.mrf.mxu0
    %v6353 = vadd.f32 0.0, %v6352
    %v6354 = vpop.f32.mrf.mxu0
    %6355 = vmatprep.mubr.f32.mxu0 0.0
    %6356 = vmatmul.mubr.f32.gmra.mxu0 %v6166
    %v6357 = vpop.f32.mrf.mxu0
    %v6358 = vadd.f32 0.0, %v6357
    %v6359 = vpop.f32.mrf.mxu0
    %6360 = vmatprep.mubr.f32.mxu0 0.0
    %6361 = vmatmul.mubr.f32.gmra.mxu0 %v6169
    %v6362 = vpop.f32.mrf.mxu0
    %v6363 = vadd.f32 0.0, %v6362
    %v6364 = vpop.f32.mrf.mxu0
    %6365 = vmatprep.mubr.f32.mxu0 0.0
    %6366 = vmatmul.mubr.f32.gmra.mxu0 %v6172
    %v6367 = vpop.f32.mrf.mxu0
    %v6368 = vadd.f32 0.0, %v6367
    %v6369 = vpop.f32.mrf.mxu0
    %6370 = vmatprep.mubr.f32.mxu0 0.0
    %6371 = vmatmul.mubr.f32.gmra.mxu0 %v6175
    %v6372 = vpop.f32.mrf.mxu0
    %v6373 = vadd.f32 0.0, %v6372
    %v6374 = vpop.f32.mrf.mxu0
    %6375 = vmatprep.mubr.f32.mxu0 0.0
    %6376 = vmatmul.mubr.f32.gmra.mxu0 %v6178
    %v6377 = vpop.f32.mrf.mxu0
    %v6378 = vadd.f32 0.0, %v6377
    %v6379 = vpop.f32.mrf.mxu0
    %6380 = vmatprep.mubr.f32.mxu0 0.0
    %6381 = vmatmul.mubr.f32.gmra.mxu0 %v6181
    %v6382 = vpop.f32.mrf.mxu0
    %v6383 = vadd.f32 0.0, %v6382
    %v6384 = vpop.f32.mrf.mxu0
    %6385 = vmatprep.mubr.f32.mxu0 0.0
    %6386 = vmatmul.mubr.f32.gmra.mxu0 %v6184
    %v6387 = vpop.f32.mrf.mxu0
    %v6388 = vadd.f32 0.0, %v6387
    %v6389 = vpop.f32.mrf.mxu0
    %6390 = vmatprep.mubr.f32.mxu0 0.0
    %6391 = vmatmul.mubr.f32.gmra.mxu0 %v6187
    %v6392 = vpop.f32.mrf.mxu0
    %v6393 = vadd.f32 0.0, %v6392
    %v6394 = vpop.f32.mrf.mxu0
    %6395 = vmatprep.mubr.f32.mxu0 0.0
    %6396 = vmatmul.mubr.f32.gmra.mxu0 %v6190
    %v6397 = vpop.f32.mrf.mxu0
    %v6398 = vadd.f32 0.0, %v6397
    %v6399 = vpop.f32.mrf.mxu0
    %6400 = vmatprep.mubr.f32.mxu0 0.0
    %6401 = vmatmul.mubr.f32.gmra.mxu0 %v6193
    %v6402 = vpop.f32.mrf.mxu0
    %v6403 = vadd.f32 0.0, %v6402
    %v6404 = vpop.f32.mrf.mxu0
    %6405 = vmatprep.mubr.f32.mxu0 0.0
    %6406 = vmatmul.mubr.f32.gmra.mxu0 %v6196
    %v6407 = vpop.f32.mrf.mxu0
    %v6408 = vadd.f32 0.0, %v6407
    %v6409 = vpop.f32.mrf.mxu0
    %6410 = vmatprep.mubr.f32.mxu0 0.0
    %6411 = vmatmul.mubr.f32.gmra.mxu0 %v6199
    %v6412 = vpop.f32.mrf.mxu0
    %v6413 = vadd.f32 0.0, %v6412
    %v6414 = vpop.f32.mrf.mxu0
    %6415 = vmatprep.mubr.f32.mxu0 0.0
    %6416 = vmatmul.mubr.f32.gmra.mxu0 %v6202
    %v6417 = vpop.f32.mrf.mxu0
    %v6418 = vadd.f32 0.0, %v6417
    %v6419 = vpop.f32.mrf.mxu0
    %6420 = vmatprep.mubr.f32.mxu0 0.0
    %6421 = vmatmul.mubr.f32.gmra.mxu0 %v6205
    %v6422 = vpop.f32.mrf.mxu0
    %v6423 = vadd.f32 0.0, %v6422
    %v6424 = vpop.f32.mrf.mxu0
    %6425 = vmatprep.mubr.f32.mxu0 0.0
    %6426 = vmatmul.mubr.f32.gmra.mxu0 %v6208
    %v6427 = vpop.f32.mrf.mxu0
    %v6428 = vadd.f32 0.0, %v6427
    %v6429 = vpop.f32.mrf.mxu0
    %6430 = vmatprep.mubr.f32.mxu0 0.0
    %6431 = vmatmul.mubr.f32.gmra.mxu0 %v6211
    %v6432 = vpop.f32.mrf.mxu0
    %v6433 = vadd.f32 0.0, %v6432
    %v6434 = vpop.f32.mrf.mxu0
    %6435 = vmatprep.mubr.f32.mxu0 0.0
    %6436 = vmatmul.mubr.f32.gmra.mxu0 %v6214
    %v6437 = vpop.f32.mrf.mxu0
    %v6438 = vadd.f32 0.0, %v6437
    %v6439 = vpop.f32.mrf.mxu0
    %6440 = vdwg.mxu0
    %v6442 = vsel %vm1635, %v6067, 0
    %v6445 = vsel %vm1635, %v6068, 0
    %v6448 = vsel %vm1635, %v6069, 0
    %v6451 = vsel %vm1635, %v6070, 0
    %6453 = vmatprep.subr.mxu0 0.0
    %6454 = vmatpush1.msra.mxu0 0.0
    %6455 = vmatprep.subr.mxu0 0.0
    %6456 = vmatpush1.msra.mxu0 0.0
    %6457 = vmatprep.subr.mxu0 0.0
    %6458 = vmatpush1.msra.mxu0 0.0
    %6459 = vmatprep.subr.mxu0 0.0
    %6460 = vmatpush1.msra.mxu0 0.0
    %6461 = vmatprep.subr.mxu0 0.0
    %6462 = vmatpush1.msra.mxu0 0.0
    %6463 = vmatprep.subr.mxu0 0.0
    %6464 = vmatpush1.msra.mxu0 0.0
    %6465 = vmatprep.subr.mxu0 0.0
    %6466 = vmatpush1.msra.mxu0 0.0
    %6467 = vmatprep.subr.mxu0 0.0
    %6468 = vmatpush1.msra.mxu0 0.0
    %6469 = vmatprep.subr.mxu0 0.0
    %6470 = vmatpush1.msra.mxu0 0.0
    %6471 = vmatprep.subr.mxu0 0.0
    %6472 = vmatpush1.msra.mxu0 0.0
    %6473 = vmatprep.subr.mxu0 0.0
    %6474 = vmatpush1.msra.mxu0 0.0
    %6475 = vmatprep.subr.mxu0 0.0
    %6476 = vmatpush1.msra.mxu0 0.0
    %6477 = vmatprep.subr.mxu0 0.0
    %6478 = vmatpush1.msra.mxu0 0.0
    %6479 = vmatprep.subr.mxu0 0.0
    %6480 = vmatpush1.msra.mxu0 0.0
    %6481 = vmatprep.subr.mxu0 0.0
    %6482 = vmatpush1.msra.mxu0 %v6116
    %6483 = vmatprep.subr.mxu0 0.0
    %6484 = vmatpush1.msra.mxu0 %v6115
    %6485 = vmatprep.subr.mxu0 0.0
    %6486 = vmatpush2.msra.mxu0 0.0
    %6487 = vmatprep.subr.mxu0 0.0
    %6488 = vmatpush2.msra.mxu0 0.0
    %6489 = vmatprep.subr.mxu0 0.0
    %6490 = vmatpush2.msra.mxu0 0.0
    %6491 = vmatprep.subr.mxu0 0.0
    %6492 = vmatpush2.msra.mxu0 0.0
    %6493 = vmatprep.subr.mxu0 0.0
    %6494 = vmatpush2.msra.mxu0 0.0
    %6495 = vmatprep.subr.mxu0 0.0
    %6496 = vmatpush2.msra.mxu0 0.0
    %6497 = vmatprep.subr.mxu0 0.0
    %6498 = vmatpush2.msra.mxu0 0.0
    %6499 = vmatprep.subr.mxu0 0.0
    %6500 = vmatpush2.msra.mxu0 0.0
    %6501 = vmatprep.subr.mxu0 0.0
    %6502 = vmatpush2.msra.mxu0 0.0
    %6503 = vmatprep.subr.mxu0 0.0
    %6504 = vmatpush2.msra.mxu0 0.0
    %6505 = vmatprep.subr.mxu0 0.0
    %6506 = vmatpush2.msra.mxu0 0.0
    %6507 = vmatprep.subr.mxu0 0.0
    %6508 = vmatpush2.msra.mxu0 0.0
    %6509 = vmatprep.subr.mxu0 0.0
    %6510 = vmatpush2.msra.mxu0 0.0
    %6511 = vmatprep.subr.mxu0 0.0
    %6512 = vmatpush2.msra.mxu0 0.0
    %6513 = vmatprep.subr.mxu0 0.0
    %6514 = vmatpush2.msra.mxu0 0.0
    %6515 = vmatprep.subr.mxu0 0.0
    %6516 = vmatpush2.msra.mxu0 0.0
    %6517 = vmatprep.mubr.f32.mxu0 0.0
    %6518 = vmatmul.mubr.f32.gmra.mxu0 %v6442
    %v6519 = vpop.f32.mrf.mxu0
    %v6520 = vadd.f32 %v6283, %v6519
    %v6521 = vpop.f32.mrf.mxu0
    %6522 = vmatprep.mubr.f32.mxu0 0.0
    %6523 = vmatmul.mubr.f32.gmra.mxu0 %v6445
    %v6524 = vpop.f32.mrf.mxu0
    %v6525 = vadd.f32 %v6288, %v6524
    %v6526 = vpop.f32.mrf.mxu0
    %6527 = vmatprep.mubr.f32.mxu0 0.0
    %6528 = vmatmul.mubr.f32.gmra.mxu0 %v6448
    %v6529 = vpop.f32.mrf.mxu0
    %v6530 = vadd.f32 %v6293, %v6529
    %v6531 = vpop.f32.mrf.mxu0
    %6532 = vmatprep.mubr.f32.mxu0 0.0
    %6533 = vmatmul.mubr.f32.gmra.mxu0 %v6451
    %v6534 = vpop.f32.mrf.mxu0
    %v6535 = vadd.f32 %v6298, %v6534
    %v6536 = vpop.f32.mrf.mxu0
    %6537 = vmatprep.mubr.f32.mxu0 0.0
    %6538 = vmatmul.mubr.f32.gmra.mxu0 %v6121
    %v6539 = vpop.f32.mrf.mxu0
    %v6540 = vadd.f32 %v6303, %v6539
    %v6541 = vpop.f32.mrf.mxu0
    %6542 = vmatprep.mubr.f32.mxu0 0.0
    %6543 = vmatmul.mubr.f32.gmra.mxu0 %v6124
    %v6544 = vpop.f32.mrf.mxu0
    %v6545 = vadd.f32 %v6308, %v6544
    %v6546 = vpop.f32.mrf.mxu0
    %6547 = vmatprep.mubr.f32.mxu0 0.0
    %6548 = vmatmul.mubr.f32.gmra.mxu0 %v6127
    %v6549 = vpop.f32.mrf.mxu0
    %v6550 = vadd.f32 %v6313, %v6549
    %v6551 = vpop.f32.mrf.mxu0
    %6552 = vmatprep.mubr.f32.mxu0 0.0
    %6553 = vmatmul.mubr.f32.gmra.mxu0 %v6130
    %v6554 = vpop.f32.mrf.mxu0
    %v6555 = vadd.f32 %v6318, %v6554
    %v6556 = vpop.f32.mrf.mxu0
    %6557 = vmatprep.mubr.f32.mxu0 0.0
    %6558 = vmatmul.mubr.f32.gmra.mxu0 %v6133
    %v6559 = vpop.f32.mrf.mxu0
    %v6560 = vadd.f32 %v6323, %v6559
    %v6561 = vpop.f32.mrf.mxu0
    %6562 = vmatprep.mubr.f32.mxu0 0.0
    %6563 = vmatmul.mubr.f32.gmra.mxu0 %v6136
    %v6564 = vpop.f32.mrf.mxu0
    %v6565 = vadd.f32 %v6328, %v6564
    %v6566 = vpop.f32.mrf.mxu0
    %6567 = vmatprep.mubr.f32.mxu0 0.0
    %6568 = vmatmul.mubr.f32.gmra.mxu0 %v6139
    %v6569 = vpop.f32.mrf.mxu0
    %v6570 = vadd.f32 %v6333, %v6569
    %v6571 = vpop.f32.mrf.mxu0
    %6572 = vmatprep.mubr.f32.mxu0 0.0
    %6573 = vmatmul.mubr.f32.gmra.mxu0 %v6142
    %v6574 = vpop.f32.mrf.mxu0
    %v6575 = vadd.f32 %v6338, %v6574
    %v6576 = vpop.f32.mrf.mxu0
    %6577 = vmatprep.mubr.f32.mxu0 0.0
    %6578 = vmatmul.mubr.f32.gmra.mxu0 %v6145
    %v6579 = vpop.f32.mrf.mxu0
    %v6580 = vadd.f32 %v6343, %v6579
    %v6581 = vpop.f32.mrf.mxu0
    %6582 = vmatprep.mubr.f32.mxu0 0.0
    %6583 = vmatmul.mubr.f32.gmra.mxu0 %v6148
    %v6584 = vpop.f32.mrf.mxu0
    %v6585 = vadd.f32 %v6348, %v6584
    %v6586 = vpop.f32.mrf.mxu0
    %6587 = vmatprep.mubr.f32.mxu0 0.0
    %6588 = vmatmul.mubr.f32.gmra.mxu0 %v6151
    %v6589 = vpop.f32.mrf.mxu0
    %v6590 = vadd.f32 %v6353, %v6589
    %v6591 = vpop.f32.mrf.mxu0
    %6592 = vmatprep.mubr.f32.mxu0 0.0
    %6593 = vmatmul.mubr.f32.gmra.mxu0 %v6154
    %v6594 = vpop.f32.mrf.mxu0
    %v6595 = vadd.f32 %v6358, %v6594
    %v6596 = vpop.f32.mrf.mxu0
    %6597 = vmatprep.mubr.f32.mxu0 0.0
    %6598 = vmatmul.mubr.f32.gmra.mxu0 %v6157
    %v6599 = vpop.f32.mrf.mxu0
    %v6600 = vadd.f32 %v6363, %v6599
    %v6601 = vpop.f32.mrf.mxu0
    %6602 = vmatprep.mubr.f32.mxu0 0.0
    %6603 = vmatmul.mubr.f32.gmra.mxu0 %v6160
    %v6604 = vpop.f32.mrf.mxu0
    %v6605 = vadd.f32 %v6368, %v6604
    %v6606 = vpop.f32.mrf.mxu0
    %6607 = vmatprep.mubr.f32.mxu0 0.0
    %6608 = vmatmul.mubr.f32.gmra.mxu0 %v6163
    %v6609 = vpop.f32.mrf.mxu0
    %v6610 = vadd.f32 %v6373, %v6609
    %v6611 = vpop.f32.mrf.mxu0
    %6612 = vmatprep.mubr.f32.mxu0 0.0
    %6613 = vmatmul.mubr.f32.gmra.mxu0 %v6166
    %v6614 = vpop.f32.mrf.mxu0
    %v6615 = vadd.f32 %v6378, %v6614
    %v6616 = vpop.f32.mrf.mxu0
    %6617 = vmatprep.mubr.f32.mxu0 0.0
    %6618 = vmatmul.mubr.f32.gmra.mxu0 %v6169
    %v6619 = vpop.f32.mrf.mxu0
    %v6620 = vadd.f32 %v6383, %v6619
    %v6621 = vpop.f32.mrf.mxu0
    %6622 = vmatprep.mubr.f32.mxu0 0.0
    %6623 = vmatmul.mubr.f32.gmra.mxu0 %v6172
    %v6624 = vpop.f32.mrf.mxu0
    %v6625 = vadd.f32 %v6388, %v6624
    %v6626 = vpop.f32.mrf.mxu0
    %6627 = vmatprep.mubr.f32.mxu0 0.0
    %6628 = vmatmul.mubr.f32.gmra.mxu0 %v6175
    %v6629 = vpop.f32.mrf.mxu0
    %v6630 = vadd.f32 %v6393, %v6629
    %v6631 = vpop.f32.mrf.mxu0
    %6632 = vmatprep.mubr.f32.mxu0 0.0
    %6633 = vmatmul.mubr.f32.gmra.mxu0 %v6178
    %v6634 = vpop.f32.mrf.mxu0
    %v6635 = vadd.f32 %v6398, %v6634
    %v6636 = vpop.f32.mrf.mxu0
    %6637 = vmatprep.mubr.f32.mxu0 0.0
    %6638 = vmatmul.mubr.f32.gmra.mxu0 %v6181
    %v6639 = vpop.f32.mrf.mxu0
    %v6640 = vadd.f32 %v6403, %v6639
    %v6641 = vpop.f32.mrf.mxu0
    %6642 = vmatprep.mubr.f32.mxu0 0.0
    %6643 = vmatmul.mubr.f32.gmra.mxu0 %v6184
    %v6644 = vpop.f32.mrf.mxu0
    %v6645 = vadd.f32 %v6408, %v6644
    %v6646 = vpop.f32.mrf.mxu0
    %6647 = vmatprep.mubr.f32.mxu0 0.0
    %6648 = vmatmul.mubr.f32.gmra.mxu0 %v6187
    %v6649 = vpop.f32.mrf.mxu0
    %v6650 = vadd.f32 %v6413, %v6649
    %v6651 = vpop.f32.mrf.mxu0
    %6652 = vmatprep.mubr.f32.mxu0 0.0
    %6653 = vmatmul.mubr.f32.gmra.mxu0 %v6190
    %v6654 = vpop.f32.mrf.mxu0
    %v6655 = vadd.f32 %v6418, %v6654
    %v6656 = vpop.f32.mrf.mxu0
    %6657 = vmatprep.mubr.f32.mxu0 0.0
    %6658 = vmatmul.mubr.f32.gmra.mxu0 %v6193
    %v6659 = vpop.f32.mrf.mxu0
    %v6660 = vadd.f32 %v6423, %v6659
    %v6661 = vpop.f32.mrf.mxu0
    %6662 = vmatprep.mubr.f32.mxu0 0.0
    %6663 = vmatmul.mubr.f32.gmra.mxu0 %v6196
    %v6664 = vpop.f32.mrf.mxu0
    %v6665 = vadd.f32 %v6428, %v6664
    %v6666 = vpop.f32.mrf.mxu0
    %6667 = vmatprep.mubr.f32.mxu0 0.0
    %6668 = vmatmul.mubr.f32.gmra.mxu0 %v6199
    %v6669 = vpop.f32.mrf.mxu0
    %v6670 = vadd.f32 %v6433, %v6669
    %v6671 = vpop.f32.mrf.mxu0
    %6672 = vmatprep.mubr.f32.mxu0 0.0
    %6673 = vmatmul.mubr.f32.gmra.mxu0 %v6202
    %v6674 = vpop.f32.mrf.mxu0
    %v6675 = vadd.f32 %v6438, %v6674
    %v6676 = vpop.f32.mrf.mxu0
    %6677 = vdwg.mxu0
    %s6678 = scalar_lea.vmem %s7, 32
    %v6679 = vld [vmem:[%s6678] sm:$0xff]
    %v6680 = vld [vmem:[%s6678 + $0x8] sm:$0xff]
    %v6682 = vsel %vm1635, %v6103, 0
    %v6685 = vsel %vm1635, %v6104, 0
    %v6688 = vsel %vm1635, %v6105, 0
    %v6691 = vsel %vm1635, %v6106, 0
    %6693 = vmatprep.subr.mxu0 0.0
    %6694 = vmatpush1.msra.mxu0 0.0
    %6695 = vmatprep.subr.mxu0 0.0
    %6696 = vmatpush1.msra.mxu0 0.0
    %6697 = vmatprep.subr.mxu0 0.0
    %6698 = vmatpush1.msra.mxu0 0.0
    %6699 = vmatprep.subr.mxu0 0.0
    %6700 = vmatpush1.msra.mxu0 0.0
    %6701 = vmatprep.subr.mxu0 0.0
    %6702 = vmatpush1.msra.mxu0 0.0
    %6703 = vmatprep.subr.mxu0 0.0
    %6704 = vmatpush1.msra.mxu0 0.0
    %6705 = vmatprep.subr.mxu0 0.0
    %6706 = vmatpush1.msra.mxu0 0.0
    %6707 = vmatprep.subr.mxu0 0.0
    %6708 = vmatpush1.msra.mxu0 0.0
    %6709 = vmatprep.subr.mxu0 0.0
    %6710 = vmatpush1.msra.mxu0 0.0
    %6711 = vmatprep.subr.mxu0 0.0
    %6712 = vmatpush1.msra.mxu0 0.0
    %6713 = vmatprep.subr.mxu0 0.0
    %6714 = vmatpush1.msra.mxu0 0.0
    %6715 = vmatprep.subr.mxu0 0.0
    %6716 = vmatpush1.msra.mxu0 0.0
    %6717 = vmatprep.subr.mxu0 0.0
    %6718 = vmatpush1.msra.mxu0 0.0
    %6719 = vmatprep.subr.mxu0 0.0
    %6720 = vmatpush1.msra.mxu0 0.0
    %6721 = vmatprep.subr.mxu0 0.0
    %6722 = vmatpush1.msra.mxu0 %v6680
    %6723 = vmatprep.subr.mxu0 0.0
    %6724 = vmatpush1.msra.mxu0 %v6679
    %6725 = vmatprep.subr.mxu0 0.0
    %6726 = vmatpush2.msra.mxu0 0.0
    %6727 = vmatprep.subr.mxu0 0.0
    %6728 = vmatpush2.msra.mxu0 0.0
    %6729 = vmatprep.subr.mxu0 0.0
    %6730 = vmatpush2.msra.mxu0 0.0
    %6731 = vmatprep.subr.mxu0 0.0
    %6732 = vmatpush2.msra.mxu0 0.0
    %6733 = vmatprep.subr.mxu0 0.0
    %6734 = vmatpush2.msra.mxu0 0.0
    %6735 = vmatprep.subr.mxu0 0.0
    %6736 = vmatpush2.msra.mxu0 0.0
    %6737 = vmatprep.subr.mxu0 0.0
    %6738 = vmatpush2.msra.mxu0 0.0
    %6739 = vmatprep.subr.mxu0 0.0
    %6740 = vmatpush2.msra.mxu0 0.0
    %6741 = vmatprep.subr.mxu0 0.0
    %6742 = vmatpush2.msra.mxu0 0.0
    %6743 = vmatprep.subr.mxu0 0.0
    %6744 = vmatpush2.msra.mxu0 0.0
    %6745 = vmatprep.subr.mxu0 0.0
    %6746 = vmatpush2.msra.mxu0 0.0
    %6747 = vmatprep.subr.mxu0 0.0
    %6748 = vmatpush2.msra.mxu0 0.0
    %6749 = vmatprep.subr.mxu0 0.0
    %6750 = vmatpush2.msra.mxu0 0.0
    %6751 = vmatprep.subr.mxu0 0.0
    %6752 = vmatpush2.msra.mxu0 0.0
    %6753 = vmatprep.subr.mxu0 0.0
    %6754 = vmatpush2.msra.mxu0 0.0
    %6755 = vmatprep.subr.mxu0 0.0
    %6756 = vmatpush2.msra.mxu0 0.0
    %6757 = vmatprep.mubr.f32.mxu0 0.0
    %6758 = vmatmul.mubr.f32.gmra.mxu0 %v6133
    %v6759 = vpop.f32.mrf.mxu0
    %v6760 = vadd.f32 0.0, %v6759
    %v6761 = vpop.f32.mrf.mxu0
    %6762 = vmatprep.mubr.f32.mxu0 0.0
    %6763 = vmatmul.mubr.f32.gmra.mxu0 %v6136
    %v6764 = vpop.f32.mrf.mxu0
    %v6765 = vadd.f32 0.0, %v6764
    %v6766 = vpop.f32.mrf.mxu0
    %6767 = vmatprep.mubr.f32.mxu0 0.0
    %6768 = vmatmul.mubr.f32.gmra.mxu0 %v6139
    %v6769 = vpop.f32.mrf.mxu0
    %v6770 = vadd.f32 0.0, %v6769
    %v6771 = vpop.f32.mrf.mxu0
    %6772 = vmatprep.mubr.f32.mxu0 0.0
    %6773 = vmatmul.mubr.f32.gmra.mxu0 %v6142
    %v6774 = vpop.f32.mrf.mxu0
    %v6775 = vadd.f32 0.0, %v6774
    %v6776 = vpop.f32.mrf.mxu0
    %6777 = vmatprep.mubr.f32.mxu0 0.0
    %6778 = vmatmul.mubr.f32.gmra.mxu0 %v6145
    %v6779 = vpop.f32.mrf.mxu0
    %v6780 = vadd.f32 0.0, %v6779
    %v6781 = vpop.f32.mrf.mxu0
    %6782 = vmatprep.mubr.f32.mxu0 0.0
    %6783 = vmatmul.mubr.f32.gmra.mxu0 %v6148
    %v6784 = vpop.f32.mrf.mxu0
    %v6785 = vadd.f32 0.0, %v6784
    %v6786 = vpop.f32.mrf.mxu0
    %6787 = vmatprep.mubr.f32.mxu0 0.0
    %6788 = vmatmul.mubr.f32.gmra.mxu0 %v6151
    %v6789 = vpop.f32.mrf.mxu0
    %v6790 = vadd.f32 0.0, %v6789
    %v6791 = vpop.f32.mrf.mxu0
    %6792 = vmatprep.mubr.f32.mxu0 0.0
    %6793 = vmatmul.mubr.f32.gmra.mxu0 %v6154
    %v6794 = vpop.f32.mrf.mxu0
    %v6795 = vadd.f32 0.0, %v6794
    %v6796 = vpop.f32.mrf.mxu0
    %6797 = vmatprep.mubr.f32.mxu0 0.0
    %6798 = vmatmul.mubr.f32.gmra.mxu0 %v6157
    %v6799 = vpop.f32.mrf.mxu0
    %v6800 = vadd.f32 0.0, %v6799
    %v6801 = vpop.f32.mrf.mxu0
    %6802 = vmatprep.mubr.f32.mxu0 0.0
    %6803 = vmatmul.mubr.f32.gmra.mxu0 %v6160
    %v6804 = vpop.f32.mrf.mxu0
    %v6805 = vadd.f32 0.0, %v6804
    %v6806 = vpop.f32.mrf.mxu0
    %6807 = vmatprep.mubr.f32.mxu0 0.0
    %6808 = vmatmul.mubr.f32.gmra.mxu0 %v6163
    %v6809 = vpop.f32.mrf.mxu0
    %v6810 = vadd.f32 0.0, %v6809
    %v6811 = vpop.f32.mrf.mxu0
    %6812 = vmatprep.mubr.f32.mxu0 0.0
    %6813 = vmatmul.mubr.f32.gmra.mxu0 %v6166
    %v6814 = vpop.f32.mrf.mxu0
    %v6815 = vadd.f32 0.0, %v6814
    %v6816 = vpop.f32.mrf.mxu0
    %6817 = vmatprep.mubr.f32.mxu0 0.0
    %6818 = vmatmul.mubr.f32.gmra.mxu0 %v6169
    %v6819 = vpop.f32.mrf.mxu0
    %v6820 = vadd.f32 0.0, %v6819
    %v6821 = vpop.f32.mrf.mxu0
    %6822 = vmatprep.mubr.f32.mxu0 0.0
    %6823 = vmatmul.mubr.f32.gmra.mxu0 %v6172
    %v6824 = vpop.f32.mrf.mxu0
    %v6825 = vadd.f32 0.0, %v6824
    %v6826 = vpop.f32.mrf.mxu0
    %6827 = vmatprep.mubr.f32.mxu0 0.0
    %6828 = vmatmul.mubr.f32.gmra.mxu0 %v6175
    %v6829 = vpop.f32.mrf.mxu0
    %v6830 = vadd.f32 0.0, %v6829
    %v6831 = vpop.f32.mrf.mxu0
    %6832 = vmatprep.mubr.f32.mxu0 0.0
    %6833 = vmatmul.mubr.f32.gmra.mxu0 %v6178
    %v6834 = vpop.f32.mrf.mxu0
    %v6835 = vadd.f32 0.0, %v6834
    %v6836 = vpop.f32.mrf.mxu0
    %6837 = vmatprep.mubr.f32.mxu0 0.0
    %6838 = vmatmul.mubr.f32.gmra.mxu0 %v6181
    %v6839 = vpop.f32.mrf.mxu0
    %v6840 = vadd.f32 0.0, %v6839
    %v6841 = vpop.f32.mrf.mxu0
    %6842 = vmatprep.mubr.f32.mxu0 0.0
    %6843 = vmatmul.mubr.f32.gmra.mxu0 %v6184
    %v6844 = vpop.f32.mrf.mxu0
    %v6845 = vadd.f32 0.0, %v6844
    %v6846 = vpop.f32.mrf.mxu0
    %6847 = vmatprep.mubr.f32.mxu0 0.0
    %6848 = vmatmul.mubr.f32.gmra.mxu0 %v6187
    %v6849 = vpop.f32.mrf.mxu0
    %v6850 = vadd.f32 0.0, %v6849
    %v6851 = vpop.f32.mrf.mxu0
    %6852 = vmatprep.mubr.f32.mxu0 0.0
    %6853 = vmatmul.mubr.f32.gmra.mxu0 %v6190
    %v6854 = vpop.f32.mrf.mxu0
    %v6855 = vadd.f32 0.0, %v6854
    %v6856 = vpop.f32.mrf.mxu0
    %6857 = vmatprep.mubr.f32.mxu0 0.0
    %6858 = vmatmul.mubr.f32.gmra.mxu0 %v6193
    %v6859 = vpop.f32.mrf.mxu0
    %v6860 = vadd.f32 0.0, %v6859
    %v6861 = vpop.f32.mrf.mxu0
    %6862 = vmatprep.mubr.f32.mxu0 0.0
    %6863 = vmatmul.mubr.f32.gmra.mxu0 %v6196
    %v6864 = vpop.f32.mrf.mxu0
    %v6865 = vadd.f32 0.0, %v6864
    %v6866 = vpop.f32.mrf.mxu0
    %6867 = vmatprep.mubr.f32.mxu0 0.0
    %6868 = vmatmul.mubr.f32.gmra.mxu0 %v6199
    %v6869 = vpop.f32.mrf.mxu0
    %v6870 = vadd.f32 0.0, %v6869
    %v6871 = vpop.f32.mrf.mxu0
    %6872 = vmatprep.mubr.f32.mxu0 0.0
    %6873 = vmatmul.mubr.f32.gmra.mxu0 %v6202
    %v6874 = vpop.f32.mrf.mxu0
    %v6875 = vadd.f32 0.0, %v6874
    %v6876 = vpop.f32.mrf.mxu0
    %6877 = vmatprep.mubr.f32.mxu0 0.0
    %6878 = vmatmul.mubr.f32.gmra.mxu0 %v6205
    %v6879 = vpop.f32.mrf.mxu0
    %v6880 = vadd.f32 0.0, %v6879
    %v6881 = vpop.f32.mrf.mxu0
    %6882 = vmatprep.mubr.f32.mxu0 0.0
    %6883 = vmatmul.mubr.f32.gmra.mxu0 %v6208
    %v6884 = vpop.f32.mrf.mxu0
    %v6885 = vadd.f32 0.0, %v6884
    %v6886 = vpop.f32.mrf.mxu0
    %6887 = vmatprep.mubr.f32.mxu0 0.0
    %6888 = vmatmul.mubr.f32.gmra.mxu0 %v6211
    %v6889 = vpop.f32.mrf.mxu0
    %v6890 = vadd.f32 0.0, %v6889
    %v6891 = vpop.f32.mrf.mxu0
    %6892 = vmatprep.mubr.f32.mxu0 0.0
    %6893 = vmatmul.mubr.f32.gmra.mxu0 %v6214
    %v6894 = vpop.f32.mrf.mxu0
    %v6895 = vadd.f32 0.0, %v6894
    %v6896 = vpop.f32.mrf.mxu0
    %6897 = vmatprep.mubr.f32.mxu0 0.0
    %6898 = vmatmul.mubr.f32.gmra.mxu0 %v6682
    %v6899 = vpop.f32.mrf.mxu0
    %v6900 = vadd.f32 0.0, %v6899
    %v6901 = vpop.f32.mrf.mxu0
    %6902 = vmatprep.mubr.f32.mxu0 0.0
    %6903 = vmatmul.mubr.f32.gmra.mxu0 %v6685
    %v6904 = vpop.f32.mrf.mxu0
    %v6905 = vadd.f32 0.0, %v6904
    %v6906 = vpop.f32.mrf.mxu0
    %6907 = vmatprep.mubr.f32.mxu0 0.0
    %6908 = vmatmul.mubr.f32.gmra.mxu0 %v6688
    %v6909 = vpop.f32.mrf.mxu0
    %v6910 = vadd.f32 0.0, %v6909
    %v6911 = vpop.f32.mrf.mxu0
    %6912 = vmatprep.mubr.f32.mxu0 0.0
    %6913 = vmatmul.mubr.f32.gmra.mxu0 %v6691
    %v6914 = vpop.f32.mrf.mxu0
    %v6915 = vadd.f32 0.0, %v6914
    %v6916 = vpop.f32.mrf.mxu0
    %6917 = vdwg.mxu0
    %v6918 = vadd.f32 %v6520, %v6760
    %v6919 = vadd.f32 %v6525, %v6765
    %v6920 = vadd.f32 %v6530, %v6770
    %v6921 = vadd.f32 %v6535, %v6775
    %v6922 = vadd.f32 %v6540, %v6780
    %v6923 = vadd.f32 %v6545, %v6785
    %v6924 = vadd.f32 %v6550, %v6790
    %v6925 = vadd.f32 %v6555, %v6795
    %v6926 = vadd.f32 %v6560, %v6800
    %v6927 = vadd.f32 %v6565, %v6805
    %v6928 = vadd.f32 %v6570, %v6810
    %v6929 = vadd.f32 %v6575, %v6815
    %v6930 = vadd.f32 %v6580, %v6820
    %v6931 = vadd.f32 %v6585, %v6825
    %v6932 = vadd.f32 %v6590, %v6830
    %v6933 = vadd.f32 %v6595, %v6835
    %v6934 = vadd.f32 %v6600, %v6840
    %v6935 = vadd.f32 %v6605, %v6845
    %v6936 = vadd.f32 %v6610, %v6850
    %v6937 = vadd.f32 %v6615, %v6855
    %v6938 = vadd.f32 %v6620, %v6860
    %v6939 = vadd.f32 %v6625, %v6865
    %v6940 = vadd.f32 %v6630, %v6870
    %v6941 = vadd.f32 %v6635, %v6875
    %v6942 = vadd.f32 %v6640, %v6880
    %v6943 = vadd.f32 %v6645, %v6885
    %v6944 = vadd.f32 %v6650, %v6890
    %v6945 = vadd.f32 %v6655, %v6895
    %v6946 = vadd.f32 %v6660, %v6900
    %v6947 = vadd.f32 %v6665, %v6905
    %v6948 = vadd.f32 %v6670, %v6910
    %v6949 = vadd.f32 %v6675, %v6915
    %s6950 = scalar_lea.vmem %s7, 48
    %v6951 = vld [vmem:[%s6950] sm:$0xff]
    %v6952 = vld [vmem:[%s6950 + $0x8] sm:$0xff]
    %v6954 = vsel %vm1635, %v6107, 0
    %v6957 = vsel %vm1635, %v6108, 0
    %v6960 = vsel %vm1635, %v6109, 0
    %v6963 = vsel %vm1635, %v6110, 0
    %6965 = vmatprep.subr.mxu0 0.0
    %6966 = vmatpush1.msra.mxu0 0.0
    %6967 = vmatprep.subr.mxu0 0.0
    %6968 = vmatpush1.msra.mxu0 0.0
    %6969 = vmatprep.subr.mxu0 0.0
    %6970 = vmatpush1.msra.mxu0 0.0
    %6971 = vmatprep.subr.mxu0 0.0
    %6972 = vmatpush1.msra.mxu0 0.0
    %6973 = vmatprep.subr.mxu0 0.0
    %6974 = vmatpush1.msra.mxu0 0.0
    %6975 = vmatprep.subr.mxu0 0.0
    %6976 = vmatpush1.msra.mxu0 0.0
    %6977 = vmatprep.subr.mxu0 0.0
    %6978 = vmatpush1.msra.mxu0 0.0
    %6979 = vmatprep.subr.mxu0 0.0
    %6980 = vmatpush1.msra.mxu0 0.0
    %6981 = vmatprep.subr.mxu0 0.0
    %6982 = vmatpush1.msra.mxu0 0.0
    %6983 = vmatprep.subr.mxu0 0.0
    %6984 = vmatpush1.msra.mxu0 0.0
    %6985 = vmatprep.subr.mxu0 0.0
    %6986 = vmatpush1.msra.mxu0 0.0
    %6987 = vmatprep.subr.mxu0 0.0
    %6988 = vmatpush1.msra.mxu0 0.0
    %6989 = vmatprep.subr.mxu0 0.0
    %6990 = vmatpush1.msra.mxu0 0.0
    %6991 = vmatprep.subr.mxu0 0.0
    %6992 = vmatpush1.msra.mxu0 0.0
    %6993 = vmatprep.subr.mxu0 0.0
    %6994 = vmatpush1.msra.mxu0 %v6952
    %6995 = vmatprep.subr.mxu0 0.0
    %6996 = vmatpush1.msra.mxu0 %v6951
    %6997 = vmatprep.subr.mxu0 0.0
    %6998 = vmatpush2.msra.mxu0 0.0
    %6999 = vmatprep.subr.mxu0 0.0
    %7000 = vmatpush2.msra.mxu0 0.0
    %7001 = vmatprep.subr.mxu0 0.0
    %7002 = vmatpush2.msra.mxu0 0.0
    %7003 = vmatprep.subr.mxu0 0.0
    %7004 = vmatpush2.msra.mxu0 0.0
    %7005 = vmatprep.subr.mxu0 0.0
    %7006 = vmatpush2.msra.mxu0 0.0
    %7007 = vmatprep.subr.mxu0 0.0
    %7008 = vmatpush2.msra.mxu0 0.0
    %7009 = vmatprep.subr.mxu0 0.0
    %7010 = vmatpush2.msra.mxu0 0.0
    %7011 = vmatprep.subr.mxu0 0.0
    %7012 = vmatpush2.msra.mxu0 0.0
    %7013 = vmatprep.subr.mxu0 0.0
    %7014 = vmatpush2.msra.mxu0 0.0
    %7015 = vmatprep.subr.mxu0 0.0
    %7016 = vmatpush2.msra.mxu0 0.0
    %7017 = vmatprep.subr.mxu0 0.0
    %7018 = vmatpush2.msra.mxu0 0.0
    %7019 = vmatprep.subr.mxu0 0.0
    %7020 = vmatpush2.msra.mxu0 0.0
    %7021 = vmatprep.subr.mxu0 0.0
    %7022 = vmatpush2.msra.mxu0 0.0
    %7023 = vmatprep.subr.mxu0 0.0
    %7024 = vmatpush2.msra.mxu0 0.0
    %7025 = vmatprep.subr.mxu0 0.0
    %7026 = vmatpush2.msra.mxu0 0.0
    %7027 = vmatprep.subr.mxu0 0.0
    %7028 = vmatpush2.msra.mxu0 0.0
    %7029 = vmatprep.mubr.f32.mxu0 0.0
    %7030 = vmatmul.mubr.f32.gmra.mxu0 %v6145
    %v7031 = vpop.f32.mrf.mxu0
    %v7032 = vadd.f32 0.0, %v7031
    %v7033 = vpop.f32.mrf.mxu0
    %7034 = vmatprep.mubr.f32.mxu0 0.0
    %7035 = vmatmul.mubr.f32.gmra.mxu0 %v6148
    %v7036 = vpop.f32.mrf.mxu0
    %v7037 = vadd.f32 0.0, %v7036
    %v7038 = vpop.f32.mrf.mxu0
    %7039 = vmatprep.mubr.f32.mxu0 0.0
    %7040 = vmatmul.mubr.f32.gmra.mxu0 %v6151
    %v7041 = vpop.f32.mrf.mxu0
    %v7042 = vadd.f32 0.0, %v7041
    %v7043 = vpop.f32.mrf.mxu0
    %7044 = vmatprep.mubr.f32.mxu0 0.0
    %7045 = vmatmul.mubr.f32.gmra.mxu0 %v6154
    %v7046 = vpop.f32.mrf.mxu0
    %v7047 = vadd.f32 0.0, %v7046
    %v7048 = vpop.f32.mrf.mxu0
    %7049 = vmatprep.mubr.f32.mxu0 0.0
    %7050 = vmatmul.mubr.f32.gmra.mxu0 %v6157
    %v7051 = vpop.f32.mrf.mxu0
    %v7052 = vadd.f32 0.0, %v7051
    %v7053 = vpop.f32.mrf.mxu0
    %7054 = vmatprep.mubr.f32.mxu0 0.0
    %7055 = vmatmul.mubr.f32.gmra.mxu0 %v6160
    %v7056 = vpop.f32.mrf.mxu0
    %v7057 = vadd.f32 0.0, %v7056
    %v7058 = vpop.f32.mrf.mxu0
    %7059 = vmatprep.mubr.f32.mxu0 0.0
    %7060 = vmatmul.mubr.f32.gmra.mxu0 %v6163
    %v7061 = vpop.f32.mrf.mxu0
    %v7062 = vadd.f32 0.0, %v7061
    %v7063 = vpop.f32.mrf.mxu0
    %7064 = vmatprep.mubr.f32.mxu0 0.0
    %7065 = vmatmul.mubr.f32.gmra.mxu0 %v6166
    %v7066 = vpop.f32.mrf.mxu0
    %v7067 = vadd.f32 0.0, %v7066
    %v7068 = vpop.f32.mrf.mxu0
    %7069 = vmatprep.mubr.f32.mxu0 0.0
    %7070 = vmatmul.mubr.f32.gmra.mxu0 %v6169
    %v7071 = vpop.f32.mrf.mxu0
    %v7072 = vadd.f32 0.0, %v7071
    %v7073 = vpop.f32.mrf.mxu0
    %7074 = vmatprep.mubr.f32.mxu0 0.0
    %7075 = vmatmul.mubr.f32.gmra.mxu0 %v6172
    %v7076 = vpop.f32.mrf.mxu0
    %v7077 = vadd.f32 0.0, %v7076
    %v7078 = vpop.f32.mrf.mxu0
    %7079 = vmatprep.mubr.f32.mxu0 0.0
    %7080 = vmatmul.mubr.f32.gmra.mxu0 %v6175
    %v7081 = vpop.f32.mrf.mxu0
    %v7082 = vadd.f32 0.0, %v7081
    %v7083 = vpop.f32.mrf.mxu0
    %7084 = vmatprep.mubr.f32.mxu0 0.0
    %7085 = vmatmul.mubr.f32.gmra.mxu0 %v6178
    %v7086 = vpop.f32.mrf.mxu0
    %v7087 = vadd.f32 0.0, %v7086
    %v7088 = vpop.f32.mrf.mxu0
    %7089 = vmatprep.mubr.f32.mxu0 0.0
    %7090 = vmatmul.mubr.f32.gmra.mxu0 %v6181
    %v7091 = vpop.f32.mrf.mxu0
    %v7092 = vadd.f32 0.0, %v7091
    %v7093 = vpop.f32.mrf.mxu0
    %7094 = vmatprep.mubr.f32.mxu0 0.0
    %7095 = vmatmul.mubr.f32.gmra.mxu0 %v6184
    %v7096 = vpop.f32.mrf.mxu0
    %v7097 = vadd.f32 0.0, %v7096
    %v7098 = vpop.f32.mrf.mxu0
    %7099 = vmatprep.mubr.f32.mxu0 0.0
    %7100 = vmatmul.mubr.f32.gmra.mxu0 %v6187
    %v7101 = vpop.f32.mrf.mxu0
    %v7102 = vadd.f32 0.0, %v7101
    %v7103 = vpop.f32.mrf.mxu0
    %7104 = vmatprep.mubr.f32.mxu0 0.0
    %7105 = vmatmul.mubr.f32.gmra.mxu0 %v6190
    %v7106 = vpop.f32.mrf.mxu0
    %v7107 = vadd.f32 0.0, %v7106
    %v7108 = vpop.f32.mrf.mxu0
    %7109 = vmatprep.mubr.f32.mxu0 0.0
    %7110 = vmatmul.mubr.f32.gmra.mxu0 %v6193
    %v7111 = vpop.f32.mrf.mxu0
    %v7112 = vadd.f32 0.0, %v7111
    %v7113 = vpop.f32.mrf.mxu0
    %7114 = vmatprep.mubr.f32.mxu0 0.0
    %7115 = vmatmul.mubr.f32.gmra.mxu0 %v6196
    %v7116 = vpop.f32.mrf.mxu0
    %v7117 = vadd.f32 0.0, %v7116
    %v7118 = vpop.f32.mrf.mxu0
    %7119 = vmatprep.mubr.f32.mxu0 0.0
    %7120 = vmatmul.mubr.f32.gmra.mxu0 %v6199
    %v7121 = vpop.f32.mrf.mxu0
    %v7122 = vadd.f32 0.0, %v7121
    %v7123 = vpop.f32.mrf.mxu0
    %7124 = vmatprep.mubr.f32.mxu0 0.0
    %7125 = vmatmul.mubr.f32.gmra.mxu0 %v6202
    %v7126 = vpop.f32.mrf.mxu0
    %v7127 = vadd.f32 0.0, %v7126
    %v7128 = vpop.f32.mrf.mxu0
    %7129 = vmatprep.mubr.f32.mxu0 0.0
    %7130 = vmatmul.mubr.f32.gmra.mxu0 %v6205
    %v7131 = vpop.f32.mrf.mxu0
    %v7132 = vadd.f32 0.0, %v7131
    %v7133 = vpop.f32.mrf.mxu0
    %7134 = vmatprep.mubr.f32.mxu0 0.0
    %7135 = vmatmul.mubr.f32.gmra.mxu0 %v6208
    %v7136 = vpop.f32.mrf.mxu0
    %v7137 = vadd.f32 0.0, %v7136
    %v7138 = vpop.f32.mrf.mxu0
    %7139 = vmatprep.mubr.f32.mxu0 0.0
    %7140 = vmatmul.mubr.f32.gmra.mxu0 %v6211
    %v7141 = vpop.f32.mrf.mxu0
    %v7142 = vadd.f32 0.0, %v7141
    %v7143 = vpop.f32.mrf.mxu0
    %7144 = vmatprep.mubr.f32.mxu0 0.0
    %7145 = vmatmul.mubr.f32.gmra.mxu0 %v6214
    %v7146 = vpop.f32.mrf.mxu0
    %v7147 = vadd.f32 0.0, %v7146
    %v7148 = vpop.f32.mrf.mxu0
    %7149 = vmatprep.mubr.f32.mxu0 0.0
    %7150 = vmatmul.mubr.f32.gmra.mxu0 %v6682
    %v7151 = vpop.f32.mrf.mxu0
    %v7152 = vadd.f32 0.0, %v7151
    %v7153 = vpop.f32.mrf.mxu0
    %7154 = vmatprep.mubr.f32.mxu0 0.0
    %7155 = vmatmul.mubr.f32.gmra.mxu0 %v6685
    %v7156 = vpop.f32.mrf.mxu0
    %v7157 = vadd.f32 0.0, %v7156
    %v7158 = vpop.f32.mrf.mxu0
    %7159 = vmatprep.mubr.f32.mxu0 0.0
    %7160 = vmatmul.mubr.f32.gmra.mxu0 %v6688
    %v7161 = vpop.f32.mrf.mxu0
    %v7162 = vadd.f32 0.0, %v7161
    %v7163 = vpop.f32.mrf.mxu0
    %7164 = vmatprep.mubr.f32.mxu0 0.0
    %7165 = vmatmul.mubr.f32.gmra.mxu0 %v6691
    %v7166 = vpop.f32.mrf.mxu0
    %v7167 = vadd.f32 0.0, %v7166
    %v7168 = vpop.f32.mrf.mxu0
    %7169 = vmatprep.mubr.f32.mxu0 0.0
    %7170 = vmatmul.mubr.f32.gmra.mxu0 %v6954
    %v7171 = vpop.f32.mrf.mxu0
    %v7172 = vadd.f32 0.0, %v7171
    %v7173 = vpop.f32.mrf.mxu0
    %7174 = vmatprep.mubr.f32.mxu0 0.0
    %7175 = vmatmul.mubr.f32.gmra.mxu0 %v6957
    %v7176 = vpop.f32.mrf.mxu0
    %v7177 = vadd.f32 0.0, %v7176
    %v7178 = vpop.f32.mrf.mxu0
    %7179 = vmatprep.mubr.f32.mxu0 0.0
    %7180 = vmatmul.mubr.f32.gmra.mxu0 %v6960
    %v7181 = vpop.f32.mrf.mxu0
    %v7182 = vadd.f32 0.0, %v7181
    %v7183 = vpop.f32.mrf.mxu0
    %7184 = vmatprep.mubr.f32.mxu0 0.0
    %7185 = vmatmul.mubr.f32.gmra.mxu0 %v6963
    %v7186 = vpop.f32.mrf.mxu0
    %v7187 = vadd.f32 0.0, %v7186
    %v7188 = vpop.f32.mrf.mxu0
    %7189 = vdwg.mxu0
    %v7190 = vadd.f32 %v6918, %v7032
    %v7191 = vadd.f32 %v6919, %v7037
    %v7192 = vadd.f32 %v6920, %v7042
    %v7193 = vadd.f32 %v6921, %v7047
    %v7194 = vadd.f32 %v6922, %v7052
    %v7195 = vadd.f32 %v6923, %v7057
    %v7196 = vadd.f32 %v6924, %v7062
    %v7197 = vadd.f32 %v6925, %v7067
    %v7198 = vadd.f32 %v6926, %v7072
    %v7199 = vadd.f32 %v6927, %v7077
    %v7200 = vadd.f32 %v6928, %v7082
    %v7201 = vadd.f32 %v6929, %v7087
    %v7202 = vadd.f32 %v6930, %v7092
    %v7203 = vadd.f32 %v6931, %v7097
    %v7204 = vadd.f32 %v6932, %v7102
    %v7205 = vadd.f32 %v6933, %v7107
    %v7206 = vadd.f32 %v6934, %v7112
    %v7207 = vadd.f32 %v6935, %v7117
    %v7208 = vadd.f32 %v6936, %v7122
    %v7209 = vadd.f32 %v6937, %v7127
    %v7210 = vadd.f32 %v6938, %v7132
    %v7211 = vadd.f32 %v6939, %v7137
    %v7212 = vadd.f32 %v6940, %v7142
    %v7213 = vadd.f32 %v6941, %v7147
    %v7214 = vadd.f32 %v6942, %v7152
    %v7215 = vadd.f32 %v6943, %v7157
    %v7216 = vadd.f32 %v6944, %v7162
    %v7217 = vadd.f32 %v6945, %v7167
    %v7218 = vadd.f32 %v6946, %v7172
    %v7219 = vadd.f32 %v6947, %v7177
    %v7220 = vadd.f32 %v6948, %v7182
    %v7221 = vadd.f32 %v6949, %v7187
    %s7222 = scalar_lea.vmem %s7, 64
    %v7223 = vld [vmem:[%s7222] sm:$0xff]
    %v7224 = vld [vmem:[%s7222 + $0x8] sm:$0xff]
    %v7226 = vsel %vm1635, %v6111, 0
    %v7229 = vsel %vm1635, %v6112, 0
    %v7232 = vsel %vm1635, %v6113, 0
    %v7235 = vsel %vm1635, %v6114, 0
    %7237 = vmatprep.subr.mxu0 0.0
    %7238 = vmatpush1.msra.mxu0 0.0
    %7239 = vmatprep.subr.mxu0 0.0
    %7240 = vmatpush1.msra.mxu0 0.0
    %7241 = vmatprep.subr.mxu0 0.0
    %7242 = vmatpush1.msra.mxu0 0.0
    %7243 = vmatprep.subr.mxu0 0.0
    %7244 = vmatpush1.msra.mxu0 0.0
    %7245 = vmatprep.subr.mxu0 0.0
    %7246 = vmatpush1.msra.mxu0 0.0
    %7247 = vmatprep.subr.mxu0 0.0
    %7248 = vmatpush1.msra.mxu0 0.0
    %7249 = vmatprep.subr.mxu0 0.0
    %7250 = vmatpush1.msra.mxu0 0.0
    %7251 = vmatprep.subr.mxu0 0.0
    %7252 = vmatpush1.msra.mxu0 0.0
    %7253 = vmatprep.subr.mxu0 0.0
    %7254 = vmatpush1.msra.mxu0 0.0
    %7255 = vmatprep.subr.mxu0 0.0
    %7256 = vmatpush1.msra.mxu0 0.0
    %7257 = vmatprep.subr.mxu0 0.0
    %7258 = vmatpush1.msra.mxu0 0.0
    %7259 = vmatprep.subr.mxu0 0.0
    %7260 = vmatpush1.msra.mxu0 0.0
    %7261 = vmatprep.subr.mxu0 0.0
    %7262 = vmatpush1.msra.mxu0 0.0
    %7263 = vmatprep.subr.mxu0 0.0
    %7264 = vmatpush1.msra.mxu0 0.0
    %7265 = vmatprep.subr.mxu0 0.0
    %7266 = vmatpush1.msra.mxu0 %v7224
    %7267 = vmatprep.subr.mxu0 0.0
    %7268 = vmatpush1.msra.mxu0 %v7223
    %7269 = vmatprep.subr.mxu0 0.0
    %7270 = vmatpush2.msra.mxu0 0.0
    %7271 = vmatprep.subr.mxu0 0.0
    %7272 = vmatpush2.msra.mxu0 0.0
    %7273 = vmatprep.subr.mxu0 0.0
    %7274 = vmatpush2.msra.mxu0 0.0
    %7275 = vmatprep.subr.mxu0 0.0
    %7276 = vmatpush2.msra.mxu0 0.0
    %7277 = vmatprep.subr.mxu0 0.0
    %7278 = vmatpush2.msra.mxu0 0.0
    %7279 = vmatprep.subr.mxu0 0.0
    %7280 = vmatpush2.msra.mxu0 0.0
    %7281 = vmatprep.subr.mxu0 0.0
    %7282 = vmatpush2.msra.mxu0 0.0
    %7283 = vmatprep.subr.mxu0 0.0
    %7284 = vmatpush2.msra.mxu0 0.0
    %7285 = vmatprep.subr.mxu0 0.0
    %7286 = vmatpush2.msra.mxu0 0.0
    %7287 = vmatprep.subr.mxu0 0.0
    %7288 = vmatpush2.msra.mxu0 0.0
    %7289 = vmatprep.subr.mxu0 0.0
    %7290 = vmatpush2.msra.mxu0 0.0
    %7291 = vmatprep.subr.mxu0 0.0
    %7292 = vmatpush2.msra.mxu0 0.0
    %7293 = vmatprep.subr.mxu0 0.0
    %7294 = vmatpush2.msra.mxu0 0.0
    %7295 = vmatprep.subr.mxu0 0.0
    %7296 = vmatpush2.msra.mxu0 0.0
    %7297 = vmatprep.subr.mxu0 0.0
    %7298 = vmatpush2.msra.mxu0 0.0
    %7299 = vmatprep.subr.mxu0 0.0
    %7300 = vmatpush2.msra.mxu0 0.0
    %7301 = vmatprep.mubr.f32.mxu0 0.0
    %7302 = vmatmul.mubr.f32.gmra.mxu0 %v6157
    %v7303 = vpop.f32.mrf.mxu0
    %v7304 = vadd.f32 0.0, %v7303
    %v7305 = vpop.f32.mrf.mxu0
    %7306 = vmatprep.mubr.f32.mxu0 0.0
    %7307 = vmatmul.mubr.f32.gmra.mxu0 %v6160
    %v7308 = vpop.f32.mrf.mxu0
    %v7309 = vadd.f32 0.0, %v7308
    %v7310 = vpop.f32.mrf.mxu0
    %7311 = vmatprep.mubr.f32.mxu0 0.0
    %7312 = vmatmul.mubr.f32.gmra.mxu0 %v6163
    %v7313 = vpop.f32.mrf.mxu0
    %v7314 = vadd.f32 0.0, %v7313
    %v7315 = vpop.f32.mrf.mxu0
    %7316 = vmatprep.mubr.f32.mxu0 0.0
    %7317 = vmatmul.mubr.f32.gmra.mxu0 %v6166
    %v7318 = vpop.f32.mrf.mxu0
    %v7319 = vadd.f32 0.0, %v7318
    %v7320 = vpop.f32.mrf.mxu0
    %7321 = vmatprep.mubr.f32.mxu0 0.0
    %7322 = vmatmul.mubr.f32.gmra.mxu0 %v6169
    %v7323 = vpop.f32.mrf.mxu0
    %v7324 = vadd.f32 0.0, %v7323
    %v7325 = vpop.f32.mrf.mxu0
    %7326 = vmatprep.mubr.f32.mxu0 0.0
    %7327 = vmatmul.mubr.f32.gmra.mxu0 %v6172
    %v7328 = vpop.f32.mrf.mxu0
    %v7329 = vadd.f32 0.0, %v7328
    %v7330 = vpop.f32.mrf.mxu0
    %7331 = vmatprep.mubr.f32.mxu0 0.0
    %7332 = vmatmul.mubr.f32.gmra.mxu0 %v6175
    %v7333 = vpop.f32.mrf.mxu0
    %v7334 = vadd.f32 0.0, %v7333
    %v7335 = vpop.f32.mrf.mxu0
    %7336 = vmatprep.mubr.f32.mxu0 0.0
    %7337 = vmatmul.mubr.f32.gmra.mxu0 %v6178
    %v7338 = vpop.f32.mrf.mxu0
    %v7339 = vadd.f32 0.0, %v7338
    %v7340 = vpop.f32.mrf.mxu0
    %7341 = vmatprep.mubr.f32.mxu0 0.0
    %7342 = vmatmul.mubr.f32.gmra.mxu0 %v6181
    %v7343 = vpop.f32.mrf.mxu0
    %v7344 = vadd.f32 0.0, %v7343
    %v7345 = vpop.f32.mrf.mxu0
    %7346 = vmatprep.mubr.f32.mxu0 0.0
    %7347 = vmatmul.mubr.f32.gmra.mxu0 %v6184
    %v7348 = vpop.f32.mrf.mxu0
    %v7349 = vadd.f32 0.0, %v7348
    %v7350 = vpop.f32.mrf.mxu0
    %7351 = vmatprep.mubr.f32.mxu0 0.0
    %7352 = vmatmul.mubr.f32.gmra.mxu0 %v6187
    %v7353 = vpop.f32.mrf.mxu0
    %v7354 = vadd.f32 0.0, %v7353
    %v7355 = vpop.f32.mrf.mxu0
    %7356 = vmatprep.mubr.f32.mxu0 0.0
    %7357 = vmatmul.mubr.f32.gmra.mxu0 %v6190
    %v7358 = vpop.f32.mrf.mxu0
    %v7359 = vadd.f32 0.0, %v7358
    %v7360 = vpop.f32.mrf.mxu0
    %7361 = vmatprep.mubr.f32.mxu0 0.0
    %7362 = vmatmul.mubr.f32.gmra.mxu0 %v6193
    %v7363 = vpop.f32.mrf.mxu0
    %v7364 = vadd.f32 0.0, %v7363
    %v7365 = vpop.f32.mrf.mxu0
    %7366 = vmatprep.mubr.f32.mxu0 0.0
    %7367 = vmatmul.mubr.f32.gmra.mxu0 %v6196
    %v7368 = vpop.f32.mrf.mxu0
    %v7369 = vadd.f32 0.0, %v7368
    %v7370 = vpop.f32.mrf.mxu0
    %7371 = vmatprep.mubr.f32.mxu0 0.0
    %7372 = vmatmul.mubr.f32.gmra.mxu0 %v6199
    %v7373 = vpop.f32.mrf.mxu0
    %v7374 = vadd.f32 0.0, %v7373
    %v7375 = vpop.f32.mrf.mxu0
    %7376 = vmatprep.mubr.f32.mxu0 0.0
    %7377 = vmatmul.mubr.f32.gmra.mxu0 %v6202
    %v7378 = vpop.f32.mrf.mxu0
    %v7379 = vadd.f32 0.0, %v7378
    %v7380 = vpop.f32.mrf.mxu0
    %7381 = vmatprep.mubr.f32.mxu0 0.0
    %7382 = vmatmul.mubr.f32.gmra.mxu0 %v6205
    %v7383 = vpop.f32.mrf.mxu0
    %v7384 = vadd.f32 0.0, %v7383
    %v7385 = vpop.f32.mrf.mxu0
    %7386 = vmatprep.mubr.f32.mxu0 0.0
    %7387 = vmatmul.mubr.f32.gmra.mxu0 %v6208
    %v7388 = vpop.f32.mrf.mxu0
    %v7389 = vadd.f32 0.0, %v7388
    %v7390 = vpop.f32.mrf.mxu0
    %7391 = vmatprep.mubr.f32.mxu0 0.0
    %7392 = vmatmul.mubr.f32.gmra.mxu0 %v6211
    %v7393 = vpop.f32.mrf.mxu0
    %v7394 = vadd.f32 0.0, %v7393
    %v7395 = vpop.f32.mrf.mxu0
    %7396 = vmatprep.mubr.f32.mxu0 0.0
    %7397 = vmatmul.mubr.f32.gmra.mxu0 %v6214
    %v7398 = vpop.f32.mrf.mxu0
    %v7399 = vadd.f32 0.0, %v7398
    %v7400 = vpop.f32.mrf.mxu0
    %7401 = vmatprep.mubr.f32.mxu0 0.0
    %7402 = vmatmul.mubr.f32.gmra.mxu0 %v6682
    %v7403 = vpop.f32.mrf.mxu0
    %v7404 = vadd.f32 0.0, %v7403
    %v7405 = vpop.f32.mrf.mxu0
    %7406 = vmatprep.mubr.f32.mxu0 0.0
    %7407 = vmatmul.mubr.f32.gmra.mxu0 %v6685
    %v7408 = vpop.f32.mrf.mxu0
    %v7409 = vadd.f32 0.0, %v7408
    %v7410 = vpop.f32.mrf.mxu0
    %7411 = vmatprep.mubr.f32.mxu0 0.0
    %7412 = vmatmul.mubr.f32.gmra.mxu0 %v6688
    %v7413 = vpop.f32.mrf.mxu0
    %v7414 = vadd.f32 0.0, %v7413
    %v7415 = vpop.f32.mrf.mxu0
    %7416 = vmatprep.mubr.f32.mxu0 0.0
    %7417 = vmatmul.mubr.f32.gmra.mxu0 %v6691
    %v7418 = vpop.f32.mrf.mxu0
    %v7419 = vadd.f32 0.0, %v7418
    %v7420 = vpop.f32.mrf.mxu0
    %7421 = vmatprep.mubr.f32.mxu0 0.0
    %7422 = vmatmul.mubr.f32.gmra.mxu0 %v6954
    %v7423 = vpop.f32.mrf.mxu0
    %v7424 = vadd.f32 0.0, %v7423
    %v7425 = vpop.f32.mrf.mxu0
    %7426 = vmatprep.mubr.f32.mxu0 0.0
    %7427 = vmatmul.mubr.f32.gmra.mxu0 %v6957
    %v7428 = vpop.f32.mrf.mxu0
    %v7429 = vadd.f32 0.0, %v7428
    %v7430 = vpop.f32.mrf.mxu0
    %7431 = vmatprep.mubr.f32.mxu0 0.0
    %7432 = vmatmul.mubr.f32.gmra.mxu0 %v6960
    %v7433 = vpop.f32.mrf.mxu0
    %v7434 = vadd.f32 0.0, %v7433
    %v7435 = vpop.f32.mrf.mxu0
    %7436 = vmatprep.mubr.f32.mxu0 0.0
    %7437 = vmatmul.mubr.f32.gmra.mxu0 %v6963
    %v7438 = vpop.f32.mrf.mxu0
    %v7439 = vadd.f32 0.0, %v7438
    %v7440 = vpop.f32.mrf.mxu0
    %7441 = vmatprep.mubr.f32.mxu0 0.0
    %7442 = vmatmul.mubr.f32.gmra.mxu0 %v7226
    %v7443 = vpop.f32.mrf.mxu0
    %v7444 = vadd.f32 0.0, %v7443
    %v7445 = vpop.f32.mrf.mxu0
    %7446 = vmatprep.mubr.f32.mxu0 0.0
    %7447 = vmatmul.mubr.f32.gmra.mxu0 %v7229
    %v7448 = vpop.f32.mrf.mxu0
    %v7449 = vadd.f32 0.0, %v7448
    %v7450 = vpop.f32.mrf.mxu0
    %7451 = vmatprep.mubr.f32.mxu0 0.0
    %7452 = vmatmul.mubr.f32.gmra.mxu0 %v7232
    %v7453 = vpop.f32.mrf.mxu0
    %v7454 = vadd.f32 0.0, %v7453
    %v7455 = vpop.f32.mrf.mxu0
    %7456 = vmatprep.mubr.f32.mxu0 0.0
    %7457 = vmatmul.mubr.f32.gmra.mxu0 %v7235
    %v7458 = vpop.f32.mrf.mxu0
    %v7459 = vadd.f32 0.0, %v7458
    %v7460 = vpop.f32.mrf.mxu0
    %7461 = vdwg.mxu0
    %v7462 = vadd.f32 %v7190, %v7304
    %v7463 = vadd.f32 %v7191, %v7309
    %v7464 = vadd.f32 %v7192, %v7314
    %v7465 = vadd.f32 %v7193, %v7319
    %v7466 = vadd.f32 %v7194, %v7324
    %v7467 = vadd.f32 %v7195, %v7329
    %v7468 = vadd.f32 %v7196, %v7334
    %v7469 = vadd.f32 %v7197, %v7339
    %v7470 = vadd.f32 %v7198, %v7344
    %v7471 = vadd.f32 %v7199, %v7349
    %v7472 = vadd.f32 %v7200, %v7354
    %v7473 = vadd.f32 %v7201, %v7359
    %v7474 = vadd.f32 %v7202, %v7364
    %v7475 = vadd.f32 %v7203, %v7369
    %v7476 = vadd.f32 %v7204, %v7374
    %v7477 = vadd.f32 %v7205, %v7379
    %v7478 = vadd.f32 %v7206, %v7384
    %v7479 = vadd.f32 %v7207, %v7389
    %v7480 = vadd.f32 %v7208, %v7394
    %v7481 = vadd.f32 %v7209, %v7399
    %v7482 = vadd.f32 %v7210, %v7404
    %v7483 = vadd.f32 %v7211, %v7409
    %v7484 = vadd.f32 %v7212, %v7414
    %v7485 = vadd.f32 %v7213, %v7419
    %v7486 = vadd.f32 %v7214, %v7424
    %v7487 = vadd.f32 %v7215, %v7429
    %v7488 = vadd.f32 %v7216, %v7434
    %v7489 = vadd.f32 %v7217, %v7439
    %v7490 = vadd.f32 %v7218, %v7444
    %v7491 = vadd.f32 %v7219, %v7449
    %v7492 = vadd.f32 %v7220, %v7454
    %v7493 = vadd.f32 %v7221, %v7459
    %v7494 = vld [vmem:[%s8] sm:$0x1]
    %v7496 = vlaneseq
    %v7497 = vshrl.u32 %v7496, 7
    %v7498 = vsub.s32 0, %v7497
    %v7499 = vrot.slane %v7494, %v7498
    %v7501 = vadd.f32 %v7462, %v7499
    %v7502 = vadd.f32 %v7463, %v7499
    %v7503 = vadd.f32 %v7464, %v7499
    %v7504 = vadd.f32 %v7465, %v7499
    %v7505 = vadd.f32 %v7466, %v7499
    %v7506 = vadd.f32 %v7467, %v7499
    %v7507 = vadd.f32 %v7468, %v7499
    %v7508 = vadd.f32 %v7469, %v7499
    %v7509 = vadd.f32 %v7470, %v7499
    %v7510 = vadd.f32 %v7471, %v7499
    %v7511 = vadd.f32 %v7472, %v7499
    %v7512 = vadd.f32 %v7473, %v7499
    %v7513 = vadd.f32 %v7474, %v7499
    %v7514 = vadd.f32 %v7475, %v7499
    %v7515 = vadd.f32 %v7476, %v7499
    %v7516 = vadd.f32 %v7477, %v7499
    %v7517 = vadd.f32 %v7478, %v7499
    %v7518 = vadd.f32 %v7479, %v7499
    %v7519 = vadd.f32 %v7480, %v7499
    %v7520 = vadd.f32 %v7481, %v7499
    %v7521 = vadd.f32 %v7482, %v7499
    %v7522 = vadd.f32 %v7483, %v7499
    %v7523 = vadd.f32 %v7484, %v7499
    %v7524 = vadd.f32 %v7485, %v7499
    %v7525 = vadd.f32 %v7486, %v7499
    %v7526 = vadd.f32 %v7487, %v7499
    %v7527 = vadd.f32 %v7488, %v7499
    %v7528 = vadd.f32 %v7489, %v7499
    %v7529 = vadd.f32 %v7490, %v7499
    %v7530 = vadd.f32 %v7491, %v7499
    %v7531 = vadd.f32 %v7492, %v7499
    %v7532 = vadd.f32 %v7493, %v7499
    %v7533 = vmax.f32 %v7501, 0.0
    %v7534 = vmax.f32 %v7502, 0.0
    %v7535 = vmax.f32 %v7503, 0.0
    %v7536 = vmax.f32 %v7504, 0.0
    %v7537 = vmax.f32 %v7505, 0.0
    %v7538 = vmax.f32 %v7506, 0.0
    %v7539 = vmax.f32 %v7507, 0.0
    %v7540 = vmax.f32 %v7508, 0.0
    %v7541 = vmax.f32 %v7509, 0.0
    %v7542 = vmax.f32 %v7510, 0.0
    %v7543 = vmax.f32 %v7511, 0.0
    %v7544 = vmax.f32 %v7512, 0.0
    %v7545 = vmax.f32 %v7513, 0.0
    %v7546 = vmax.f32 %v7514, 0.0
    %v7547 = vmax.f32 %v7515, 0.0
    %v7548 = vmax.f32 %v7516, 0.0
    %v7549 = vmax.f32 %v7517, 0.0
    %v7550 = vmax.f32 %v7518, 0.0
    %v7551 = vmax.f32 %v7519, 0.0
    %v7552 = vmax.f32 %v7520, 0.0
    %v7553 = vmax.f32 %v7521, 0.0
    %v7554 = vmax.f32 %v7522, 0.0
    %v7555 = vmax.f32 %v7523, 0.0
    %v7556 = vmax.f32 %v7524, 0.0
    %v7557 = vmax.f32 %v7525, 0.0
    %v7558 = vmax.f32 %v7526, 0.0
    %v7559 = vmax.f32 %v7527, 0.0
    %v7560 = vmax.f32 %v7528, 0.0
    %v7561 = vmax.f32 %v7529, 0.0
    %v7562 = vmax.f32 %v7530, 0.0
    %v7563 = vmax.f32 %v7531, 0.0
    %v7564 = vmax.f32 %v7532, 0.0
    %v7565 = vld [vmem:[%s9] sm:$0xff]
    %v7566 = vld [vmem:[%s9 + $0x8] sm:$0xff]
    %v7567 = vld [vmem:[%s9 + $0x10] sm:$0xff]
    %v7568 = vld [vmem:[%s9 + $0x18] sm:$0xff]
    %v7569 = vld [vmem:[%s9 + $0x20] sm:$0xff]
    %v7570 = vld [vmem:[%s9 + $0x28] sm:$0xff]
    %v7571 = vld [vmem:[%s9 + $0x30] sm:$0xff]
    %v7572 = vld [vmem:[%s9 + $0x38] sm:$0xff]
    %v7574 = vsel %vm1635, %v7533, 0
    %v7577 = vsel %vm1635, %v7534, 0
    %v7580 = vsel %vm1635, %v7535, 0
    %v7583 = vsel %vm1635, %v7536, 0
    %v7586 = vsel %vm1635, %v7537, 0
    %v7589 = vsel %vm1635, %v7538, 0
    %v7592 = vsel %vm1635, %v7539, 0
    %v7595 = vsel %vm1635, %v7540, 0
    %v7598 = vsel %vm1635, %v7541, 0
    %v7601 = vsel %vm1635, %v7542, 0
    %v7604 = vsel %vm1635, %v7543, 0
    %v7607 = vsel %vm1635, %v7544, 0
    %v7610 = vsel %vm1635, %v7545, 0
    %v7613 = vsel %vm1635, %v7546, 0
    %v7616 = vsel %vm1635, %v7547, 0
    %v7619 = vsel %vm1635, %v7548, 0
    %v7622 = vsel %vm1635, %v7549, 0
    %v7625 = vsel %vm1635, %v7550, 0
    %v7628 = vsel %vm1635, %v7551, 0
    %v7631 = vsel %vm1635, %v7552, 0
    %v7634 = vsel %vm1635, %v7553, 0
    %v7637 = vsel %vm1635, %v7554, 0
    %v7640 = vsel %vm1635, %v7555, 0
    %v7643 = vsel %vm1635, %v7556, 0
    %v7646 = vsel %vm1635, %v7557, 0
    %v7649 = vsel %vm1635, %v7558, 0
    %v7652 = vsel %vm1635, %v7559, 0
    %v7655 = vsel %vm1635, %v7560, 0
    %v7658 = vsel %vm1635, %v7561, 0
    %v7661 = vsel %vm1635, %v7562, 0
    %v7664 = vsel %vm1635, %v7563, 0
    %v7667 = vsel %vm1635, %v7564, 0
    %7669 = vmatprep.subr.mxu0 0.0
    %7670 = vmatpush1.msra.mxu0 0.0
    %7671 = vmatprep.subr.mxu0 0.0
    %7672 = vmatpush1.msra.mxu0 0.0
    %7673 = vmatprep.subr.mxu0 0.0
    %7674 = vmatpush1.msra.mxu0 0.0
    %7675 = vmatprep.subr.mxu0 0.0
    %7676 = vmatpush1.msra.mxu0 0.0
    %7677 = vmatprep.subr.mxu0 0.0
    %7678 = vmatpush1.msra.mxu0 0.0
    %7679 = vmatprep.subr.mxu0 0.0
    %7680 = vmatpush1.msra.mxu0 0.0
    %7681 = vmatprep.subr.mxu0 0.0
    %7682 = vmatpush1.msra.mxu0 0.0
    %7683 = vmatprep.subr.mxu0 0.0
    %7684 = vmatpush1.msra.mxu0 0.0
    %7685 = vmatprep.subr.mxu0 0.0
    %7686 = vmatpush1.msra.mxu0 0.0
    %7687 = vmatprep.subr.mxu0 0.0
    %7688 = vmatpush1.msra.mxu0 0.0
    %7689 = vmatprep.subr.mxu0 0.0
    %7690 = vmatpush1.msra.mxu0 0.0
    %7691 = vmatprep.subr.mxu0 0.0
    %7692 = vmatpush1.msra.mxu0 0.0
    %7693 = vmatprep.subr.mxu0 0.0
    %7694 = vmatpush1.msra.mxu0 0.0
    %7695 = vmatprep.subr.mxu0 0.0
    %7696 = vmatpush1.msra.mxu0 0.0
    %7697 = vmatprep.subr.mxu0 %v7570
    %7698 = vmatpush1.msra.mxu0 %v7569
    %7699 = vmatprep.subr.mxu0 %v7566
    %7700 = vmatpush1.msra.mxu0 %v7565
    %7701 = vmatprep.subr.mxu0 0.0
    %7702 = vmatpush2.msra.mxu0 0.0
    %7703 = vmatprep.subr.mxu0 0.0
    %7704 = vmatpush2.msra.mxu0 0.0
    %7705 = vmatprep.subr.mxu0 0.0
    %7706 = vmatpush2.msra.mxu0 0.0
    %7707 = vmatprep.subr.mxu0 0.0
    %7708 = vmatpush2.msra.mxu0 0.0
    %7709 = vmatprep.subr.mxu0 0.0
    %7710 = vmatpush2.msra.mxu0 0.0
    %7711 = vmatprep.subr.mxu0 0.0
    %7712 = vmatpush2.msra.mxu0 0.0
    %7713 = vmatprep.subr.mxu0 0.0
    %7714 = vmatpush2.msra.mxu0 0.0
    %7715 = vmatprep.subr.mxu0 0.0
    %7716 = vmatpush2.msra.mxu0 0.0
    %7717 = vmatprep.subr.mxu0 0.0
    %7718 = vmatpush2.msra.mxu0 0.0
    %7719 = vmatprep.subr.mxu0 0.0
    %7720 = vmatpush2.msra.mxu0 0.0
    %7721 = vmatprep.subr.mxu0 0.0
    %7722 = vmatpush2.msra.mxu0 0.0
    %7723 = vmatprep.subr.mxu0 0.0
    %7724 = vmatpush2.msra.mxu0 0.0
    %7725 = vmatprep.subr.mxu0 0.0
    %7726 = vmatpush2.msra.mxu0 0.0
    %7727 = vmatprep.subr.mxu0 0.0
    %7728 = vmatpush2.msra.mxu0 0.0
    %7729 = vmatprep.subr.mxu0 0.0
    %7730 = vmatpush2.msra.mxu0 0.0
    %7731 = vmatprep.subr.mxu0 0.0
    %7732 = vmatpush2.msra.mxu0 0.0
    %7733 = vmatprep.mubr.f32.mxu0 0.0
    %7734 = vmatmul.mubr.f32.gmra.mxu0 %v7574
    %v7735 = vpop.f32.mrf.mxu0
    %v7736 = vadd.f32 0.0, %v7735
    %v7737 = vpop.f32.mrf.mxu0
    %7738 = vmatprep.mubr.f32.mxu0 0.0
    %7739 = vmatmul.mubr.f32.gmra.mxu0 %v7577
    %v7740 = vpop.f32.mrf.mxu0
    %v7741 = vpop.f32.mrf.mxu0
    %v7742 = vadd.f32 0.0, %v7741
    %7743 = vmatprep.mubr.f32.mxu0 0.0
    %7744 = vmatmul.mubr.f32.gmra.mxu0 %v7580
    %v7745 = vpop.f32.mrf.mxu0
    %v7746 = vpop.f32.mrf.mxu0
    %7747 = vmatprep.mubr.f32.mxu0 0.0
    %7748 = vmatmul.mubr.f32.gmra.mxu0 %v7583
    %v7749 = vpop.f32.mrf.mxu0
    %v7750 = vpop.f32.mrf.mxu0
    %7751 = vmatprep.mubr.f32.mxu0 0.0
    %7752 = vmatmul.mubr.f32.gmra.mxu0 %v7586
    %v7753 = vpop.f32.mrf.mxu0
    %v7754 = vadd.f32 0.0, %v7753
    %v7755 = vpop.f32.mrf.mxu0
    %7756 = vmatprep.mubr.f32.mxu0 0.0
    %7757 = vmatmul.mubr.f32.gmra.mxu0 %v7589
    %v7758 = vpop.f32.mrf.mxu0
    %v7759 = vpop.f32.mrf.mxu0
    %v7760 = vadd.f32 0.0, %v7759
    %7761 = vmatprep.mubr.f32.mxu0 0.0
    %7762 = vmatmul.mubr.f32.gmra.mxu0 %v7592
    %v7763 = vpop.f32.mrf.mxu0
    %v7764 = vpop.f32.mrf.mxu0
    %7765 = vmatprep.mubr.f32.mxu0 0.0
    %7766 = vmatmul.mubr.f32.gmra.mxu0 %v7595
    %v7767 = vpop.f32.mrf.mxu0
    %v7768 = vpop.f32.mrf.mxu0
    %7769 = vmatprep.mubr.f32.mxu0 0.0
    %7770 = vmatmul.mubr.f32.gmra.mxu0 %v7598
    %v7771 = vpop.f32.mrf.mxu0
    %v7772 = vadd.f32 0.0, %v7771
    %v7773 = vpop.f32.mrf.mxu0
    %7774 = vmatprep.mubr.f32.mxu0 0.0
    %7775 = vmatmul.mubr.f32.gmra.mxu0 %v7601
    %v7776 = vpop.f32.mrf.mxu0
    %v7777 = vpop.f32.mrf.mxu0
    %v7778 = vadd.f32 0.0, %v7777
    %7779 = vmatprep.mubr.f32.mxu0 0.0
    %7780 = vmatmul.mubr.f32.gmra.mxu0 %v7604
    %v7781 = vpop.f32.mrf.mxu0
    %v7782 = vpop.f32.mrf.mxu0
    %7783 = vmatprep.mubr.f32.mxu0 0.0
    %7784 = vmatmul.mubr.f32.gmra.mxu0 %v7607
    %v7785 = vpop.f32.mrf.mxu0
    %v7786 = vpop.f32.mrf.mxu0
    %7787 = vmatprep.mubr.f32.mxu0 0.0
    %7788 = vmatmul.mubr.f32.gmra.mxu0 %v7610
    %v7789 = vpop.f32.mrf.mxu0
    %v7790 = vadd.f32 0.0, %v7789
    %v7791 = vpop.f32.mrf.mxu0
    %7792 = vmatprep.mubr.f32.mxu0 0.0
    %7793 = vmatmul.mubr.f32.gmra.mxu0 %v7613
    %v7794 = vpop.f32.mrf.mxu0
    %v7795 = vpop.f32.mrf.mxu0
    %v7796 = vadd.f32 0.0, %v7795
    %7797 = vmatprep.mubr.f32.mxu0 0.0
    %7798 = vmatmul.mubr.f32.gmra.mxu0 %v7616
    %v7799 = vpop.f32.mrf.mxu0
    %v7800 = vpop.f32.mrf.mxu0
    %7801 = vmatprep.mubr.f32.mxu0 0.0
    %7802 = vmatmul.mubr.f32.gmra.mxu0 %v7619
    %v7803 = vpop.f32.mrf.mxu0
    %v7804 = vpop.f32.mrf.mxu0
    %7805 = vmatprep.mubr.f32.mxu0 0.0
    %7806 = vmatmul.mubr.f32.gmra.mxu0 %v7622
    %v7807 = vpop.f32.mrf.mxu0
    %v7808 = vadd.f32 0.0, %v7807
    %v7809 = vpop.f32.mrf.mxu0
    %7810 = vmatprep.mubr.f32.mxu0 0.0
    %7811 = vmatmul.mubr.f32.gmra.mxu0 %v7625
    %v7812 = vpop.f32.mrf.mxu0
    %v7813 = vpop.f32.mrf.mxu0
    %v7814 = vadd.f32 0.0, %v7813
    %7815 = vmatprep.mubr.f32.mxu0 0.0
    %7816 = vmatmul.mubr.f32.gmra.mxu0 %v7628
    %v7817 = vpop.f32.mrf.mxu0
    %v7818 = vpop.f32.mrf.mxu0
    %7819 = vmatprep.mubr.f32.mxu0 0.0
    %7820 = vmatmul.mubr.f32.gmra.mxu0 %v7631
    %v7821 = vpop.f32.mrf.mxu0
    %v7822 = vpop.f32.mrf.mxu0
    %7823 = vmatprep.mubr.f32.mxu0 0.0
    %7824 = vmatmul.mubr.f32.gmra.mxu0 %v7634
    %v7825 = vpop.f32.mrf.mxu0
    %v7826 = vadd.f32 0.0, %v7825
    %v7827 = vpop.f32.mrf.mxu0
    %7828 = vmatprep.mubr.f32.mxu0 0.0
    %7829 = vmatmul.mubr.f32.gmra.mxu0 %v7637
    %v7830 = vpop.f32.mrf.mxu0
    %v7831 = vpop.f32.mrf.mxu0
    %v7832 = vadd.f32 0.0, %v7831
    %7833 = vmatprep.mubr.f32.mxu0 0.0
    %7834 = vmatmul.mubr.f32.gmra.mxu0 %v7640
    %v7835 = vpop.f32.mrf.mxu0
    %v7836 = vpop.f32.mrf.mxu0
    %7837 = vmatprep.mubr.f32.mxu0 0.0
    %7838 = vmatmul.mubr.f32.gmra.mxu0 %v7643
    %v7839 = vpop.f32.mrf.mxu0
    %v7840 = vpop.f32.mrf.mxu0
    %7841 = vmatprep.mubr.f32.mxu0 0.0
    %7842 = vmatmul.mubr.f32.gmra.mxu0 %v7646
    %v7843 = vpop.f32.mrf.mxu0
    %v7844 = vadd.f32 0.0, %v7843
    %v7845 = vpop.f32.mrf.mxu0
    %7846 = vmatprep.mubr.f32.mxu0 0.0
    %7847 = vmatmul.mubr.f32.gmra.mxu0 %v7649
    %v7848 = vpop.f32.mrf.mxu0
    %v7849 = vpop.f32.mrf.mxu0
    %v7850 = vadd.f32 0.0, %v7849
    %7851 = vmatprep.mubr.f32.mxu0 0.0
    %7852 = vmatmul.mubr.f32.gmra.mxu0 %v7652
    %v7853 = vpop.f32.mrf.mxu0
    %v7854 = vpop.f32.mrf.mxu0
    %7855 = vmatprep.mubr.f32.mxu0 0.0
    %7856 = vmatmul.mubr.f32.gmra.mxu0 %v7655
    %v7857 = vpop.f32.mrf.mxu0
    %v7858 = vpop.f32.mrf.mxu0
    %7859 = vmatprep.mubr.f32.mxu0 0.0
    %7860 = vmatmul.mubr.f32.gmra.mxu0 %v7658
    %v7861 = vpop.f32.mrf.mxu0
    %v7862 = vadd.f32 0.0, %v7861
    %v7863 = vpop.f32.mrf.mxu0
    %7864 = vmatprep.mubr.f32.mxu0 0.0
    %7865 = vmatmul.mubr.f32.gmra.mxu0 %v7661
    %v7866 = vpop.f32.mrf.mxu0
    %v7867 = vpop.f32.mrf.mxu0
    %v7868 = vadd.f32 0.0, %v7867
    %7869 = vmatprep.mubr.f32.mxu0 0.0
    %7870 = vmatmul.mubr.f32.gmra.mxu0 %v7664
    %v7871 = vpop.f32.mrf.mxu0
    %v7872 = vpop.f32.mrf.mxu0
    %7873 = vmatprep.mubr.f32.mxu0 0.0
    %7874 = vmatmul.mubr.f32.gmra.mxu0 %v7667
    %v7875 = vpop.f32.mrf.mxu0
    %v7876 = vpop.f32.mrf.mxu0
    %7877 = vdwg.mxu0
    %7878 = vmatprep.subr.mxu0 0.0
    %7879 = vmatpush1.msra.mxu0 0.0
    %7880 = vmatprep.subr.mxu0 0.0
    %7881 = vmatpush1.msra.mxu0 0.0
    %7882 = vmatprep.subr.mxu0 0.0
    %7883 = vmatpush1.msra.mxu0 0.0
    %7884 = vmatprep.subr.mxu0 0.0
    %7885 = vmatpush1.msra.mxu0 0.0
    %7886 = vmatprep.subr.mxu0 0.0
    %7887 = vmatpush1.msra.mxu0 0.0
    %7888 = vmatprep.subr.mxu0 0.0
    %7889 = vmatpush1.msra.mxu0 0.0
    %7890 = vmatprep.subr.mxu0 0.0
    %7891 = vmatpush1.msra.mxu0 0.0
    %7892 = vmatprep.subr.mxu0 0.0
    %7893 = vmatpush1.msra.mxu0 0.0
    %7894 = vmatprep.subr.mxu0 0.0
    %7895 = vmatpush1.msra.mxu0 0.0
    %7896 = vmatprep.subr.mxu0 0.0
    %7897 = vmatpush1.msra.mxu0 0.0
    %7898 = vmatprep.subr.mxu0 0.0
    %7899 = vmatpush1.msra.mxu0 0.0
    %7900 = vmatprep.subr.mxu0 0.0
    %7901 = vmatpush1.msra.mxu0 0.0
    %7902 = vmatprep.subr.mxu0 0.0
    %7903 = vmatpush1.msra.mxu0 0.0
    %7904 = vmatprep.subr.mxu0 0.0
    %7905 = vmatpush1.msra.mxu0 0.0
    %7906 = vmatprep.subr.mxu0 %v7572
    %7907 = vmatpush1.msra.mxu0 %v7571
    %7908 = vmatprep.subr.mxu0 %v7568
    %7909 = vmatpush1.msra.mxu0 %v7567
    %7910 = vmatprep.subr.mxu0 0.0
    %7911 = vmatpush2.msra.mxu0 0.0
    %7912 = vmatprep.subr.mxu0 0.0
    %7913 = vmatpush2.msra.mxu0 0.0
    %7914 = vmatprep.subr.mxu0 0.0
    %7915 = vmatpush2.msra.mxu0 0.0
    %7916 = vmatprep.subr.mxu0 0.0
    %7917 = vmatpush2.msra.mxu0 0.0
    %7918 = vmatprep.subr.mxu0 0.0
    %7919 = vmatpush2.msra.mxu0 0.0
    %7920 = vmatprep.subr.mxu0 0.0
    %7921 = vmatpush2.msra.mxu0 0.0
    %7922 = vmatprep.subr.mxu0 0.0
    %7923 = vmatpush2.msra.mxu0 0.0
    %7924 = vmatprep.subr.mxu0 0.0
    %7925 = vmatpush2.msra.mxu0 0.0
    %7926 = vmatprep.subr.mxu0 0.0
    %7927 = vmatpush2.msra.mxu0 0.0
    %7928 = vmatprep.subr.mxu0 0.0
    %7929 = vmatpush2.msra.mxu0 0.0
    %7930 = vmatprep.subr.mxu0 0.0
    %7931 = vmatpush2.msra.mxu0 0.0
    %7932 = vmatprep.subr.mxu0 0.0
    %7933 = vmatpush2.msra.mxu0 0.0
    %7934 = vmatprep.subr.mxu0 0.0
    %7935 = vmatpush2.msra.mxu0 0.0
    %7936 = vmatprep.subr.mxu0 0.0
    %7937 = vmatpush2.msra.mxu0 0.0
    %7938 = vmatprep.subr.mxu0 0.0
    %7939 = vmatpush2.msra.mxu0 0.0
    %7940 = vmatprep.subr.mxu0 0.0
    %7941 = vmatpush2.msra.mxu0 0.0
    %7942 = vmatprep.mubr.f32.mxu0 0.0
    %7943 = vmatmul.mubr.f32.gmra.mxu0 %v7574
    %v7944 = vpop.f32.mrf.mxu0
    %v7945 = vpop.f32.mrf.mxu0
    %7946 = vmatprep.mubr.f32.mxu0 0.0
    %7947 = vmatmul.mubr.f32.gmra.mxu0 %v7577
    %v7948 = vpop.f32.mrf.mxu0
    %v7949 = vpop.f32.mrf.mxu0
    %7950 = vmatprep.mubr.f32.mxu0 0.0
    %7951 = vmatmul.mubr.f32.gmra.mxu0 %v7580
    %v7952 = vpop.f32.mrf.mxu0
    %v7953 = vadd.f32 0.0, %v7952
    %v7954 = vpop.f32.mrf.mxu0
    %7955 = vmatprep.mubr.f32.mxu0 0.0
    %7956 = vmatmul.mubr.f32.gmra.mxu0 %v7583
    %v7957 = vpop.f32.mrf.mxu0
    %v7958 = vpop.f32.mrf.mxu0
    %v7959 = vadd.f32 0.0, %v7958
    %7960 = vmatprep.mubr.f32.mxu0 0.0
    %7961 = vmatmul.mubr.f32.gmra.mxu0 %v7586
    %v7962 = vpop.f32.mrf.mxu0
    %v7963 = vpop.f32.mrf.mxu0
    %7964 = vmatprep.mubr.f32.mxu0 0.0
    %7965 = vmatmul.mubr.f32.gmra.mxu0 %v7589
    %v7966 = vpop.f32.mrf.mxu0
    %v7967 = vpop.f32.mrf.mxu0
    %7968 = vmatprep.mubr.f32.mxu0 0.0
    %7969 = vmatmul.mubr.f32.gmra.mxu0 %v7592
    %v7970 = vpop.f32.mrf.mxu0
    %v7971 = vadd.f32 0.0, %v7970
    %v7972 = vpop.f32.mrf.mxu0
    %7973 = vmatprep.mubr.f32.mxu0 0.0
    %7974 = vmatmul.mubr.f32.gmra.mxu0 %v7595
    %v7975 = vpop.f32.mrf.mxu0
    %v7976 = vpop.f32.mrf.mxu0
    %v7977 = vadd.f32 0.0, %v7976
    %7978 = vmatprep.mubr.f32.mxu0 0.0
    %7979 = vmatmul.mubr.f32.gmra.mxu0 %v7598
    %v7980 = vpop.f32.mrf.mxu0
    %v7981 = vpop.f32.mrf.mxu0
    %7982 = vmatprep.mubr.f32.mxu0 0.0
    %7983 = vmatmul.mubr.f32.gmra.mxu0 %v7601
    %v7984 = vpop.f32.mrf.mxu0
    %v7985 = vpop.f32.mrf.mxu0
    %7986 = vmatprep.mubr.f32.mxu0 0.0
    %7987 = vmatmul.mubr.f32.gmra.mxu0 %v7604
    %v7988 = vpop.f32.mrf.mxu0
    %v7989 = vadd.f32 0.0, %v7988
    %v7990 = vpop.f32.mrf.mxu0
    %7991 = vmatprep.mubr.f32.mxu0 0.0
    %7992 = vmatmul.mubr.f32.gmra.mxu0 %v7607
    %v7993 = vpop.f32.mrf.mxu0
    %v7994 = vpop.f32.mrf.mxu0
    %v7995 = vadd.f32 0.0, %v7994
    %7996 = vmatprep.mubr.f32.mxu0 0.0
    %7997 = vmatmul.mubr.f32.gmra.mxu0 %v7610
    %v7998 = vpop.f32.mrf.mxu0
    %v7999 = vpop.f32.mrf.mxu0
    %8000 = vmatprep.mubr.f32.mxu0 0.0
    %8001 = vmatmul.mubr.f32.gmra.mxu0 %v7613
    %v8002 = vpop.f32.mrf.mxu0
    %v8003 = vpop.f32.mrf.mxu0
    %8004 = vmatprep.mubr.f32.mxu0 0.0
    %8005 = vmatmul.mubr.f32.gmra.mxu0 %v7616
    %v8006 = vpop.f32.mrf.mxu0
    %v8007 = vadd.f32 0.0, %v8006
    %v8008 = vpop.f32.mrf.mxu0
    %8009 = vmatprep.mubr.f32.mxu0 0.0
    %8010 = vmatmul.mubr.f32.gmra.mxu0 %v7619
    %v8011 = vpop.f32.mrf.mxu0
    %v8012 = vpop.f32.mrf.mxu0
    %v8013 = vadd.f32 0.0, %v8012
    %8014 = vmatprep.mubr.f32.mxu0 0.0
    %8015 = vmatmul.mubr.f32.gmra.mxu0 %v7622
    %v8016 = vpop.f32.mrf.mxu0
    %v8017 = vpop.f32.mrf.mxu0
    %8018 = vmatprep.mubr.f32.mxu0 0.0
    %8019 = vmatmul.mubr.f32.gmra.mxu0 %v7625
    %v8020 = vpop.f32.mrf.mxu0
    %v8021 = vpop.f32.mrf.mxu0
    %8022 = vmatprep.mubr.f32.mxu0 0.0
    %8023 = vmatmul.mubr.f32.gmra.mxu0 %v7628
    %v8024 = vpop.f32.mrf.mxu0
    %v8025 = vadd.f32 0.0, %v8024
    %v8026 = vpop.f32.mrf.mxu0
    %8027 = vmatprep.mubr.f32.mxu0 0.0
    %8028 = vmatmul.mubr.f32.gmra.mxu0 %v7631
    %v8029 = vpop.f32.mrf.mxu0
    %v8030 = vpop.f32.mrf.mxu0
    %v8031 = vadd.f32 0.0, %v8030
    %8032 = vmatprep.mubr.f32.mxu0 0.0
    %8033 = vmatmul.mubr.f32.gmra.mxu0 %v7634
    %v8034 = vpop.f32.mrf.mxu0
    %v8035 = vpop.f32.mrf.mxu0
    %8036 = vmatprep.mubr.f32.mxu0 0.0
    %8037 = vmatmul.mubr.f32.gmra.mxu0 %v7637
    %v8038 = vpop.f32.mrf.mxu0
    %v8039 = vpop.f32.mrf.mxu0
    %8040 = vmatprep.mubr.f32.mxu0 0.0
    %8041 = vmatmul.mubr.f32.gmra.mxu0 %v7640
    %v8042 = vpop.f32.mrf.mxu0
    %v8043 = vadd.f32 0.0, %v8042
    %v8044 = vpop.f32.mrf.mxu0
    %8045 = vmatprep.mubr.f32.mxu0 0.0
    %8046 = vmatmul.mubr.f32.gmra.mxu0 %v7643
    %v8047 = vpop.f32.mrf.mxu0
    %v8048 = vpop.f32.mrf.mxu0
    %v8049 = vadd.f32 0.0, %v8048
    %8050 = vmatprep.mubr.f32.mxu0 0.0
    %8051 = vmatmul.mubr.f32.gmra.mxu0 %v7646
    %v8052 = vpop.f32.mrf.mxu0
    %v8053 = vpop.f32.mrf.mxu0
    %8054 = vmatprep.mubr.f32.mxu0 0.0
    %8055 = vmatmul.mubr.f32.gmra.mxu0 %v7649
    %v8056 = vpop.f32.mrf.mxu0
    %v8057 = vpop.f32.mrf.mxu0
    %8058 = vmatprep.mubr.f32.mxu0 0.0
    %8059 = vmatmul.mubr.f32.gmra.mxu0 %v7652
    %v8060 = vpop.f32.mrf.mxu0
    %v8061 = vadd.f32 0.0, %v8060
    %v8062 = vpop.f32.mrf.mxu0
    %8063 = vmatprep.mubr.f32.mxu0 0.0
    %8064 = vmatmul.mubr.f32.gmra.mxu0 %v7655
    %v8065 = vpop.f32.mrf.mxu0
    %v8066 = vpop.f32.mrf.mxu0
    %v8067 = vadd.f32 0.0, %v8066
    %8068 = vmatprep.mubr.f32.mxu0 0.0
    %8069 = vmatmul.mubr.f32.gmra.mxu0 %v7658
    %v8070 = vpop.f32.mrf.mxu0
    %v8071 = vpop.f32.mrf.mxu0
    %8072 = vmatprep.mubr.f32.mxu0 0.0
    %8073 = vmatmul.mubr.f32.gmra.mxu0 %v7661
    %v8074 = vpop.f32.mrf.mxu0
    %v8075 = vpop.f32.mrf.mxu0
    %8076 = vmatprep.mubr.f32.mxu0 0.0
    %8077 = vmatmul.mubr.f32.gmra.mxu0 %v7664
    %v8078 = vpop.f32.mrf.mxu0
    %v8079 = vadd.f32 0.0, %v8078
    %v8080 = vpop.f32.mrf.mxu0
    %8081 = vmatprep.mubr.f32.mxu0 0.0
    %8082 = vmatmul.mubr.f32.gmra.mxu0 %v7667
    %v8083 = vpop.f32.mrf.mxu0
    %v8084 = vpop.f32.mrf.mxu0
    %v8085 = vadd.f32 0.0, %v8084
    %8086 = vdwg.mxu0
    %v8087 = vld [vmem:[%s11] sm:$0x1]
    %v8088 = vld [vmem:[%s13] sm:$0x1]
    %v8089 = vld [vmem:[%s10] sm:$0xff]
    %v8090 = vld [vmem:[%s10 + $0x8] sm:$0xff]
    %v8091 = vld [vmem:[%s10 + $0x10] sm:$0xff]
    %v8092 = vld [vmem:[%s10 + $0x18] sm:$0xff]
    %v8093 = vld [vmem:[%s12] sm:$0xff]
    %v8094 = vld [vmem:[%s12 + $0x8] sm:$0xff]
    %v8095 = vld [vmem:[%s12 + $0x10] sm:$0xff]
    %v8096 = vld [vmem:[%s12 + $0x18] sm:$0xff]
    %v8097 = vld [vmem:[%s12 + $0x20] sm:$0xff]
    %v8098 = vld [vmem:[%s12 + $0x28] sm:$0xff]
    %v8099 = vld [vmem:[%s12 + $0x30] sm:$0xff]
    %v8100 = vld [vmem:[%s12 + $0x38] sm:$0xff]
    %v8102 = vlaneseq
    %v8103 = vshrl.u32 %v8102, 7
    %v8104 = vsub.s32 0, %v8103
    %v8105 = vrot.slane %v8087, %v8104
    %v8107 = vadd.f32 %v8105, %v7736
    %v8108 = vadd.f32 %v8107, %v7742
    %v8109 = vadd.f32 %v8108, %v7953
    %v8110 = vadd.f32 %v8109, %v7959
    %v8111 = vadd.f32 %v8105, %v7754
    %v8112 = vadd.f32 %v8111, %v7760
    %v8113 = vadd.f32 %v8112, %v7971
    %v8114 = vadd.f32 %v8113, %v7977
    %v8115 = vadd.f32 %v8105, %v7772
    %v8116 = vadd.f32 %v8115, %v7778
    %v8117 = vadd.f32 %v8116, %v7989
    %v8118 = vadd.f32 %v8117, %v7995
    %v8119 = vadd.f32 %v8105, %v7790
    %v8120 = vadd.f32 %v8119, %v7796
    %v8121 = vadd.f32 %v8120, %v8007
    %v8122 = vadd.f32 %v8121, %v8013
    %v8123 = vadd.f32 %v8105, %v7808
    %v8124 = vadd.f32 %v8123, %v7814
    %v8125 = vadd.f32 %v8124, %v8025
    %v8126 = vadd.f32 %v8125, %v8031
    %v8127 = vadd.f32 %v8105, %v7826
    %v8128 = vadd.f32 %v8127, %v7832
    %v8129 = vadd.f32 %v8128, %v8043
    %v8130 = vadd.f32 %v8129, %v8049
    %v8131 = vadd.f32 %v8105, %v7844
    %v8132 = vadd.f32 %v8131, %v7850
    %v8133 = vadd.f32 %v8132, %v8061
    %v8134 = vadd.f32 %v8133, %v8067
    %v8135 = vadd.f32 %v8105, %v7862
    %v8136 = vadd.f32 %v8135, %v7868
    %v8137 = vadd.f32 %v8136, %v8079
    %v8138 = vadd.f32 %v8137, %v8085
    %vm8139 = vcmask 261120
    %v8141 = vsel %vm8139, 0.0, 0
    %8143 = vmatprep.subr.mxu0 0.0
    %8144 = vmatpush1.msra.mxu0 0.0
    %8145 = vmatprep.subr.mxu0 0.0
    %8146 = vmatpush1.msra.mxu0 0.0
    %8147 = vmatprep.subr.mxu0 0.0
    %8148 = vmatpush1.msra.mxu0 0.0
    %8149 = vmatprep.subr.mxu0 0.0
    %8150 = vmatpush1.msra.mxu0 0.0
    %8151 = vmatprep.subr.mxu0 0.0
    %8152 = vmatpush1.msra.mxu0 0.0
    %8153 = vmatprep.subr.mxu0 0.0
    %8154 = vmatpush1.msra.mxu0 0.0
    %8155 = vmatprep.subr.mxu0 0.0
    %8156 = vmatpush1.msra.mxu0 0.0
    %8157 = vmatprep.subr.mxu0 0.0
    %8158 = vmatpush1.msra.mxu0 0.0
    %8159 = vmatprep.subr.mxu0 0.0
    %8160 = vmatpush1.msra.mxu0 0.0
    %8161 = vmatprep.subr.mxu0 0.0
    %8162 = vmatpush1.msra.mxu0 0.0
    %8163 = vmatprep.subr.mxu0 0.0
    %8164 = vmatpush1.msra.mxu0 0.0
    %8165 = vmatprep.subr.mxu0 0.0
    %8166 = vmatpush1.msra.mxu0 0.0
    %8167 = vmatprep.subr.mxu0 0.0
    %8168 = vmatpush1.msra.mxu0 %v8092
    %8169 = vmatprep.subr.mxu0 0.0
    %8170 = vmatpush1.msra.mxu0 %v8091
    %8171 = vmatprep.subr.mxu0 0.0
    %8172 = vmatpush1.msra.mxu0 %v8090
    %8173 = vmatprep.subr.mxu0 0.0
    %8174 = vmatpush1.msra.mxu0 %v8089
    %8175 = vmatprep.subr.mxu0 0.0
    %8176 = vmatpush2.msra.mxu0 0.0
    %8177 = vmatprep.subr.mxu0 0.0
    %8178 = vmatpush2.msra.mxu0 0.0
    %8179 = vmatprep.subr.mxu0 0.0
    %8180 = vmatpush2.msra.mxu0 0.0
    %8181 = vmatprep.subr.mxu0 0.0
    %8182 = vmatpush2.msra.mxu0 0.0
    %8183 = vmatprep.subr.mxu0 0.0
    %8184 = vmatpush2.msra.mxu0 0.0
    %8185 = vmatprep.subr.mxu0 0.0
    %8186 = vmatpush2.msra.mxu0 0.0
    %8187 = vmatprep.subr.mxu0 0.0
    %8188 = vmatpush2.msra.mxu0 0.0
    %8189 = vmatprep.subr.mxu0 0.0
    %8190 = vmatpush2.msra.mxu0 0.0
    %8191 = vmatprep.subr.mxu0 0.0
    %8192 = vmatpush2.msra.mxu0 0.0
    %8193 = vmatprep.subr.mxu0 0.0
    %8194 = vmatpush2.msra.mxu0 0.0
    %8195 = vmatprep.subr.mxu0 0.0
    %8196 = vmatpush2.msra.mxu0 0.0
    %8197 = vmatprep.subr.mxu0 0.0
    %8198 = vmatpush2.msra.mxu0 0.0
    %8199 = vmatprep.subr.mxu0 0.0
    %8200 = vmatpush2.msra.mxu0 0.0
    %8201 = vmatprep.subr.mxu0 0.0
    %8202 = vmatpush2.msra.mxu0 0.0
    %8203 = vmatprep.subr.mxu0 0.0
    %8204 = vmatpush2.msra.mxu0 0.0
    %8205 = vmatprep.subr.mxu0 0.0
    %8206 = vmatpush2.msra.mxu0 0.0
    %8207 = vmatprep.mubr.f32.mxu0 0.0
    %8208 = vmatmul.mubr.f32.gmra.mxu0 %v8141
    %v8209 = vpop.f32.mrf.mxu0
    %v8210 = vadd.f32 0.0, %v8209
    %v8211 = vpop.f32.mrf.mxu0
    %8212 = vdwg.mxu0
    %v8213 = vadd.f32 %v8110, %v8210
    %v8214 = vxor.u32 %v8213, 2147483648
    %v8215 = vmul.f32 %v8214, 1.442695
    %v8216 = vpow.pop %v8215
    %v8217 = vadd.f32 %v8216, 1.0
    %v8218 = vrcp.pop %v8217
    %v8219 = vmul.f32 1.0, %v8218
    %v8220 = vtanh.pop %v8213
    %v8221 = vmul.f32 %v8219, 0.0
    %8223 = vrot.lane.b32.xlu0 %v8220, 64
    %v8224 = vpop.permute.xlu0 %8223
    %v8226 = vmul.f32 %v8219, %v8224
    %8228 = vrot.lane.b32.xlu0 %v8226, 32
    %v8229 = vpop.permute.xlu0 %8228
    %v8231 = vadd.f32 %v8221, %v8229
    %v8232 = vtanh.pop %v8231
    %8234 = vrot.lane.b32.xlu0 %v8232, 64
    %v8235 = vpop.permute.xlu0 %8234
    %v8237 = vmul.f32 %v8219, %v8235
    %8239 = vrot.lane.b32.xlu0 %v8237, 32
    %v8240 = vpop.permute.xlu0 %8239
    %v8242 = vsel %vm8139, %v8240, 0.0
    %v8244 = vlaneseq
    %v8245 = vshrl.u32 %v8244, 7
    %v8246 = vsub.s32 0, %v8245
    %v8247 = vrot.slane %v8088, %v8246
    %vm8249 = vcmask 523264
    %v8251 = vsel %vm8249, %v8242, 0
    %8253 = vmatprep.subr.mxu0 0.0
    %8254 = vmatpush1.msra.mxu0 0.0
    %8255 = vmatprep.subr.mxu0 0.0
    %8256 = vmatpush1.msra.mxu0 0.0
    %8257 = vmatprep.subr.mxu0 0.0
    %8258 = vmatpush1.msra.mxu0 0.0
    %8259 = vmatprep.subr.mxu0 0.0
    %8260 = vmatpush1.msra.mxu0 0.0
    %8261 = vmatprep.subr.mxu0 0.0
    %8262 = vmatpush1.msra.mxu0 0.0
    %8263 = vmatprep.subr.mxu0 0.0
    %8264 = vmatpush1.msra.mxu0 0.0
    %8265 = vmatprep.subr.mxu0 0.0
    %8266 = vmatpush1.msra.mxu0 0.0
    %8267 = vmatprep.subr.mxu0 0.0
    %8268 = vmatpush1.msra.mxu0 0.0
    %8269 = vmatprep.subr.mxu0 0.0
    %8270 = vmatpush1.msra.mxu0 %v8100
    %8271 = vmatprep.subr.mxu0 0.0
    %8272 = vmatpush1.msra.mxu0 %v8099
    %8273 = vmatprep.subr.mxu0 0.0
    %8274 = vmatpush1.msra.mxu0 %v8098
    %8275 = vmatprep.subr.mxu0 0.0
    %8276 = vmatpush1.msra.mxu0 %v8097
    %8277 = vmatprep.subr.mxu0 0.0
    %8278 = vmatpush1.msra.mxu0 %v8096
    %8279 = vmatprep.subr.mxu0 0.0
    %8280 = vmatpush1.msra.mxu0 %v8095
    %8281 = vmatprep.subr.mxu0 0.0
    %8282 = vmatpush1.msra.mxu0 %v8094
    %8283 = vmatprep.subr.mxu0 0.0
    %8284 = vmatpush1.msra.mxu0 %v8093
    %8285 = vmatprep.subr.mxu0 0.0
    %8286 = vmatpush2.msra.mxu0 0.0
    %8287 = vmatprep.subr.mxu0 0.0
    %8288 = vmatpush2.msra.mxu0 0.0
    %8289 = vmatprep.subr.mxu0 0.0
    %8290 = vmatpush2.msra.mxu0 0.0
    %8291 = vmatprep.subr.mxu0 0.0
    %8292 = vmatpush2.msra.mxu0 0.0
    %8293 = vmatprep.subr.mxu0 0.0
    %8294 = vmatpush2.msra.mxu0 0.0
    %8295 = vmatprep.subr.mxu0 0.0
    %8296 = vmatpush2.msra.mxu0 0.0
    %8297 = vmatprep.subr.mxu0 0.0
    %8298 = vmatpush2.msra.mxu0 0.0
    %8299 = vmatprep.subr.mxu0 0.0
    %8300 = vmatpush2.msra.mxu0 0.0
    %8301 = vmatprep.subr.mxu0 0.0
    %8302 = vmatpush2.msra.mxu0 0.0
    %8303 = vmatprep.subr.mxu0 0.0
    %8304 = vmatpush2.msra.mxu0 0.0
    %8305 = vmatprep.subr.mxu0 0.0
    %8306 = vmatpush2.msra.mxu0 0.0
    %8307 = vmatprep.subr.mxu0 0.0
    %8308 = vmatpush2.msra.mxu0 0.0
    %8309 = vmatprep.subr.mxu0 0.0
    %8310 = vmatpush2.msra.mxu0 0.0
    %8311 = vmatprep.subr.mxu0 0.0
    %8312 = vmatpush2.msra.mxu0 0.0
    %8313 = vmatprep.subr.mxu0 0.0
    %8314 = vmatpush2.msra.mxu0 0.0
    %8315 = vmatprep.subr.mxu0 0.0
    %8316 = vmatpush2.msra.mxu0 0.0
    %8317 = vmatprep.mubr.f32.mxu0 0.0
    %8318 = vmatmul.mubr.f32.gmra.mxu0 %v8251
    %v8319 = vpop.f32.mrf.mxu0
    %v8320 = vadd.f32 %v8247, %v8319
    %v8321 = vpop.f32.mrf.mxu0
    %8322 = vdwg.mxu0
    %v8323 = vxor.u32 %v8320, 2147483648
    %v8324 = vmul.f32 %v8323, 1.442695
    %v8325 = vpow.pop %v8324
    %v8326 = vadd.f32 %v8325, 1.0
    %v8327 = vrcp.pop %v8326
    %v8328 = vmul.f32 1.0, %v8327
    %v8329 = vtanh.pop %v8320
    %v8330 = vmul.f32 %v8328, 0.0
    %8332 = vrot.lane.b32.xlu0 %v8329, 64
    %v8333 = vpop.permute.xlu0 %8332
    %v8335 = vmul.f32 %v8328, %v8333
    %8337 = vrot.lane.b32.xlu0 %v8335, 32
    %v8338 = vpop.permute.xlu0 %8337
    %v8340 = vadd.f32 %v8330, %v8338
    %v8341 = vtanh.pop %v8340
    %8343 = vrot.lane.b32.xlu0 %v8341, 64
    %v8344 = vpop.permute.xlu0 %8343
    %v8346 = vmul.f32 %v8328, %v8344
    %v8347 = vsel %vm8139, %v8240, 0
    %8349 = vmatprep.subr.mxu0 0.0
    %8350 = vmatpush1.msra.mxu0 0.0
    %8351 = vmatprep.subr.mxu0 0.0
    %8352 = vmatpush1.msra.mxu0 0.0
    %8353 = vmatprep.subr.mxu0 0.0
    %8354 = vmatpush1.msra.mxu0 0.0
    %8355 = vmatprep.subr.mxu0 0.0
    %8356 = vmatpush1.msra.mxu0 0.0
    %8357 = vmatprep.subr.mxu0 0.0
    %8358 = vmatpush1.msra.mxu0 0.0
    %8359 = vmatprep.subr.mxu0 0.0
    %8360 = vmatpush1.msra.mxu0 0.0
    %8361 = vmatprep.subr.mxu0 0.0
    %8362 = vmatpush1.msra.mxu0 0.0
    %8363 = vmatprep.subr.mxu0 0.0
    %8364 = vmatpush1.msra.mxu0 0.0
    %8365 = vmatprep.subr.mxu0 0.0
    %8366 = vmatpush1.msra.mxu0 0.0
    %8367 = vmatprep.subr.mxu0 0.0
    %8368 = vmatpush1.msra.mxu0 0.0
    %8369 = vmatprep.subr.mxu0 0.0
    %8370 = vmatpush1.msra.mxu0 0.0
    %8371 = vmatprep.subr.mxu0 0.0
    %8372 = vmatpush1.msra.mxu0 0.0
    %8373 = vmatprep.subr.mxu0 0.0
    %8374 = vmatpush1.msra.mxu0 %v8092
    %8375 = vmatprep.subr.mxu0 0.0
    %8376 = vmatpush1.msra.mxu0 %v8091
    %8377 = vmatprep.subr.mxu0 0.0
    %8378 = vmatpush1.msra.mxu0 %v8090
    %8379 = vmatprep.subr.mxu0 0.0
    %8380 = vmatpush1.msra.mxu0 %v8089
    %8381 = vmatprep.subr.mxu0 0.0
    %8382 = vmatpush2.msra.mxu0 0.0
    %8383 = vmatprep.subr.mxu0 0.0
    %8384 = vmatpush2.msra.mxu0 0.0
    %8385 = vmatprep.subr.mxu0 0.0
    %8386 = vmatpush2.msra.mxu0 0.0
    %8387 = vmatprep.subr.mxu0 0.0
    %8388 = vmatpush2.msra.mxu0 0.0
    %8389 = vmatprep.subr.mxu0 0.0
    %8390 = vmatpush2.msra.mxu0 0.0
    %8391 = vmatprep.subr.mxu0 0.0
    %8392 = vmatpush2.msra.mxu0 0.0
    %8393 = vmatprep.subr.mxu0 0.0
    %8394 = vmatpush2.msra.mxu0 0.0
    %8395 = vmatprep.subr.mxu0 0.0
    %8396 = vmatpush2.msra.mxu0 0.0
    %8397 = vmatprep.subr.mxu0 0.0
    %8398 = vmatpush2.msra.mxu0 0.0
    %8399 = vmatprep.subr.mxu0 0.0
    %8400 = vmatpush2.msra.mxu0 0.0
    %8401 = vmatprep.subr.mxu0 0.0
    %8402 = vmatpush2.msra.mxu0 0.0
    %8403 = vmatprep.subr.mxu0 0.0
    %8404 = vmatpush2.msra.mxu0 0.0
    %8405 = vmatprep.subr.mxu0 0.0
    %8406 = vmatpush2.msra.mxu0 0.0
    %8407 = vmatprep.subr.mxu0 0.0
    %8408 = vmatpush2.msra.mxu0 0.0
    %8409 = vmatprep.subr.mxu0 0.0
    %8410 = vmatpush2.msra.mxu0 0.0
    %8411 = vmatprep.subr.mxu0 0.0
    %8412 = vmatpush2.msra.mxu0 0.0
    %8413 = vmatprep.mubr.f32.mxu0 0.0
    %8414 = vmatmul.mubr.f32.gmra.mxu0 %v8347
    %v8415 = vpop.f32.mrf.mxu0
    %v8416 = vadd.f32 0.0, %v8415
    %v8417 = vpop.f32.mrf.mxu0
    %8418 = vdwg.mxu0
    %v8419 = vadd.f32 %v8114, %v8416
    %v8420 = vxor.u32 %v8419, 2147483648
    %v8421 = vmul.f32 %v8420, 1.442695
    %v8422 = vpow.pop %v8421
    %v8423 = vadd.f32 %v8422, 1.0
    %v8424 = vrcp.pop %v8423
    %v8425 = vmul.f32 1.0, %v8424
    %v8426 = vtanh.pop %v8419
    %v8427 = vmul.f32 %v8425, %v8231
    %8429 = vrot.lane.b32.xlu0 %v8426, 64
    %v8430 = vpop.permute.xlu0 %8429
    %v8432 = vmul.f32 %v8425, %v8430
    %8434 = vrot.lane.b32.xlu0 %v8432, 32
    %v8435 = vpop.permute.xlu0 %8434
    %v8437 = vadd.f32 %v8427, %v8435
    %v8438 = vtanh.pop %v8437
    %8440 = vrot.lane.b32.xlu0 %v8438, 64
    %v8441 = vpop.permute.xlu0 %8440
    %v8443 = vmul.f32 %v8425, %v8441
    %8445 = vrot.lane.b32.xlu0 %v8443, 32
    %v8446 = vpop.permute.xlu0 %8445
    %8449 = vrot.lane.b32.xlu0 %v8346, 64
    %v8450 = vpop.permute.xlu0 %8449
    %v8452 = vsel %vm8139, %v8446, %v8450
    %v8454 = vsel %vm8249, %v8452, 0
    %8456 = vmatprep.subr.mxu0 0.0
    %8457 = vmatpush1.msra.mxu0 0.0
    %8458 = vmatprep.subr.mxu0 0.0
    %8459 = vmatpush1.msra.mxu0 0.0
    %8460 = vmatprep.subr.mxu0 0.0
    %8461 = vmatpush1.msra.mxu0 0.0
    %8462 = vmatprep.subr.mxu0 0.0
    %8463 = vmatpush1.msra.mxu0 0.0
    %8464 = vmatprep.subr.mxu0 0.0
    %8465 = vmatpush1.msra.mxu0 0.0
    %8466 = vmatprep.subr.mxu0 0.0
    %8467 = vmatpush1.msra.mxu0 0.0
    %8468 = vmatprep.subr.mxu0 0.0
    %8469 = vmatpush1.msra.mxu0 0.0
    %8470 = vmatprep.subr.mxu0 0.0
    %8471 = vmatpush1.msra.mxu0 0.0
    %8472 = vmatprep.subr.mxu0 0.0
    %8473 = vmatpush1.msra.mxu0 %v8100
    %8474 = vmatprep.subr.mxu0 0.0
    %8475 = vmatpush1.msra.mxu0 %v8099
    %8476 = vmatprep.subr.mxu0 0.0
    %8477 = vmatpush1.msra.mxu0 %v8098
    %8478 = vmatprep.subr.mxu0 0.0
    %8479 = vmatpush1.msra.mxu0 %v8097
    %8480 = vmatprep.subr.mxu0 0.0
    %8481 = vmatpush1.msra.mxu0 %v8096
    %8482 = vmatprep.subr.mxu0 0.0
    %8483 = vmatpush1.msra.mxu0 %v8095
    %8484 = vmatprep.subr.mxu0 0.0
    %8485 = vmatpush1.msra.mxu0 %v8094
    %8486 = vmatprep.subr.mxu0 0.0
    %8487 = vmatpush1.msra.mxu0 %v8093
    %8488 = vmatprep.subr.mxu0 0.0
    %8489 = vmatpush2.msra.mxu0 0.0
    %8490 = vmatprep.subr.mxu0 0.0
    %8491 = vmatpush2.msra.mxu0 0.0
    %8492 = vmatprep.subr.mxu0 0.0
    %8493 = vmatpush2.msra.mxu0 0.0
    %8494 = vmatprep.subr.mxu0 0.0
    %8495 = vmatpush2.msra.mxu0 0.0
    %8496 = vmatprep.subr.mxu0 0.0
    %8497 = vmatpush2.msra.mxu0 0.0
    %8498 = vmatprep.subr.mxu0 0.0
    %8499 = vmatpush2.msra.mxu0 0.0
    %8500 = vmatprep.subr.mxu0 0.0
    %8501 = vmatpush2.msra.mxu0 0.0
    %8502 = vmatprep.subr.mxu0 0.0
    %8503 = vmatpush2.msra.mxu0 0.0
    %8504 = vmatprep.subr.mxu0 0.0
    %8505 = vmatpush2.msra.mxu0 0.0
    %8506 = vmatprep.subr.mxu0 0.0
    %8507 = vmatpush2.msra.mxu0 0.0
    %8508 = vmatprep.subr.mxu0 0.0
    %8509 = vmatpush2.msra.mxu0 0.0
    %8510 = vmatprep.subr.mxu0 0.0
    %8511 = vmatpush2.msra.mxu0 0.0
    %8512 = vmatprep.subr.mxu0 0.0
    %8513 = vmatpush2.msra.mxu0 0.0
    %8514 = vmatprep.subr.mxu0 0.0
    %8515 = vmatpush2.msra.mxu0 0.0
    %8516 = vmatprep.subr.mxu0 0.0
    %8517 = vmatpush2.msra.mxu0 0.0
    %8518 = vmatprep.subr.mxu0 0.0
    %8519 = vmatpush2.msra.mxu0 0.0
    %8520 = vmatprep.mubr.f32.mxu0 0.0
    %8521 = vmatmul.mubr.f32.gmra.mxu0 %v8454
    %v8522 = vpop.f32.mrf.mxu0
    %v8523 = vadd.f32 %v8247, %v8522
    %v8524 = vpop.f32.mrf.mxu0
    %8525 = vdwg.mxu0
    %v8526 = vxor.u32 %v8523, 2147483648
    %v8527 = vmul.f32 %v8526, 1.442695
    %v8528 = vpow.pop %v8527
    %v8529 = vadd.f32 %v8528, 1.0
    %v8530 = vrcp.pop %v8529
    %v8531 = vmul.f32 1.0, %v8530
    %v8532 = vtanh.pop %v8523
    %v8533 = vmul.f32 %v8531, %v8340
    %8535 = vrot.lane.b32.xlu0 %v8532, 64
    %v8536 = vpop.permute.xlu0 %8535
    %v8538 = vmul.f32 %v8531, %v8536
    %8540 = vrot.lane.b32.xlu0 %v8538, 32
    %v8541 = vpop.permute.xlu0 %8540
    %v8543 = vadd.f32 %v8533, %v8541
    %v8544 = vtanh.pop %v8543
    %8546 = vrot.lane.b32.xlu0 %v8544, 64
    %v8547 = vpop.permute.xlu0 %8546
    %v8549 = vmul.f32 %v8531, %v8547
    %v8550 = vsel %vm8139, %v8446, 0
    %8552 = vmatprep.subr.mxu0 0.0
    %8553 = vmatpush1.msra.mxu0 0.0
    %8554 = vmatprep.subr.mxu0 0.0
    %8555 = vmatpush1.msra.mxu0 0.0
    %8556 = vmatprep.subr.mxu0 0.0
    %8557 = vmatpush1.msra.mxu0 0.0
    %8558 = vmatprep.subr.mxu0 0.0
    %8559 = vmatpush1.msra.mxu0 0.0
    %8560 = vmatprep.subr.mxu0 0.0
    %8561 = vmatpush1.msra.mxu0 0.0
    %8562 = vmatprep.subr.mxu0 0.0
    %8563 = vmatpush1.msra.mxu0 0.0
    %8564 = vmatprep.subr.mxu0 0.0
    %8565 = vmatpush1.msra.mxu0 0.0
    %8566 = vmatprep.subr.mxu0 0.0
    %8567 = vmatpush1.msra.mxu0 0.0
    %8568 = vmatprep.subr.mxu0 0.0
    %8569 = vmatpush1.msra.mxu0 0.0
    %8570 = vmatprep.subr.mxu0 0.0
    %8571 = vmatpush1.msra.mxu0 0.0
    %8572 = vmatprep.subr.mxu0 0.0
    %8573 = vmatpush1.msra.mxu0 0.0
    %8574 = vmatprep.subr.mxu0 0.0
    %8575 = vmatpush1.msra.mxu0 0.0
    %8576 = vmatprep.subr.mxu0 0.0
    %8577 = vmatpush1.msra.mxu0 %v8092
    %8578 = vmatprep.subr.mxu0 0.0
    %8579 = vmatpush1.msra.mxu0 %v8091
    %8580 = vmatprep.subr.mxu0 0.0
    %8581 = vmatpush1.msra.mxu0 %v8090
    %8582 = vmatprep.subr.mxu0 0.0
    %8583 = vmatpush1.msra.mxu0 %v8089
    %8584 = vmatprep.subr.mxu0 0.0
    %8585 = vmatpush2.msra.mxu0 0.0
    %8586 = vmatprep.subr.mxu0 0.0
    %8587 = vmatpush2.msra.mxu0 0.0
    %8588 = vmatprep.subr.mxu0 0.0
    %8589 = vmatpush2.msra.mxu0 0.0
    %8590 = vmatprep.subr.mxu0 0.0
    %8591 = vmatpush2.msra.mxu0 0.0
    %8592 = vmatprep.subr.mxu0 0.0
    %8593 = vmatpush2.msra.mxu0 0.0
    %8594 = vmatprep.subr.mxu0 0.0
    %8595 = vmatpush2.msra.mxu0 0.0
    %8596 = vmatprep.subr.mxu0 0.0
    %8597 = vmatpush2.msra.mxu0 0.0
    %8598 = vmatprep.subr.mxu0 0.0
    %8599 = vmatpush2.msra.mxu0 0.0
    %8600 = vmatprep.subr.mxu0 0.0
    %8601 = vmatpush2.msra.mxu0 0.0
    %8602 = vmatprep.subr.mxu0 0.0
    %8603 = vmatpush2.msra.mxu0 0.0
    %8604 = vmatprep.subr.mxu0 0.0
    %8605 = vmatpush2.msra.mxu0 0.0
    %8606 = vmatprep.subr.mxu0 0.0
    %8607 = vmatpush2.msra.mxu0 0.0
    %8608 = vmatprep.subr.mxu0 0.0
    %8609 = vmatpush2.msra.mxu0 0.0
    %8610 = vmatprep.subr.mxu0 0.0
    %8611 = vmatpush2.msra.mxu0 0.0
    %8612 = vmatprep.subr.mxu0 0.0
    %8613 = vmatpush2.msra.mxu0 0.0
    %8614 = vmatprep.subr.mxu0 0.0
    %8615 = vmatpush2.msra.mxu0 0.0
    %8616 = vmatprep.mubr.f32.mxu0 0.0
    %8617 = vmatmul.mubr.f32.gmra.mxu0 %v8550
    %v8618 = vpop.f32.mrf.mxu0
    %v8619 = vadd.f32 0.0, %v8618
    %v8620 = vpop.f32.mrf.mxu0
    %8621 = vdwg.mxu0
    %v8622 = vadd.f32 %v8118, %v8619
    %v8623 = vxor.u32 %v8622, 2147483648
    %v8624 = vmul.f32 %v8623, 1.442695
    %v8625 = vpow.pop %v8624
    %v8626 = vadd.f32 %v8625, 1.0
    %v8627 = vrcp.pop %v8626
    %v8628 = vmul.f32 1.0, %v8627
    %v8629 = vtanh.pop %v8622
    %v8630 = vmul.f32 %v8628, %v8437
    %8632 = vrot.lane.b32.xlu0 %v8629, 64
    %v8633 = vpop.permute.xlu0 %8632
    %v8635 = vmul.f32 %v8628, %v8633
    %8637 = vrot.lane.b32.xlu0 %v8635, 32
    %v8638 = vpop.permute.xlu0 %8637
    %v8640 = vadd.f32 %v8630, %v8638
    %v8641 = vtanh.pop %v8640
    %8643 = vrot.lane.b32.xlu0 %v8641, 64
    %v8644 = vpop.permute.xlu0 %8643
    %v8646 = vmul.f32 %v8628, %v8644
    %8648 = vrot.lane.b32.xlu0 %v8646, 32
    %v8649 = vpop.permute.xlu0 %8648
    %8652 = vrot.lane.b32.xlu0 %v8549, 64
    %v8653 = vpop.permute.xlu0 %8652
    %v8655 = vsel %vm8139, %v8649, %v8653
    %v8657 = vsel %vm8249, %v8655, 0
    %8659 = vmatprep.subr.mxu0 0.0
    %8660 = vmatpush1.msra.mxu0 0.0
    %8661 = vmatprep.subr.mxu0 0.0
    %8662 = vmatpush1.msra.mxu0 0.0
    %8663 = vmatprep.subr.mxu0 0.0
    %8664 = vmatpush1.msra.mxu0 0.0
    %8665 = vmatprep.subr.mxu0 0.0
    %8666 = vmatpush1.msra.mxu0 0.0
    %8667 = vmatprep.subr.mxu0 0.0
    %8668 = vmatpush1.msra.mxu0 0.0
    %8669 = vmatprep.subr.mxu0 0.0
    %8670 = vmatpush1.msra.mxu0 0.0
    %8671 = vmatprep.subr.mxu0 0.0
    %8672 = vmatpush1.msra.mxu0 0.0
    %8673 = vmatprep.subr.mxu0 0.0
    %8674 = vmatpush1.msra.mxu0 0.0
    %8675 = vmatprep.subr.mxu0 0.0
    %8676 = vmatpush1.msra.mxu0 %v8100
    %8677 = vmatprep.subr.mxu0 0.0
    %8678 = vmatpush1.msra.mxu0 %v8099
    %8679 = vmatprep.subr.mxu0 0.0
    %8680 = vmatpush1.msra.mxu0 %v8098
    %8681 = vmatprep.subr.mxu0 0.0
    %8682 = vmatpush1.msra.mxu0 %v8097
    %8683 = vmatprep.subr.mxu0 0.0
    %8684 = vmatpush1.msra.mxu0 %v8096
    %8685 = vmatprep.subr.mxu0 0.0
    %8686 = vmatpush1.msra.mxu0 %v8095
    %8687 = vmatprep.subr.mxu0 0.0
    %8688 = vmatpush1.msra.mxu0 %v8094
    %8689 = vmatprep.subr.mxu0 0.0
    %8690 = vmatpush1.msra.mxu0 %v8093
    %8691 = vmatprep.subr.mxu0 0.0
    %8692 = vmatpush2.msra.mxu0 0.0
    %8693 = vmatprep.subr.mxu0 0.0
    %8694 = vmatpush2.msra.mxu0 0.0
    %8695 = vmatprep.subr.mxu0 0.0
    %8696 = vmatpush2.msra.mxu0 0.0
    %8697 = vmatprep.subr.mxu0 0.0
    %8698 = vmatpush2.msra.mxu0 0.0
    %8699 = vmatprep.subr.mxu0 0.0
    %8700 = vmatpush2.msra.mxu0 0.0
    %8701 = vmatprep.subr.mxu0 0.0
    %8702 = vmatpush2.msra.mxu0 0.0
    %8703 = vmatprep.subr.mxu0 0.0
    %8704 = vmatpush2.msra.mxu0 0.0
    %8705 = vmatprep.subr.mxu0 0.0
    %8706 = vmatpush2.msra.mxu0 0.0
    %8707 = vmatprep.subr.mxu0 0.0
    %8708 = vmatpush2.msra.mxu0 0.0
    %8709 = vmatprep.subr.mxu0 0.0
    %8710 = vmatpush2.msra.mxu0 0.0
    %8711 = vmatprep.subr.mxu0 0.0
    %8712 = vmatpush2.msra.mxu0 0.0
    %8713 = vmatprep.subr.mxu0 0.0
    %8714 = vmatpush2.msra.mxu0 0.0
    %8715 = vmatprep.subr.mxu0 0.0
    %8716 = vmatpush2.msra.mxu0 0.0
    %8717 = vmatprep.subr.mxu0 0.0
    %8718 = vmatpush2.msra.mxu0 0.0
    %8719 = vmatprep.subr.mxu0 0.0
    %8720 = vmatpush2.msra.mxu0 0.0
    %8721 = vmatprep.subr.mxu0 0.0
    %8722 = vmatpush2.msra.mxu0 0.0
    %8723 = vmatprep.mubr.f32.mxu0 0.0
    %8724 = vmatmul.mubr.f32.gmra.mxu0 %v8657
    %v8725 = vpop.f32.mrf.mxu0
    %v8726 = vadd.f32 %v8247, %v8725
    %v8727 = vpop.f32.mrf.mxu0
    %8728 = vdwg.mxu0
    %v8729 = vxor.u32 %v8726, 2147483648
    %v8730 = vmul.f32 %v8729, 1.442695
    %v8731 = vpow.pop %v8730
    %v8732 = vadd.f32 %v8731, 1.0
    %v8733 = vrcp.pop %v8732
    %v8734 = vmul.f32 1.0, %v8733
    %v8735 = vtanh.pop %v8726
    %v8736 = vmul.f32 %v8734, %v8543
    %8738 = vrot.lane.b32.xlu0 %v8735, 64
    %v8739 = vpop.permute.xlu0 %8738
    %v8741 = vmul.f32 %v8734, %v8739
    %8743 = vrot.lane.b32.xlu0 %v8741, 32
    %v8744 = vpop.permute.xlu0 %8743
    %v8746 = vadd.f32 %v8736, %v8744
    %v8747 = vtanh.pop %v8746
    %8749 = vrot.lane.b32.xlu0 %v8747, 64
    %v8750 = vpop.permute.xlu0 %8749
    %v8752 = vmul.f32 %v8734, %v8750
    %v8753 = vsel %vm8139, %v8649, 0
    %8755 = vmatprep.subr.mxu0 0.0
    %8756 = vmatpush1.msra.mxu0 0.0
    %8757 = vmatprep.subr.mxu0 0.0
    %8758 = vmatpush1.msra.mxu0 0.0
    %8759 = vmatprep.subr.mxu0 0.0
    %8760 = vmatpush1.msra.mxu0 0.0
    %8761 = vmatprep.subr.mxu0 0.0
    %8762 = vmatpush1.msra.mxu0 0.0
    %8763 = vmatprep.subr.mxu0 0.0
    %8764 = vmatpush1.msra.mxu0 0.0
    %8765 = vmatprep.subr.mxu0 0.0
    %8766 = vmatpush1.msra.mxu0 0.0
    %8767 = vmatprep.subr.mxu0 0.0
    %8768 = vmatpush1.msra.mxu0 0.0
    %8769 = vmatprep.subr.mxu0 0.0
    %8770 = vmatpush1.msra.mxu0 0.0
    %8771 = vmatprep.subr.mxu0 0.0
    %8772 = vmatpush1.msra.mxu0 0.0
    %8773 = vmatprep.subr.mxu0 0.0
    %8774 = vmatpush1.msra.mxu0 0.0
    %8775 = vmatprep.subr.mxu0 0.0
    %8776 = vmatpush1.msra.mxu0 0.0
    %8777 = vmatprep.subr.mxu0 0.0
    %8778 = vmatpush1.msra.mxu0 0.0
    %8779 = vmatprep.subr.mxu0 0.0
    %8780 = vmatpush1.msra.mxu0 %v8092
    %8781 = vmatprep.subr.mxu0 0.0
    %8782 = vmatpush1.msra.mxu0 %v8091
    %8783 = vmatprep.subr.mxu0 0.0
    %8784 = vmatpush1.msra.mxu0 %v8090
    %8785 = vmatprep.subr.mxu0 0.0
    %8786 = vmatpush1.msra.mxu0 %v8089
    %8787 = vmatprep.subr.mxu0 0.0
    %8788 = vmatpush2.msra.mxu0 0.0
    %8789 = vmatprep.subr.mxu0 0.0
    %8790 = vmatpush2.msra.mxu0 0.0
    %8791 = vmatprep.subr.mxu0 0.0
    %8792 = vmatpush2.msra.mxu0 0.0
    %8793 = vmatprep.subr.mxu0 0.0
    %8794 = vmatpush2.msra.mxu0 0.0
    %8795 = vmatprep.subr.mxu0 0.0
    %8796 = vmatpush2.msra.mxu0 0.0
    %8797 = vmatprep.subr.mxu0 0.0
    %8798 = vmatpush2.msra.mxu0 0.0
    %8799 = vmatprep.subr.mxu0 0.0
    %8800 = vmatpush2.msra.mxu0 0.0
    %8801 = vmatprep.subr.mxu0 0.0
    %8802 = vmatpush2.msra.mxu0 0.0
    %8803 = vmatprep.subr.mxu0 0.0
    %8804 = vmatpush2.msra.mxu0 0.0
    %8805 = vmatprep.subr.mxu0 0.0
    %8806 = vmatpush2.msra.mxu0 0.0
    %8807 = vmatprep.subr.mxu0 0.0
    %8808 = vmatpush2.msra.mxu0 0.0
    %8809 = vmatprep.subr.mxu0 0.0
    %8810 = vmatpush2.msra.mxu0 0.0
    %8811 = vmatprep.subr.mxu0 0.0
    %8812 = vmatpush2.msra.mxu0 0.0
    %8813 = vmatprep.subr.mxu0 0.0
    %8814 = vmatpush2.msra.mxu0 0.0
    %8815 = vmatprep.subr.mxu0 0.0
    %8816 = vmatpush2.msra.mxu0 0.0
    %8817 = vmatprep.subr.mxu0 0.0
    %8818 = vmatpush2.msra.mxu0 0.0
    %8819 = vmatprep.mubr.f32.mxu0 0.0
    %8820 = vmatmul.mubr.f32.gmra.mxu0 %v8753
    %v8821 = vpop.f32.mrf.mxu0
    %v8822 = vadd.f32 0.0, %v8821
    %v8823 = vpop.f32.mrf.mxu0
    %8824 = vdwg.mxu0
    %v8825 = vadd.f32 %v8122, %v8822
    %v8826 = vxor.u32 %v8825, 2147483648
    %v8827 = vmul.f32 %v8826, 1.442695
    %v8828 = vpow.pop %v8827
    %v8829 = vadd.f32 %v8828, 1.0
    %v8830 = vrcp.pop %v8829
    %v8831 = vmul.f32 1.0, %v8830
    %v8832 = vtanh.pop %v8825
    %v8833 = vmul.f32 %v8831, %v8640
    %8835 = vrot.lane.b32.xlu0 %v8832, 64
    %v8836 = vpop.permute.xlu0 %8835
    %v8838 = vmul.f32 %v8831, %v8836
    %8840 = vrot.lane.b32.xlu0 %v8838, 32
    %v8841 = vpop.permute.xlu0 %8840
    %v8843 = vadd.f32 %v8833, %v8841
    %v8844 = vtanh.pop %v8843
    %8846 = vrot.lane.b32.xlu0 %v8844, 64
    %v8847 = vpop.permute.xlu0 %8846
    %v8849 = vmul.f32 %v8831, %v8847
    %8851 = vrot.lane.b32.xlu0 %v8849, 32
    %v8852 = vpop.permute.xlu0 %8851
    %8855 = vrot.lane.b32.xlu0 %v8752, 64
    %v8856 = vpop.permute.xlu0 %8855
    %v8858 = vsel %vm8139, %v8852, %v8856
    %v8860 = vsel %vm8249, %v8858, 0
    %8862 = vmatprep.subr.mxu0 0.0
    %8863 = vmatpush1.msra.mxu0 0.0
    %8864 = vmatprep.subr.mxu0 0.0
    %8865 = vmatpush1.msra.mxu0 0.0
    %8866 = vmatprep.subr.mxu0 0.0
    %8867 = vmatpush1.msra.mxu0 0.0
    %8868 = vmatprep.subr.mxu0 0.0
    %8869 = vmatpush1.msra.mxu0 0.0
    %8870 = vmatprep.subr.mxu0 0.0
    %8871 = vmatpush1.msra.mxu0 0.0
    %8872 = vmatprep.subr.mxu0 0.0
    %8873 = vmatpush1.msra.mxu0 0.0
    %8874 = vmatprep.subr.mxu0 0.0
    %8875 = vmatpush1.msra.mxu0 0.0
    %8876 = vmatprep.subr.mxu0 0.0
    %8877 = vmatpush1.msra.mxu0 0.0
    %8878 = vmatprep.subr.mxu0 0.0
    %8879 = vmatpush1.msra.mxu0 %v8100
    %8880 = vmatprep.subr.mxu0 0.0
    %8881 = vmatpush1.msra.mxu0 %v8099
    %8882 = vmatprep.subr.mxu0 0.0
    %8883 = vmatpush1.msra.mxu0 %v8098
    %8884 = vmatprep.subr.mxu0 0.0
    %8885 = vmatpush1.msra.mxu0 %v8097
    %8886 = vmatprep.subr.mxu0 0.0
    %8887 = vmatpush1.msra.mxu0 %v8096
    %8888 = vmatprep.subr.mxu0 0.0
    %8889 = vmatpush1.msra.mxu0 %v8095
    %8890 = vmatprep.subr.mxu0 0.0
    %8891 = vmatpush1.msra.mxu0 %v8094
    %8892 = vmatprep.subr.mxu0 0.0
    %8893 = vmatpush1.msra.mxu0 %v8093
    %8894 = vmatprep.subr.mxu0 0.0
    %8895 = vmatpush2.msra.mxu0 0.0
    %8896 = vmatprep.subr.mxu0 0.0
    %8897 = vmatpush2.msra.mxu0 0.0
    %8898 = vmatprep.subr.mxu0 0.0
    %8899 = vmatpush2.msra.mxu0 0.0
    %8900 = vmatprep.subr.mxu0 0.0
    %8901 = vmatpush2.msra.mxu0 0.0
    %8902 = vmatprep.subr.mxu0 0.0
    %8903 = vmatpush2.msra.mxu0 0.0
    %8904 = vmatprep.subr.mxu0 0.0
    %8905 = vmatpush2.msra.mxu0 0.0
    %8906 = vmatprep.subr.mxu0 0.0
    %8907 = vmatpush2.msra.mxu0 0.0
    %8908 = vmatprep.subr.mxu0 0.0
    %8909 = vmatpush2.msra.mxu0 0.0
    %8910 = vmatprep.subr.mxu0 0.0
    %8911 = vmatpush2.msra.mxu0 0.0
    %8912 = vmatprep.subr.mxu0 0.0
    %8913 = vmatpush2.msra.mxu0 0.0
    %8914 = vmatprep.subr.mxu0 0.0
    %8915 = vmatpush2.msra.mxu0 0.0
    %8916 = vmatprep.subr.mxu0 0.0
    %8917 = vmatpush2.msra.mxu0 0.0
    %8918 = vmatprep.subr.mxu0 0.0
    %8919 = vmatpush2.msra.mxu0 0.0
    %8920 = vmatprep.subr.mxu0 0.0
    %8921 = vmatpush2.msra.mxu0 0.0
    %8922 = vmatprep.subr.mxu0 0.0
    %8923 = vmatpush2.msra.mxu0 0.0
    %8924 = vmatprep.subr.mxu0 0.0
    %8925 = vmatpush2.msra.mxu0 0.0
    %8926 = vmatprep.mubr.f32.mxu0 0.0
    %8927 = vmatmul.mubr.f32.gmra.mxu0 %v8860
    %v8928 = vpop.f32.mrf.mxu0
    %v8929 = vadd.f32 %v8247, %v8928
    %v8930 = vpop.f32.mrf.mxu0
    %8931 = vdwg.mxu0
    %v8932 = vxor.u32 %v8929, 2147483648
    %v8933 = vmul.f32 %v8932, 1.442695
    %v8934 = vpow.pop %v8933
    %v8935 = vadd.f32 %v8934, 1.0
    %v8936 = vrcp.pop %v8935
    %v8937 = vmul.f32 1.0, %v8936
    %v8938 = vtanh.pop %v8929
    %v8939 = vmul.f32 %v8937, %v8746
    %8941 = vrot.lane.b32.xlu0 %v8938, 64
    %v8942 = vpop.permute.xlu0 %8941
    %v8944 = vmul.f32 %v8937, %v8942
    %8946 = vrot.lane.b32.xlu0 %v8944, 32
    %v8947 = vpop.permute.xlu0 %8946
    %v8949 = vadd.f32 %v8939, %v8947
    %v8950 = vtanh.pop %v8949
    %8952 = vrot.lane.b32.xlu0 %v8950, 64
    %v8953 = vpop.permute.xlu0 %8952
    %v8955 = vmul.f32 %v8937, %v8953
    %v8956 = vsel %vm8139, %v8852, 0
    %8958 = vmatprep.subr.mxu0 0.0
    %8959 = vmatpush1.msra.mxu0 0.0
    %8960 = vmatprep.subr.mxu0 0.0
    %8961 = vmatpush1.msra.mxu0 0.0
    %8962 = vmatprep.subr.mxu0 0.0
    %8963 = vmatpush1.msra.mxu0 0.0
    %8964 = vmatprep.subr.mxu0 0.0
    %8965 = vmatpush1.msra.mxu0 0.0
    %8966 = vmatprep.subr.mxu0 0.0
    %8967 = vmatpush1.msra.mxu0 0.0
    %8968 = vmatprep.subr.mxu0 0.0
    %8969 = vmatpush1.msra.mxu0 0.0
    %8970 = vmatprep.subr.mxu0 0.0
    %8971 = vmatpush1.msra.mxu0 0.0
    %8972 = vmatprep.subr.mxu0 0.0
    %8973 = vmatpush1.msra.mxu0 0.0
    %8974 = vmatprep.subr.mxu0 0.0
    %8975 = vmatpush1.msra.mxu0 0.0
    %8976 = vmatprep.subr.mxu0 0.0
    %8977 = vmatpush1.msra.mxu0 0.0
    %8978 = vmatprep.subr.mxu0 0.0
    %8979 = vmatpush1.msra.mxu0 0.0
    %8980 = vmatprep.subr.mxu0 0.0
    %8981 = vmatpush1.msra.mxu0 0.0
    %8982 = vmatprep.subr.mxu0 0.0
    %8983 = vmatpush1.msra.mxu0 %v8092
    %8984 = vmatprep.subr.mxu0 0.0
    %8985 = vmatpush1.msra.mxu0 %v8091
    %8986 = vmatprep.subr.mxu0 0.0
    %8987 = vmatpush1.msra.mxu0 %v8090
    %8988 = vmatprep.subr.mxu0 0.0
    %8989 = vmatpush1.msra.mxu0 %v8089
    %8990 = vmatprep.subr.mxu0 0.0
    %8991 = vmatpush2.msra.mxu0 0.0
    %8992 = vmatprep.subr.mxu0 0.0
    %8993 = vmatpush2.msra.mxu0 0.0
    %8994 = vmatprep.subr.mxu0 0.0
    %8995 = vmatpush2.msra.mxu0 0.0
    %8996 = vmatprep.subr.mxu0 0.0
    %8997 = vmatpush2.msra.mxu0 0.0
    %8998 = vmatprep.subr.mxu0 0.0
    %8999 = vmatpush2.msra.mxu0 0.0
    %9000 = vmatprep.subr.mxu0 0.0
    %9001 = vmatpush2.msra.mxu0 0.0
    %9002 = vmatprep.subr.mxu0 0.0
    %9003 = vmatpush2.msra.mxu0 0.0
    %9004 = vmatprep.subr.mxu0 0.0
    %9005 = vmatpush2.msra.mxu0 0.0
    %9006 = vmatprep.subr.mxu0 0.0
    %9007 = vmatpush2.msra.mxu0 0.0
    %9008 = vmatprep.subr.mxu0 0.0
    %9009 = vmatpush2.msra.mxu0 0.0
    %9010 = vmatprep.subr.mxu0 0.0
    %9011 = vmatpush2.msra.mxu0 0.0
    %9012 = vmatprep.subr.mxu0 0.0
    %9013 = vmatpush2.msra.mxu0 0.0
    %9014 = vmatprep.subr.mxu0 0.0
    %9015 = vmatpush2.msra.mxu0 0.0
    %9016 = vmatprep.subr.mxu0 0.0
    %9017 = vmatpush2.msra.mxu0 0.0
    %9018 = vmatprep.subr.mxu0 0.0
    %9019 = vmatpush2.msra.mxu0 0.0
    %9020 = vmatprep.subr.mxu0 0.0
    %9021 = vmatpush2.msra.mxu0 0.0
    %9022 = vmatprep.mubr.f32.mxu0 0.0
    %9023 = vmatmul.mubr.f32.gmra.mxu0 %v8956
    %v9024 = vpop.f32.mrf.mxu0
    %v9025 = vadd.f32 0.0, %v9024
    %v9026 = vpop.f32.mrf.mxu0
    %9027 = vdwg.mxu0
    %v9028 = vadd.f32 %v8126, %v9025
    %v9029 = vxor.u32 %v9028, 2147483648
    %v9030 = vmul.f32 %v9029, 1.442695
    %v9031 = vpow.pop %v9030
    %v9032 = vadd.f32 %v9031, 1.0
    %v9033 = vrcp.pop %v9032
    %v9034 = vmul.f32 1.0, %v9033
    %v9035 = vtanh.pop %v9028
    %v9036 = vmul.f32 %v9034, %v8843
    %9038 = vrot.lane.b32.xlu0 %v9035, 64
    %v9039 = vpop.permute.xlu0 %9038
    %v9041 = vmul.f32 %v9034, %v9039
    %9043 = vrot.lane.b32.xlu0 %v9041, 32
    %v9044 = vpop.permute.xlu0 %9043
    %v9046 = vadd.f32 %v9036, %v9044
    %v9047 = vtanh.pop %v9046
    %9049 = vrot.lane.b32.xlu0 %v9047, 64
    %v9050 = vpop.permute.xlu0 %9049
    %v9052 = vmul.f32 %v9034, %v9050
    %9054 = vrot.lane.b32.xlu0 %v9052, 32
    %v9055 = vpop.permute.xlu0 %9054
    %9058 = vrot.lane.b32.xlu0 %v8955, 64
    %v9059 = vpop.permute.xlu0 %9058
    %v9061 = vsel %vm8139, %v9055, %v9059
    %v9063 = vsel %vm8249, %v9061, 0
    %9065 = vmatprep.subr.mxu0 0.0
    %9066 = vmatpush1.msra.mxu0 0.0
    %9067 = vmatprep.subr.mxu0 0.0
    %9068 = vmatpush1.msra.mxu0 0.0
    %9069 = vmatprep.subr.mxu0 0.0
    %9070 = vmatpush1.msra.mxu0 0.0
    %9071 = vmatprep.subr.mxu0 0.0
    %9072 = vmatpush1.msra.mxu0 0.0
    %9073 = vmatprep.subr.mxu0 0.0
    %9074 = vmatpush1.msra.mxu0 0.0
    %9075 = vmatprep.subr.mxu0 0.0
    %9076 = vmatpush1.msra.mxu0 0.0
    %9077 = vmatprep.subr.mxu0 0.0
    %9078 = vmatpush1.msra.mxu0 0.0
    %9079 = vmatprep.subr.mxu0 0.0
    %9080 = vmatpush1.msra.mxu0 0.0
    %9081 = vmatprep.subr.mxu0 0.0
    %9082 = vmatpush1.msra.mxu0 %v8100
    %9083 = vmatprep.subr.mxu0 0.0
    %9084 = vmatpush1.msra.mxu0 %v8099
    %9085 = vmatprep.subr.mxu0 0.0
    %9086 = vmatpush1.msra.mxu0 %v8098
    %9087 = vmatprep.subr.mxu0 0.0
    %9088 = vmatpush1.msra.mxu0 %v8097
    %9089 = vmatprep.subr.mxu0 0.0
    %9090 = vmatpush1.msra.mxu0 %v8096
    %9091 = vmatprep.subr.mxu0 0.0
    %9092 = vmatpush1.msra.mxu0 %v8095
    %9093 = vmatprep.subr.mxu0 0.0
    %9094 = vmatpush1.msra.mxu0 %v8094
    %9095 = vmatprep.subr.mxu0 0.0
    %9096 = vmatpush1.msra.mxu0 %v8093
    %9097 = vmatprep.subr.mxu0 0.0
    %9098 = vmatpush2.msra.mxu0 0.0
    %9099 = vmatprep.subr.mxu0 0.0
    %9100 = vmatpush2.msra.mxu0 0.0
    %9101 = vmatprep.subr.mxu0 0.0
    %9102 = vmatpush2.msra.mxu0 0.0
    %9103 = vmatprep.subr.mxu0 0.0
    %9104 = vmatpush2.msra.mxu0 0.0
    %9105 = vmatprep.subr.mxu0 0.0
    %9106 = vmatpush2.msra.mxu0 0.0
    %9107 = vmatprep.subr.mxu0 0.0
    %9108 = vmatpush2.msra.mxu0 0.0
    %9109 = vmatprep.subr.mxu0 0.0
    %9110 = vmatpush2.msra.mxu0 0.0
    %9111 = vmatprep.subr.mxu0 0.0
    %9112 = vmatpush2.msra.mxu0 0.0
    %9113 = vmatprep.subr.mxu0 0.0
    %9114 = vmatpush2.msra.mxu0 0.0
    %9115 = vmatprep.subr.mxu0 0.0
    %9116 = vmatpush2.msra.mxu0 0.0
    %9117 = vmatprep.subr.mxu0 0.0
    %9118 = vmatpush2.msra.mxu0 0.0
    %9119 = vmatprep.subr.mxu0 0.0
    %9120 = vmatpush2.msra.mxu0 0.0
    %9121 = vmatprep.subr.mxu0 0.0
    %9122 = vmatpush2.msra.mxu0 0.0
    %9123 = vmatprep.subr.mxu0 0.0
    %9124 = vmatpush2.msra.mxu0 0.0
    %9125 = vmatprep.subr.mxu0 0.0
    %9126 = vmatpush2.msra.mxu0 0.0
    %9127 = vmatprep.subr.mxu0 0.0
    %9128 = vmatpush2.msra.mxu0 0.0
    %9129 = vmatprep.mubr.f32.mxu0 0.0
    %9130 = vmatmul.mubr.f32.gmra.mxu0 %v9063
    %v9131 = vpop.f32.mrf.mxu0
    %v9132 = vadd.f32 %v8247, %v9131
    %v9133 = vpop.f32.mrf.mxu0
    %9134 = vdwg.mxu0
    %v9135 = vxor.u32 %v9132, 2147483648
    %v9136 = vmul.f32 %v9135, 1.442695
    %v9137 = vpow.pop %v9136
    %v9138 = vadd.f32 %v9137, 1.0
    %v9139 = vrcp.pop %v9138
    %v9140 = vmul.f32 1.0, %v9139
    %v9141 = vtanh.pop %v9132
    %v9142 = vmul.f32 %v9140, %v8949
    %9144 = vrot.lane.b32.xlu0 %v9141, 64
    %v9145 = vpop.permute.xlu0 %9144
    %v9147 = vmul.f32 %v9140, %v9145
    %9149 = vrot.lane.b32.xlu0 %v9147, 32
    %v9150 = vpop.permute.xlu0 %9149
    %v9152 = vadd.f32 %v9142, %v9150
    %v9153 = vtanh.pop %v9152
    %9155 = vrot.lane.b32.xlu0 %v9153, 64
    %v9156 = vpop.permute.xlu0 %9155
    %v9158 = vmul.f32 %v9140, %v9156
    %v9159 = vsel %vm8139, %v9055, 0
    %9161 = vmatprep.subr.mxu0 0.0
    %9162 = vmatpush1.msra.mxu0 0.0
    %9163 = vmatprep.subr.mxu0 0.0
    %9164 = vmatpush1.msra.mxu0 0.0
    %9165 = vmatprep.subr.mxu0 0.0
    %9166 = vmatpush1.msra.mxu0 0.0
    %9167 = vmatprep.subr.mxu0 0.0
    %9168 = vmatpush1.msra.mxu0 0.0
    %9169 = vmatprep.subr.mxu0 0.0
    %9170 = vmatpush1.msra.mxu0 0.0
    %9171 = vmatprep.subr.mxu0 0.0
    %9172 = vmatpush1.msra.mxu0 0.0
    %9173 = vmatprep.subr.mxu0 0.0
    %9174 = vmatpush1.msra.mxu0 0.0
    %9175 = vmatprep.subr.mxu0 0.0
    %9176 = vmatpush1.msra.mxu0 0.0
    %9177 = vmatprep.subr.mxu0 0.0
    %9178 = vmatpush1.msra.mxu0 0.0
    %9179 = vmatprep.subr.mxu0 0.0
    %9180 = vmatpush1.msra.mxu0 0.0
    %9181 = vmatprep.subr.mxu0 0.0
    %9182 = vmatpush1.msra.mxu0 0.0
    %9183 = vmatprep.subr.mxu0 0.0
    %9184 = vmatpush1.msra.mxu0 0.0
    %9185 = vmatprep.subr.mxu0 0.0
    %9186 = vmatpush1.msra.mxu0 %v8092
    %9187 = vmatprep.subr.mxu0 0.0
    %9188 = vmatpush1.msra.mxu0 %v8091
    %9189 = vmatprep.subr.mxu0 0.0
    %9190 = vmatpush1.msra.mxu0 %v8090
    %9191 = vmatprep.subr.mxu0 0.0
    %9192 = vmatpush1.msra.mxu0 %v8089
    %9193 = vmatprep.subr.mxu0 0.0
    %9194 = vmatpush2.msra.mxu0 0.0
    %9195 = vmatprep.subr.mxu0 0.0
    %9196 = vmatpush2.msra.mxu0 0.0
    %9197 = vmatprep.subr.mxu0 0.0
    %9198 = vmatpush2.msra.mxu0 0.0
    %9199 = vmatprep.subr.mxu0 0.0
    %9200 = vmatpush2.msra.mxu0 0.0
    %9201 = vmatprep.subr.mxu0 0.0
    %9202 = vmatpush2.msra.mxu0 0.0
    %9203 = vmatprep.subr.mxu0 0.0
    %9204 = vmatpush2.msra.mxu0 0.0
    %9205 = vmatprep.subr.mxu0 0.0
    %9206 = vmatpush2.msra.mxu0 0.0
    %9207 = vmatprep.subr.mxu0 0.0
    %9208 = vmatpush2.msra.mxu0 0.0
    %9209 = vmatprep.subr.mxu0 0.0
    %9210 = vmatpush2.msra.mxu0 0.0
    %9211 = vmatprep.subr.mxu0 0.0
    %9212 = vmatpush2.msra.mxu0 0.0
    %9213 = vmatprep.subr.mxu0 0.0
    %9214 = vmatpush2.msra.mxu0 0.0
    %9215 = vmatprep.subr.mxu0 0.0
    %9216 = vmatpush2.msra.mxu0 0.0
    %9217 = vmatprep.subr.mxu0 0.0
    %9218 = vmatpush2.msra.mxu0 0.0
    %9219 = vmatprep.subr.mxu0 0.0
    %9220 = vmatpush2.msra.mxu0 0.0
    %9221 = vmatprep.subr.mxu0 0.0
    %9222 = vmatpush2.msra.mxu0 0.0
    %9223 = vmatprep.subr.mxu0 0.0
    %9224 = vmatpush2.msra.mxu0 0.0
    %9225 = vmatprep.mubr.f32.mxu0 0.0
    %9226 = vmatmul.mubr.f32.gmra.mxu0 %v9159
    %v9227 = vpop.f32.mrf.mxu0
    %v9228 = vadd.f32 0.0, %v9227
    %v9229 = vpop.f32.mrf.mxu0
    %9230 = vdwg.mxu0
    %v9231 = vadd.f32 %v8130, %v9228
    %v9232 = vxor.u32 %v9231, 2147483648
    %v9233 = vmul.f32 %v9232, 1.442695
    %v9234 = vpow.pop %v9233
    %v9235 = vadd.f32 %v9234, 1.0
    %v9236 = vrcp.pop %v9235
    %v9237 = vmul.f32 1.0, %v9236
    %v9238 = vtanh.pop %v9231
    %v9239 = vmul.f32 %v9237, %v9046
    %9241 = vrot.lane.b32.xlu0 %v9238, 64
    %v9242 = vpop.permute.xlu0 %9241
    %v9244 = vmul.f32 %v9237, %v9242
    %9246 = vrot.lane.b32.xlu0 %v9244, 32
    %v9247 = vpop.permute.xlu0 %9246
    %v9249 = vadd.f32 %v9239, %v9247
    %v9250 = vtanh.pop %v9249
    %9252 = vrot.lane.b32.xlu0 %v9250, 64
    %v9253 = vpop.permute.xlu0 %9252
    %v9255 = vmul.f32 %v9237, %v9253
    %9257 = vrot.lane.b32.xlu0 %v9255, 32
    %v9258 = vpop.permute.xlu0 %9257
    %9261 = vrot.lane.b32.xlu0 %v9158, 64
    %v9262 = vpop.permute.xlu0 %9261
    %v9264 = vsel %vm8139, %v9258, %v9262
    %v9266 = vsel %vm8249, %v9264, 0
    %9268 = vmatprep.subr.mxu0 0.0
    %9269 = vmatpush1.msra.mxu0 0.0
    %9270 = vmatprep.subr.mxu0 0.0
    %9271 = vmatpush1.msra.mxu0 0.0
    %9272 = vmatprep.subr.mxu0 0.0
    %9273 = vmatpush1.msra.mxu0 0.0
    %9274 = vmatprep.subr.mxu0 0.0
    %9275 = vmatpush1.msra.mxu0 0.0
    %9276 = vmatprep.subr.mxu0 0.0
    %9277 = vmatpush1.msra.mxu0 0.0
    %9278 = vmatprep.subr.mxu0 0.0
    %9279 = vmatpush1.msra.mxu0 0.0
    %9280 = vmatprep.subr.mxu0 0.0
    %9281 = vmatpush1.msra.mxu0 0.0
    %9282 = vmatprep.subr.mxu0 0.0
    %9283 = vmatpush1.msra.mxu0 0.0
    %9284 = vmatprep.subr.mxu0 0.0
    %9285 = vmatpush1.msra.mxu0 %v8100
    %9286 = vmatprep.subr.mxu0 0.0
    %9287 = vmatpush1.msra.mxu0 %v8099
    %9288 = vmatprep.subr.mxu0 0.0
    %9289 = vmatpush1.msra.mxu0 %v8098
    %9290 = vmatprep.subr.mxu0 0.0
    %9291 = vmatpush1.msra.mxu0 %v8097
    %9292 = vmatprep.subr.mxu0 0.0
    %9293 = vmatpush1.msra.mxu0 %v8096
    %9294 = vmatprep.subr.mxu0 0.0
    %9295 = vmatpush1.msra.mxu0 %v8095
    %9296 = vmatprep.subr.mxu0 0.0
    %9297 = vmatpush1.msra.mxu0 %v8094
    %9298 = vmatprep.subr.mxu0 0.0
    %9299 = vmatpush1.msra.mxu0 %v8093
    %9300 = vmatprep.subr.mxu0 0.0
    %9301 = vmatpush2.msra.mxu0 0.0
    %9302 = vmatprep.subr.mxu0 0.0
    %9303 = vmatpush2.msra.mxu0 0.0
    %9304 = vmatprep.subr.mxu0 0.0
    %9305 = vmatpush2.msra.mxu0 0.0
    %9306 = vmatprep.subr.mxu0 0.0
    %9307 = vmatpush2.msra.mxu0 0.0
    %9308 = vmatprep.subr.mxu0 0.0
    %9309 = vmatpush2.msra.mxu0 0.0
    %9310 = vmatprep.subr.mxu0 0.0
    %9311 = vmatpush2.msra.mxu0 0.0
    %9312 = vmatprep.subr.mxu0 0.0
    %9313 = vmatpush2.msra.mxu0 0.0
    %9314 = vmatprep.subr.mxu0 0.0
    %9315 = vmatpush2.msra.mxu0 0.0
    %9316 = vmatprep.subr.mxu0 0.0
    %9317 = vmatpush2.msra.mxu0 0.0
    %9318 = vmatprep.subr.mxu0 0.0
    %9319 = vmatpush2.msra.mxu0 0.0
    %9320 = vmatprep.subr.mxu0 0.0
    %9321 = vmatpush2.msra.mxu0 0.0
    %9322 = vmatprep.subr.mxu0 0.0
    %9323 = vmatpush2.msra.mxu0 0.0
    %9324 = vmatprep.subr.mxu0 0.0
    %9325 = vmatpush2.msra.mxu0 0.0
    %9326 = vmatprep.subr.mxu0 0.0
    %9327 = vmatpush2.msra.mxu0 0.0
    %9328 = vmatprep.subr.mxu0 0.0
    %9329 = vmatpush2.msra.mxu0 0.0
    %9330 = vmatprep.subr.mxu0 0.0
    %9331 = vmatpush2.msra.mxu0 0.0
    %9332 = vmatprep.mubr.f32.mxu0 0.0
    %9333 = vmatmul.mubr.f32.gmra.mxu0 %v9266
    %v9334 = vpop.f32.mrf.mxu0
    %v9335 = vadd.f32 %v8247, %v9334
    %v9336 = vpop.f32.mrf.mxu0
    %9337 = vdwg.mxu0
    %v9338 = vxor.u32 %v9335, 2147483648
    %v9339 = vmul.f32 %v9338, 1.442695
    %v9340 = vpow.pop %v9339
    %v9341 = vadd.f32 %v9340, 1.0
    %v9342 = vrcp.pop %v9341
    %v9343 = vmul.f32 1.0, %v9342
    %v9344 = vtanh.pop %v9335
    %v9345 = vmul.f32 %v9343, %v9152
    %9347 = vrot.lane.b32.xlu0 %v9344, 64
    %v9348 = vpop.permute.xlu0 %9347
    %v9350 = vmul.f32 %v9343, %v9348
    %9352 = vrot.lane.b32.xlu0 %v9350, 32
    %v9353 = vpop.permute.xlu0 %9352
    %v9355 = vadd.f32 %v9345, %v9353
    %v9356 = vtanh.pop %v9355
    %9358 = vrot.lane.b32.xlu0 %v9356, 64
    %v9359 = vpop.permute.xlu0 %9358
    %v9361 = vmul.f32 %v9343, %v9359
    %v9362 = vsel %vm8139, %v9258, 0
    %9364 = vmatprep.subr.mxu0 0.0
    %9365 = vmatpush1.msra.mxu0 0.0
    %9366 = vmatprep.subr.mxu0 0.0
    %9367 = vmatpush1.msra.mxu0 0.0
    %9368 = vmatprep.subr.mxu0 0.0
    %9369 = vmatpush1.msra.mxu0 0.0
    %9370 = vmatprep.subr.mxu0 0.0
    %9371 = vmatpush1.msra.mxu0 0.0
    %9372 = vmatprep.subr.mxu0 0.0
    %9373 = vmatpush1.msra.mxu0 0.0
    %9374 = vmatprep.subr.mxu0 0.0
    %9375 = vmatpush1.msra.mxu0 0.0
    %9376 = vmatprep.subr.mxu0 0.0
    %9377 = vmatpush1.msra.mxu0 0.0
    %9378 = vmatprep.subr.mxu0 0.0
    %9379 = vmatpush1.msra.mxu0 0.0
    %9380 = vmatprep.subr.mxu0 0.0
    %9381 = vmatpush1.msra.mxu0 0.0
    %9382 = vmatprep.subr.mxu0 0.0
    %9383 = vmatpush1.msra.mxu0 0.0
    %9384 = vmatprep.subr.mxu0 0.0
    %9385 = vmatpush1.msra.mxu0 0.0
    %9386 = vmatprep.subr.mxu0 0.0
    %9387 = vmatpush1.msra.mxu0 0.0
    %9388 = vmatprep.subr.mxu0 0.0
    %9389 = vmatpush1.msra.mxu0 %v8092
    %9390 = vmatprep.subr.mxu0 0.0
    %9391 = vmatpush1.msra.mxu0 %v8091
    %9392 = vmatprep.subr.mxu0 0.0
    %9393 = vmatpush1.msra.mxu0 %v8090
    %9394 = vmatprep.subr.mxu0 0.0
    %9395 = vmatpush1.msra.mxu0 %v8089
    %9396 = vmatprep.subr.mxu0 0.0
    %9397 = vmatpush2.msra.mxu0 0.0
    %9398 = vmatprep.subr.mxu0 0.0
    %9399 = vmatpush2.msra.mxu0 0.0
    %9400 = vmatprep.subr.mxu0 0.0
    %9401 = vmatpush2.msra.mxu0 0.0
    %9402 = vmatprep.subr.mxu0 0.0
    %9403 = vmatpush2.msra.mxu0 0.0
    %9404 = vmatprep.subr.mxu0 0.0
    %9405 = vmatpush2.msra.mxu0 0.0
    %9406 = vmatprep.subr.mxu0 0.0
    %9407 = vmatpush2.msra.mxu0 0.0
    %9408 = vmatprep.subr.mxu0 0.0
    %9409 = vmatpush2.msra.mxu0 0.0
    %9410 = vmatprep.subr.mxu0 0.0
    %9411 = vmatpush2.msra.mxu0 0.0
    %9412 = vmatprep.subr.mxu0 0.0
    %9413 = vmatpush2.msra.mxu0 0.0
    %9414 = vmatprep.subr.mxu0 0.0
    %9415 = vmatpush2.msra.mxu0 0.0
    %9416 = vmatprep.subr.mxu0 0.0
    %9417 = vmatpush2.msra.mxu0 0.0
    %9418 = vmatprep.subr.mxu0 0.0
    %9419 = vmatpush2.msra.mxu0 0.0
    %9420 = vmatprep.subr.mxu0 0.0
    %9421 = vmatpush2.msra.mxu0 0.0
    %9422 = vmatprep.subr.mxu0 0.0
    %9423 = vmatpush2.msra.mxu0 0.0
    %9424 = vmatprep.subr.mxu0 0.0
    %9425 = vmatpush2.msra.mxu0 0.0
    %9426 = vmatprep.subr.mxu0 0.0
    %9427 = vmatpush2.msra.mxu0 0.0
    %9428 = vmatprep.mubr.f32.mxu0 0.0
    %9429 = vmatmul.mubr.f32.gmra.mxu0 %v9362
    %v9430 = vpop.f32.mrf.mxu0
    %v9431 = vadd.f32 0.0, %v9430
    %v9432 = vpop.f32.mrf.mxu0
    %9433 = vdwg.mxu0
    %v9434 = vadd.f32 %v8134, %v9431
    %v9435 = vxor.u32 %v9434, 2147483648
    %v9436 = vmul.f32 %v9435, 1.442695
    %v9437 = vpow.pop %v9436
    %v9438 = vadd.f32 %v9437, 1.0
    %v9439 = vrcp.pop %v9438
    %v9440 = vmul.f32 1.0, %v9439
    %v9441 = vtanh.pop %v9434
    %v9442 = vmul.f32 %v9440, %v9249
    %9444 = vrot.lane.b32.xlu0 %v9441, 64
    %v9445 = vpop.permute.xlu0 %9444
    %v9447 = vmul.f32 %v9440, %v9445
    %9449 = vrot.lane.b32.xlu0 %v9447, 32
    %v9450 = vpop.permute.xlu0 %9449
    %v9452 = vadd.f32 %v9442, %v9450
    %v9453 = vtanh.pop %v9452
    %9455 = vrot.lane.b32.xlu0 %v9453, 64
    %v9456 = vpop.permute.xlu0 %9455
    %v9458 = vmul.f32 %v9440, %v9456
    %9460 = vrot.lane.b32.xlu0 %v9458, 32
    %v9461 = vpop.permute.xlu0 %9460
    %9464 = vrot.lane.b32.xlu0 %v9361, 64
    %v9465 = vpop.permute.xlu0 %9464
    %v9467 = vsel %vm8139, %v9461, %v9465
    %v9469 = vsel %vm8249, %v9467, 0
    %9471 = vmatprep.subr.mxu0 0.0
    %9472 = vmatpush1.msra.mxu0 0.0
    %9473 = vmatprep.subr.mxu0 0.0
    %9474 = vmatpush1.msra.mxu0 0.0
    %9475 = vmatprep.subr.mxu0 0.0
    %9476 = vmatpush1.msra.mxu0 0.0
    %9477 = vmatprep.subr.mxu0 0.0
    %9478 = vmatpush1.msra.mxu0 0.0
    %9479 = vmatprep.subr.mxu0 0.0
    %9480 = vmatpush1.msra.mxu0 0.0
    %9481 = vmatprep.subr.mxu0 0.0
    %9482 = vmatpush1.msra.mxu0 0.0
    %9483 = vmatprep.subr.mxu0 0.0
    %9484 = vmatpush1.msra.mxu0 0.0
    %9485 = vmatprep.subr.mxu0 0.0
    %9486 = vmatpush1.msra.mxu0 0.0
    %9487 = vmatprep.subr.mxu0 0.0
    %9488 = vmatpush1.msra.mxu0 %v8100
    %9489 = vmatprep.subr.mxu0 0.0
    %9490 = vmatpush1.msra.mxu0 %v8099
    %9491 = vmatprep.subr.mxu0 0.0
    %9492 = vmatpush1.msra.mxu0 %v8098
    %9493 = vmatprep.subr.mxu0 0.0
    %9494 = vmatpush1.msra.mxu0 %v8097
    %9495 = vmatprep.subr.mxu0 0.0
    %9496 = vmatpush1.msra.mxu0 %v8096
    %9497 = vmatprep.subr.mxu0 0.0
    %9498 = vmatpush1.msra.mxu0 %v8095
    %9499 = vmatprep.subr.mxu0 0.0
    %9500 = vmatpush1.msra.mxu0 %v8094
    %9501 = vmatprep.subr.mxu0 0.0
    %9502 = vmatpush1.msra.mxu0 %v8093
    %9503 = vmatprep.subr.mxu0 0.0
    %9504 = vmatpush2.msra.mxu0 0.0
    %9505 = vmatprep.subr.mxu0 0.0
    %9506 = vmatpush2.msra.mxu0 0.0
    %9507 = vmatprep.subr.mxu0 0.0
    %9508 = vmatpush2.msra.mxu0 0.0
    %9509 = vmatprep.subr.mxu0 0.0
    %9510 = vmatpush2.msra.mxu0 0.0
    %9511 = vmatprep.subr.mxu0 0.0
    %9512 = vmatpush2.msra.mxu0 0.0
    %9513 = vmatprep.subr.mxu0 0.0
    %9514 = vmatpush2.msra.mxu0 0.0
    %9515 = vmatprep.subr.mxu0 0.0
    %9516 = vmatpush2.msra.mxu0 0.0
    %9517 = vmatprep.subr.mxu0 0.0
    %9518 = vmatpush2.msra.mxu0 0.0
    %9519 = vmatprep.subr.mxu0 0.0
    %9520 = vmatpush2.msra.mxu0 0.0
    %9521 = vmatprep.subr.mxu0 0.0
    %9522 = vmatpush2.msra.mxu0 0.0
    %9523 = vmatprep.subr.mxu0 0.0
    %9524 = vmatpush2.msra.mxu0 0.0
    %9525 = vmatprep.subr.mxu0 0.0
    %9526 = vmatpush2.msra.mxu0 0.0
    %9527 = vmatprep.subr.mxu0 0.0
    %9528 = vmatpush2.msra.mxu0 0.0
    %9529 = vmatprep.subr.mxu0 0.0
    %9530 = vmatpush2.msra.mxu0 0.0
    %9531 = vmatprep.subr.mxu0 0.0
    %9532 = vmatpush2.msra.mxu0 0.0
    %9533 = vmatprep.subr.mxu0 0.0
    %9534 = vmatpush2.msra.mxu0 0.0
    %9535 = vmatprep.mubr.f32.mxu0 0.0
    %9536 = vmatmul.mubr.f32.gmra.mxu0 %v9469
    %v9537 = vpop.f32.mrf.mxu0
    %v9538 = vadd.f32 %v8247, %v9537
    %v9539 = vpop.f32.mrf.mxu0
    %9540 = vdwg.mxu0
    %v9541 = vxor.u32 %v9538, 2147483648
    %v9542 = vmul.f32 %v9541, 1.442695
    %v9543 = vpow.pop %v9542
    %v9544 = vadd.f32 %v9543, 1.0
    %v9545 = vrcp.pop %v9544
    %v9546 = vmul.f32 1.0, %v9545
    %v9547 = vtanh.pop %v9538
    %v9548 = vmul.f32 %v9546, %v9355
    %9550 = vrot.lane.b32.xlu0 %v9547, 64
    %v9551 = vpop.permute.xlu0 %9550
    %v9553 = vmul.f32 %v9546, %v9551
    %9555 = vrot.lane.b32.xlu0 %v9553, 32
    %v9556 = vpop.permute.xlu0 %9555
    %v9558 = vadd.f32 %v9548, %v9556
    %v9559 = vtanh.pop %v9558
    %9561 = vrot.lane.b32.xlu0 %v9559, 64
    %v9562 = vpop.permute.xlu0 %9561
    %v9564 = vmul.f32 %v9546, %v9562
    %v9565 = vsel %vm8139, %v9461, 0
    %9567 = vmatprep.subr.mxu0 0.0
    %9568 = vmatpush1.msra.mxu0 0.0
    %9569 = vmatprep.subr.mxu0 0.0
    %9570 = vmatpush1.msra.mxu0 0.0
    %9571 = vmatprep.subr.mxu0 0.0
    %9572 = vmatpush1.msra.mxu0 0.0
    %9573 = vmatprep.subr.mxu0 0.0
    %9574 = vmatpush1.msra.mxu0 0.0
    %9575 = vmatprep.subr.mxu0 0.0
    %9576 = vmatpush1.msra.mxu0 0.0
    %9577 = vmatprep.subr.mxu0 0.0
    %9578 = vmatpush1.msra.mxu0 0.0
    %9579 = vmatprep.subr.mxu0 0.0
    %9580 = vmatpush1.msra.mxu0 0.0
    %9581 = vmatprep.subr.mxu0 0.0
    %9582 = vmatpush1.msra.mxu0 0.0
    %9583 = vmatprep.subr.mxu0 0.0
    %9584 = vmatpush1.msra.mxu0 0.0
    %9585 = vmatprep.subr.mxu0 0.0
    %9586 = vmatpush1.msra.mxu0 0.0
    %9587 = vmatprep.subr.mxu0 0.0
    %9588 = vmatpush1.msra.mxu0 0.0
    %9589 = vmatprep.subr.mxu0 0.0
    %9590 = vmatpush1.msra.mxu0 0.0
    %9591 = vmatprep.subr.mxu0 0.0
    %9592 = vmatpush1.msra.mxu0 %v8092
    %9593 = vmatprep.subr.mxu0 0.0
    %9594 = vmatpush1.msra.mxu0 %v8091
    %9595 = vmatprep.subr.mxu0 0.0
    %9596 = vmatpush1.msra.mxu0 %v8090
    %9597 = vmatprep.subr.mxu0 0.0
    %9598 = vmatpush1.msra.mxu0 %v8089
    %9599 = vmatprep.subr.mxu0 0.0
    %9600 = vmatpush2.msra.mxu0 0.0
    %9601 = vmatprep.subr.mxu0 0.0
    %9602 = vmatpush2.msra.mxu0 0.0
    %9603 = vmatprep.subr.mxu0 0.0
    %9604 = vmatpush2.msra.mxu0 0.0
    %9605 = vmatprep.subr.mxu0 0.0
    %9606 = vmatpush2.msra.mxu0 0.0
    %9607 = vmatprep.subr.mxu0 0.0
    %9608 = vmatpush2.msra.mxu0 0.0
    %9609 = vmatprep.subr.mxu0 0.0
    %9610 = vmatpush2.msra.mxu0 0.0
    %9611 = vmatprep.subr.mxu0 0.0
    %9612 = vmatpush2.msra.mxu0 0.0
    %9613 = vmatprep.subr.mxu0 0.0
    %9614 = vmatpush2.msra.mxu0 0.0
    %9615 = vmatprep.subr.mxu0 0.0
    %9616 = vmatpush2.msra.mxu0 0.0
    %9617 = vmatprep.subr.mxu0 0.0
    %9618 = vmatpush2.msra.mxu0 0.0
    %9619 = vmatprep.subr.mxu0 0.0
    %9620 = vmatpush2.msra.mxu0 0.0
    %9621 = vmatprep.subr.mxu0 0.0
    %9622 = vmatpush2.msra.mxu0 0.0
    %9623 = vmatprep.subr.mxu0 0.0
    %9624 = vmatpush2.msra.mxu0 0.0
    %9625 = vmatprep.subr.mxu0 0.0
    %9626 = vmatpush2.msra.mxu0 0.0
    %9627 = vmatprep.subr.mxu0 0.0
    %9628 = vmatpush2.msra.mxu0 0.0
    %9629 = vmatprep.subr.mxu0 0.0
    %9630 = vmatpush2.msra.mxu0 0.0
    %9631 = vmatprep.mubr.f32.mxu0 0.0
    %9632 = vmatmul.mubr.f32.gmra.mxu0 %v9565
    %v9633 = vpop.f32.mrf.mxu0
    %v9634 = vadd.f32 0.0, %v9633
    %v9635 = vpop.f32.mrf.mxu0
    %9636 = vdwg.mxu0
    %v9637 = vadd.f32 %v8138, %v9634
    %v9638 = vxor.u32 %v9637, 2147483648
    %v9639 = vmul.f32 %v9638, 1.442695
    %v9640 = vpow.pop %v9639
    %v9641 = vadd.f32 %v9640, 1.0
    %v9642 = vrcp.pop %v9641
    %v9643 = vmul.f32 1.0, %v9642
    %v9644 = vtanh.pop %v9637
    %v9645 = vmul.f32 %v9643, %v9452
    %9647 = vrot.lane.b32.xlu0 %v9644, 64
    %v9648 = vpop.permute.xlu0 %9647
    %v9650 = vmul.f32 %v9643, %v9648
    %9652 = vrot.lane.b32.xlu0 %v9650, 32
    %v9653 = vpop.permute.xlu0 %9652
    %v9655 = vadd.f32 %v9645, %v9653
    %v9656 = vtanh.pop %v9655
    %9658 = vrot.lane.b32.xlu0 %v9656, 64
    %v9659 = vpop.permute.xlu0 %9658
    %v9661 = vmul.f32 %v9643, %v9659
    %9663 = vrot.lane.b32.xlu0 %v9661, 32
    %v9664 = vpop.permute.xlu0 %9663
    %9667 = vrot.lane.b32.xlu0 %v9564, 64
    %v9668 = vpop.permute.xlu0 %9667
    %v9670 = vsel %vm8139, %v9664, %v9668
    %v9672 = vsel %vm8249, %v9670, 0
    %9674 = vmatprep.subr.mxu0 0.0
    %9675 = vmatpush1.msra.mxu0 0.0
    %9676 = vmatprep.subr.mxu0 0.0
    %9677 = vmatpush1.msra.mxu0 0.0
    %9678 = vmatprep.subr.mxu0 0.0
    %9679 = vmatpush1.msra.mxu0 0.0
    %9680 = vmatprep.subr.mxu0 0.0
    %9681 = vmatpush1.msra.mxu0 0.0
    %9682 = vmatprep.subr.mxu0 0.0
    %9683 = vmatpush1.msra.mxu0 0.0
    %9684 = vmatprep.subr.mxu0 0.0
    %9685 = vmatpush1.msra.mxu0 0.0
    %9686 = vmatprep.subr.mxu0 0.0
    %9687 = vmatpush1.msra.mxu0 0.0
    %9688 = vmatprep.subr.mxu0 0.0
    %9689 = vmatpush1.msra.mxu0 0.0
    %9690 = vmatprep.subr.mxu0 0.0
    %9691 = vmatpush1.msra.mxu0 %v8100
    %9692 = vmatprep.subr.mxu0 0.0
    %9693 = vmatpush1.msra.mxu0 %v8099
    %9694 = vmatprep.subr.mxu0 0.0
    %9695 = vmatpush1.msra.mxu0 %v8098
    %9696 = vmatprep.subr.mxu0 0.0
    %9697 = vmatpush1.msra.mxu0 %v8097
    %9698 = vmatprep.subr.mxu0 0.0
    %9699 = vmatpush1.msra.mxu0 %v8096
    %9700 = vmatprep.subr.mxu0 0.0
    %9701 = vmatpush1.msra.mxu0 %v8095
    %9702 = vmatprep.subr.mxu0 0.0
    %9703 = vmatpush1.msra.mxu0 %v8094
    %9704 = vmatprep.subr.mxu0 0.0
    %9705 = vmatpush1.msra.mxu0 %v8093
    %9706 = vmatprep.subr.mxu0 0.0
    %9707 = vmatpush2.msra.mxu0 0.0
    %9708 = vmatprep.subr.mxu0 0.0
    %9709 = vmatpush2.msra.mxu0 0.0
    %9710 = vmatprep.subr.mxu0 0.0
    %9711 = vmatpush2.msra.mxu0 0.0
    %9712 = vmatprep.subr.mxu0 0.0
    %9713 = vmatpush2.msra.mxu0 0.0
    %9714 = vmatprep.subr.mxu0 0.0
    %9715 = vmatpush2.msra.mxu0 0.0
    %9716 = vmatprep.subr.mxu0 0.0
    %9717 = vmatpush2.msra.mxu0 0.0
    %9718 = vmatprep.subr.mxu0 0.0
    %9719 = vmatpush2.msra.mxu0 0.0
    %9720 = vmatprep.subr.mxu0 0.0
    %9721 = vmatpush2.msra.mxu0 0.0
    %9722 = vmatprep.subr.mxu0 0.0
    %9723 = vmatpush2.msra.mxu0 0.0
    %9724 = vmatprep.subr.mxu0 0.0
    %9725 = vmatpush2.msra.mxu0 0.0
    %9726 = vmatprep.subr.mxu0 0.0
    %9727 = vmatpush2.msra.mxu0 0.0
    %9728 = vmatprep.subr.mxu0 0.0
    %9729 = vmatpush2.msra.mxu0 0.0
    %9730 = vmatprep.subr.mxu0 0.0
    %9731 = vmatpush2.msra.mxu0 0.0
    %9732 = vmatprep.subr.mxu0 0.0
    %9733 = vmatpush2.msra.mxu0 0.0
    %9734 = vmatprep.subr.mxu0 0.0
    %9735 = vmatpush2.msra.mxu0 0.0
    %9736 = vmatprep.subr.mxu0 0.0
    %9737 = vmatpush2.msra.mxu0 0.0
    %9738 = vmatprep.mubr.f32.mxu0 0.0
    %9739 = vmatmul.mubr.f32.gmra.mxu0 %v9672
    %v9740 = vpop.f32.mrf.mxu0
    %v9741 = vadd.f32 %v8247, %v9740
    %v9742 = vpop.f32.mrf.mxu0
    %9743 = vdwg.mxu0
    %v9744 = vxor.u32 %v9741, 2147483648
    %v9745 = vmul.f32 %v9744, 1.442695
    %v9746 = vpow.pop %v9745
    %v9747 = vadd.f32 %v9746, 1.0
    %v9748 = vrcp.pop %v9747
    %v9749 = vmul.f32 1.0, %v9748
    %v9750 = vtanh.pop %v9741
    %v9751 = vmul.f32 %v9749, %v9558
    %9753 = vrot.lane.b32.xlu0 %v9750, 64
    %v9754 = vpop.permute.xlu0 %9753
    %v9756 = vmul.f32 %v9749, %v9754
    %9758 = vrot.lane.b32.xlu0 %v9756, 32
    %v9759 = vpop.permute.xlu0 %9758
    %v9761 = vadd.f32 %v9751, %v9759
    %v9762 = vtanh.pop %v9761
    %9764 = vrot.lane.b32.xlu0 %v9762, 64
    %v9765 = vpop.permute.xlu0 %9764
    %v9767 = vmul.f32 %v9749, %v9765
    %9769 = vrot.lane.b32.xlu0 %v9767, 32
    %v9770 = vpop.permute.xlu0 %9769
    %9772 = vst.msk [vmem:[#allocation2] sm:$0xff] %vm8139, %v9770
    // Predicated region
    $region58: #{_lambda_.1} parent=1 // pred_check
      _
    $region59: #{_lambda_.1} parent=1 // pred_check_branch
      %9774 = sbr.rel (0) target = $region61
    $region60: #{_lambda_.1} parent=1 // pred_region
      %s9776 = ssub.s32 128, 128
      %9777 = vsyncadd [#allocation3], %s9776
      %s9779 = sshll.u32 [#allocation2], 4
      %s9780 = int_to_ptr.vmem [resolvable:$true] %s9779
      %9782 = dma.vmem_to_hbm [thread:$0]  %s9780, 128, %s14, [#allocation3]
    $region61: #{_lambda_.1} parent=1 // pred_fallthru
      _
    // Predicated region
    $region62: #{_lambda_.1} parent=1 // pred_check
      _
    $region63: #{_lambda_.1} parent=1 // pred_check_branch
      %9784 = sbr.rel (0) target = $region65
    $region64: #{_lambda_.1} parent=1 // pred_region
      %9785 = dma.done [#allocation3], 128
    $region65: #{_lambda_.1} parent=1 // pred_fallthru
      _
    %9786 = vsyncpa [#allocation3], 1

</llo_original>
